<compile_context>
chip_gen: v5e
topology: v5e:2x2
jax: 0.10.0
libtpu: 0.0.40
codegen_flags: <defaults>
</compile_context>

<pallas_src>
import functools

import jax
import jax.numpy as jnp
from jax import lax
from jax.experimental import pallas as pl
from jax.experimental.pallas import tpu as pltpu


def _round_up(x, m):
    return -(-x // m) * m


def _gnn_layer_kernel(idsc_ref, idsr_ref, feat_ref, rwct_ref, rbc_ref, rvt_ref,
                      nwct_ref, nbc_ref, nvt_ref, bias_ref, out_ref,
                      hsrc_ref, hdst_ref, sc_ref, msge_ref,
                      *, mem_size, out_feats, node_chunk):
    eb = pl.program_id(0)          # edge block (outer)
    r = pl.program_id(1)           # relation   (inner)
    n_eb = pl.num_programs(0)
    n_r = pl.num_programs(1)

    te = msge_ref.shape[0]
    o_pad = msge_ref.shape[1]
    n_pad = out_ref.shape[0]

    @pl.when(jnp.logical_and(eb == 0, r == 0))
    def _init_output():
        out_ref[...] = jnp.zeros_like(out_ref)

    # ---- once per edge block (r == 0): one-hots, gathers, msg accumulator ----
    @pl.when(r == 0)
    def _edge_block_setup():
        ids_c = idsc_ref[...]                               # (TE, 8) int32
        src_col = ids_c[:, 0:1]
        dst_col = ids_c[:, 1:2]
        valid_col = (ids_c[:, 2:3] >= 0).astype(jnp.float32)  # padded edges: etype=-1

        feat = feat_ref[...]                                # (N, I) bf16, resident
        iota_n = lax.broadcasted_iota(jnp.int32, (te, n_pad), 1)
        g_src = jnp.where(iota_n == src_col, 1.0, 0.0).astype(jnp.bfloat16)
        g_dst = jnp.where(iota_n == dst_col, 1.0, 0.0).astype(jnp.bfloat16)
        # One-hot row gathers are exact: rows of feat (bf16) are copied verbatim.
        hsrc_ref[...] = jnp.dot(g_src, feat,
                                preferred_element_type=jnp.float32).astype(jnp.bfloat16)
        hdst_ref[...] = jnp.dot(g_dst, feat,
                                preferred_element_type=jnp.float32).astype(jnp.bfloat16)

        # Scatter-orientation dst one-hot (N, TE) built directly from the
        # (1, TE) id rows -> plain (N,TE)x(TE,O) scatter matmul, no XLU transpose.
        ids_r = idsr_ref[...]                               # (8, TE) int32
        dst_row = ids_r[1:2, :]
        et_row = ids_r[2:3, :]
        iota_sc = lax.broadcasted_iota(jnp.int32, (n_pad, te), 0)
        hit = jnp.logical_and(iota_sc == dst_row, et_row >= 0)
        sc_ref[...] = jnp.where(hit, 1.0, 0.0).astype(jnp.bfloat16)

        # Per-edge message accumulator; lane `out_feats` carries the edge-valid
        # flag so the in-degree count is produced by the same scatter matmul.
        col_iota = lax.broadcasted_iota(jnp.int32, (te, o_pad), 1)
        msge_ref[...] = jnp.where(col_iota == out_feats, valid_col, 0.0)

    # ---- per relation: messages with relation r's MemoryEncoding ----
    match = (idsc_ref[...][:, 2:3] == r).astype(jnp.float32)       # (TE, 1)
    coef = jnp.dot(hdst_ref[...], rwct_ref[0],
                   preferred_element_type=jnp.float32) + rbc_ref[0]
    coef = jnp.where(coef > 0, coef, 0.2 * coef)                    # LeakyReLU 0.2
    u = jnp.dot(hsrc_ref[...], rvt_ref[0],
                preferred_element_type=jnp.float32)                 # (TE, M*O_pad)
    msg = jnp.zeros((te, o_pad), jnp.float32)
    for m in range(mem_size):                                       # static unroll
        msg = msg + coef[:, m:m + 1] * u[:, m * o_pad:(m + 1) * o_pad]
    msge_ref[...] += match * msg

    # ---- once per edge block (last relation): single scatter of all relations ----
    @pl.when(r == n_r - 1)
    def _scatter():
        out_ref[...] += jnp.dot(sc_ref[...], msge_ref[...].astype(jnp.bfloat16),
                                preferred_element_type=jnp.float32)

    # ---- last grid step: mean + bias + self-loop, chunked over node tiles ----
    @pl.when(jnp.logical_and(eb == n_eb - 1, r == n_r - 1))
    def _finalize():
        for c0 in range(0, n_pad, node_chunk):                      # static chunks
            acc = out_ref[c0:c0 + node_chunk, :]
            cnt = acc[:, out_feats:out_feats + 1]                   # in-degree
            inv = pl.reciprocal(jnp.maximum(cnt, 1.0), approx=True)
            mean_msg = jnp.where(cnt > 0.0, acc * inv, 0.0)         # DGL mean: 0 if deg==0

            fc = feat_ref[c0:c0 + node_chunk, :]
            coef_n = jnp.dot(fc, nwct_ref[...],
                             preferred_element_type=jnp.float32) + nbc_ref[...]
            coef_n = jnp.where(coef_n > 0, coef_n, 0.2 * coef_n)
            u_n = jnp.dot(fc, nvt_ref[...], preferred_element_type=jnp.float32)
            h_self = jnp.zeros((node_chunk, o_pad), jnp.float32)
            for m in range(mem_size):
                h_self = h_self + coef_n[:, m:m + 1] * u_n[:, m * o_pad:(m + 1) * o_pad]

            # TODO(synk): optional LayerNorm / activation / dropout>0 paths of
            # the module are disabled by default and not lowered here.
            out_ref[c0:c0 + node_chunk, :] = mean_msg + bias_ref[...] + h_self


def gnn_layer_forward(feat, src_ids, dst_ids, etypes, params, *,
                      edge_tile=256, node_chunk=128):
    n_nodes, in_feats = feat.shape
    out_feats = params["h_bias"].shape[0]
    mem_size = params["node_bc"].shape[0]
    num_rels = params["rel_wc"].shape[0]
    n_edges = src_ids.shape[0]

    # Lane-dense padded sizes (multiples of 128); one spare output lane is
    # reserved for the in-degree count.
    n_pad = _round_up(max(n_nodes, 128), 128)
    i_pad = _round_up(max(in_feats, 128), 128)
    o_pad = _round_up(max(out_feats + 1, 128), 128)
    e_pad = _round_up(max(n_edges, edge_tile), edge_tile)
    node_chunk = min(node_chunk, n_pad)
    assert n_pad % node_chunk == 0

    f32, bf16 = jnp.float32, jnp.bfloat16

    feat_p = jnp.zeros((n_pad, i_pad), f32).at[:n_nodes, :in_feats].set(
        feat.astype(f32)).astype(bf16)

    # Edge ids in both layouts: column-major (edge on sublanes) for the gather
    # one-hots / relation match, row-major (edge on lanes) for the transposed
    # scatter one-hot. Padded edges carry -1 and never match.
    ids_col = jnp.full((e_pad, 8), -1, jnp.int32)
    ids_col = ids_col.at[:n_edges, 0].set(src_ids.astype(jnp.int32))
    ids_col = ids_col.at[:n_edges, 1].set(dst_ids.astype(jnp.int32))
    ids_col = ids_col.at[:n_edges, 2].set(etypes.astype(jnp.int32))
    ids_row = jnp.full((8, e_pad), -1, jnp.int32)
    ids_row = ids_row.at[0, :n_edges].set(src_ids.astype(jnp.int32))
    ids_row = ids_row.at[1, :n_edges].set(dst_ids.astype(jnp.int32))
    ids_row = ids_row.at[2, :n_edges].set(etypes.astype(jnp.int32))

    # MXU-friendly packed / zero-padded weights (tiny one-time transposes), bf16.
    rel_wct = jnp.transpose(params["rel_wc"], (0, 2, 1)).astype(f32)          # (R,I,M)
    rel_wct = jnp.pad(rel_wct, ((0, 0), (0, i_pad - in_feats), (0, 0))).astype(bf16)
    rel_bc = params["rel_bc"].reshape(num_rels, 1, mem_size).astype(f32)

    rel_vt = jnp.transpose(
        params["rel_ww"].reshape(num_rels, out_feats, in_feats, mem_size),
        (0, 2, 3, 1)).astype(f32)                                             # (R,I,M,O)
    rel_vt = jnp.pad(rel_vt, ((0, 0), (0, i_pad - in_feats), (0, 0),
                              (0, o_pad - out_feats)))
    rel_vt = rel_vt.reshape(num_rels, i_pad, mem_size * o_pad).astype(bf16)

    node_wct = jnp.pad(params["node_wc"].T.astype(f32),
                       ((0, i_pad - in_feats), (0, 0))).astype(bf16)          # (I,M)
    node_bc = params["node_bc"].reshape(1, mem_size).astype(f32)
    node_vt = jnp.transpose(
        params["node_ww"].reshape(out_feats, in_feats, mem_size),
        (1, 2, 0)).astype(f32)                                                # (I,M,O)
    node_vt = jnp.pad(node_vt, ((0, i_pad - in_feats), (0, 0),
                                (0, o_pad - out_feats)))
    node_vt = node_vt.reshape(i_pad, mem_size * o_pad).astype(bf16)

    h_bias = jnp.zeros((1, o_pad), f32).at[0, :out_feats].set(
        params["h_bias"].astype(f32))

    grid = (e_pad // edge_tile, num_rels)                  # relation innermost
    kernel = functools.partial(_gnn_layer_kernel, mem_size=mem_size,
                               out_feats=out_feats, node_chunk=node_chunk)

    out = pl.pallas_call(
        kernel,
        out_shape=jax.ShapeDtypeStruct((n_pad, o_pad), jnp.float32),
        grid_spec=pltpu.PrefetchScalarGridSpec(
            num_scalar_prefetch=0,
            grid=grid,
            in_specs=[
                pl.BlockSpec((edge_tile, 8), lambda e, r: (e, 0)),            # edge ids (cols)
                pl.BlockSpec((8, edge_tile), lambda e, r: (0, e)),            # edge ids (rows)
                pl.BlockSpec((n_pad, i_pad), lambda e, r: (0, 0)),            # feat (resident)
                pl.BlockSpec((1, i_pad, mem_size), lambda e, r: (r, 0, 0)),   # rel Wc^T
                pl.BlockSpec((1, 1, mem_size), lambda e, r: (r, 0, 0)),       # rel bc
                pl.BlockSpec((1, i_pad, mem_size * o_pad),
                             lambda e, r: (r, 0, 0)),                         # rel Vt
                pl.BlockSpec((i_pad, mem_size), lambda e, r: (0, 0)),         # node Wc^T
                pl.BlockSpec((1, mem_size), lambda e, r: (0, 0)),             # node bc
                pl.BlockSpec((i_pad, mem_size * o_pad), lambda e, r: (0, 0)),  # node Vt
                pl.BlockSpec((1, o_pad), lambda e, r: (0, 0)),                # h_bias
            ],
            out_specs=pl.BlockSpec((n_pad, o_pad), lambda e, r: (0, 0)),
            scratch_shapes=[
                pltpu.VMEM((edge_tile, i_pad), jnp.bfloat16),   # gathered h_src
                pltpu.VMEM((edge_tile, i_pad), jnp.bfloat16),   # gathered h_dst
                pltpu.VMEM((n_pad, edge_tile), jnp.bfloat16),   # scatter one-hot (N,TE)
                pltpu.VMEM((edge_tile, o_pad), jnp.float32),    # per-edge msg + count lane
            ],
        ),
        compiler_params=pltpu.CompilerParams(
            # Both axes carry accumulator state (msge across relations, out
            # across edge blocks) -> must stay sequential. v7x dual-core use
            # would require per-core node-partitioned accumulators.
            dimension_semantics=("arbitrary", "arbitrary"),
            vmem_limit_bytes=32 * 1024 * 1024,
        ),
    )(ids_col, ids_row, feat_p, rel_wct, rel_bc, rel_vt,
      node_wct, node_bc, node_vt, h_bias)

    return out[:n_nodes, :out_feats]


def gnn_layer_reference(feat, src_ids, dst_ids, etypes, params):
    """Pure-JAX mirror of the PyTorch GNNLayer.forward (default flags), f32."""
    n_nodes, in_feats = feat.shape
    out_feats = params["h_bias"].shape[0]
    num_rels = params["rel_wc"].shape[0]
    hp = jax.lax.Precision.HIGHEST

    def mem_encode(h_dst, h_src, wc, bc, ww):
        coef = jnp.dot(h_dst, wc.T, precision=hp) + bc
        coef = jnp.where(coef > 0, coef, 0.2 * coef)
        w = jnp.dot(coef, ww.T, precision=hp).reshape(-1, out_feats, in_feats)
        return jnp.einsum('boi,bi->bo', w, h_src, precision=hp)

    h_dst = feat[dst_ids]
    h_src = feat[src_ids]
    msgs = jnp.zeros((src_ids.shape[0], out_feats), jnp.float32)
    for r in range(num_rels):
        m_r = mem_encode(h_dst, h_src, params["rel_wc"][r], params["rel_bc"][r],
                         params["rel_ww"][r])
        msgs = jnp.where((etypes == r)[:, None], m_r, msgs)

    msg_sum = jnp.zeros((n_nodes, out_feats), jnp.float32).at[dst_ids].add(msgs)
    deg = jnp.zeros((n_nodes,), jnp.float32).at[dst_ids].add(1.0)
    node_rep = jnp.where(deg[:, None] > 0,
                         msg_sum / jnp.maximum(deg, 1.0)[:, None], 0.0)
    node_rep = node_rep + params["h_bias"][None, :]
    node_rep = node_rep + mem_encode(feat, feat, params["node_wc"],
                                     params["node_bc"], params["node_ww"])
    return node_rep


if __name__ == "__main__":
    key = jax.random.PRNGKey(0)
    ks = jax.random.split(key, 11)

    n_nodes, in_feats, out_feats, mem_size, num_rels, n_edges = 64, 32, 32, 16, 3, 200

    feat = jax.random.normal(ks[0], (n_nodes, in_feats), jnp.float32)
    src_ids = jax.random.randint(ks[1], (n_edges,), 0, n_nodes, jnp.int32)
    dst_ids = jax.random.randint(ks[2], (n_edges,), 0, n_nodes, jnp.int32)
    etypes = jax.random.randint(ks[3], (n_edges,), 0, num_rels, jnp.int32)

    s = 0.1  # keep activations O(1) for a tight numerical check
    params = {
        "rel_wc":  s * jax.random.normal(ks[4], (num_rels, mem_size, in_feats), jnp.float32),
        "rel_bc":  s * jax.random.normal(ks[5], (num_rels, mem_size), jnp.float32),
        "rel_ww":  s * jax.random.normal(ks[6], (num_rels, out_feats * in_feats, mem_size), jnp.float32),
        "node_wc": s * jax.random.normal(ks[7], (mem_size, in_feats), jnp.float32),
        "node_bc": s * jax.random.normal(ks[8], (mem_size,), jnp.float32),
        "node_ww": s * jax.random.normal(ks[9], (out_feats * in_feats, mem_size), jnp.float32),
        "h_bias":  s * jax.random.normal(ks[10], (out_feats,), jnp.float32),
    }

    fwd = jax.jit(gnn_layer_forward)
    out = fwd(feat, src_ids, dst_ids, etypes, params)
    jax.block_until_ready(out)

    ref = gnn_layer_reference(feat, src_ids, dst_ids, etypes, params)
    assert out.shape == (n_nodes, out_feats), out.shape
    max_err = float(jnp.max(jnp.abs(out - ref)))
    # bf16 MXU inputs with f32 accumulation (per perf review) vs. an f32
    # HIGHEST-precision reference -> loose tolerance.
    assert max_err < 5e-2, f"max abs err {max_err}"

    print("KERNEL_OK")
</pallas_src>

<mosaic_0001>
module attributes {stable_mosaic.version = 11 : i64} {
  func.func @_gnn_layer_kernel(%arg0: i32, %arg1: i32, %arg2: memref<256x8xi32, #tpu.memory_space<vmem>>, %arg3: memref<8x256xi32, #tpu.memory_space<vmem>>, %arg4: memref<128x128xbf16, #tpu.memory_space<vmem>>, %arg5: memref<1x128x16xbf16, #tpu.memory_space<vmem>>, %arg6: memref<1x1x16xf32, #tpu.memory_space<vmem>>, %arg7: memref<1x128x2048xbf16, #tpu.memory_space<vmem>>, %arg8: memref<128x16xbf16, #tpu.memory_space<vmem>>, %arg9: memref<1x16xf32, #tpu.memory_space<vmem>>, %arg10: memref<128x2048xbf16, #tpu.memory_space<vmem>>, %arg11: memref<1x128xf32, #tpu.memory_space<vmem>>, %arg12: memref<128x128xf32, #tpu.memory_space<vmem>>, %arg13: memref<256x128xbf16, #tpu.memory_space<vmem>>, %arg14: memref<256x128xbf16, #tpu.memory_space<vmem>>, %arg15: memref<128x256xbf16, #tpu.memory_space<vmem>>, %arg16: memref<256x128xf32, #tpu.memory_space<vmem>>) attributes {dimension_semantics = [#tpu.dimension_semantics<arbitrary>, #tpu.dimension_semantics<arbitrary>], iteration_bounds = array<i64: 1, 3>, scalar_prefetch = 0 : i64, scratch_operands = 4 : i64, tpu.core_type = #tpu.core_type<tc>, window_params = [{transform_indices = @transform_0, window_bounds = array<i64: 256, 8>}, {transform_indices = @transform_1, window_bounds = array<i64: 8, 256>}, {pipeline_mode = #tpu.pipeline_mode<synchronous>, transform_indices = @transform_2, window_bounds = array<i64: 128, 128>}, {transform_indices = @transform_3, window_bounds = array<i64: 1, 128, 16>}, {transform_indices = @transform_4, window_bounds = array<i64: 1, 1, 16>}, {transform_indices = @transform_5, window_bounds = array<i64: 1, 128, 2048>}, {pipeline_mode = #tpu.pipeline_mode<synchronous>, transform_indices = @transform_6, window_bounds = array<i64: 128, 16>}, {pipeline_mode = #tpu.pipeline_mode<synchronous>, transform_indices = @transform_7, window_bounds = array<i64: 1, 16>}, {pipeline_mode = #tpu.pipeline_mode<synchronous>, transform_indices = @transform_8, window_bounds = array<i64: 128, 2048>}, {pipeline_mode = #tpu.pipeline_mode<synchronous>, transform_indices = @transform_9, window_bounds = array<i64: 1, 128>}, {pipeline_mode = #tpu.pipeline_mode<synchronous>, transform_indices = @transform_10, window_bounds = array<i64: 128, 128>}]} {
    %c0_i32 = arith.constant 0 : i32
    %0 = arith.cmpi eq, %arg0, %c0_i32 : i32
    %c0_i32_0 = arith.constant 0 : i32
    %1 = arith.cmpi eq, %arg1, %c0_i32_0 : i32
    %2 = arith.andi %0, %1 : i1
    %3 = arith.extui %2 : i1 to i32
    %c0_i32_1 = arith.constant 0 : i32
    %4 = arith.cmpi ne, %3, %c0_i32_1 : i32
    scf.if %4 {
      %cst_30 = arith.constant 0.000000e+00 : f32
      %125 = vector.broadcast %cst_30 : f32 to vector<128x128xf32>
      %c0_31 = arith.constant 0 : index
      %c0_32 = arith.constant 0 : index
      %126 = vector.load %arg12[%c0_31, %c0_32] : memref<128x128xf32, #tpu.memory_space<vmem>>, vector<128x128xf32>
      tpu.vector_store %arg12[%c0_31, %c0_32], %125 {strides = array<i32>} : memref<128x128xf32, #tpu.memory_space<vmem>>, vector<128x128xf32>,
    } else {
    }
    %c0_i32_2 = arith.constant 0 : i32
    %5 = arith.cmpi eq, %arg1, %c0_i32_2 : i32
    %6 = arith.extui %5 : i1 to i32
    %c0_i32_3 = arith.constant 0 : i32
    %7 = arith.cmpi ne, %6, %c0_i32_3 : i32
    scf.if %7 {
      %c0_30 = arith.constant 0 : index
      %c0_31 = arith.constant 0 : index
      %125 = vector.load %arg2[%c0_30, %c0_31] : memref<256x8xi32, #tpu.memory_space<vmem>>, vector<256x8xi32>
      %126 = vector.extract_strided_slice %125 {offsets = [0, 0], sizes = [256, 1], strides = [1, 1]} : vector<256x8xi32> to vector<256x1xi32>
      %127 = vector.extract_strided_slice %125 {offsets = [0, 1], sizes = [256, 1], strides = [1, 1]} : vector<256x8xi32> to vector<256x1xi32>
      %128 = vector.extract_strided_slice %125 {offsets = [0, 2], sizes = [256, 1], strides = [1, 1]} : vector<256x8xi32> to vector<256x1xi32>
      %c0_i32_32 = arith.constant 0 : i32
      %129 = vector.broadcast %c0_i32_32 : i32 to vector<256x1xi32>
      %130 = arith.cmpi sge, %128, %129 : vector<256x1xi32>
      %131 = arith.extui %130 : vector<256x1xi1> to vector<256x1xi32>
      %132 = arith.sitofp %131 : vector<256x1xi32> to vector<256x1xf32>
      %c0_33 = arith.constant 0 : index
      %c0_34 = arith.constant 0 : index
      %133 = vector.load %arg4[%c0_33, %c0_34] : memref<128x128xbf16, #tpu.memory_space<vmem>>, vector<128x128xbf16>
      %134 = tpu.iota {dimensions = array<i32: 1>} : vector<256x128xi32>
      %135 = vector.broadcast %126 : vector<256x1xi32> to vector<256x128xi32>
      %136 = arith.cmpi eq, %134, %135 : vector<256x128xi32>
      %cst_35 = arith.constant 1.000000e+00 : f32
      %cst_36 = arith.constant 0.000000e+00 : f32
      %137 = vector.broadcast %cst_35 : f32 to vector<256x128xf32>
      %138 = vector.broadcast %cst_36 : f32 to vector<256x128xf32>
      %139 = arith.select %136, %137, %138 : vector<256x128xi1>, vector<256x128xf32>
      %140 = arith.truncf %139 : vector<256x128xf32> to vector<256x128xbf16>
      %141 = vector.broadcast %127 : vector<256x1xi32> to vector<256x128xi32>
      %142 = arith.cmpi eq, %134, %141 : vector<256x128xi32>
      %cst_37 = arith.constant 1.000000e+00 : f32
      %cst_38 = arith.constant 0.000000e+00 : f32
      %143 = vector.broadcast %cst_37 : f32 to vector<256x128xf32>
      %144 = vector.broadcast %cst_38 : f32 to vector<256x128xf32>
      %145 = arith.select %142, %143, %144 : vector<256x128xi1>, vector<256x128xf32>
      %146 = arith.truncf %145 : vector<256x128xf32> to vector<256x128xbf16>
      %cst_39 = arith.constant dense<0.000000e+00> : vector<256x128xf32>
      %147 = tpu.matmul %140, %133, %cst_39 {dimension_numbers = #tpu.dot_dimension_numbers<[1], [0], [0], [1], [0, 0, 1, 1], [], []>} : vector<256x128xbf16>, vector<128x128xbf16>, vector<256x128xf32> -> vector<256x128xf32>
      %148 = arith.truncf %147 : vector<256x128xf32> to vector<256x128xbf16>
      %c0_40 = arith.constant 0 : index
      %c0_41 = arith.constant 0 : index
      %149 = vector.load %arg13[%c0_40, %c0_41] : memref<256x128xbf16, #tpu.memory_space<vmem>>, vector<256x128xbf16>
      tpu.vector_store %arg13[%c0_40, %c0_41], %148 {strides = array<i32>} : memref<256x128xbf16, #tpu.memory_space<vmem>>, vector<256x128xbf16>,
      %cst_42 = arith.constant dense<0.000000e+00> : vector<256x128xf32>
      %150 = tpu.matmul %146, %133, %cst_42 {dimension_numbers = #tpu.dot_dimension_numbers<[1], [0], [0], [1], [0, 0, 1, 1], [], []>} : vector<256x128xbf16>, vector<128x128xbf16>, vector<256x128xf32> -> vector<256x128xf32>
      %151 = arith.truncf %150 : vector<256x128xf32> to vector<256x128xbf16>
      %c0_43 = arith.constant 0 : index
      %c0_44 = arith.constant 0 : index
      %152 = vector.load %arg14[%c0_43, %c0_44] : memref<256x128xbf16, #tpu.memory_space<vmem>>, vector<256x128xbf16>
      tpu.vector_store %arg14[%c0_43, %c0_44], %151 {strides = array<i32>} : memref<256x128xbf16, #tpu.memory_space<vmem>>, vector<256x128xbf16>,
      %c0_45 = arith.constant 0 : index
      %c0_46 = arith.constant 0 : index
      %153 = vector.load %arg3[%c0_45, %c0_46] : memref<8x256xi32, #tpu.memory_space<vmem>>, vector<8x256xi32>
      %154 = vector.extract_strided_slice %153 {offsets = [1, 0], sizes = [1, 256], strides = [1, 1]} : vector<8x256xi32> to vector<1x256xi32>
      %155 = vector.extract_strided_slice %153 {offsets = [2, 0], sizes = [1, 256], strides = [1, 1]} : vector<8x256xi32> to vector<1x256xi32>
      %156 = tpu.iota {dimensions = array<i32: 0>} : vector<128x256xi32>
      %157 = vector.broadcast %154 : vector<1x256xi32> to vector<128x256xi32>
      %158 = arith.cmpi eq, %156, %157 : vector<128x256xi32>
      %c0_i32_47 = arith.constant 0 : i32
      %159 = vector.broadcast %c0_i32_47 : i32 to vector<1x256xi32>
      %160 = arith.cmpi sge, %155, %159 : vector<1x256xi32>
      %161 = vector.broadcast %160 : vector<1x256xi1> to vector<128x256xi1>
      %162 = arith.andi %158, %161 : vector<128x256xi1>
      %cst_48 = arith.constant 1.000000e+00 : f32
      %cst_49 = arith.constant 0.000000e+00 : f32
      %163 = vector.broadcast %cst_48 : f32 to vector<128x256xf32>
      %164 = vector.broadcast %cst_49 : f32 to vector<128x256xf32>
      %165 = arith.select %162, %163, %164 : vector<128x256xi1>, vector<128x256xf32>
      %166 = arith.truncf %165 : vector<128x256xf32> to vector<128x256xbf16>
      %c0_50 = arith.constant 0 : index
      %c0_51 = arith.constant 0 : index
      %167 = vector.load %arg15[%c0_50, %c0_51] : memref<128x256xbf16, #tpu.memory_space<vmem>>, vector<128x256xbf16>
      tpu.vector_store %arg15[%c0_50, %c0_51], %166 {strides = array<i32>} : memref<128x256xbf16, #tpu.memory_space<vmem>>, vector<128x256xbf16>,
      %168 = tpu.iota {dimensions = array<i32: 1>} : vector<256x128xi32>
      %c32_i32 = arith.constant 32 : i32
      %169 = vector.broadcast %c32_i32 : i32 to vector<256x128xi32>
      %170 = arith.cmpi eq, %168, %169 : vector<256x128xi32>
      %cst_52 = arith.constant 0.000000e+00 : f32
      %171 = vector.shape_cast %132 : vector<256x1xf32> to vector<256x1xf32>
      %172 = vector.broadcast %171 : vector<256x1xf32> to vector<256x128xf32>
      %173 = vector.broadcast %cst_52 : f32 to vector<256x128xf32>
      %174 = arith.select %170, %172, %173 : vector<256x128xi1>, vector<256x128xf32>
      %c0_53 = arith.constant 0 : index
      %c0_54 = arith.constant 0 : index
      %175 = vector.load %arg16[%c0_53, %c0_54] : memref<256x128xf32, #tpu.memory_space<vmem>>, vector<256x128xf32>
      tpu.vector_store %arg16[%c0_53, %c0_54], %174 {strides = array<i32>} : memref<256x128xf32, #tpu.memory_space<vmem>>, vector<256x128xf32>,
    } else {
    }
    %c0 = arith.constant 0 : index
    %c0_4 = arith.constant 0 : index
    %8 = vector.load %arg2[%c0, %c0_4] : memref<256x8xi32, #tpu.memory_space<vmem>>, vector<256x8xi32>
    %9 = vector.extract_strided_slice %8 {offsets = [0, 2], sizes = [256, 1], strides = [1, 1]} : vector<256x8xi32> to vector<256x1xi32>
    %10 = vector.broadcast %arg1 : i32 to vector<256x1xi32>
    %11 = arith.cmpi eq, %9, %10 : vector<256x1xi32>
    %12 = arith.extui %11 : vector<256x1xi1> to vector<256x1xi32>
    %13 = arith.sitofp %12 : vector<256x1xi32> to vector<256x1xf32>
    %c0_5 = arith.constant 0 : index
    %c0_6 = arith.constant 0 : index
    %14 = vector.load %arg14[%c0_5, %c0_6] : memref<256x128xbf16, #tpu.memory_space<vmem>>, vector<256x128xbf16>
    %c0_7 = arith.constant 0 : index
    %c0_8 = arith.constant 0 : index
    %c0_9 = arith.constant 0 : index
    %15 = vector.load %arg5[%c0_7, %c0_8, %c0_9] : memref<1x128x16xbf16, #tpu.memory_space<vmem>>, vector<1x128x16xbf16>
    %16 = vector.shape_cast %15 : vector<1x128x16xbf16> to vector<128x16xbf16>
    %cst = arith.constant dense<0.000000e+00> : vector<256x16xf32>
    %17 = tpu.matmul %14, %16, %cst {dimension_numbers = #tpu.dot_dimension_numbers<[1], [0], [0], [1], [0, 0, 1, 1], [], []>} : vector<256x128xbf16>, vector<128x16xbf16>, vector<256x16xf32> -> vector<256x16xf32>
    %c0_10 = arith.constant 0 : index
    %c0_11 = arith.constant 0 : index
    %c0_12 = arith.constant 0 : index
    %18 = vector.load %arg6[%c0_10, %c0_11, %c0_12] : memref<1x1x16xf32, #tpu.memory_space<vmem>>, vector<1x1x16xf32>
    %19 = vector.shape_cast %18 : vector<1x1x16xf32> to vector<1x16xf32>
    %20 = vector.broadcast %19 : vector<1x16xf32> to vector<256x16xf32>
    %21 = arith.addf %17, %20 : vector<256x16xf32>
    %cst_13 = arith.constant 0.000000e+00 : f32
    %22 = vector.broadcast %cst_13 : f32 to vector<256x16xf32>
    %23 = arith.cmpf ogt, %21, %22 : vector<256x16xf32>
    %cst_14 = arith.constant 2.000000e-01 : f32
    %24 = vector.broadcast %cst_14 : f32 to vector<256x16xf32>
    %25 = arith.mulf %24, %21 : vector<256x16xf32>
    %26 = arith.select %23, %21, %25 : vector<256x16xi1>, vector<256x16xf32>
    %c0_15 = arith.constant 0 : index
    %c0_16 = arith.constant 0 : index
    %27 = vector.load %arg13[%c0_15, %c0_16] : memref<256x128xbf16, #tpu.memory_space<vmem>>, vector<256x128xbf16>
    %c0_17 = arith.constant 0 : index
    %c0_18 = arith.constant 0 : index
    %c0_19 = arith.constant 0 : index
    %28 = vector.load %arg7[%c0_17, %c0_18, %c0_19] : memref<1x128x2048xbf16, #tpu.memory_space<vmem>>, vector<1x128x2048xbf16>
    %29 = vector.shape_cast %28 : vector<1x128x2048xbf16> to vector<128x2048xbf16>
    %cst_20 = arith.constant dense<0.000000e+00> : vector<256x2048xf32>
    %30 = tpu.matmul %27, %29, %cst_20 {dimension_numbers = #tpu.dot_dimension_numbers<[1], [0], [0], [1], [0, 0, 1, 1], [], []>} : vector<256x128xbf16>, vector<128x2048xbf16>, vector<256x2048xf32> -> vector<256x2048xf32>
    %cst_21 = arith.constant 0.000000e+00 : f32
    %31 = vector.broadcast %cst_21 : f32 to vector<256x128xf32>
    %32 = vector.extract_strided_slice %26 {offsets = [0, 0], sizes = [256, 1], strides = [1, 1]} : vector<256x16xf32> to vector<256x1xf32>
    %33 = vector.extract_strided_slice %30 {offsets = [0, 0], sizes = [256, 128], strides = [1, 1]} : vector<256x2048xf32> to vector<256x128xf32>
    %34 = vector.broadcast %32 : vector<256x1xf32> to vector<256x128xf32>
    %35 = arith.mulf %34, %33 : vector<256x128xf32>
    %36 = arith.addf %31, %35 : vector<256x128xf32>
    %37 = vector.extract_strided_slice %26 {offsets = [0, 1], sizes = [256, 1], strides = [1, 1]} : vector<256x16xf32> to vector<256x1xf32>
    %38 = vector.extract_strided_slice %30 {offsets = [0, 128], sizes = [256, 128], strides = [1, 1]} : vector<256x2048xf32> to vector<256x128xf32>
    %39 = vector.broadcast %37 : vector<256x1xf32> to vector<256x128xf32>
    %40 = arith.mulf %39, %38 : vector<256x128xf32>
    %41 = arith.addf %36, %40 : vector<256x128xf32>
    %42 = vector.extract_strided_slice %26 {offsets = [0, 2], sizes = [256, 1], strides = [1, 1]} : vector<256x16xf32> to vector<256x1xf32>
    %43 = vector.extract_strided_slice %30 {offsets = [0, 256], sizes = [256, 128], strides = [1, 1]} : vector<256x2048xf32> to vector<256x128xf32>
    %44 = vector.broadcast %42 : vector<256x1xf32> to vector<256x128xf32>
    %45 = arith.mulf %44, %43 : vector<256x128xf32>
    %46 = arith.addf %41, %45 : vector<256x128xf32>
    %47 = vector.extract_strided_slice %26 {offsets = [0, 3], sizes = [256, 1], strides = [1, 1]} : vector<256x16xf32> to vector<256x1xf32>
    %48 = vector.extract_strided_slice %30 {offsets = [0, 384], sizes = [256, 128], strides = [1, 1]} : vector<256x2048xf32> to vector<256x128xf32>
    %49 = vector.broadcast %47 : vector<256x1xf32> to vector<256x128xf32>
    %50 = arith.mulf %49, %48 : vector<256x128xf32>
    %51 = arith.addf %46, %50 : vector<256x128xf32>
    %52 = vector.extract_strided_slice %26 {offsets = [0, 4], sizes = [256, 1], strides = [1, 1]} : vector<256x16xf32> to vector<256x1xf32>
    %53 = vector.extract_strided_slice %30 {offsets = [0, 512], sizes = [256, 128], strides = [1, 1]} : vector<256x2048xf32> to vector<256x128xf32>
    %54 = vector.broadcast %52 : vector<256x1xf32> to vector<256x128xf32>
    %55 = arith.mulf %54, %53 : vector<256x128xf32>
    %56 = arith.addf %51, %55 : vector<256x128xf32>
    %57 = vector.extract_strided_slice %26 {offsets = [0, 5], sizes = [256, 1], strides = [1, 1]} : vector<256x16xf32> to vector<256x1xf32>
    %58 = vector.extract_strided_slice %30 {offsets = [0, 640], sizes = [256, 128], strides = [1, 1]} : vector<256x2048xf32> to vector<256x128xf32>
    %59 = vector.broadcast %57 : vector<256x1xf32> to vector<256x128xf32>
    %60 = arith.mulf %59, %58 : vector<256x128xf32>
    %61 = arith.addf %56, %60 : vector<256x128xf32>
    %62 = vector.extract_strided_slice %26 {offsets = [0, 6], sizes = [256, 1], strides = [1, 1]} : vector<256x16xf32> to vector<256x1xf32>
    %63 = vector.extract_strided_slice %30 {offsets = [0, 768], sizes = [256, 128], strides = [1, 1]} : vector<256x2048xf32> to vector<256x128xf32>
    %64 = vector.broadcast %62 : vector<256x1xf32> to vector<256x128xf32>
    %65 = arith.mulf %64, %63 : vector<256x128xf32>
    %66 = arith.addf %61, %65 : vector<256x128xf32>
    %67 = vector.extract_strided_slice %26 {offsets = [0, 7], sizes = [256, 1], strides = [1, 1]} : vector<256x16xf32> to vector<256x1xf32>
    %68 = vector.extract_strided_slice %30 {offsets = [0, 896], sizes = [256, 128], strides = [1, 1]} : vector<256x2048xf32> to vector<256x128xf32>
    %69 = vector.broadcast %67 : vector<256x1xf32> to vector<256x128xf32>
    %70 = arith.mulf %69, %68 : vector<256x128xf32>
    %71 = arith.addf %66, %70 : vector<256x128xf32>
    %72 = vector.extract_strided_slice %26 {offsets = [0, 8], sizes = [256, 1], strides = [1, 1]} : vector<256x16xf32> to vector<256x1xf32>
    %73 = vector.extract_strided_slice %30 {offsets = [0, 1024], sizes = [256, 128], strides = [1, 1]} : vector<256x2048xf32> to vector<256x128xf32>
    %74 = vector.broadcast %72 : vector<256x1xf32> to vector<256x128xf32>
    %75 = arith.mulf %74, %73 : vector<256x128xf32>
    %76 = arith.addf %71, %75 : vector<256x128xf32>
    %77 = vector.extract_strided_slice %26 {offsets = [0, 9], sizes = [256, 1], strides = [1, 1]} : vector<256x16xf32> to vector<256x1xf32>
    %78 = vector.extract_strided_slice %30 {offsets = [0, 1152], sizes = [256, 128], strides = [1, 1]} : vector<256x2048xf32> to vector<256x128xf32>
    %79 = vector.broadcast %77 : vector<256x1xf32> to vector<256x128xf32>
    %80 = arith.mulf %79, %78 : vector<256x128xf32>
    %81 = arith.addf %76, %80 : vector<256x128xf32>
    %82 = vector.extract_strided_slice %26 {offsets = [0, 10], sizes = [256, 1], strides = [1, 1]} : vector<256x16xf32> to vector<256x1xf32>
    %83 = vector.extract_strided_slice %30 {offsets = [0, 1280], sizes = [256, 128], strides = [1, 1]} : vector<256x2048xf32> to vector<256x128xf32>
    %84 = vector.broadcast %82 : vector<256x1xf32> to vector<256x128xf32>
    %85 = arith.mulf %84, %83 : vector<256x128xf32>
    %86 = arith.addf %81, %85 : vector<256x128xf32>
    %87 = vector.extract_strided_slice %26 {offsets = [0, 11], sizes = [256, 1], strides = [1, 1]} : vector<256x16xf32> to vector<256x1xf32>
    %88 = vector.extract_strided_slice %30 {offsets = [0, 1408], sizes = [256, 128], strides = [1, 1]} : vector<256x2048xf32> to vector<256x128xf32>
    %89 = vector.broadcast %87 : vector<256x1xf32> to vector<256x128xf32>
    %90 = arith.mulf %89, %88 : vector<256x128xf32>
    %91 = arith.addf %86, %90 : vector<256x128xf32>
    %92 = vector.extract_strided_slice %26 {offsets = [0, 12], sizes = [256, 1], strides = [1, 1]} : vector<256x16xf32> to vector<256x1xf32>
    %93 = vector.extract_strided_slice %30 {offsets = [0, 1536], sizes = [256, 128], strides = [1, 1]} : vector<256x2048xf32> to vector<256x128xf32>
    %94 = vector.broadcast %92 : vector<256x1xf32> to vector<256x128xf32>
    %95 = arith.mulf %94, %93 : vector<256x128xf32>
    %96 = arith.addf %91, %95 : vector<256x128xf32>
    %97 = vector.extract_strided_slice %26 {offsets = [0, 13], sizes = [256, 1], strides = [1, 1]} : vector<256x16xf32> to vector<256x1xf32>
    %98 = vector.extract_strided_slice %30 {offsets = [0, 1664], sizes = [256, 128], strides = [1, 1]} : vector<256x2048xf32> to vector<256x128xf32>
    %99 = vector.broadcast %97 : vector<256x1xf32> to vector<256x128xf32>
    %100 = arith.mulf %99, %98 : vector<256x128xf32>
    %101 = arith.addf %96, %100 : vector<256x128xf32>
    %102 = vector.extract_strided_slice %26 {offsets = [0, 14], sizes = [256, 1], strides = [1, 1]} : vector<256x16xf32> to vector<256x1xf32>
    %103 = vector.extract_strided_slice %30 {offsets = [0, 1792], sizes = [256, 128], strides = [1, 1]} : vector<256x2048xf32> to vector<256x128xf32>
    %104 = vector.broadcast %102 : vector<256x1xf32> to vector<256x128xf32>
    %105 = arith.mulf %104, %103 : vector<256x128xf32>
    %106 = arith.addf %101, %105 : vector<256x128xf32>
    %107 = vector.extract_strided_slice %26 {offsets = [0, 15], sizes = [256, 1], strides = [1, 1]} : vector<256x16xf32> to vector<256x1xf32>
    %108 = vector.extract_strided_slice %30 {offsets = [0, 1920], sizes = [256, 128], strides = [1, 1]} : vector<256x2048xf32> to vector<256x128xf32>
    %109 = vector.broadcast %107 : vector<256x1xf32> to vector<256x128xf32>
    %110 = arith.mulf %109, %108 : vector<256x128xf32>
    %111 = arith.addf %106, %110 : vector<256x128xf32>
    %c0_22 = arith.constant 0 : index
    %c0_23 = arith.constant 0 : index
    %112 = vector.load %arg16[%c0_22, %c0_23] : memref<256x128xf32, #tpu.memory_space<vmem>>, vector<256x128xf32>
    %113 = vector.broadcast %13 : vector<256x1xf32> to vector<256x128xf32>
    %114 = arith.mulf %113, %111 : vector<256x128xf32>
    %115 = arith.addf %112, %114 : vector<256x128xf32>
    %c0_24 = arith.constant 0 : index
    %c0_25 = arith.constant 0 : index
    %116 = vector.load %arg16[%c0_24, %c0_25] : memref<256x128xf32, #tpu.memory_space<vmem>>, vector<256x128xf32>
    tpu.vector_store %arg16[%c0_24, %c0_25], %115 {strides = array<i32>} : memref<256x128xf32, #tpu.memory_space<vmem>>, vector<256x128xf32>,
    %c2_i32 = arith.constant 2 : i32
    %117 = arith.cmpi eq, %arg1, %c2_i32 : i32
    %118 = arith.extui %117 : i1 to i32
    %c0_i32_26 = arith.constant 0 : i32
    %119 = arith.cmpi ne, %118, %c0_i32_26 : i32
    scf.if %119 {
      %c0_30 = arith.constant 0 : index
      %c0_31 = arith.constant 0 : index
      %125 = vector.load %arg12[%c0_30, %c0_31] : memref<128x128xf32, #tpu.memory_space<vmem>>, vector<128x128xf32>
      %c0_32 = arith.constant 0 : index
      %c0_33 = arith.constant 0 : index
      %126 = vector.load %arg15[%c0_32, %c0_33] : memref<128x256xbf16, #tpu.memory_space<vmem>>, vector<128x256xbf16>
      %c0_34 = arith.constant 0 : index
      %c0_35 = arith.constant 0 : index
      %127 = vector.load %arg16[%c0_34, %c0_35] : memref<256x128xf32, #tpu.memory_space<vmem>>, vector<256x128xf32>
      %128 = arith.truncf %127 : vector<256x128xf32> to vector<256x128xbf16>
      %cst_36 = arith.constant dense<0.000000e+00> : vector<128x128xf32>
      %129 = tpu.matmul %126, %128, %cst_36 {dimension_numbers = #tpu.dot_dimension_numbers<[1], [0], [0], [1], [0, 0, 1, 1], [], []>} : vector<128x256xbf16>, vector<256x128xbf16>, vector<128x128xf32> -> vector<128x128xf32>
      %130 = arith.addf %125, %129 : vector<128x128xf32>
      %c0_37 = arith.constant 0 : index
      %c0_38 = arith.constant 0 : index
      %131 = vector.load %arg12[%c0_37, %c0_38] : memref<128x128xf32, #tpu.memory_space<vmem>>, vector<128x128xf32>
      tpu.vector_store %arg12[%c0_37, %c0_38], %130 {strides = array<i32>} : memref<128x128xf32, #tpu.memory_space<vmem>>, vector<128x128xf32>,
    } else {
    }
    %c0_i32_27 = arith.constant 0 : i32
    %120 = arith.cmpi eq, %arg0, %c0_i32_27 : i32
    %c2_i32_28 = arith.constant 2 : i32
    %121 = arith.cmpi eq, %arg1, %c2_i32_28 : i32
    %122 = arith.andi %120, %121 : i1
    %123 = arith.extui %122 : i1 to i32
    %c0_i32_29 = arith.constant 0 : i32
    %124 = arith.cmpi ne, %123, %c0_i32_29 : i32
    scf.if %124 {
      %c0_30 = arith.constant 0 : index
      %c0_31 = arith.constant 0 : index
      %125 = vector.load %arg12[%c0_30, %c0_31] : memref<128x128xf32, #tpu.memory_space<vmem>>, vector<128x128xf32>
      %126 = vector.extract_strided_slice %125 {offsets = [0, 32], sizes = [128, 1], strides = [1, 1]} : vector<128x128xf32> to vector<128x1xf32>
      %cst_32 = arith.constant 1.000000e+00 : f32
      %127 = vector.broadcast %cst_32 : f32 to vector<128x1xf32>
      %128 = arith.maximumf %126, %127 : vector<128x1xf32>
      %129 = tpu.reciprocal %128 {approx = true} : vector<128x1xf32> -> vector<128x1xf32>
      %cst_33 = arith.constant 0.000000e+00 : f32
      %130 = vector.broadcast %cst_33 : f32 to vector<128x1xf32>
      %131 = arith.cmpf ogt, %126, %130 : vector<128x1xf32>
      %132 = vector.broadcast %129 : vector<128x1xf32> to vector<128x128xf32>
      %133 = arith.mulf %125, %132 : vector<128x128xf32>
      %cst_34 = arith.constant 0.000000e+00 : f32
      %134 = vector.shape_cast %131 : vector<128x1xi1> to vector<128x1xi1>
      %135 = vector.broadcast %134 : vector<128x1xi1> to vector<128x128xi1>
      %136 = vector.broadcast %cst_34 : f32 to vector<128x128xf32>
      %137 = arith.select %135, %133, %136 : vector<128x128xi1>, vector<128x128xf32>
      %c0_35 = arith.constant 0 : index
      %c0_36 = arith.constant 0 : index
      %138 = vector.load %arg4[%c0_35, %c0_36] : memref<128x128xbf16, #tpu.memory_space<vmem>>, vector<128x128xbf16>
      %c0_37 = arith.constant 0 : index
      %c0_38 = arith.constant 0 : index
      %139 = vector.load %arg8[%c0_37, %c0_38] : memref<128x16xbf16, #tpu.memory_space<vmem>>, vector<128x16xbf16>
      %cst_39 = arith.constant dense<0.000000e+00> : vector<128x16xf32>
      %140 = tpu.matmul %138, %139, %cst_39 {dimension_numbers = #tpu.dot_dimension_numbers<[1], [0], [0], [1], [0, 0, 1, 1], [], []>} : vector<128x128xbf16>, vector<128x16xbf16>, vector<128x16xf32> -> vector<128x16xf32>
      %c0_40 = arith.constant 0 : index
      %c0_41 = arith.constant 0 : index
      %141 = vector.load %arg9[%c0_40, %c0_41] : memref<1x16xf32, #tpu.memory_space<vmem>>, vector<1x16xf32>
      %142 = vector.broadcast %141 : vector<1x16xf32> to vector<128x16xf32>
      %143 = arith.addf %140, %142 : vector<128x16xf32>
      %cst_42 = arith.constant 0.000000e+00 : f32
      %144 = vector.broadcast %cst_42 : f32 to vector<128x16xf32>
      %145 = arith.cmpf ogt, %143, %144 : vector<128x16xf32>
      %cst_43 = arith.constant 2.000000e-01 : f32
      %146 = vector.broadcast %cst_43 : f32 to vector<128x16xf32>
      %147 = arith.mulf %146, %143 : vector<128x16xf32>
      %148 = arith.select %145, %143, %147 : vector<128x16xi1>, vector<128x16xf32>
      %c0_44 = arith.constant 0 : index
      %c0_45 = arith.constant 0 : index
      %149 = vector.load %arg10[%c0_44, %c0_45] : memref<128x2048xbf16, #tpu.memory_space<vmem>>, vector<128x2048xbf16>
      %cst_46 = arith.constant dense<0.000000e+00> : vector<128x2048xf32>
      %150 = tpu.matmul %138, %149, %cst_46 {dimension_numbers = #tpu.dot_dimension_numbers<[1], [0], [0], [1], [0, 0, 1, 1], [], []>} : vector<128x128xbf16>, vector<128x2048xbf16>, vector<128x2048xf32> -> vector<128x2048xf32>
      %cst_47 = arith.constant 0.000000e+00 : f32
      %151 = vector.broadcast %cst_47 : f32 to vector<128x128xf32>
      %152 = vector.extract_strided_slice %148 {offsets = [0, 0], sizes = [128, 1], strides = [1, 1]} : vector<128x16xf32> to vector<128x1xf32>
      %153 = vector.extract_strided_slice %150 {offsets = [0, 0], sizes = [128, 128], strides = [1, 1]} : vector<128x2048xf32> to vector<128x128xf32>
      %154 = vector.broadcast %152 : vector<128x1xf32> to vector<128x128xf32>
      %155 = arith.mulf %154, %153 : vector<128x128xf32>
      %156 = arith.addf %151, %155 : vector<128x128xf32>
      %157 = vector.extract_strided_slice %148 {offsets = [0, 1], sizes = [128, 1], strides = [1, 1]} : vector<128x16xf32> to vector<128x1xf32>
      %158 = vector.extract_strided_slice %150 {offsets = [0, 128], sizes = [128, 128], strides = [1, 1]} : vector<128x2048xf32> to vector<128x128xf32>
      %159 = vector.broadcast %157 : vector<128x1xf32> to vector<128x128xf32>
      %160 = arith.mulf %159, %158 : vector<128x128xf32>
      %161 = arith.addf %156, %160 : vector<128x128xf32>
      %162 = vector.extract_strided_slice %148 {offsets = [0, 2], sizes = [128, 1], strides = [1, 1]} : vector<128x16xf32> to vector<128x1xf32>
      %163 = vector.extract_strided_slice %150 {offsets = [0, 256], sizes = [128, 128], strides = [1, 1]} : vector<128x2048xf32> to vector<128x128xf32>
      %164 = vector.broadcast %162 : vector<128x1xf32> to vector<128x128xf32>
      %165 = arith.mulf %164, %163 : vector<128x128xf32>
      %166 = arith.addf %161, %165 : vector<128x128xf32>
      %167 = vector.extract_strided_slice %148 {offsets = [0, 3], sizes = [128, 1], strides = [1, 1]} : vector<128x16xf32> to vector<128x1xf32>
      %168 = vector.extract_strided_slice %150 {offsets = [0, 384], sizes = [128, 128], strides = [1, 1]} : vector<128x2048xf32> to vector<128x128xf32>
      %169 = vector.broadcast %167 : vector<128x1xf32> to vector<128x128xf32>
      %170 = arith.mulf %169, %168 : vector<128x128xf32>
      %171 = arith.addf %166, %170 : vector<128x128xf32>
      %172 = vector.extract_strided_slice %148 {offsets = [0, 4], sizes = [128, 1], strides = [1, 1]} : vector<128x16xf32> to vector<128x1xf32>
      %173 = vector.extract_strided_slice %150 {offsets = [0, 512], sizes = [128, 128], strides = [1, 1]} : vector<128x2048xf32> to vector<128x128xf32>
      %174 = vector.broadcast %172 : vector<128x1xf32> to vector<128x128xf32>
      %175 = arith.mulf %174, %173 : vector<128x128xf32>
      %176 = arith.addf %171, %175 : vector<128x128xf32>
      %177 = vector.extract_strided_slice %148 {offsets = [0, 5], sizes = [128, 1], strides = [1, 1]} : vector<128x16xf32> to vector<128x1xf32>
      %178 = vector.extract_strided_slice %150 {offsets = [0, 640], sizes = [128, 128], strides = [1, 1]} : vector<128x2048xf32> to vector<128x128xf32>
      %179 = vector.broadcast %177 : vector<128x1xf32> to vector<128x128xf32>
      %180 = arith.mulf %179, %178 : vector<128x128xf32>
      %181 = arith.addf %176, %180 : vector<128x128xf32>
      %182 = vector.extract_strided_slice %148 {offsets = [0, 6], sizes = [128, 1], strides = [1, 1]} : vector<128x16xf32> to vector<128x1xf32>
      %183 = vector.extract_strided_slice %150 {offsets = [0, 768], sizes = [128, 128], strides = [1, 1]} : vector<128x2048xf32> to vector<128x128xf32>
      %184 = vector.broadcast %182 : vector<128x1xf32> to vector<128x128xf32>
      %185 = arith.mulf %184, %183 : vector<128x128xf32>
      %186 = arith.addf %181, %185 : vector<128x128xf32>
      %187 = vector.extract_strided_slice %148 {offsets = [0, 7], sizes = [128, 1], strides = [1, 1]} : vector<128x16xf32> to vector<128x1xf32>
      %188 = vector.extract_strided_slice %150 {offsets = [0, 896], sizes = [128, 128], strides = [1, 1]} : vector<128x2048xf32> to vector<128x128xf32>
      %189 = vector.broadcast %187 : vector<128x1xf32> to vector<128x128xf32>
      %190 = arith.mulf %189, %188 : vector<128x128xf32>
      %191 = arith.addf %186, %190 : vector<128x128xf32>
      %192 = vector.extract_strided_slice %148 {offsets = [0, 8], sizes = [128, 1], strides = [1, 1]} : vector<128x16xf32> to vector<128x1xf32>
      %193 = vector.extract_strided_slice %150 {offsets = [0, 1024], sizes = [128, 128], strides = [1, 1]} : vector<128x2048xf32> to vector<128x128xf32>
      %194 = vector.broadcast %192 : vector<128x1xf32> to vector<128x128xf32>
      %195 = arith.mulf %194, %193 : vector<128x128xf32>
      %196 = arith.addf %191, %195 : vector<128x128xf32>
      %197 = vector.extract_strided_slice %148 {offsets = [0, 9], sizes = [128, 1], strides = [1, 1]} : vector<128x16xf32> to vector<128x1xf32>
      %198 = vector.extract_strided_slice %150 {offsets = [0, 1152], sizes = [128, 128], strides = [1, 1]} : vector<128x2048xf32> to vector<128x128xf32>
      %199 = vector.broadcast %197 : vector<128x1xf32> to vector<128x128xf32>
      %200 = arith.mulf %199, %198 : vector<128x128xf32>
      %201 = arith.addf %196, %200 : vector<128x128xf32>
      %202 = vector.extract_strided_slice %148 {offsets = [0, 10], sizes = [128, 1], strides = [1, 1]} : vector<128x16xf32> to vector<128x1xf32>
      %203 = vector.extract_strided_slice %150 {offsets = [0, 1280], sizes = [128, 128], strides = [1, 1]} : vector<128x2048xf32> to vector<128x128xf32>
      %204 = vector.broadcast %202 : vector<128x1xf32> to vector<128x128xf32>
      %205 = arith.mulf %204, %203 : vector<128x128xf32>
      %206 = arith.addf %201, %205 : vector<128x128xf32>
      %207 = vector.extract_strided_slice %148 {offsets = [0, 11], sizes = [128, 1], strides = [1, 1]} : vector<128x16xf32> to vector<128x1xf32>
      %208 = vector.extract_strided_slice %150 {offsets = [0, 1408], sizes = [128, 128], strides = [1, 1]} : vector<128x2048xf32> to vector<128x128xf32>
      %209 = vector.broadcast %207 : vector<128x1xf32> to vector<128x128xf32>
      %210 = arith.mulf %209, %208 : vector<128x128xf32>
      %211 = arith.addf %206, %210 : vector<128x128xf32>
      %212 = vector.extract_strided_slice %148 {offsets = [0, 12], sizes = [128, 1], strides = [1, 1]} : vector<128x16xf32> to vector<128x1xf32>
      %213 = vector.extract_strided_slice %150 {offsets = [0, 1536], sizes = [128, 128], strides = [1, 1]} : vector<128x2048xf32> to vector<128x128xf32>
      %214 = vector.broadcast %212 : vector<128x1xf32> to vector<128x128xf32>
      %215 = arith.mulf %214, %213 : vector<128x128xf32>
      %216 = arith.addf %211, %215 : vector<128x128xf32>
      %217 = vector.extract_strided_slice %148 {offsets = [0, 13], sizes = [128, 1], strides = [1, 1]} : vector<128x16xf32> to vector<128x1xf32>
      %218 = vector.extract_strided_slice %150 {offsets = [0, 1664], sizes = [128, 128], strides = [1, 1]} : vector<128x2048xf32> to vector<128x128xf32>
      %219 = vector.broadcast %217 : vector<128x1xf32> to vector<128x128xf32>
      %220 = arith.mulf %219, %218 : vector<128x128xf32>
      %221 = arith.addf %216, %220 : vector<128x128xf32>
      %222 = vector.extract_strided_slice %148 {offsets = [0, 14], sizes = [128, 1], strides = [1, 1]} : vector<128x16xf32> to vector<128x1xf32>
      %223 = vector.extract_strided_slice %150 {offsets = [0, 1792], sizes = [128, 128], strides = [1, 1]} : vector<128x2048xf32> to vector<128x128xf32>
      %224 = vector.broadcast %222 : vector<128x1xf32> to vector<128x128xf32>
      %225 = arith.mulf %224, %223 : vector<128x128xf32>
      %226 = arith.addf %221, %225 : vector<128x128xf32>
      %227 = vector.extract_strided_slice %148 {offsets = [0, 15], sizes = [128, 1], strides = [1, 1]} : vector<128x16xf32> to vector<128x1xf32>
      %228 = vector.extract_strided_slice %150 {offsets = [0, 1920], sizes = [128, 128], strides = [1, 1]} : vector<128x2048xf32> to vector<128x128xf32>
      %229 = vector.broadcast %227 : vector<128x1xf32> to vector<128x128xf32>
      %230 = arith.mulf %229, %228 : vector<128x128xf32>
      %231 = arith.addf %226, %230 : vector<128x128xf32>
      %c0_48 = arith.constant 0 : index
      %c0_49 = arith.constant 0 : index
      %232 = vector.load %arg11[%c0_48, %c0_49] : memref<1x128xf32, #tpu.memory_space<vmem>>, vector<1x128xf32>
      %233 = vector.broadcast %232 : vector<1x128xf32> to vector<128x128xf32>
      %234 = arith.addf %137, %233 : vector<128x128xf32>
      %235 = arith.addf %234, %231 : vector<128x128xf32>
      %c0_50 = arith.constant 0 : index
      %c0_51 = arith.constant 0 : index
      %236 = vector.load %arg12[%c0_50, %c0_51] : memref<128x128xf32, #tpu.memory_space<vmem>>, vector<128x128xf32>
      tpu.vector_store %arg12[%c0_50, %c0_51], %235 {strides = array<i32>} : memref<128x128xf32, #tpu.memory_space<vmem>>, vector<128x128xf32>,
    } else {
    }
    return
  }
  func.func @transform_0(%arg0: i32, %arg1: i32) -> (i32, i32) {
    %c0_i32 = arith.constant 0 : i32
    %c0_i32_0 = arith.constant 0 : i32
    return %arg0, %c0_i32 : i32, i32
  }
  func.func @transform_1(%arg0: i32, %arg1: i32) -> (i32, i32) {
    %c0_i32 = arith.constant 0 : i32
    %c0_i32_0 = arith.constant 0 : i32
    return %c0_i32, %arg0 : i32, i32
  }
  func.func @transform_2(%arg0: i32, %arg1: i32) -> (i32, i32) {
    %c0_i32 = arith.constant 0 : i32
    %c0_i32_0 = arith.constant 0 : i32
    %c0_i32_1 = arith.constant 0 : i32
    return %c0_i32, %c0_i32_0 : i32, i32
  }
  func.func @transform_3(%arg0: i32, %arg1: i32) -> (i32, i32, i32) {
    %c0_i32 = arith.constant 0 : i32
    %c0_i32_0 = arith.constant 0 : i32
    %c0_i32_1 = arith.constant 0 : i32
    return %arg1, %c0_i32, %c0_i32_0 : i32, i32, i32
  }
  func.func @transform_4(%arg0: i32, %arg1: i32) -> (i32, i32, i32) {
    %c0_i32 = arith.constant 0 : i32
    %c0_i32_0 = arith.constant 0 : i32
    %c0_i32_1 = arith.constant 0 : i32
    return %arg1, %c0_i32, %c0_i32_0 : i32, i32, i32
  }
  func.func @transform_5(%arg0: i32, %arg1: i32) -> (i32, i32, i32) {
    %c0_i32 = arith.constant 0 : i32
    %c0_i32_0 = arith.constant 0 : i32
    %c0_i32_1 = arith.constant 0 : i32
    return %arg1, %c0_i32, %c0_i32_0 : i32, i32, i32
  }
  func.func @transform_6(%arg0: i32, %arg1: i32) -> (i32, i32) {
    %c0_i32 = arith.constant 0 : i32
    %c0_i32_0 = arith.constant 0 : i32
    %c0_i32_1 = arith.constant 0 : i32
    return %c0_i32, %c0_i32_0 : i32, i32
  }
  func.func @transform_7(%arg0: i32, %arg1: i32) -> (i32, i32) {
    %c0_i32 = arith.constant 0 : i32
    %c0_i32_0 = arith.constant 0 : i32
    %c0_i32_1 = arith.constant 0 : i32
    return %c0_i32, %c0_i32_0 : i32, i32
  }
  func.func @transform_8(%arg0: i32, %arg1: i32) -> (i32, i32) {
    %c0_i32 = arith.constant 0 : i32
    %c0_i32_0 = arith.constant 0 : i32
    %c0_i32_1 = arith.constant 0 : i32
    return %c0_i32, %c0_i32_0 : i32, i32
  }
  func.func @transform_9(%arg0: i32, %arg1: i32) -> (i32, i32) {
    %c0_i32 = arith.constant 0 : i32
    %c0_i32_0 = arith.constant 0 : i32
    %c0_i32_1 = arith.constant 0 : i32
    return %c0_i32, %c0_i32_0 : i32, i32
  }
  func.func @transform_10(%arg0: i32, %arg1: i32) -> (i32, i32) {
    %c0_i32 = arith.constant 0 : i32
    %c0_i32_0 = arith.constant 0 : i32
    %c0_i32_1 = arith.constant 0 : i32
    return %c0_i32, %c0_i32_0 : i32, i32
  }
}

</mosaic_0001>

<llo_original>
// kernel: gnn_layer_forward.1
$region0: #{gnn_layer_forward.1}
  #allocation0 [shape = 'u32[]', space=smem, size = 0x4, offset = 0x4, fixed_abs, tag = 'smem constant byte address 0x4 - core index']
  #allocation1 [shape = 'u32[72,128]{1,0:T(1,128)}', space=vmem, size = 0x9000, scoped, tag = 'internal scratch']
  #allocation2 [shape = 'bf16[256,128]{1,0:T(8,128)(2,1)}', space=vmem, size = 0x10000, scoped, tag = 'scratch operand']
  #allocation3 [shape = 'bf16[256,128]{1,0:T(8,128)(2,1)}', space=vmem, size = 0x10000, scoped, tag = 'scratch operand']
  #allocation4 [shape = 'bf16[128,256]{1,0:T(8,128)(2,1)}', space=vmem, size = 0x10000, scoped, tag = 'scratch operand']
  #allocation5 [shape = 'f32[256,128]{1,0:T(8,128)}', space=vmem, size = 0x20000, scoped, tag = 'scratch operand']
  %s0 = inlined_call_operand.vmem [shape: s32[256,8], index: 0, kind: input, shape index: {}]
  %s1 = inlined_call_operand.vmem [shape: s32[8,256], index: 1, kind: input, shape index: {}]
  %s2 = inlined_call_operand.vmem [shape: bf16[128,128], index: 2, kind: input, shape index: {}]
  %s3 = inlined_call_operand.vmem [shape: bf16[3,128,16], index: 3, kind: input, shape index: {}]
  %s4 = inlined_call_operand.vmem [shape: f32[3,1,16], index: 4, kind: input, shape index: {}]
  %s5 = inlined_call_operand.vmem [shape: bf16[3,128,2048], index: 5, kind: input, shape index: {}]
  %s6 = inlined_call_operand.vmem [shape: bf16[128,16], index: 6, kind: input, shape index: {}]
  %s7 = inlined_call_operand.vmem [shape: f32[1,16], index: 7, kind: input, shape index: {}]
  %s8 = inlined_call_operand.vmem [shape: bf16[128,2048], index: 8, kind: input, shape index: {}]
  %s9 = inlined_call_operand.vmem [shape: f32[1,128], index: 9, kind: input, shape index: {}]
  %s10 = inlined_call_operand.vmem [shape: f32[128,128], index: 10, kind: output, shape index: {}]
  %s11 = sld [smem:[#allocation0]]
  $region89: #{gnn_layer_forward.1} parent=0
    _
  %s13 = ssub.s32 1, %s11
  %s14 = scalar_select 0, %s13, %s11
  loop: start=0, step=1, limit=5
  $region2: #{gnn_layer_forward.1} parent=0 // loop_pre_header
    _
  $region3: #{gnn_layer_forward.1} parent=0 // loop_header
    %s16 = sphi 0, %s20
    %p17 = scmp.ge.s32.totalorder %s16, 5
    %s23 = sphi 0, %s35
    %s24 = sphi 0, %s31
    %s25 = sphi 0, %s23
    %s26 = sphi 0, %s24
    %s27 = sphi 0, %s25
    %s28 = sphi 0, %s26
    %s38 = sphi 0, %s40
    %s41 = sphi 0, %s38
    %s42 = sphi 0, %s41
    %s58 = sphi 0, %s42
    %s64 = sphi 0, %s66
    %s67 = sphi 0, %s64
    %s68 = sphi 0, %s67
    %s84 = sphi 0, %s68
    %s88 = sphi 0, %s88
    %s90 = sphi 0, %s88
    %s91 = sphi 0, %s90
    %s105 = sphi 0, %s91
    %s111 = sphi 0, %s113
    %s114 = sphi 0, %s111
    %s115 = sphi 0, %s114
    %s131 = sphi 0, %s115
    %s137 = sphi 0, %s139
    %s140 = sphi 0, %s137
    %s141 = sphi 0, %s140
    %s157 = sphi 0, %s141
    %s163 = sphi 0, %s165
    %s166 = sphi 0, %s163
    %s167 = sphi 0, %s166
    %s183 = sphi 0, %s167
    %s187 = sphi 0, %s187
    %s189 = sphi 0, %s187
    %s190 = sphi 0, %s189
    %s204 = sphi 0, %s190
    %s208 = sphi 0, %s208
    %s210 = sphi 0, %s208
    %s211 = sphi 0, %s210
    %s225 = sphi 0, %s211
    %s229 = sphi 0, %s229
    %s231 = sphi 0, %s229
    %s232 = sphi 0, %s231
    %s246 = sphi 0, %s232
    %s250 = sphi 0, %s250
    %s252 = sphi 0, %s250
    %s253 = sphi 0, %s252
    %s267 = sphi 0, %s253
    %s271 = sphi 0, %s271
    %s273 = sphi 0, %s271
    %s274 = sphi 0, %s273
    %s288 = sphi 0, %s274
  $region4: #{gnn_layer_forward.1} parent=0 // loop_header_branch
    %19 = sbr.rel (%p17) target = $region8
  $region5: #{gnn_layer_forward.1} parent=0 // loop_body
    %s21 = ssub.s32 %s16, 1
    %s22 = ssub.s32 %s16, 2
    %s29 = sadd.s32 1, %s24
    %p30 = scmp.ge.s32.totalorder %s29, 3
    %s31 = scalar_select %p30, 0, %s29
    %s32 = sadd.s32 1, %s23
    %s33 = scalar_select %p30, %s32, %s23
    %p34 = scmp.ge.s32.totalorder %s33, 1
    %s35 = scalar_select %p34, 0, %s33
    %s36 = ssub.s32 %s23, %s35
    %p37 = scmp.eq.s32.totalorder %s36, 0
    %s39 = sadd.s32 %s38, 1
    %s40 = scalar_select %p37, %s38, %s39
    %p43 = pneg %p37
    %p44 = scmp.eq.s32.totalorder %s16, 2
    %p45 = por %p43, %p44
    %p46 = scmp.ne.s32.totalorder %s38, %s41
    %p47 = scmp.eq.s32.totalorder %s16, 0
    %p48 = por %p46, %p47
    %p49 = scmp.ne.s32.totalorder %s38, %s41
    %p50 = scmp.eq.s32.totalorder %s21, 2
    %p51 = por %p49, %p50
    %p52 = scmp.ne.s32.totalorder %s41, %s42
    %p53 = scmp.eq.s32.totalorder %s21, 0
    %p54 = por %p52, %p53
    %p55 = scmp.ne.s32.totalorder %s41, %s42
    %p56 = scmp.eq.s32.totalorder %s22, 2
    %p57 = por %p55, %p56
    %p59 = scmp.ne.s32.totalorder %s42, %s58
    %p60 = scmp.eq.s32.totalorder %s22, 0
    %p61 = por %p59, %p60
    %s62 = ssub.s32 %s23, %s35
    %p63 = scmp.eq.s32.totalorder %s62, 0
    %s65 = sadd.s32 %s64, 1
    %s66 = scalar_select %p63, %s64, %s65
    %p69 = pneg %p63
    %p70 = scmp.eq.s32.totalorder %s16, 2
    %p71 = por %p69, %p70
    %p72 = scmp.ne.s32.totalorder %s64, %s67
    %p73 = scmp.eq.s32.totalorder %s16, 0
    %p74 = por %p72, %p73
    %p75 = scmp.ne.s32.totalorder %s64, %s67
    %p76 = scmp.eq.s32.totalorder %s21, 2
    %p77 = por %p75, %p76
    %p78 = scmp.ne.s32.totalorder %s67, %s68
    %p79 = scmp.eq.s32.totalorder %s21, 0
    %p80 = por %p78, %p79
    %p81 = scmp.ne.s32.totalorder %s67, %s68
    %p82 = scmp.eq.s32.totalorder %s22, 2
    %p83 = por %p81, %p82
    %p85 = scmp.ne.s32.totalorder %s68, %s84
    %p86 = scmp.eq.s32.totalorder %s22, 0
    %p87 = por %p85, %p86
    %s89 = sadd.s32 %s88, 1
    %p92 = scmp.eq.s32.totalorder %s16, 2
    %p93 = scmp.ne.s32.totalorder %s88, %s90
    %p94 = scmp.eq.s32.totalorder %s16, 0
    %p95 = por %p93, %p94
    %p96 = scmp.ne.s32.totalorder %s88, %s90
    %p97 = scmp.eq.s32.totalorder %s21, 2
    %p98 = por %p96, %p97
    %p99 = scmp.ne.s32.totalorder %s90, %s91
    %p100 = scmp.eq.s32.totalorder %s21, 0
    %p101 = por %p99, %p100
    %p102 = scmp.ne.s32.totalorder %s90, %s91
    %p103 = scmp.eq.s32.totalorder %s22, 2
    %p104 = por %p102, %p103
    %p106 = scmp.ne.s32.totalorder %s91, %s105
    %p107 = scmp.eq.s32.totalorder %s22, 0
    %p108 = por %p106, %p107
    %s109 = ssub.s32 %s24, %s31
    %p110 = scmp.eq.s32.totalorder %s109, 0
    %s112 = sadd.s32 %s111, 1
    %s113 = scalar_select %p110, %s111, %s112
    %p116 = pneg %p110
    %p117 = scmp.eq.s32.totalorder %s16, 2
    %p118 = por %p116, %p117
    %p119 = scmp.ne.s32.totalorder %s111, %s114
    %p120 = scmp.eq.s32.totalorder %s16, 0
    %p121 = por %p119, %p120
    %p122 = scmp.ne.s32.totalorder %s111, %s114
    %p123 = scmp.eq.s32.totalorder %s21, 2
    %p124 = por %p122, %p123
    %p125 = scmp.ne.s32.totalorder %s114, %s115
    %p126 = scmp.eq.s32.totalorder %s21, 0
    %p127 = por %p125, %p126
    %p128 = scmp.ne.s32.totalorder %s114, %s115
    %p129 = scmp.eq.s32.totalorder %s22, 2
    %p130 = por %p128, %p129
    %p132 = scmp.ne.s32.totalorder %s115, %s131
    %p133 = scmp.eq.s32.totalorder %s22, 0
    %p134 = por %p132, %p133
    %s135 = ssub.s32 %s24, %s31
    %p136 = scmp.eq.s32.totalorder %s135, 0
    %s138 = sadd.s32 %s137, 1
    %s139 = scalar_select %p136, %s137, %s138
    %p142 = pneg %p136
    %p143 = scmp.eq.s32.totalorder %s16, 2
    %p144 = por %p142, %p143
    %p145 = scmp.ne.s32.totalorder %s137, %s140
    %p146 = scmp.eq.s32.totalorder %s16, 0
    %p147 = por %p145, %p146
    %p148 = scmp.ne.s32.totalorder %s137, %s140
    %p149 = scmp.eq.s32.totalorder %s21, 2
    %p150 = por %p148, %p149
    %p151 = scmp.ne.s32.totalorder %s140, %s141
    %p152 = scmp.eq.s32.totalorder %s21, 0
    %p153 = por %p151, %p152
    %p154 = scmp.ne.s32.totalorder %s140, %s141
    %p155 = scmp.eq.s32.totalorder %s22, 2
    %p156 = por %p154, %p155
    %p158 = scmp.ne.s32.totalorder %s141, %s157
    %p159 = scmp.eq.s32.totalorder %s22, 0
    %p160 = por %p158, %p159
    %s161 = ssub.s32 %s24, %s31
    %p162 = scmp.eq.s32.totalorder %s161, 0
    %s164 = sadd.s32 %s163, 1
    %s165 = scalar_select %p162, %s163, %s164
    %p168 = pneg %p162
    %p169 = scmp.eq.s32.totalorder %s16, 2
    %p170 = por %p168, %p169
    %p171 = scmp.ne.s32.totalorder %s163, %s166
    %p172 = scmp.eq.s32.totalorder %s16, 0
    %p173 = por %p171, %p172
    %p174 = scmp.ne.s32.totalorder %s163, %s166
    %p175 = scmp.eq.s32.totalorder %s21, 2
    %p176 = por %p174, %p175
    %p177 = scmp.ne.s32.totalorder %s166, %s167
    %p178 = scmp.eq.s32.totalorder %s21, 0
    %p179 = por %p177, %p178
    %p180 = scmp.ne.s32.totalorder %s166, %s167
    %p181 = scmp.eq.s32.totalorder %s22, 2
    %p182 = por %p180, %p181
    %p184 = scmp.ne.s32.totalorder %s167, %s183
    %p185 = scmp.eq.s32.totalorder %s22, 0
    %p186 = por %p184, %p185
    %s188 = sadd.s32 %s187, 1
    %p191 = scmp.eq.s32.totalorder %s16, 2
    %p192 = scmp.ne.s32.totalorder %s187, %s189
    %p193 = scmp.eq.s32.totalorder %s16, 0
    %p194 = por %p192, %p193
    %p195 = scmp.ne.s32.totalorder %s187, %s189
    %p196 = scmp.eq.s32.totalorder %s21, 2
    %p197 = por %p195, %p196
    %p198 = scmp.ne.s32.totalorder %s189, %s190
    %p199 = scmp.eq.s32.totalorder %s21, 0
    %p200 = por %p198, %p199
    %p201 = scmp.ne.s32.totalorder %s189, %s190
    %p202 = scmp.eq.s32.totalorder %s22, 2
    %p203 = por %p201, %p202
    %p205 = scmp.ne.s32.totalorder %s190, %s204
    %p206 = scmp.eq.s32.totalorder %s22, 0
    %p207 = por %p205, %p206
    %s209 = sadd.s32 %s208, 1
    %p212 = scmp.eq.s32.totalorder %s16, 2
    %p213 = scmp.ne.s32.totalorder %s208, %s210
    %p214 = scmp.eq.s32.totalorder %s16, 0
    %p215 = por %p213, %p214
    %p216 = scmp.ne.s32.totalorder %s208, %s210
    %p217 = scmp.eq.s32.totalorder %s21, 2
    %p218 = por %p216, %p217
    %p219 = scmp.ne.s32.totalorder %s210, %s211
    %p220 = scmp.eq.s32.totalorder %s21, 0
    %p221 = por %p219, %p220
    %p222 = scmp.ne.s32.totalorder %s210, %s211
    %p223 = scmp.eq.s32.totalorder %s22, 2
    %p224 = por %p222, %p223
    %p226 = scmp.ne.s32.totalorder %s211, %s225
    %p227 = scmp.eq.s32.totalorder %s22, 0
    %p228 = por %p226, %p227
    %s230 = sadd.s32 %s229, 1
    %p233 = scmp.eq.s32.totalorder %s16, 2
    %p234 = scmp.ne.s32.totalorder %s229, %s231
    %p235 = scmp.eq.s32.totalorder %s16, 0
    %p236 = por %p234, %p235
    %p237 = scmp.ne.s32.totalorder %s229, %s231
    %p238 = scmp.eq.s32.totalorder %s21, 2
    %p239 = por %p237, %p238
    %p240 = scmp.ne.s32.totalorder %s231, %s232
    %p241 = scmp.eq.s32.totalorder %s21, 0
    %p242 = por %p240, %p241
    %p243 = scmp.ne.s32.totalorder %s231, %s232
    %p244 = scmp.eq.s32.totalorder %s22, 2
    %p245 = por %p243, %p244
    %p247 = scmp.ne.s32.totalorder %s232, %s246
    %p248 = scmp.eq.s32.totalorder %s22, 0
    %p249 = por %p247, %p248
    %s251 = sadd.s32 %s250, 1
    %p254 = scmp.eq.s32.totalorder %s16, 2
    %p255 = scmp.ne.s32.totalorder %s250, %s252
    %p256 = scmp.eq.s32.totalorder %s16, 0
    %p257 = por %p255, %p256
    %p258 = scmp.ne.s32.totalorder %s250, %s252
    %p259 = scmp.eq.s32.totalorder %s21, 2
    %p260 = por %p258, %p259
    %p261 = scmp.ne.s32.totalorder %s252, %s253
    %p262 = scmp.eq.s32.totalorder %s21, 0
    %p263 = por %p261, %p262
    %p264 = scmp.ne.s32.totalorder %s252, %s253
    %p265 = scmp.eq.s32.totalorder %s22, 2
    %p266 = por %p264, %p265
    %p268 = scmp.ne.s32.totalorder %s253, %s267
    %p269 = scmp.eq.s32.totalorder %s22, 0
    %p270 = por %p268, %p269
    %s272 = sadd.s32 %s271, 1
    %p275 = scmp.eq.s32.totalorder %s16, 2
    %p276 = scmp.ne.s32.totalorder %s271, %s273
    %p277 = scmp.eq.s32.totalorder %s16, 0
    %p278 = por %p276, %p277
    %p279 = scmp.ne.s32.totalorder %s271, %s273
    %p280 = scmp.eq.s32.totalorder %s21, 2
    %p281 = por %p279, %p280
    %p282 = scmp.ne.s32.totalorder %s273, %s274
    %p283 = scmp.eq.s32.totalorder %s21, 0
    %p284 = por %p282, %p283
    %p285 = scmp.ne.s32.totalorder %s273, %s274
    %p286 = scmp.eq.s32.totalorder %s22, 2
    %p287 = por %p285, %p286
    %p289 = scmp.ne.s32.totalorder %s274, %s288
    %p290 = scmp.eq.s32.totalorder %s22, 0
    %p291 = por %p289, %p290
    %p292 = scmp.le.s32.totalorder 1, %s16
    %p293 = scmp.lt.s32.totalorder %s16, 4
    %p294 = pnand %p292, %p293
    %p295 = pneg %p294
    // Predicated region
    $region9: #{gnn_layer_forward.1} parent=5 // pred_check
      _
    $region10: #{gnn_layer_forward.1} parent=5 // pred_check_branch
      %297 = sbr.rel (%p294) target = $region12
    $region11: #{gnn_layer_forward.1} parent=5 // pred_region
      %s298 = ssub.s32 %s16, 1
      // Predicated region
      $region13: #{gnn_layer_forward.1} parent=11 // pred_check
        %p299 = pneg %p54
      $region14: #{gnn_layer_forward.1} parent=11 // pred_check_branch
        %301 = sbr.rel (%p299) target = $region16
      $region15: #{gnn_layer_forward.1} parent=11 // pred_region
        %s302 = smul.u32 32, %s25
        %p303 = scmp.lt.s32.totalorder %s302, 31
        %s304 = scalar_select %p303, %s302, 31
        %s305 = smul.addr %s304, 8
        %s306 = scalar_lea.vmem %s0, %s305
        %s307 = smul.u32 32, %s25
      $region16: #{gnn_layer_forward.1} parent=11 // pred_fallthru
        _
      // Predicated region
      $region17: #{gnn_layer_forward.1} parent=11 // pred_check
        %p308 = pneg %p80
      $region18: #{gnn_layer_forward.1} parent=11 // pred_check_branch
        %310 = sbr.rel (%p308) target = $region20
      $region19: #{gnn_layer_forward.1} parent=11 // pred_region
        %s311 = smul.u32 2, %s25
        %p312 = scmp.lt.s32.totalorder %s311, 1
        %s313 = scalar_select %p312, %s311, 1
        %s314 = smul.addr %s313, 8
        %s315 = scalar_lea.vmem %s1, %s314
        %s316 = smul.u32 2, %s25
      $region20: #{gnn_layer_forward.1} parent=11 // pred_fallthru
        _
      // Predicated region
      $region21: #{gnn_layer_forward.1} parent=11 // pred_check
        %p317 = pneg %p101
      $region22: #{gnn_layer_forward.1} parent=11 // pred_check_branch
        %319 = sbr.rel (%p317) target = $region24
      $region23: #{gnn_layer_forward.1} parent=11 // pred_region
        _
      $region24: #{gnn_layer_forward.1} parent=11 // pred_fallthru
        _
      // Predicated region
      $region25: #{gnn_layer_forward.1} parent=11 // pred_check
        %p320 = pneg %p200
      $region26: #{gnn_layer_forward.1} parent=11 // pred_check_branch
        %322 = sbr.rel (%p320) target = $region28
      $region27: #{gnn_layer_forward.1} parent=11 // pred_region
        _
      $region28: #{gnn_layer_forward.1} parent=11 // pred_fallthru
        _
      // Predicated region
      $region29: #{gnn_layer_forward.1} parent=11 // pred_check
        %p323 = pneg %p221
      $region30: #{gnn_layer_forward.1} parent=11 // pred_check_branch
        %325 = sbr.rel (%p323) target = $region32
      $region31: #{gnn_layer_forward.1} parent=11 // pred_region
        _
      $region32: #{gnn_layer_forward.1} parent=11 // pred_fallthru
        _
      // Predicated region
      $region33: #{gnn_layer_forward.1} parent=11 // pred_check
        %p326 = pneg %p242
      $region34: #{gnn_layer_forward.1} parent=11 // pred_check_branch
        %328 = sbr.rel (%p326) target = $region36
      $region35: #{gnn_layer_forward.1} parent=11 // pred_region
        _
      $region36: #{gnn_layer_forward.1} parent=11 // pred_fallthru
        _
      // Predicated region
      $region37: #{gnn_layer_forward.1} parent=11 // pred_check
        %p329 = pneg %p263
      $region38: #{gnn_layer_forward.1} parent=11 // pred_check_branch
        %331 = sbr.rel (%p329) target = $region40
      $region39: #{gnn_layer_forward.1} parent=11 // pred_region
        _
      $region40: #{gnn_layer_forward.1} parent=11 // pred_fallthru
        _
    $region12: #{gnn_layer_forward.1} parent=5 // pred_fallthru
      _
    %p332 = scmp.lt.s32.totalorder %s16, 3
    // Predicated region
    $region41: #{gnn_layer_forward.1} parent=5 // pred_check
      %p333 = pneg %p332
    $region42: #{gnn_layer_forward.1} parent=5 // pred_check_branch
      %335 = sbr.rel (%p333) target = $region44
    $region43: #{gnn_layer_forward.1} parent=5 // pred_region
      // Predicated region
      $region45: #{gnn_layer_forward.1} parent=43 // pred_check
        %p336 = pneg %p121
      $region46: #{gnn_layer_forward.1} parent=43 // pred_check_branch
        %338 = sbr.rel (%p336) target = $region48
      $region47: #{gnn_layer_forward.1} parent=43 // pred_region
        %p339 = scmp.lt.s32.totalorder %s24, 2
        %s340 = scalar_select %p339, %s24, 2
        %s341 = smul.addr %s340, 16
        %s342 = smul.addr %s341, 4
        %s343 = scalar_lea.vmem %s3, %s342
      $region48: #{gnn_layer_forward.1} parent=43 // pred_fallthru
        _
      // Predicated region
      $region49: #{gnn_layer_forward.1} parent=43 // pred_check
        %p344 = pneg %p147
      $region50: #{gnn_layer_forward.1} parent=43 // pred_check_branch
        %346 = sbr.rel (%p344) target = $region52
      $region51: #{gnn_layer_forward.1} parent=43 // pred_region
        %p347 = scmp.lt.s32.totalorder %s24, 2
        %s348 = scalar_select %p347, %s24, 2
        %s349 = scalar_lea.vmem %s4, %s348
      $region52: #{gnn_layer_forward.1} parent=43 // pred_fallthru
        _
      // Predicated region
      $region53: #{gnn_layer_forward.1} parent=43 // pred_check
        %p350 = pneg %p173
      $region54: #{gnn_layer_forward.1} parent=43 // pred_check_branch
        %352 = sbr.rel (%p350) target = $region56
      $region55: #{gnn_layer_forward.1} parent=43 // pred_region
        %p353 = scmp.lt.s32.totalorder %s24, 2
        %s354 = scalar_select %p353, %s24, 2
        %s355 = smul.addr %s354, 256
        %s356 = smul.addr %s355, 4
        %s357 = scalar_lea.vmem %s5, %s356
      $region56: #{gnn_layer_forward.1} parent=43 // pred_fallthru
        _
    $region44: #{gnn_layer_forward.1} parent=5 // pred_fallthru
      _
    %p358 = scmp.le.s32.totalorder 1, %s16
    %p359 = scmp.lt.s32.totalorder %s16, 4
    %p360 = pnand %p358, %p359
    %p361 = pneg %p360
    // Predicated region
    $region57: #{gnn_layer_forward.1} parent=5 // pred_check
      _
    $region58: #{gnn_layer_forward.1} parent=5 // pred_check_branch
      %363 = sbr.rel (%p360) target = $region60
    $region59: #{gnn_layer_forward.1} parent=5 // pred_region
      %s364 = ssub.s32 %s16, 1
      %s365 = smul.u32 32, %s25
      %p366 = scmp.lt.s32.totalorder %s365, 31
      %s367 = scalar_select %p366, %s365, 31
      %s368 = smul.addr %s367, 8
      %s369 = scalar_lea.vmem %s0, %s368
      %p370 = pneg %p54
      %p371 = pneg %p51
      %s372 = smul.u32 2, %s25
      %p373 = scmp.lt.s32.totalorder %s372, 1
      %s374 = scalar_select %p373, %s372, 1
      %s375 = smul.addr %s374, 8
      %s376 = scalar_lea.vmem %s1, %s375
      %p377 = pneg %p80
      %p378 = pneg %p77
      %p379 = pneg %p101
      %p380 = pneg %p98
      %p381 = scmp.lt.s32.totalorder %s26, 2
      %s382 = scalar_select %p381, %s26, 2
      %s383 = smul.addr %s382, 16
      %s384 = smul.addr %s383, 4
      %s385 = scalar_lea.vmem %s3, %s384
      %p386 = pneg %p127
      %p387 = pneg %p124
      %p388 = scmp.lt.s32.totalorder %s26, 2
      %s389 = scalar_select %p388, %s26, 2
      %s390 = scalar_lea.vmem %s4, %s389
      %p391 = pneg %p153
      %p392 = pneg %p150
      %p393 = scmp.lt.s32.totalorder %s26, 2
      %s394 = scalar_select %p393, %s26, 2
      %s395 = smul.addr %s394, 256
      %s396 = smul.addr %s395, 4
      %s397 = scalar_lea.vmem %s5, %s396
      %p398 = pneg %p179
      %p399 = pneg %p176
      %p400 = pneg %p200
      %p401 = pneg %p197
      %p402 = pneg %p221
      %p403 = pneg %p218
      %p404 = pneg %p242
      %p405 = pneg %p239
      %p406 = pneg %p263
      %p407 = pneg %p260
      %p408 = pneg %p284
      %p409 = pneg %p281
      %s410 = smul.u32 32, %s25
      %p411 = scmp.lt.s32.totalorder %s410, 31
      %s412 = scalar_select %p411, %s410, 31
      %s413 = smul.addr %s412, 8
      %s414 = scalar_lea.vmem %s0, %s413
      %s415 = smul.u32 32, %s25
      %s416 = smul.u32 2, %s25
      %p417 = scmp.lt.s32.totalorder %s416, 1
      %s418 = scalar_select %p417, %s416, 1
      %s419 = smul.addr %s418, 8
      %s420 = scalar_lea.vmem %s1, %s419
      %s421 = smul.u32 2, %s25
      %p422 = scmp.lt.s32.totalorder %s26, 2
      %s423 = scalar_select %p422, %s26, 2
      %s424 = smul.addr %s423, 16
      %s425 = smul.addr %s424, 4
      %s426 = scalar_lea.vmem %s3, %s425
      %p427 = scmp.lt.s32.totalorder %s26, 2
      %s428 = scalar_select %p427, %s26, 2
      %s429 = scalar_lea.vmem %s4, %s428
      %p430 = scmp.lt.s32.totalorder %s26, 2
      %s431 = scalar_select %p430, %s26, 2
      %s432 = smul.addr %s431, 256
      %s433 = smul.addr %s432, 4
      %s434 = scalar_lea.vmem %s5, %s433
      %p435 = scmp.eq.s32.totalorder %s25, 0
      %p436 = scmp.eq.s32.totalorder %s26, 0
      %p437 = pnand %p435, %p436
      %p438 = pneg %p437
      // Predicated region
      $region61: #{gnn_layer_forward.1} parent=59 // pred_check
        _
      $region62: #{gnn_layer_forward.1} parent=59 // pred_check_branch
        %440 = sbr.rel (%p437) target = $region64
      $region63: #{gnn_layer_forward.1} parent=59 // pred_region
        %441 = vst [vmem:[%s10] sm:$0xff] 0.0
        %442 = vst [vmem:[%s10 + $0x8] sm:$0xff] 0.0
        %443 = vst [vmem:[%s10 + $0x10] sm:$0xff] 0.0
        %444 = vst [vmem:[%s10 + $0x18] sm:$0xff] 0.0
        %445 = vst [vmem:[%s10 + $0x20] sm:$0xff] 0.0
        %446 = vst [vmem:[%s10 + $0x28] sm:$0xff] 0.0
        %447 = vst [vmem:[%s10 + $0x30] sm:$0xff] 0.0
        %448 = vst [vmem:[%s10 + $0x38] sm:$0xff] 0.0
        %449 = vst [vmem:[%s10 + $0x40] sm:$0xff] 0.0
        %450 = vst [vmem:[%s10 + $0x48] sm:$0xff] 0.0
        %451 = vst [vmem:[%s10 + $0x50] sm:$0xff] 0.0
        %452 = vst [vmem:[%s10 + $0x58] sm:$0xff] 0.0
        %453 = vst [vmem:[%s10 + $0x60] sm:$0xff] 0.0
        %454 = vst [vmem:[%s10 + $0x68] sm:$0xff] 0.0
        %455 = vst [vmem:[%s10 + $0x70] sm:$0xff] 0.0
        %456 = vst [vmem:[%s10 + $0x78] sm:$0xff] 0.0
      $region64: #{gnn_layer_forward.1} parent=59 // pred_fallthru
        _
      // Predicated region
      $region65: #{gnn_layer_forward.1} parent=59 // pred_check
        %p457 = pneg %p436
      $region66: #{gnn_layer_forward.1} parent=59 // pred_check_branch
        %459 = sbr.rel (%p457) target = $region68
      $region67: #{gnn_layer_forward.1} parent=59 // pred_region
        %v460 = vld [vmem:[%s414] sm:$0xff]
        %v461 = vld [vmem:[%s414 + $0x8] sm:$0xff]
        %v462 = vld [vmem:[%s414 + $0x10] sm:$0xff]
        %v463 = vld [vmem:[%s414 + $0x18] sm:$0xff]
        %v464 = vld [vmem:[%s414 + $0x20] sm:$0xff]
        %v465 = vld [vmem:[%s414 + $0x28] sm:$0xff]
        %v466 = vld [vmem:[%s414 + $0x30] sm:$0xff]
        %v467 = vld [vmem:[%s414 + $0x38] sm:$0xff]
        %v468 = vld [vmem:[%s414 + $0x40] sm:$0xff]
        %v469 = vld [vmem:[%s414 + $0x48] sm:$0xff]
        %v470 = vld [vmem:[%s414 + $0x50] sm:$0xff]
        %v471 = vld [vmem:[%s414 + $0x58] sm:$0xff]
        %v472 = vld [vmem:[%s414 + $0x60] sm:$0xff]
        %v473 = vld [vmem:[%s414 + $0x68] sm:$0xff]
        %v474 = vld [vmem:[%s414 + $0x70] sm:$0xff]
        %v475 = vld [vmem:[%s414 + $0x78] sm:$0xff]
        %v476 = vld [vmem:[%s414 + $0x80] sm:$0xff]
        %v477 = vld [vmem:[%s414 + $0x88] sm:$0xff]
        %v478 = vld [vmem:[%s414 + $0x90] sm:$0xff]
        %v479 = vld [vmem:[%s414 + $0x98] sm:$0xff]
        %v480 = vld [vmem:[%s414 + $0xa0] sm:$0xff]
        %v481 = vld [vmem:[%s414 + $0xa8] sm:$0xff]
        %v482 = vld [vmem:[%s414 + $0xb0] sm:$0xff]
        %v483 = vld [vmem:[%s414 + $0xb8] sm:$0xff]
        %v484 = vld [vmem:[%s414 + $0xc0] sm:$0xff]
        %v485 = vld [vmem:[%s414 + $0xc8] sm:$0xff]
        %v486 = vld [vmem:[%s414 + $0xd0] sm:$0xff]
        %v487 = vld [vmem:[%s414 + $0xd8] sm:$0xff]
        %v488 = vld [vmem:[%s414 + $0xe0] sm:$0xff]
        %v489 = vld [vmem:[%s414 + $0xe8] sm:$0xff]
        %v490 = vld [vmem:[%s414 + $0xf0] sm:$0xff]
        %v491 = vld [vmem:[%s414 + $0xf8] sm:$0xff]
        %vm492 = vcmp.ge.s32.totalorder %v460, 0
        %vm493 = vcmp.ge.s32.totalorder %v461, 0
        %vm494 = vcmp.ge.s32.totalorder %v462, 0
        %vm495 = vcmp.ge.s32.totalorder %v463, 0
        %vm496 = vcmp.ge.s32.totalorder %v464, 0
        %vm497 = vcmp.ge.s32.totalorder %v465, 0
        %vm498 = vcmp.ge.s32.totalorder %v466, 0
        %vm499 = vcmp.ge.s32.totalorder %v467, 0
        %vm500 = vcmp.ge.s32.totalorder %v468, 0
        %vm501 = vcmp.ge.s32.totalorder %v469, 0
        %vm502 = vcmp.ge.s32.totalorder %v470, 0
        %vm503 = vcmp.ge.s32.totalorder %v471, 0
        %vm504 = vcmp.ge.s32.totalorder %v472, 0
        %vm505 = vcmp.ge.s32.totalorder %v473, 0
        %vm506 = vcmp.ge.s32.totalorder %v474, 0
        %vm507 = vcmp.ge.s32.totalorder %v475, 0
        %vm508 = vcmp.ge.s32.totalorder %v476, 0
        %vm509 = vcmp.ge.s32.totalorder %v477, 0
        %vm510 = vcmp.ge.s32.totalorder %v478, 0
        %vm511 = vcmp.ge.s32.totalorder %v479, 0
        %vm512 = vcmp.ge.s32.totalorder %v480, 0
        %vm513 = vcmp.ge.s32.totalorder %v481, 0
        %vm514 = vcmp.ge.s32.totalorder %v482, 0
        %vm515 = vcmp.ge.s32.totalorder %v483, 0
        %vm516 = vcmp.ge.s32.totalorder %v484, 0
        %vm517 = vcmp.ge.s32.totalorder %v485, 0
        %vm518 = vcmp.ge.s32.totalorder %v486, 0
        %vm519 = vcmp.ge.s32.totalorder %v487, 0
        %vm520 = vcmp.ge.s32.totalorder %v488, 0
        %vm521 = vcmp.ge.s32.totalorder %v489, 0
        %vm522 = vcmp.ge.s32.totalorder %v490, 0
        %vm523 = vcmp.ge.s32.totalorder %v491, 0
        %v524 = vsel %vm492, 1, 0
        %v525 = vsel %vm493, 1, 0
        %v526 = vsel %vm494, 1, 0
        %v527 = vsel %vm495, 1, 0
        %v528 = vsel %vm496, 1, 0
        %v529 = vsel %vm497, 1, 0
        %v530 = vsel %vm498, 1, 0
        %v531 = vsel %vm499, 1, 0
        %v532 = vsel %vm500, 1, 0
        %v533 = vsel %vm501, 1, 0
        %v534 = vsel %vm502, 1, 0
        %v535 = vsel %vm503, 1, 0
        %v536 = vsel %vm504, 1, 0
        %v537 = vsel %vm505, 1, 0
        %v538 = vsel %vm506, 1, 0
        %v539 = vsel %vm507, 1, 0
        %v540 = vsel %vm508, 1, 0
        %v541 = vsel %vm509, 1, 0
        %v542 = vsel %vm510, 1, 0
        %v543 = vsel %vm511, 1, 0
        %v544 = vsel %vm512, 1, 0
        %v545 = vsel %vm513, 1, 0
        %v546 = vsel %vm514, 1, 0
        %v547 = vsel %vm515, 1, 0
        %v548 = vsel %vm516, 1, 0
        %v549 = vsel %vm517, 1, 0
        %v550 = vsel %vm518, 1, 0
        %v551 = vsel %vm519, 1, 0
        %v552 = vsel %vm520, 1, 0
        %v553 = vsel %vm521, 1, 0
        %v554 = vsel %vm522, 1, 0
        %v555 = vsel %vm523, 1, 0
        %v556 = vcvt.s32.f32 %v524
        %v557 = vcvt.s32.f32 %v525
        %v558 = vcvt.s32.f32 %v526
        %v559 = vcvt.s32.f32 %v527
        %v560 = vcvt.s32.f32 %v528
        %v561 = vcvt.s32.f32 %v529
        %v562 = vcvt.s32.f32 %v530
        %v563 = vcvt.s32.f32 %v531
        %v564 = vcvt.s32.f32 %v532
        %v565 = vcvt.s32.f32 %v533
        %v566 = vcvt.s32.f32 %v534
        %v567 = vcvt.s32.f32 %v535
        %v568 = vcvt.s32.f32 %v536
        %v569 = vcvt.s32.f32 %v537
        %v570 = vcvt.s32.f32 %v538
        %v571 = vcvt.s32.f32 %v539
        %v572 = vcvt.s32.f32 %v540
        %v573 = vcvt.s32.f32 %v541
        %v574 = vcvt.s32.f32 %v542
        %v575 = vcvt.s32.f32 %v543
        %v576 = vcvt.s32.f32 %v544
        %v577 = vcvt.s32.f32 %v545
        %v578 = vcvt.s32.f32 %v546
        %v579 = vcvt.s32.f32 %v547
        %v580 = vcvt.s32.f32 %v548
        %v581 = vcvt.s32.f32 %v549
        %v582 = vcvt.s32.f32 %v550
        %v583 = vcvt.s32.f32 %v551
        %v584 = vcvt.s32.f32 %v552
        %v585 = vcvt.s32.f32 %v553
        %v586 = vcvt.s32.f32 %v554
        %v587 = vcvt.s32.f32 %v555
        %v588 = vld [vmem:[%s2] sm:$0xf]
        %v589 = vld [vmem:[%s2 + $0x4] sm:$0xf]
        %v590 = vld [vmem:[%s2 + $0x8] sm:$0xf]
        %v591 = vld [vmem:[%s2 + $0xc] sm:$0xf]
        %v592 = vld [vmem:[%s2 + $0x10] sm:$0xf]
        %v593 = vld [vmem:[%s2 + $0x14] sm:$0xf]
        %v594 = vld [vmem:[%s2 + $0x18] sm:$0xf]
        %v595 = vld [vmem:[%s2 + $0x1c] sm:$0xf]
        %v596 = vld [vmem:[%s2 + $0x20] sm:$0xf]
        %v597 = vld [vmem:[%s2 + $0x24] sm:$0xf]
        %v598 = vld [vmem:[%s2 + $0x28] sm:$0xf]
        %v599 = vld [vmem:[%s2 + $0x2c] sm:$0xf]
        %v600 = vld [vmem:[%s2 + $0x30] sm:$0xf]
        %v601 = vld [vmem:[%s2 + $0x34] sm:$0xf]
        %v602 = vld [vmem:[%s2 + $0x38] sm:$0xf]
        %v603 = vld [vmem:[%s2 + $0x3c] sm:$0xf]
        %v604 = vlaneseq
        %v605 = vand.u32 %v604, 127
        %606 = vset.pattern.permute.xlu0 0
        %607 = vperm.xlu0 %606, %v460
        %v608 = vpop.permute.xlu0 %607
        %609 = vset.pattern.permute.xlu0 0
        %610 = vperm.xlu0 %609, %v461
        %v611 = vpop.permute.xlu0 %610
        %612 = vset.pattern.permute.xlu0 0
        %613 = vperm.xlu0 %612, %v462
        %v614 = vpop.permute.xlu0 %613
        %615 = vset.pattern.permute.xlu0 0
        %616 = vperm.xlu0 %615, %v463
        %v617 = vpop.permute.xlu0 %616
        %618 = vset.pattern.permute.xlu0 0
        %619 = vperm.xlu0 %618, %v464
        %v620 = vpop.permute.xlu0 %619
        %621 = vset.pattern.permute.xlu0 0
        %622 = vperm.xlu0 %621, %v465
        %v623 = vpop.permute.xlu0 %622
        %624 = vset.pattern.permute.xlu0 0
        %625 = vperm.xlu0 %624, %v466
        %v626 = vpop.permute.xlu0 %625
        %627 = vset.pattern.permute.xlu0 0
        %628 = vperm.xlu0 %627, %v467
        %v629 = vpop.permute.xlu0 %628
        %630 = vset.pattern.permute.xlu0 0
        %631 = vperm.xlu0 %630, %v468
        %v632 = vpop.permute.xlu0 %631
        %633 = vset.pattern.permute.xlu0 0
        %634 = vperm.xlu0 %633, %v469
        %v635 = vpop.permute.xlu0 %634
        %636 = vset.pattern.permute.xlu0 0
        %637 = vperm.xlu0 %636, %v470
        %v638 = vpop.permute.xlu0 %637
        %639 = vset.pattern.permute.xlu0 0
        %640 = vperm.xlu0 %639, %v471
        %v641 = vpop.permute.xlu0 %640
        %642 = vset.pattern.permute.xlu0 0
        %643 = vperm.xlu0 %642, %v472
        %v644 = vpop.permute.xlu0 %643
        %645 = vset.pattern.permute.xlu0 0
        %646 = vperm.xlu0 %645, %v473
        %v647 = vpop.permute.xlu0 %646
        %648 = vset.pattern.permute.xlu0 0
        %649 = vperm.xlu0 %648, %v474
        %v650 = vpop.permute.xlu0 %649
        %651 = vset.pattern.permute.xlu0 0
        %652 = vperm.xlu0 %651, %v475
        %v653 = vpop.permute.xlu0 %652
        %654 = vset.pattern.permute.xlu0 0
        %655 = vperm.xlu0 %654, %v476
        %v656 = vpop.permute.xlu0 %655
        %657 = vset.pattern.permute.xlu0 0
        %658 = vperm.xlu0 %657, %v477
        %v659 = vpop.permute.xlu0 %658
        %660 = vset.pattern.permute.xlu0 0
        %661 = vperm.xlu0 %660, %v478
        %v662 = vpop.permute.xlu0 %661
        %663 = vset.pattern.permute.xlu0 0
        %664 = vperm.xlu0 %663, %v479
        %v665 = vpop.permute.xlu0 %664
        %666 = vset.pattern.permute.xlu0 0
        %667 = vperm.xlu0 %666, %v480
        %v668 = vpop.permute.xlu0 %667
        %669 = vset.pattern.permute.xlu0 0
        %670 = vperm.xlu0 %669, %v481
        %v671 = vpop.permute.xlu0 %670
        %672 = vset.pattern.permute.xlu0 0
        %673 = vperm.xlu0 %672, %v482
        %v674 = vpop.permute.xlu0 %673
        %675 = vset.pattern.permute.xlu0 0
        %676 = vperm.xlu0 %675, %v483
        %v677 = vpop.permute.xlu0 %676
        %678 = vset.pattern.permute.xlu0 0
        %679 = vperm.xlu0 %678, %v484
        %v680 = vpop.permute.xlu0 %679
        %681 = vset.pattern.permute.xlu0 0
        %682 = vperm.xlu0 %681, %v485
        %v683 = vpop.permute.xlu0 %682
        %684 = vset.pattern.permute.xlu0 0
        %685 = vperm.xlu0 %684, %v486
        %v686 = vpop.permute.xlu0 %685
        %687 = vset.pattern.permute.xlu0 0
        %688 = vperm.xlu0 %687, %v487
        %v689 = vpop.permute.xlu0 %688
        %690 = vset.pattern.permute.xlu0 0
        %691 = vperm.xlu0 %690, %v488
        %v692 = vpop.permute.xlu0 %691
        %693 = vset.pattern.permute.xlu0 0
        %694 = vperm.xlu0 %693, %v489
        %v695 = vpop.permute.xlu0 %694
        %696 = vset.pattern.permute.xlu0 0
        %697 = vperm.xlu0 %696, %v490
        %v698 = vpop.permute.xlu0 %697
        %699 = vset.pattern.permute.xlu0 0
        %700 = vperm.xlu0 %699, %v491
        %v701 = vpop.permute.xlu0 %700
        %vm702 = vcmp.eq.s32.totalorder %v605, %v608
        %vm703 = vcmp.eq.s32.totalorder %v605, %v611
        %vm704 = vcmp.eq.s32.totalorder %v605, %v614
        %vm705 = vcmp.eq.s32.totalorder %v605, %v617
        %vm706 = vcmp.eq.s32.totalorder %v605, %v620
        %vm707 = vcmp.eq.s32.totalorder %v605, %v623
        %vm708 = vcmp.eq.s32.totalorder %v605, %v626
        %vm709 = vcmp.eq.s32.totalorder %v605, %v629
        %vm710 = vcmp.eq.s32.totalorder %v605, %v632
        %vm711 = vcmp.eq.s32.totalorder %v605, %v635
        %vm712 = vcmp.eq.s32.totalorder %v605, %v638
        %vm713 = vcmp.eq.s32.totalorder %v605, %v641
        %vm714 = vcmp.eq.s32.totalorder %v605, %v644
        %vm715 = vcmp.eq.s32.totalorder %v605, %v647
        %vm716 = vcmp.eq.s32.totalorder %v605, %v650
        %vm717 = vcmp.eq.s32.totalorder %v605, %v653
        %vm718 = vcmp.eq.s32.totalorder %v605, %v656
        %vm719 = vcmp.eq.s32.totalorder %v605, %v659
        %vm720 = vcmp.eq.s32.totalorder %v605, %v662
        %vm721 = vcmp.eq.s32.totalorder %v605, %v665
        %vm722 = vcmp.eq.s32.totalorder %v605, %v668
        %vm723 = vcmp.eq.s32.totalorder %v605, %v671
        %vm724 = vcmp.eq.s32.totalorder %v605, %v674
        %vm725 = vcmp.eq.s32.totalorder %v605, %v677
        %vm726 = vcmp.eq.s32.totalorder %v605, %v680
        %vm727 = vcmp.eq.s32.totalorder %v605, %v683
        %vm728 = vcmp.eq.s32.totalorder %v605, %v686
        %vm729 = vcmp.eq.s32.totalorder %v605, %v689
        %vm730 = vcmp.eq.s32.totalorder %v605, %v692
        %vm731 = vcmp.eq.s32.totalorder %v605, %v695
        %vm732 = vcmp.eq.s32.totalorder %v605, %v698
        %vm733 = vcmp.eq.s32.totalorder %v605, %v701
        %v734 = vsel %vm702, 1.0, 0.0
        %v735 = vsel %vm703, 1.0, 0.0
        %v736 = vsel %vm704, 1.0, 0.0
        %v737 = vsel %vm705, 1.0, 0.0
        %v738 = vsel %vm706, 1.0, 0.0
        %v739 = vsel %vm707, 1.0, 0.0
        %v740 = vsel %vm708, 1.0, 0.0
        %v741 = vsel %vm709, 1.0, 0.0
        %v742 = vsel %vm710, 1.0, 0.0
        %v743 = vsel %vm711, 1.0, 0.0
        %v744 = vsel %vm712, 1.0, 0.0
        %v745 = vsel %vm713, 1.0, 0.0
        %v746 = vsel %vm714, 1.0, 0.0
        %v747 = vsel %vm715, 1.0, 0.0
        %v748 = vsel %vm716, 1.0, 0.0
        %v749 = vsel %vm717, 1.0, 0.0
        %v750 = vsel %vm718, 1.0, 0.0
        %v751 = vsel %vm719, 1.0, 0.0
        %v752 = vsel %vm720, 1.0, 0.0
        %v753 = vsel %vm721, 1.0, 0.0
        %v754 = vsel %vm722, 1.0, 0.0
        %v755 = vsel %vm723, 1.0, 0.0
        %v756 = vsel %vm724, 1.0, 0.0
        %v757 = vsel %vm725, 1.0, 0.0
        %v758 = vsel %vm726, 1.0, 0.0
        %v759 = vsel %vm727, 1.0, 0.0
        %v760 = vsel %vm728, 1.0, 0.0
        %v761 = vsel %vm729, 1.0, 0.0
        %v762 = vsel %vm730, 1.0, 0.0
        %v763 = vsel %vm731, 1.0, 0.0
        %v764 = vsel %vm732, 1.0, 0.0
        %v765 = vsel %vm733, 1.0, 0.0
        %v766 = vpack.c.bf16 %v735, %v734
        %v767 = vpack.c.bf16 %v737, %v736
        %v768 = vpack.c.bf16 %v739, %v738
        %v769 = vpack.c.bf16 %v741, %v740
        %v770 = vpack.c.bf16 %v743, %v742
        %v771 = vpack.c.bf16 %v745, %v744
        %v772 = vpack.c.bf16 %v747, %v746
        %v773 = vpack.c.bf16 %v749, %v748
        %v774 = vpack.c.bf16 %v751, %v750
        %v775 = vpack.c.bf16 %v753, %v752
        %v776 = vpack.c.bf16 %v755, %v754
        %v777 = vpack.c.bf16 %v757, %v756
        %v778 = vpack.c.bf16 %v759, %v758
        %v779 = vpack.c.bf16 %v761, %v760
        %v780 = vpack.c.bf16 %v763, %v762
        %v781 = vpack.c.bf16 %v765, %v764
        %782 = vset.pattern.permute.xlu0 1
        %783 = vperm.xlu0 %782, %v460
        %v784 = vpop.permute.xlu0 %783
        %785 = vset.pattern.permute.xlu0 1
        %786 = vperm.xlu0 %785, %v461
        %v787 = vpop.permute.xlu0 %786
        %788 = vset.pattern.permute.xlu0 1
        %789 = vperm.xlu0 %788, %v462
        %v790 = vpop.permute.xlu0 %789
        %791 = vset.pattern.permute.xlu0 1
        %792 = vperm.xlu0 %791, %v463
        %v793 = vpop.permute.xlu0 %792
        %794 = vset.pattern.permute.xlu0 1
        %795 = vperm.xlu0 %794, %v464
        %v796 = vpop.permute.xlu0 %795
        %797 = vset.pattern.permute.xlu0 1
        %798 = vperm.xlu0 %797, %v465
        %v799 = vpop.permute.xlu0 %798
        %800 = vset.pattern.permute.xlu0 1
        %801 = vperm.xlu0 %800, %v466
        %v802 = vpop.permute.xlu0 %801
        %803 = vset.pattern.permute.xlu0 1
        %804 = vperm.xlu0 %803, %v467
        %v805 = vpop.permute.xlu0 %804
        %806 = vset.pattern.permute.xlu0 1
        %807 = vperm.xlu0 %806, %v468
        %v808 = vpop.permute.xlu0 %807
        %809 = vset.pattern.permute.xlu0 1
        %810 = vperm.xlu0 %809, %v469
        %v811 = vpop.permute.xlu0 %810
        %812 = vset.pattern.permute.xlu0 1
        %813 = vperm.xlu0 %812, %v470
        %v814 = vpop.permute.xlu0 %813
        %815 = vset.pattern.permute.xlu0 1
        %816 = vperm.xlu0 %815, %v471
        %v817 = vpop.permute.xlu0 %816
        %818 = vset.pattern.permute.xlu0 1
        %819 = vperm.xlu0 %818, %v472
        %v820 = vpop.permute.xlu0 %819
        %821 = vset.pattern.permute.xlu0 1
        %822 = vperm.xlu0 %821, %v473
        %v823 = vpop.permute.xlu0 %822
        %824 = vset.pattern.permute.xlu0 1
        %825 = vperm.xlu0 %824, %v474
        %v826 = vpop.permute.xlu0 %825
        %827 = vset.pattern.permute.xlu0 1
        %828 = vperm.xlu0 %827, %v475
        %v829 = vpop.permute.xlu0 %828
        %830 = vset.pattern.permute.xlu0 1
        %831 = vperm.xlu0 %830, %v476
        %v832 = vpop.permute.xlu0 %831
        %833 = vset.pattern.permute.xlu0 1
        %834 = vperm.xlu0 %833, %v477
        %v835 = vpop.permute.xlu0 %834
        %836 = vset.pattern.permute.xlu0 1
        %837 = vperm.xlu0 %836, %v478
        %v838 = vpop.permute.xlu0 %837
        %839 = vset.pattern.permute.xlu0 1
        %840 = vperm.xlu0 %839, %v479
        %v841 = vpop.permute.xlu0 %840
        %842 = vset.pattern.permute.xlu0 1
        %843 = vperm.xlu0 %842, %v480
        %v844 = vpop.permute.xlu0 %843
        %845 = vset.pattern.permute.xlu0 1
        %846 = vperm.xlu0 %845, %v481
        %v847 = vpop.permute.xlu0 %846
        %848 = vset.pattern.permute.xlu0 1
        %849 = vperm.xlu0 %848, %v482
        %v850 = vpop.permute.xlu0 %849
        %851 = vset.pattern.permute.xlu0 1
        %852 = vperm.xlu0 %851, %v483
        %v853 = vpop.permute.xlu0 %852
        %854 = vset.pattern.permute.xlu0 1
        %855 = vperm.xlu0 %854, %v484
        %v856 = vpop.permute.xlu0 %855
        %857 = vset.pattern.permute.xlu0 1
        %858 = vperm.xlu0 %857, %v485
        %v859 = vpop.permute.xlu0 %858
        %860 = vset.pattern.permute.xlu0 1
        %861 = vperm.xlu0 %860, %v486
        %v862 = vpop.permute.xlu0 %861
        %863 = vset.pattern.permute.xlu0 1
        %864 = vperm.xlu0 %863, %v487
        %v865 = vpop.permute.xlu0 %864
        %866 = vset.pattern.permute.xlu0 1
        %867 = vperm.xlu0 %866, %v488
        %v868 = vpop.permute.xlu0 %867
        %869 = vset.pattern.permute.xlu0 1
        %870 = vperm.xlu0 %869, %v489
        %v871 = vpop.permute.xlu0 %870
        %872 = vset.pattern.permute.xlu0 1
        %873 = vperm.xlu0 %872, %v490
        %v874 = vpop.permute.xlu0 %873
        %875 = vset.pattern.permute.xlu0 1
        %876 = vperm.xlu0 %875, %v491
        %v877 = vpop.permute.xlu0 %876
        %vm878 = vcmp.eq.s32.totalorder %v605, %v784
        %vm879 = vcmp.eq.s32.totalorder %v605, %v787
        %vm880 = vcmp.eq.s32.totalorder %v605, %v790
        %vm881 = vcmp.eq.s32.totalorder %v605, %v793
        %vm882 = vcmp.eq.s32.totalorder %v605, %v796
        %vm883 = vcmp.eq.s32.totalorder %v605, %v799
        %vm884 = vcmp.eq.s32.totalorder %v605, %v802
        %vm885 = vcmp.eq.s32.totalorder %v605, %v805
        %vm886 = vcmp.eq.s32.totalorder %v605, %v808
        %vm887 = vcmp.eq.s32.totalorder %v605, %v811
        %vm888 = vcmp.eq.s32.totalorder %v605, %v814
        %vm889 = vcmp.eq.s32.totalorder %v605, %v817
        %vm890 = vcmp.eq.s32.totalorder %v605, %v820
        %vm891 = vcmp.eq.s32.totalorder %v605, %v823
        %vm892 = vcmp.eq.s32.totalorder %v605, %v826
        %vm893 = vcmp.eq.s32.totalorder %v605, %v829
        %vm894 = vcmp.eq.s32.totalorder %v605, %v832
        %vm895 = vcmp.eq.s32.totalorder %v605, %v835
        %vm896 = vcmp.eq.s32.totalorder %v605, %v838
        %vm897 = vcmp.eq.s32.totalorder %v605, %v841
        %vm898 = vcmp.eq.s32.totalorder %v605, %v844
        %vm899 = vcmp.eq.s32.totalorder %v605, %v847
        %vm900 = vcmp.eq.s32.totalorder %v605, %v850
        %vm901 = vcmp.eq.s32.totalorder %v605, %v853
        %vm902 = vcmp.eq.s32.totalorder %v605, %v856
        %vm903 = vcmp.eq.s32.totalorder %v605, %v859
        %vm904 = vcmp.eq.s32.totalorder %v605, %v862
        %vm905 = vcmp.eq.s32.totalorder %v605, %v865
        %vm906 = vcmp.eq.s32.totalorder %v605, %v868
        %vm907 = vcmp.eq.s32.totalorder %v605, %v871
        %vm908 = vcmp.eq.s32.totalorder %v605, %v874
        %vm909 = vcmp.eq.s32.totalorder %v605, %v877
        %v910 = vsel %vm878, 1.0, 0.0
        %v911 = vsel %vm879, 1.0, 0.0
        %v912 = vsel %vm880, 1.0, 0.0
        %v913 = vsel %vm881, 1.0, 0.0
        %v914 = vsel %vm882, 1.0, 0.0
        %v915 = vsel %vm883, 1.0, 0.0
        %v916 = vsel %vm884, 1.0, 0.0
        %v917 = vsel %vm885, 1.0, 0.0
        %v918 = vsel %vm886, 1.0, 0.0
        %v919 = vsel %vm887, 1.0, 0.0
        %v920 = vsel %vm888, 1.0, 0.0
        %v921 = vsel %vm889, 1.0, 0.0
        %v922 = vsel %vm890, 1.0, 0.0
        %v923 = vsel %vm891, 1.0, 0.0
        %v924 = vsel %vm892, 1.0, 0.0
        %v925 = vsel %vm893, 1.0, 0.0
        %v926 = vsel %vm894, 1.0, 0.0
        %v927 = vsel %vm895, 1.0, 0.0
        %v928 = vsel %vm896, 1.0, 0.0
        %v929 = vsel %vm897, 1.0, 0.0
        %v930 = vsel %vm898, 1.0, 0.0
        %v931 = vsel %vm899, 1.0, 0.0
        %v932 = vsel %vm900, 1.0, 0.0
        %v933 = vsel %vm901, 1.0, 0.0
        %v934 = vsel %vm902, 1.0, 0.0
        %v935 = vsel %vm903, 1.0, 0.0
        %v936 = vsel %vm904, 1.0, 0.0
        %v937 = vsel %vm905, 1.0, 0.0
        %v938 = vsel %vm906, 1.0, 0.0
        %v939 = vsel %vm907, 1.0, 0.0
        %v940 = vsel %vm908, 1.0, 0.0
        %v941 = vsel %vm909, 1.0, 0.0
        %v942 = vpack.c.bf16 %v911, %v910
        %v943 = vpack.c.bf16 %v913, %v912
        %v944 = vpack.c.bf16 %v915, %v914
        %v945 = vpack.c.bf16 %v917, %v916
        %v946 = vpack.c.bf16 %v919, %v918
        %v947 = vpack.c.bf16 %v921, %v920
        %v948 = vpack.c.bf16 %v923, %v922
        %v949 = vpack.c.bf16 %v925, %v924
        %v950 = vpack.c.bf16 %v927, %v926
        %v951 = vpack.c.bf16 %v929, %v928
        %v952 = vpack.c.bf16 %v931, %v930
        %v953 = vpack.c.bf16 %v933, %v932
        %v954 = vpack.c.bf16 %v935, %v934
        %v955 = vpack.c.bf16 %v937, %v936
        %v956 = vpack.c.bf16 %v939, %v938
        %v957 = vpack.c.bf16 %v941, %v940
        %v974 = vunpack.c.l.b16 %v588
        %v975 = vunpack.c.l.b16 %v589
        %v976 = vunpack.c.l.b16 %v590
        %v977 = vunpack.c.l.b16 %v591
        %v978 = vunpack.c.l.b16 %v592
        %v979 = vunpack.c.l.b16 %v593
        %v980 = vunpack.c.l.b16 %v594
        %v981 = vunpack.c.l.b16 %v595
        %v982 = vunpack.c.l.b16 %v596
        %v983 = vunpack.c.l.b16 %v597
        %v984 = vunpack.c.l.b16 %v598
        %v985 = vunpack.c.l.b16 %v599
        %v986 = vunpack.c.l.b16 %v600
        %v987 = vunpack.c.l.b16 %v601
        %v988 = vunpack.c.l.b16 %v602
        %v989 = vunpack.c.l.b16 %v603
        %v990 = vpack.c.b16 %v975, %v974
        %v991 = vpack.c.b16 %v977, %v976
        %v992 = vpack.c.b16 %v979, %v978
        %v993 = vpack.c.b16 %v981, %v980
        %v994 = vpack.c.b16 %v983, %v982
        %v995 = vpack.c.b16 %v985, %v984
        %v996 = vpack.c.b16 %v987, %v986
        %v997 = vpack.c.b16 %v989, %v988
        %1006 = vmatpush.bf16.msra.mxu0 %v997
        %1007 = vmatpush.bf16.msra.mxu0 %v996
        %1008 = vmatpush.bf16.msra.mxu0 %v995
        %1009 = vmatpush.bf16.msra.mxu0 %v994
        %1010 = vmatpush.bf16.msra.mxu0 %v993
        %1011 = vmatpush.bf16.msra.mxu0 %v992
        %1012 = vmatpush.bf16.msra.mxu0 %v991
        %1013 = vmatpush.bf16.msra.mxu0 %v990
        %1014 = vmatmul.bf16.gmra.mxu0 %v766
        %v1015 = vpop.f32.mrf.mxu0
        %v1016 = vadd.f32 0.0, %v1015
        %v1017 = vpop.f32.mrf.mxu0
        %v1018 = vadd.f32 0.0, %v1017
        %1019 = vmatmul.bf16.gmra.mxu0 %v767
        %v1020 = vpop.f32.mrf.mxu0
        %v1021 = vadd.f32 0.0, %v1020
        %v1022 = vpop.f32.mrf.mxu0
        %v1023 = vadd.f32 0.0, %v1022
        %1024 = vmatmul.bf16.gmra.mxu0 %v768
        %v1025 = vpop.f32.mrf.mxu0
        %v1026 = vadd.f32 0.0, %v1025
        %v1027 = vpop.f32.mrf.mxu0
        %v1028 = vadd.f32 0.0, %v1027
        %1029 = vmatmul.bf16.gmra.mxu0 %v769
        %v1030 = vpop.f32.mrf.mxu0
        %v1031 = vadd.f32 0.0, %v1030
        %v1032 = vpop.f32.mrf.mxu0
        %v1033 = vadd.f32 0.0, %v1032
        %1034 = vmatmul.bf16.gmra.mxu0 %v770
        %v1035 = vpop.f32.mrf.mxu0
        %v1036 = vadd.f32 0.0, %v1035
        %v1037 = vpop.f32.mrf.mxu0
        %v1038 = vadd.f32 0.0, %v1037
        %1039 = vmatmul.bf16.gmra.mxu0 %v771
        %v1040 = vpop.f32.mrf.mxu0
        %v1041 = vadd.f32 0.0, %v1040
        %v1042 = vpop.f32.mrf.mxu0
        %v1043 = vadd.f32 0.0, %v1042
        %1044 = vmatmul.bf16.gmra.mxu0 %v772
        %v1045 = vpop.f32.mrf.mxu0
        %v1046 = vadd.f32 0.0, %v1045
        %v1047 = vpop.f32.mrf.mxu0
        %v1048 = vadd.f32 0.0, %v1047
        %1049 = vmatmul.bf16.gmra.mxu0 %v773
        %v1050 = vpop.f32.mrf.mxu0
        %v1051 = vadd.f32 0.0, %v1050
        %v1052 = vpop.f32.mrf.mxu0
        %v1053 = vadd.f32 0.0, %v1052
        %1054 = vmatmul.bf16.gmra.mxu0 %v774
        %v1055 = vpop.f32.mrf.mxu0
        %v1056 = vadd.f32 0.0, %v1055
        %v1057 = vpop.f32.mrf.mxu0
        %v1058 = vadd.f32 0.0, %v1057
        %1059 = vmatmul.bf16.gmra.mxu0 %v775
        %v1060 = vpop.f32.mrf.mxu0
        %v1061 = vadd.f32 0.0, %v1060
        %v1062 = vpop.f32.mrf.mxu0
        %v1063 = vadd.f32 0.0, %v1062
        %1064 = vmatmul.bf16.gmra.mxu0 %v776
        %v1065 = vpop.f32.mrf.mxu0
        %v1066 = vadd.f32 0.0, %v1065
        %v1067 = vpop.f32.mrf.mxu0
        %v1068 = vadd.f32 0.0, %v1067
        %1069 = vmatmul.bf16.gmra.mxu0 %v777
        %v1070 = vpop.f32.mrf.mxu0
        %v1071 = vadd.f32 0.0, %v1070
        %v1072 = vpop.f32.mrf.mxu0
        %v1073 = vadd.f32 0.0, %v1072
        %1074 = vmatmul.bf16.gmra.mxu0 %v778
        %v1075 = vpop.f32.mrf.mxu0
        %v1076 = vadd.f32 0.0, %v1075
        %v1077 = vpop.f32.mrf.mxu0
        %v1078 = vadd.f32 0.0, %v1077
        %1079 = vmatmul.bf16.gmra.mxu0 %v779
        %v1080 = vpop.f32.mrf.mxu0
        %v1081 = vadd.f32 0.0, %v1080
        %v1082 = vpop.f32.mrf.mxu0
        %v1083 = vadd.f32 0.0, %v1082
        %1084 = vmatmul.bf16.gmra.mxu0 %v780
        %v1085 = vpop.f32.mrf.mxu0
        %v1086 = vadd.f32 0.0, %v1085
        %v1087 = vpop.f32.mrf.mxu0
        %v1088 = vadd.f32 0.0, %v1087
        %1089 = vmatmul.bf16.gmra.mxu0 %v781
        %v1090 = vpop.f32.mrf.mxu0
        %v1091 = vadd.f32 0.0, %v1090
        %v1092 = vpop.f32.mrf.mxu0
        %v1093 = vadd.f32 0.0, %v1092
        %1094 = vdwg.mxu0
        %v1095 = vpack.c.bf16 %v1016, %v1016
        %v1096 = vpack.c.bf16 %v1018, %v1018
        %v1097 = vpack.c.bf16 %v1021, %v1021
        %v1098 = vpack.c.bf16 %v1023, %v1023
        %v1099 = vpack.c.bf16 %v1026, %v1026
        %v1100 = vpack.c.bf16 %v1028, %v1028
        %v1101 = vpack.c.bf16 %v1031, %v1031
        %v1102 = vpack.c.bf16 %v1033, %v1033
        %v1103 = vpack.c.bf16 %v1036, %v1036
        %v1104 = vpack.c.bf16 %v1038, %v1038
        %v1105 = vpack.c.bf16 %v1041, %v1041
        %v1106 = vpack.c.bf16 %v1043, %v1043
        %v1107 = vpack.c.bf16 %v1046, %v1046
        %v1108 = vpack.c.bf16 %v1048, %v1048
        %v1109 = vpack.c.bf16 %v1051, %v1051
        %v1110 = vpack.c.bf16 %v1053, %v1053
        %v1111 = vpack.c.bf16 %v1056, %v1056
        %v1112 = vpack.c.bf16 %v1058, %v1058
        %v1113 = vpack.c.bf16 %v1061, %v1061
        %v1114 = vpack.c.bf16 %v1063, %v1063
        %v1115 = vpack.c.bf16 %v1066, %v1066
        %v1116 = vpack.c.bf16 %v1068, %v1068
        %v1117 = vpack.c.bf16 %v1071, %v1071
        %v1118 = vpack.c.bf16 %v1073, %v1073
        %v1119 = vpack.c.bf16 %v1076, %v1076
        %v1120 = vpack.c.bf16 %v1078, %v1078
        %v1121 = vpack.c.bf16 %v1081, %v1081
        %v1122 = vpack.c.bf16 %v1083, %v1083
        %v1123 = vpack.c.bf16 %v1086, %v1086
        %v1124 = vpack.c.bf16 %v1088, %v1088
        %v1125 = vpack.c.bf16 %v1091, %v1091
        %v1126 = vpack.c.bf16 %v1093, %v1093
        %1127 = vst [vmem:[#allocation2] sm:$0xf] %v1095
        %1128 = vst [vmem:[#allocation2 + $0x4] sm:$0xf] %v1096
        %1129 = vst [vmem:[#allocation2 + $0x8] sm:$0xf] %v1097
        %1130 = vst [vmem:[#allocation2 + $0xc] sm:$0xf] %v1098
        %1131 = vst [vmem:[#allocation2 + $0x10] sm:$0xf] %v1099
        %1132 = vst [vmem:[#allocation2 + $0x14] sm:$0xf] %v1100
        %1133 = vst [vmem:[#allocation2 + $0x18] sm:$0xf] %v1101
        %1134 = vst [vmem:[#allocation2 + $0x1c] sm:$0xf] %v1102
        %1135 = vst [vmem:[#allocation2 + $0x20] sm:$0xf] %v1103
        %1136 = vst [vmem:[#allocation2 + $0x24] sm:$0xf] %v1104
        %1137 = vst [vmem:[#allocation2 + $0x28] sm:$0xf] %v1105
        %1138 = vst [vmem:[#allocation2 + $0x2c] sm:$0xf] %v1106
        %1139 = vst [vmem:[#allocation2 + $0x30] sm:$0xf] %v1107
        %1140 = vst [vmem:[#allocation2 + $0x34] sm:$0xf] %v1108
        %1141 = vst [vmem:[#allocation2 + $0x38] sm:$0xf] %v1109
        %1142 = vst [vmem:[#allocation2 + $0x3c] sm:$0xf] %v1110
        %1143 = vst [vmem:[#allocation2 + $0x40] sm:$0xf] %v1111
        %1144 = vst [vmem:[#allocation2 + $0x44] sm:$0xf] %v1112
        %1145 = vst [vmem:[#allocation2 + $0x48] sm:$0xf] %v1113
        %1146 = vst [vmem:[#allocation2 + $0x4c] sm:$0xf] %v1114
        %1147 = vst [vmem:[#allocation2 + $0x50] sm:$0xf] %v1115
        %1148 = vst [vmem:[#allocation2 + $0x54] sm:$0xf] %v1116
        %1149 = vst [vmem:[#allocation2 + $0x58] sm:$0xf] %v1117
        %1150 = vst [vmem:[#allocation2 + $0x5c] sm:$0xf] %v1118
        %1151 = vst [vmem:[#allocation2 + $0x60] sm:$0xf] %v1119
        %1152 = vst [vmem:[#allocation2 + $0x64] sm:$0xf] %v1120
        %1153 = vst [vmem:[#allocation2 + $0x68] sm:$0xf] %v1121
        %1154 = vst [vmem:[#allocation2 + $0x6c] sm:$0xf] %v1122
        %1155 = vst [vmem:[#allocation2 + $0x70] sm:$0xf] %v1123
        %1156 = vst [vmem:[#allocation2 + $0x74] sm:$0xf] %v1124
        %1157 = vst [vmem:[#allocation2 + $0x78] sm:$0xf] %v1125
        %1158 = vst [vmem:[#allocation2 + $0x7c] sm:$0xf] %v1126
        %1159 = vmatpush.bf16.msra.mxu0 %v997
        %1160 = vmatpush.bf16.msra.mxu0 %v996
        %1161 = vmatpush.bf16.msra.mxu0 %v995
        %1162 = vmatpush.bf16.msra.mxu0 %v994
        %1163 = vmatpush.bf16.msra.mxu0 %v993
        %1164 = vmatpush.bf16.msra.mxu0 %v992
        %1165 = vmatpush.bf16.msra.mxu0 %v991
        %1166 = vmatpush.bf16.msra.mxu0 %v990
        %1167 = vmatmul.bf16.gmra.mxu0 %v942
        %v1168 = vpop.f32.mrf.mxu0
        %v1169 = vadd.f32 0.0, %v1168
        %v1170 = vpop.f32.mrf.mxu0
        %v1171 = vadd.f32 0.0, %v1170
        %1172 = vmatmul.bf16.gmra.mxu0 %v943
        %v1173 = vpop.f32.mrf.mxu0
        %v1174 = vadd.f32 0.0, %v1173
        %v1175 = vpop.f32.mrf.mxu0
        %v1176 = vadd.f32 0.0, %v1175
        %1177 = vmatmul.bf16.gmra.mxu0 %v944
        %v1178 = vpop.f32.mrf.mxu0
        %v1179 = vadd.f32 0.0, %v1178
        %v1180 = vpop.f32.mrf.mxu0
        %v1181 = vadd.f32 0.0, %v1180
        %1182 = vmatmul.bf16.gmra.mxu0 %v945
        %v1183 = vpop.f32.mrf.mxu0
        %v1184 = vadd.f32 0.0, %v1183
        %v1185 = vpop.f32.mrf.mxu0
        %v1186 = vadd.f32 0.0, %v1185
        %1187 = vmatmul.bf16.gmra.mxu0 %v946
        %v1188 = vpop.f32.mrf.mxu0
        %v1189 = vadd.f32 0.0, %v1188
        %v1190 = vpop.f32.mrf.mxu0
        %v1191 = vadd.f32 0.0, %v1190
        %1192 = vmatmul.bf16.gmra.mxu0 %v947
        %v1193 = vpop.f32.mrf.mxu0
        %v1194 = vadd.f32 0.0, %v1193
        %v1195 = vpop.f32.mrf.mxu0
        %v1196 = vadd.f32 0.0, %v1195
        %1197 = vmatmul.bf16.gmra.mxu0 %v948
        %v1198 = vpop.f32.mrf.mxu0
        %v1199 = vadd.f32 0.0, %v1198
        %v1200 = vpop.f32.mrf.mxu0
        %v1201 = vadd.f32 0.0, %v1200
        %1202 = vmatmul.bf16.gmra.mxu0 %v949
        %v1203 = vpop.f32.mrf.mxu0
        %v1204 = vadd.f32 0.0, %v1203
        %v1205 = vpop.f32.mrf.mxu0
        %v1206 = vadd.f32 0.0, %v1205
        %1207 = vmatmul.bf16.gmra.mxu0 %v950
        %v1208 = vpop.f32.mrf.mxu0
        %v1209 = vadd.f32 0.0, %v1208
        %v1210 = vpop.f32.mrf.mxu0
        %v1211 = vadd.f32 0.0, %v1210
        %1212 = vmatmul.bf16.gmra.mxu0 %v951
        %v1213 = vpop.f32.mrf.mxu0
        %v1214 = vadd.f32 0.0, %v1213
        %v1215 = vpop.f32.mrf.mxu0
        %v1216 = vadd.f32 0.0, %v1215
        %1217 = vmatmul.bf16.gmra.mxu0 %v952
        %v1218 = vpop.f32.mrf.mxu0
        %v1219 = vadd.f32 0.0, %v1218
        %v1220 = vpop.f32.mrf.mxu0
        %v1221 = vadd.f32 0.0, %v1220
        %1222 = vmatmul.bf16.gmra.mxu0 %v953
        %v1223 = vpop.f32.mrf.mxu0
        %v1224 = vadd.f32 0.0, %v1223
        %v1225 = vpop.f32.mrf.mxu0
        %v1226 = vadd.f32 0.0, %v1225
        %1227 = vmatmul.bf16.gmra.mxu0 %v954
        %v1228 = vpop.f32.mrf.mxu0
        %v1229 = vadd.f32 0.0, %v1228
        %v1230 = vpop.f32.mrf.mxu0
        %v1231 = vadd.f32 0.0, %v1230
        %1232 = vmatmul.bf16.gmra.mxu0 %v955
        %v1233 = vpop.f32.mrf.mxu0
        %v1234 = vadd.f32 0.0, %v1233
        %v1235 = vpop.f32.mrf.mxu0
        %v1236 = vadd.f32 0.0, %v1235
        %1237 = vmatmul.bf16.gmra.mxu0 %v956
        %v1238 = vpop.f32.mrf.mxu0
        %v1239 = vadd.f32 0.0, %v1238
        %v1240 = vpop.f32.mrf.mxu0
        %v1241 = vadd.f32 0.0, %v1240
        %1242 = vmatmul.bf16.gmra.mxu0 %v957
        %v1243 = vpop.f32.mrf.mxu0
        %v1244 = vadd.f32 0.0, %v1243
        %v1245 = vpop.f32.mrf.mxu0
        %v1246 = vadd.f32 0.0, %v1245
        %1247 = vdwg.mxu0
        %v1248 = vpack.c.bf16 %v1169, %v1169
        %v1249 = vpack.c.bf16 %v1171, %v1171
        %v1250 = vpack.c.bf16 %v1174, %v1174
        %v1251 = vpack.c.bf16 %v1176, %v1176
        %v1252 = vpack.c.bf16 %v1179, %v1179
        %v1253 = vpack.c.bf16 %v1181, %v1181
        %v1254 = vpack.c.bf16 %v1184, %v1184
        %v1255 = vpack.c.bf16 %v1186, %v1186
        %v1256 = vpack.c.bf16 %v1189, %v1189
        %v1257 = vpack.c.bf16 %v1191, %v1191
        %v1258 = vpack.c.bf16 %v1194, %v1194
        %v1259 = vpack.c.bf16 %v1196, %v1196
        %v1260 = vpack.c.bf16 %v1199, %v1199
        %v1261 = vpack.c.bf16 %v1201, %v1201
        %v1262 = vpack.c.bf16 %v1204, %v1204
        %v1263 = vpack.c.bf16 %v1206, %v1206
        %v1264 = vpack.c.bf16 %v1209, %v1209
        %v1265 = vpack.c.bf16 %v1211, %v1211
        %v1266 = vpack.c.bf16 %v1214, %v1214
        %v1267 = vpack.c.bf16 %v1216, %v1216
        %v1268 = vpack.c.bf16 %v1219, %v1219
        %v1269 = vpack.c.bf16 %v1221, %v1221
        %v1270 = vpack.c.bf16 %v1224, %v1224
        %v1271 = vpack.c.bf16 %v1226, %v1226
        %v1272 = vpack.c.bf16 %v1229, %v1229
        %v1273 = vpack.c.bf16 %v1231, %v1231
        %v1274 = vpack.c.bf16 %v1234, %v1234
        %v1275 = vpack.c.bf16 %v1236, %v1236
        %v1276 = vpack.c.bf16 %v1239, %v1239
        %v1277 = vpack.c.bf16 %v1241, %v1241
        %v1278 = vpack.c.bf16 %v1244, %v1244
        %v1279 = vpack.c.bf16 %v1246, %v1246
        %1280 = vst [vmem:[#allocation3] sm:$0xf] %v1248
        %1281 = vst [vmem:[#allocation3 + $0x4] sm:$0xf] %v1249
        %1282 = vst [vmem:[#allocation3 + $0x8] sm:$0xf] %v1250
        %1283 = vst [vmem:[#allocation3 + $0xc] sm:$0xf] %v1251
        %1284 = vst [vmem:[#allocation3 + $0x10] sm:$0xf] %v1252
        %1285 = vst [vmem:[#allocation3 + $0x14] sm:$0xf] %v1253
        %1286 = vst [vmem:[#allocation3 + $0x18] sm:$0xf] %v1254
        %1287 = vst [vmem:[#allocation3 + $0x1c] sm:$0xf] %v1255
        %1288 = vst [vmem:[#allocation3 + $0x20] sm:$0xf] %v1256
        %1289 = vst [vmem:[#allocation3 + $0x24] sm:$0xf] %v1257
        %1290 = vst [vmem:[#allocation3 + $0x28] sm:$0xf] %v1258
        %1291 = vst [vmem:[#allocation3 + $0x2c] sm:$0xf] %v1259
        %1292 = vst [vmem:[#allocation3 + $0x30] sm:$0xf] %v1260
        %1293 = vst [vmem:[#allocation3 + $0x34] sm:$0xf] %v1261
        %1294 = vst [vmem:[#allocation3 + $0x38] sm:$0xf] %v1262
        %1295 = vst [vmem:[#allocation3 + $0x3c] sm:$0xf] %v1263
        %1296 = vst [vmem:[#allocation3 + $0x40] sm:$0xf] %v1264
        %1297 = vst [vmem:[#allocation3 + $0x44] sm:$0xf] %v1265
        %1298 = vst [vmem:[#allocation3 + $0x48] sm:$0xf] %v1266
        %1299 = vst [vmem:[#allocation3 + $0x4c] sm:$0xf] %v1267
        %1300 = vst [vmem:[#allocation3 + $0x50] sm:$0xf] %v1268
        %1301 = vst [vmem:[#allocation3 + $0x54] sm:$0xf] %v1269
        %1302 = vst [vmem:[#allocation3 + $0x58] sm:$0xf] %v1270
        %1303 = vst [vmem:[#allocation3 + $0x5c] sm:$0xf] %v1271
        %1304 = vst [vmem:[#allocation3 + $0x60] sm:$0xf] %v1272
        %1305 = vst [vmem:[#allocation3 + $0x64] sm:$0xf] %v1273
        %1306 = vst [vmem:[#allocation3 + $0x68] sm:$0xf] %v1274
        %1307 = vst [vmem:[#allocation3 + $0x6c] sm:$0xf] %v1275
        %1308 = vst [vmem:[#allocation3 + $0x70] sm:$0xf] %v1276
        %1309 = vst [vmem:[#allocation3 + $0x74] sm:$0xf] %v1277
        %1310 = vst [vmem:[#allocation3 + $0x78] sm:$0xf] %v1278
        %1311 = vst [vmem:[#allocation3 + $0x7c] sm:$0xf] %v1279
        %v1312 = vld [vmem:[%s420] sm:$0xff]
        %v1313 = vld [vmem:[%s420 + $0x8] sm:$0xff]
        %v1314 = vlaneseq
        %v1315 = vshrl.u32 %v1314, 7
        %v1316 = vadd.s32 %v1315, 8
        %v1317 = vadd.s32 %v1315, 16
        %v1318 = vadd.s32 %v1315, 24
        %v1319 = vadd.s32 %v1315, 32
        %v1320 = vadd.s32 %v1315, 40
        %v1321 = vadd.s32 %v1315, 48
        %v1322 = vadd.s32 %v1315, 56
        %v1323 = vadd.s32 %v1315, 64
        %v1324 = vadd.s32 %v1315, 72
        %v1325 = vadd.s32 %v1315, 80
        %v1326 = vadd.s32 %v1315, 88
        %v1327 = vadd.s32 %v1315, 96
        %v1328 = vadd.s32 %v1315, 104
        %v1329 = vadd.s32 %v1315, 112
        %v1330 = vadd.s32 %v1315, 120
        %v1331 = vperm.slane %v1312, 1
        %v1332 = vperm.slane %v1313, 1
        %vm1333 = vcmp.eq.s32.totalorder %v1315, %v1331
        %vm1334 = vcmp.eq.s32.totalorder %v1315, %v1332
        %vm1335 = vcmp.eq.s32.totalorder %v1316, %v1331
        %vm1336 = vcmp.eq.s32.totalorder %v1316, %v1332
        %vm1337 = vcmp.eq.s32.totalorder %v1317, %v1331
        %vm1338 = vcmp.eq.s32.totalorder %v1317, %v1332
        %vm1339 = vcmp.eq.s32.totalorder %v1318, %v1331
        %vm1340 = vcmp.eq.s32.totalorder %v1318, %v1332
        %vm1341 = vcmp.eq.s32.totalorder %v1319, %v1331
        %vm1342 = vcmp.eq.s32.totalorder %v1319, %v1332
        %vm1343 = vcmp.eq.s32.totalorder %v1320, %v1331
        %vm1344 = vcmp.eq.s32.totalorder %v1320, %v1332
        %vm1345 = vcmp.eq.s32.totalorder %v1321, %v1331
        %vm1346 = vcmp.eq.s32.totalorder %v1321, %v1332
        %vm1347 = vcmp.eq.s32.totalorder %v1322, %v1331
        %vm1348 = vcmp.eq.s32.totalorder %v1322, %v1332
        %vm1349 = vcmp.eq.s32.totalorder %v1323, %v1331
        %vm1350 = vcmp.eq.s32.totalorder %v1323, %v1332
        %vm1351 = vcmp.eq.s32.totalorder %v1324, %v1331
        %vm1352 = vcmp.eq.s32.totalorder %v1324, %v1332
        %vm1353 = vcmp.eq.s32.totalorder %v1325, %v1331
        %vm1354 = vcmp.eq.s32.totalorder %v1325, %v1332
        %vm1355 = vcmp.eq.s32.totalorder %v1326, %v1331
        %vm1356 = vcmp.eq.s32.totalorder %v1326, %v1332
        %vm1357 = vcmp.eq.s32.totalorder %v1327, %v1331
        %vm1358 = vcmp.eq.s32.totalorder %v1327, %v1332
        %vm1359 = vcmp.eq.s32.totalorder %v1328, %v1331
        %vm1360 = vcmp.eq.s32.totalorder %v1328, %v1332
        %vm1361 = vcmp.eq.s32.totalorder %v1329, %v1331
        %vm1362 = vcmp.eq.s32.totalorder %v1329, %v1332
        %vm1363 = vcmp.eq.s32.totalorder %v1330, %v1331
        %vm1364 = vcmp.eq.s32.totalorder %v1330, %v1332
        %vm1365 = vcmp.ge.s32.totalorder %v1312, 0
        %vm1366 = vcmp.ge.s32.totalorder %v1313, 0
        %v1367 = vsel %vm1365, 1, 0
        %v1368 = vsel %vm1366, 1, 0
        %v1369 = vperm.slane %v1367, 2
        %v1370 = vperm.slane %v1368, 2
        %vm1371 = vcmp.eq.s32.totalorder %v1369, 1
        %vm1372 = vcmp.eq.s32.totalorder %v1370, 1
        %vm1373 = vmand %vm1333, %vm1371
        %vm1374 = vmand %vm1334, %vm1372
        %vm1375 = vmand %vm1335, %vm1371
        %vm1376 = vmand %vm1336, %vm1372
        %vm1377 = vmand %vm1337, %vm1371
        %vm1378 = vmand %vm1338, %vm1372
        %vm1379 = vmand %vm1339, %vm1371
        %vm1380 = vmand %vm1340, %vm1372
        %vm1381 = vmand %vm1341, %vm1371
        %vm1382 = vmand %vm1342, %vm1372
        %vm1383 = vmand %vm1343, %vm1371
        %vm1384 = vmand %vm1344, %vm1372
        %vm1385 = vmand %vm1345, %vm1371
        %vm1386 = vmand %vm1346, %vm1372
        %vm1387 = vmand %vm1347, %vm1371
        %vm1388 = vmand %vm1348, %vm1372
        %vm1389 = vmand %vm1349, %vm1371
        %vm1390 = vmand %vm1350, %vm1372
        %vm1391 = vmand %vm1351, %vm1371
        %vm1392 = vmand %vm1352, %vm1372
        %vm1393 = vmand %vm1353, %vm1371
        %vm1394 = vmand %vm1354, %vm1372
        %vm1395 = vmand %vm1355, %vm1371
        %vm1396 = vmand %vm1356, %vm1372
        %vm1397 = vmand %vm1357, %vm1371
        %vm1398 = vmand %vm1358, %vm1372
        %vm1399 = vmand %vm1359, %vm1371
        %vm1400 = vmand %vm1360, %vm1372
        %vm1401 = vmand %vm1361, %vm1371
        %vm1402 = vmand %vm1362, %vm1372
        %vm1403 = vmand %vm1363, %vm1371
        %vm1404 = vmand %vm1364, %vm1372
        %v1405 = vsel %vm1373, 1.0, 0.0
        %v1406 = vsel %vm1374, 1.0, 0.0
        %v1407 = vsel %vm1375, 1.0, 0.0
        %v1408 = vsel %vm1376, 1.0, 0.0
        %v1409 = vsel %vm1377, 1.0, 0.0
        %v1410 = vsel %vm1378, 1.0, 0.0
        %v1411 = vsel %vm1379, 1.0, 0.0
        %v1412 = vsel %vm1380, 1.0, 0.0
        %v1413 = vsel %vm1381, 1.0, 0.0
        %v1414 = vsel %vm1382, 1.0, 0.0
        %v1415 = vsel %vm1383, 1.0, 0.0
        %v1416 = vsel %vm1384, 1.0, 0.0
        %v1417 = vsel %vm1385, 1.0, 0.0
        %v1418 = vsel %vm1386, 1.0, 0.0
        %v1419 = vsel %vm1387, 1.0, 0.0
        %v1420 = vsel %vm1388, 1.0, 0.0
        %v1421 = vsel %vm1389, 1.0, 0.0
        %v1422 = vsel %vm1390, 1.0, 0.0
        %v1423 = vsel %vm1391, 1.0, 0.0
        %v1424 = vsel %vm1392, 1.0, 0.0
        %v1425 = vsel %vm1393, 1.0, 0.0
        %v1426 = vsel %vm1394, 1.0, 0.0
        %v1427 = vsel %vm1395, 1.0, 0.0
        %v1428 = vsel %vm1396, 1.0, 0.0
        %v1429 = vsel %vm1397, 1.0, 0.0
        %v1430 = vsel %vm1398, 1.0, 0.0
        %v1431 = vsel %vm1399, 1.0, 0.0
        %v1432 = vsel %vm1400, 1.0, 0.0
        %v1433 = vsel %vm1401, 1.0, 0.0
        %v1434 = vsel %vm1402, 1.0, 0.0
        %v1435 = vsel %vm1403, 1.0, 0.0
        %v1436 = vsel %vm1404, 1.0, 0.0
        %v1437 = vpack.c.bf16 %v1406, %v1405
        %v1438 = vpack.c.bf16 %v1408, %v1407
        %v1439 = vpack.c.bf16 %v1410, %v1409
        %v1440 = vpack.c.bf16 %v1412, %v1411
        %v1441 = vpack.c.bf16 %v1414, %v1413
        %v1442 = vpack.c.bf16 %v1416, %v1415
        %v1443 = vpack.c.bf16 %v1418, %v1417
        %v1444 = vpack.c.bf16 %v1420, %v1419
        %v1445 = vpack.c.bf16 %v1422, %v1421
        %v1446 = vpack.c.bf16 %v1424, %v1423
        %v1447 = vpack.c.bf16 %v1426, %v1425
        %v1448 = vpack.c.bf16 %v1428, %v1427
        %v1449 = vpack.c.bf16 %v1430, %v1429
        %v1450 = vpack.c.bf16 %v1432, %v1431
        %v1451 = vpack.c.bf16 %v1434, %v1433
        %v1452 = vpack.c.bf16 %v1436, %v1435
        %1453 = vst [vmem:[#allocation4] sm:$0xff] %v1437
        %1454 = vst [vmem:[#allocation4 + $0x8] sm:$0xff] %v1438
        %1455 = vst [vmem:[#allocation4 + $0x10] sm:$0xff] %v1439
        %1456 = vst [vmem:[#allocation4 + $0x18] sm:$0xff] %v1440
        %1457 = vst [vmem:[#allocation4 + $0x20] sm:$0xff] %v1441
        %1458 = vst [vmem:[#allocation4 + $0x28] sm:$0xff] %v1442
        %1459 = vst [vmem:[#allocation4 + $0x30] sm:$0xff] %v1443
        %1460 = vst [vmem:[#allocation4 + $0x38] sm:$0xff] %v1444
        %1461 = vst [vmem:[#allocation4 + $0x40] sm:$0xff] %v1445
        %1462 = vst [vmem:[#allocation4 + $0x48] sm:$0xff] %v1446
        %1463 = vst [vmem:[#allocation4 + $0x50] sm:$0xff] %v1447
        %1464 = vst [vmem:[#allocation4 + $0x58] sm:$0xff] %v1448
        %1465 = vst [vmem:[#allocation4 + $0x60] sm:$0xff] %v1449
        %1466 = vst [vmem:[#allocation4 + $0x68] sm:$0xff] %v1450
        %1467 = vst [vmem:[#allocation4 + $0x70] sm:$0xff] %v1451
        %1468 = vst [vmem:[#allocation4 + $0x78] sm:$0xff] %v1452
        %vm1469 = vcmp.eq.s32.totalorder %v605, 32
        %1471 = vset.pattern.permute.xlu0 2
        %1472 = vperm.xlu0 %1471, %v556
        %v1473 = vpop.permute.xlu0 %1472
        %1476 = vset.pattern.permute.xlu0 2
        %1477 = vperm.xlu0 %1476, %v557
        %v1478 = vpop.permute.xlu0 %1477
        %1481 = vset.pattern.permute.xlu0 2
        %1482 = vperm.xlu0 %1481, %v558
        %v1483 = vpop.permute.xlu0 %1482
        %1486 = vset.pattern.permute.xlu0 2
        %1487 = vperm.xlu0 %1486, %v559
        %v1488 = vpop.permute.xlu0 %1487
        %1491 = vset.pattern.permute.xlu0 2
        %1492 = vperm.xlu0 %1491, %v560
        %v1493 = vpop.permute.xlu0 %1492
        %1496 = vset.pattern.permute.xlu0 2
        %1497 = vperm.xlu0 %1496, %v561
        %v1498 = vpop.permute.xlu0 %1497
        %1501 = vset.pattern.permute.xlu0 2
        %1502 = vperm.xlu0 %1501, %v562
        %v1503 = vpop.permute.xlu0 %1502
        %1506 = vset.pattern.permute.xlu0 2
        %1507 = vperm.xlu0 %1506, %v563
        %v1508 = vpop.permute.xlu0 %1507
        %1511 = vset.pattern.permute.xlu0 2
        %1512 = vperm.xlu0 %1511, %v564
        %v1513 = vpop.permute.xlu0 %1512
        %1516 = vset.pattern.permute.xlu0 2
        %1517 = vperm.xlu0 %1516, %v565
        %v1518 = vpop.permute.xlu0 %1517
        %1521 = vset.pattern.permute.xlu0 2
        %1522 = vperm.xlu0 %1521, %v566
        %v1523 = vpop.permute.xlu0 %1522
        %1526 = vset.pattern.permute.xlu0 2
        %1527 = vperm.xlu0 %1526, %v567
        %v1528 = vpop.permute.xlu0 %1527
        %1531 = vset.pattern.permute.xlu0 2
        %1532 = vperm.xlu0 %1531, %v568
        %v1533 = vpop.permute.xlu0 %1532
        %1536 = vset.pattern.permute.xlu0 2
        %1537 = vperm.xlu0 %1536, %v569
        %v1538 = vpop.permute.xlu0 %1537
        %1541 = vset.pattern.permute.xlu0 2
        %1542 = vperm.xlu0 %1541, %v570
        %v1543 = vpop.permute.xlu0 %1542
        %1546 = vset.pattern.permute.xlu0 2
        %1547 = vperm.xlu0 %1546, %v571
        %v1548 = vpop.permute.xlu0 %1547
        %1551 = vset.pattern.permute.xlu0 2
        %1552 = vperm.xlu0 %1551, %v572
        %v1553 = vpop.permute.xlu0 %1552
        %1556 = vset.pattern.permute.xlu0 2
        %1557 = vperm.xlu0 %1556, %v573
        %v1558 = vpop.permute.xlu0 %1557
        %1561 = vset.pattern.permute.xlu0 2
        %1562 = vperm.xlu0 %1561, %v574
        %v1563 = vpop.permute.xlu0 %1562
        %1566 = vset.pattern.permute.xlu0 2
        %1567 = vperm.xlu0 %1566, %v575
        %v1568 = vpop.permute.xlu0 %1567
        %1571 = vset.pattern.permute.xlu0 2
        %1572 = vperm.xlu0 %1571, %v576
        %v1573 = vpop.permute.xlu0 %1572
        %1576 = vset.pattern.permute.xlu0 2
        %1577 = vperm.xlu0 %1576, %v577
        %v1578 = vpop.permute.xlu0 %1577
        %1581 = vset.pattern.permute.xlu0 2
        %1582 = vperm.xlu0 %1581, %v578
        %v1583 = vpop.permute.xlu0 %1582
        %1586 = vset.pattern.permute.xlu0 2
        %1587 = vperm.xlu0 %1586, %v579
        %v1588 = vpop.permute.xlu0 %1587
        %1591 = vset.pattern.permute.xlu0 2
        %1592 = vperm.xlu0 %1591, %v580
        %v1593 = vpop.permute.xlu0 %1592
        %1596 = vset.pattern.permute.xlu0 2
        %1597 = vperm.xlu0 %1596, %v581
        %v1598 = vpop.permute.xlu0 %1597
        %1601 = vset.pattern.permute.xlu0 2
        %1602 = vperm.xlu0 %1601, %v582
        %v1603 = vpop.permute.xlu0 %1602
        %1606 = vset.pattern.permute.xlu0 2
        %1607 = vperm.xlu0 %1606, %v583
        %v1608 = vpop.permute.xlu0 %1607
        %1611 = vset.pattern.permute.xlu0 2
        %1612 = vperm.xlu0 %1611, %v584
        %v1613 = vpop.permute.xlu0 %1612
        %1616 = vset.pattern.permute.xlu0 2
        %1617 = vperm.xlu0 %1616, %v585
        %v1618 = vpop.permute.xlu0 %1617
        %1621 = vset.pattern.permute.xlu0 2
        %1622 = vperm.xlu0 %1621, %v586
        %v1623 = vpop.permute.xlu0 %1622
        %1626 = vset.pattern.permute.xlu0 2
        %1627 = vperm.xlu0 %1626, %v587
        %v1628 = vpop.permute.xlu0 %1627
        %v1630 = vsel %vm1469, %v1473, 0.0
        %v1631 = vsel %vm1469, %v1478, 0.0
        %v1632 = vsel %vm1469, %v1483, 0.0
        %v1633 = vsel %vm1469, %v1488, 0.0
        %v1634 = vsel %vm1469, %v1493, 0.0
        %v1635 = vsel %vm1469, %v1498, 0.0
        %v1636 = vsel %vm1469, %v1503, 0.0
        %v1637 = vsel %vm1469, %v1508, 0.0
        %v1638 = vsel %vm1469, %v1513, 0.0
        %v1639 = vsel %vm1469, %v1518, 0.0
        %v1640 = vsel %vm1469, %v1523, 0.0
        %v1641 = vsel %vm1469, %v1528, 0.0
        %v1642 = vsel %vm1469, %v1533, 0.0
        %v1643 = vsel %vm1469, %v1538, 0.0
        %v1644 = vsel %vm1469, %v1543, 0.0
        %v1645 = vsel %vm1469, %v1548, 0.0
        %v1646 = vsel %vm1469, %v1553, 0.0
        %v1647 = vsel %vm1469, %v1558, 0.0
        %v1648 = vsel %vm1469, %v1563, 0.0
        %v1649 = vsel %vm1469, %v1568, 0.0
        %v1650 = vsel %vm1469, %v1573, 0.0
        %v1651 = vsel %vm1469, %v1578, 0.0
        %v1652 = vsel %vm1469, %v1583, 0.0
        %v1653 = vsel %vm1469, %v1588, 0.0
        %v1654 = vsel %vm1469, %v1593, 0.0
        %v1655 = vsel %vm1469, %v1598, 0.0
        %v1656 = vsel %vm1469, %v1603, 0.0
        %v1657 = vsel %vm1469, %v1608, 0.0
        %v1658 = vsel %vm1469, %v1613, 0.0
        %v1659 = vsel %vm1469, %v1618, 0.0
        %v1660 = vsel %vm1469, %v1623, 0.0
        %v1661 = vsel %vm1469, %v1628, 0.0
        %1662 = vst [vmem:[#allocation5] sm:$0xff] %v1630
        %1663 = vst [vmem:[#allocation5 + $0x8] sm:$0xff] %v1631
        %1664 = vst [vmem:[#allocation5 + $0x10] sm:$0xff] %v1632
        %1665 = vst [vmem:[#allocation5 + $0x18] sm:$0xff] %v1633
        %1666 = vst [vmem:[#allocation5 + $0x20] sm:$0xff] %v1634
        %1667 = vst [vmem:[#allocation5 + $0x28] sm:$0xff] %v1635
        %1668 = vst [vmem:[#allocation5 + $0x30] sm:$0xff] %v1636
        %1669 = vst [vmem:[#allocation5 + $0x38] sm:$0xff] %v1637
        %1670 = vst [vmem:[#allocation5 + $0x40] sm:$0xff] %v1638
        %1671 = vst [vmem:[#allocation5 + $0x48] sm:$0xff] %v1639
        %1672 = vst [vmem:[#allocation5 + $0x50] sm:$0xff] %v1640
        %1673 = vst [vmem:[#allocation5 + $0x58] sm:$0xff] %v1641
        %1674 = vst [vmem:[#allocation5 + $0x60] sm:$0xff] %v1642
        %1675 = vst [vmem:[#allocation5 + $0x68] sm:$0xff] %v1643
        %1676 = vst [vmem:[#allocation5 + $0x70] sm:$0xff] %v1644
        %1677 = vst [vmem:[#allocation5 + $0x78] sm:$0xff] %v1645
        %1678 = vst [vmem:[#allocation5 + $0x80] sm:$0xff] %v1646
        %1679 = vst [vmem:[#allocation5 + $0x88] sm:$0xff] %v1647
        %1680 = vst [vmem:[#allocation5 + $0x90] sm:$0xff] %v1648
        %1681 = vst [vmem:[#allocation5 + $0x98] sm:$0xff] %v1649
        %1682 = vst [vmem:[#allocation5 + $0xa0] sm:$0xff] %v1650
        %1683 = vst [vmem:[#allocation5 + $0xa8] sm:$0xff] %v1651
        %1684 = vst [vmem:[#allocation5 + $0xb0] sm:$0xff] %v1652
        %1685 = vst [vmem:[#allocation5 + $0xb8] sm:$0xff] %v1653
        %1686 = vst [vmem:[#allocation5 + $0xc0] sm:$0xff] %v1654
        %1687 = vst [vmem:[#allocation5 + $0xc8] sm:$0xff] %v1655
        %1688 = vst [vmem:[#allocation5 + $0xd0] sm:$0xff] %v1656
        %1689 = vst [vmem:[#allocation5 + $0xd8] sm:$0xff] %v1657
        %1690 = vst [vmem:[#allocation5 + $0xe0] sm:$0xff] %v1658
        %1691 = vst [vmem:[#allocation5 + $0xe8] sm:$0xff] %v1659
        %1692 = vst [vmem:[#allocation5 + $0xf0] sm:$0xff] %v1660
        %1693 = vst [vmem:[#allocation5 + $0xf8] sm:$0xff] %v1661
      $region68: #{gnn_layer_forward.1} parent=59 // pred_fallthru
        _
      %v1694 = vld [vmem:[%s414] sm:$0xff]
      %v1695 = vld [vmem:[%s414 + $0x8] sm:$0xff]
      %v1696 = vld [vmem:[%s414 + $0x10] sm:$0xff]
      %v1697 = vld [vmem:[%s414 + $0x18] sm:$0xff]
      %v1698 = vld [vmem:[%s414 + $0x20] sm:$0xff]
      %v1699 = vld [vmem:[%s414 + $0x28] sm:$0xff]
      %v1700 = vld [vmem:[%s414 + $0x30] sm:$0xff]
      %v1701 = vld [vmem:[%s414 + $0x38] sm:$0xff]
      %v1702 = vld [vmem:[%s414 + $0x40] sm:$0xff]
      %v1703 = vld [vmem:[%s414 + $0x48] sm:$0xff]
      %v1704 = vld [vmem:[%s414 + $0x50] sm:$0xff]
      %v1705 = vld [vmem:[%s414 + $0x58] sm:$0xff]
      %v1706 = vld [vmem:[%s414 + $0x60] sm:$0xff]
      %v1707 = vld [vmem:[%s414 + $0x68] sm:$0xff]
      %v1708 = vld [vmem:[%s414 + $0x70] sm:$0xff]
      %v1709 = vld [vmem:[%s414 + $0x78] sm:$0xff]
      %v1710 = vld [vmem:[%s414 + $0x80] sm:$0xff]
      %v1711 = vld [vmem:[%s414 + $0x88] sm:$0xff]
      %v1712 = vld [vmem:[%s414 + $0x90] sm:$0xff]
      %v1713 = vld [vmem:[%s414 + $0x98] sm:$0xff]
      %v1714 = vld [vmem:[%s414 + $0xa0] sm:$0xff]
      %v1715 = vld [vmem:[%s414 + $0xa8] sm:$0xff]
      %v1716 = vld [vmem:[%s414 + $0xb0] sm:$0xff]
      %v1717 = vld [vmem:[%s414 + $0xb8] sm:$0xff]
      %v1718 = vld [vmem:[%s414 + $0xc0] sm:$0xff]
      %v1719 = vld [vmem:[%s414 + $0xc8] sm:$0xff]
      %v1720 = vld [vmem:[%s414 + $0xd0] sm:$0xff]
      %v1721 = vld [vmem:[%s414 + $0xd8] sm:$0xff]
      %v1722 = vld [vmem:[%s414 + $0xe0] sm:$0xff]
      %v1723 = vld [vmem:[%s414 + $0xe8] sm:$0xff]
      %v1724 = vld [vmem:[%s414 + $0xf0] sm:$0xff]
      %v1725 = vld [vmem:[%s414 + $0xf8] sm:$0xff]
      %v1726 = vstv %s26
      %vm1727 = vcmp.eq.s32.totalorder %v1694, %v1726
      %vm1728 = vcmp.eq.s32.totalorder %v1695, %v1726
      %vm1729 = vcmp.eq.s32.totalorder %v1696, %v1726
      %vm1730 = vcmp.eq.s32.totalorder %v1697, %v1726
      %vm1731 = vcmp.eq.s32.totalorder %v1698, %v1726
      %vm1732 = vcmp.eq.s32.totalorder %v1699, %v1726
      %vm1733 = vcmp.eq.s32.totalorder %v1700, %v1726
      %vm1734 = vcmp.eq.s32.totalorder %v1701, %v1726
      %vm1735 = vcmp.eq.s32.totalorder %v1702, %v1726
      %vm1736 = vcmp.eq.s32.totalorder %v1703, %v1726
      %vm1737 = vcmp.eq.s32.totalorder %v1704, %v1726
      %vm1738 = vcmp.eq.s32.totalorder %v1705, %v1726
      %vm1739 = vcmp.eq.s32.totalorder %v1706, %v1726
      %vm1740 = vcmp.eq.s32.totalorder %v1707, %v1726
      %vm1741 = vcmp.eq.s32.totalorder %v1708, %v1726
      %vm1742 = vcmp.eq.s32.totalorder %v1709, %v1726
      %vm1743 = vcmp.eq.s32.totalorder %v1710, %v1726
      %vm1744 = vcmp.eq.s32.totalorder %v1711, %v1726
      %vm1745 = vcmp.eq.s32.totalorder %v1712, %v1726
      %vm1746 = vcmp.eq.s32.totalorder %v1713, %v1726
      %vm1747 = vcmp.eq.s32.totalorder %v1714, %v1726
      %vm1748 = vcmp.eq.s32.totalorder %v1715, %v1726
      %vm1749 = vcmp.eq.s32.totalorder %v1716, %v1726
      %vm1750 = vcmp.eq.s32.totalorder %v1717, %v1726
      %vm1751 = vcmp.eq.s32.totalorder %v1718, %v1726
      %vm1752 = vcmp.eq.s32.totalorder %v1719, %v1726
      %vm1753 = vcmp.eq.s32.totalorder %v1720, %v1726
      %vm1754 = vcmp.eq.s32.totalorder %v1721, %v1726
      %vm1755 = vcmp.eq.s32.totalorder %v1722, %v1726
      %vm1756 = vcmp.eq.s32.totalorder %v1723, %v1726
      %vm1757 = vcmp.eq.s32.totalorder %v1724, %v1726
      %vm1758 = vcmp.eq.s32.totalorder %v1725, %v1726
      %v1759 = vsel %vm1727, 1, 0
      %v1760 = vsel %vm1728, 1, 0
      %v1761 = vsel %vm1729, 1, 0
      %v1762 = vsel %vm1730, 1, 0
      %v1763 = vsel %vm1731, 1, 0
      %v1764 = vsel %vm1732, 1, 0
      %v1765 = vsel %vm1733, 1, 0
      %v1766 = vsel %vm1734, 1, 0
      %v1767 = vsel %vm1735, 1, 0
      %v1768 = vsel %vm1736, 1, 0
      %v1769 = vsel %vm1737, 1, 0
      %v1770 = vsel %vm1738, 1, 0
      %v1771 = vsel %vm1739, 1, 0
      %v1772 = vsel %vm1740, 1, 0
      %v1773 = vsel %vm1741, 1, 0
      %v1774 = vsel %vm1742, 1, 0
      %v1775 = vsel %vm1743, 1, 0
      %v1776 = vsel %vm1744, 1, 0
      %v1777 = vsel %vm1745, 1, 0
      %v1778 = vsel %vm1746, 1, 0
      %v1779 = vsel %vm1747, 1, 0
      %v1780 = vsel %vm1748, 1, 0
      %v1781 = vsel %vm1749, 1, 0
      %v1782 = vsel %vm1750, 1, 0
      %v1783 = vsel %vm1751, 1, 0
      %v1784 = vsel %vm1752, 1, 0
      %v1785 = vsel %vm1753, 1, 0
      %v1786 = vsel %vm1754, 1, 0
      %v1787 = vsel %vm1755, 1, 0
      %v1788 = vsel %vm1756, 1, 0
      %v1789 = vsel %vm1757, 1, 0
      %v1790 = vsel %vm1758, 1, 0
      %v1791 = vcvt.s32.f32 %v1759
      %v1792 = vcvt.s32.f32 %v1760
      %v1793 = vcvt.s32.f32 %v1761
      %v1794 = vcvt.s32.f32 %v1762
      %v1795 = vcvt.s32.f32 %v1763
      %v1796 = vcvt.s32.f32 %v1764
      %v1797 = vcvt.s32.f32 %v1765
      %v1798 = vcvt.s32.f32 %v1766
      %v1799 = vcvt.s32.f32 %v1767
      %v1800 = vcvt.s32.f32 %v1768
      %v1801 = vcvt.s32.f32 %v1769
      %v1802 = vcvt.s32.f32 %v1770
      %v1803 = vcvt.s32.f32 %v1771
      %v1804 = vcvt.s32.f32 %v1772
      %v1805 = vcvt.s32.f32 %v1773
      %v1806 = vcvt.s32.f32 %v1774
      %v1807 = vcvt.s32.f32 %v1775
      %v1808 = vcvt.s32.f32 %v1776
      %v1809 = vcvt.s32.f32 %v1777
      %v1810 = vcvt.s32.f32 %v1778
      %v1811 = vcvt.s32.f32 %v1779
      %v1812 = vcvt.s32.f32 %v1780
      %v1813 = vcvt.s32.f32 %v1781
      %v1814 = vcvt.s32.f32 %v1782
      %v1815 = vcvt.s32.f32 %v1783
      %v1816 = vcvt.s32.f32 %v1784
      %v1817 = vcvt.s32.f32 %v1785
      %v1818 = vcvt.s32.f32 %v1786
      %v1819 = vcvt.s32.f32 %v1787
      %v1820 = vcvt.s32.f32 %v1788
      %v1821 = vcvt.s32.f32 %v1789
      %v1822 = vcvt.s32.f32 %v1790
      %v1823 = vld [vmem:[#allocation3] sm:$0xf]
      %v1824 = vld [vmem:[#allocation3 + $0x4] sm:$0xf]
      %v1825 = vld [vmem:[#allocation3 + $0x8] sm:$0xf]
      %v1826 = vld [vmem:[#allocation3 + $0xc] sm:$0xf]
      %v1827 = vld [vmem:[#allocation3 + $0x10] sm:$0xf]
      %v1828 = vld [vmem:[#allocation3 + $0x14] sm:$0xf]
      %v1829 = vld [vmem:[#allocation3 + $0x18] sm:$0xf]
      %v1830 = vld [vmem:[#allocation3 + $0x1c] sm:$0xf]
      %v1831 = vld [vmem:[#allocation3 + $0x20] sm:$0xf]
      %v1832 = vld [vmem:[#allocation3 + $0x24] sm:$0xf]
      %v1833 = vld [vmem:[#allocation3 + $0x28] sm:$0xf]
      %v1834 = vld [vmem:[#allocation3 + $0x2c] sm:$0xf]
      %v1835 = vld [vmem:[#allocation3 + $0x30] sm:$0xf]
      %v1836 = vld [vmem:[#allocation3 + $0x34] sm:$0xf]
      %v1837 = vld [vmem:[#allocation3 + $0x38] sm:$0xf]
      %v1838 = vld [vmem:[#allocation3 + $0x3c] sm:$0xf]
      %v1839 = vld [vmem:[#allocation3 + $0x40] sm:$0xf]
      %v1840 = vld [vmem:[#allocation3 + $0x44] sm:$0xf]
      %v1841 = vld [vmem:[#allocation3 + $0x48] sm:$0xf]
      %v1842 = vld [vmem:[#allocation3 + $0x4c] sm:$0xf]
      %v1843 = vld [vmem:[#allocation3 + $0x50] sm:$0xf]
      %v1844 = vld [vmem:[#allocation3 + $0x54] sm:$0xf]
      %v1845 = vld [vmem:[#allocation3 + $0x58] sm:$0xf]
      %v1846 = vld [vmem:[#allocation3 + $0x5c] sm:$0xf]
      %v1847 = vld [vmem:[#allocation3 + $0x60] sm:$0xf]
      %v1848 = vld [vmem:[#allocation3 + $0x64] sm:$0xf]
      %v1849 = vld [vmem:[#allocation3 + $0x68] sm:$0xf]
      %v1850 = vld [vmem:[#allocation3 + $0x6c] sm:$0xf]
      %v1851 = vld [vmem:[#allocation3 + $0x70] sm:$0xf]
      %v1852 = vld [vmem:[#allocation3 + $0x74] sm:$0xf]
      %v1853 = vld [vmem:[#allocation3 + $0x78] sm:$0xf]
      %v1854 = vld [vmem:[#allocation3 + $0x7c] sm:$0xf]
      %v1855 = vld [vmem:[%s426] sm:$0xf]
      %v1856 = vld [vmem:[%s426 + $0x4] sm:$0xf]
      %v1857 = vld [vmem:[%s426 + $0x8] sm:$0xf]
      %v1858 = vld [vmem:[%s426 + $0xc] sm:$0xf]
      %v1859 = vld [vmem:[%s426 + $0x10] sm:$0xf]
      %v1860 = vld [vmem:[%s426 + $0x14] sm:$0xf]
      %v1861 = vld [vmem:[%s426 + $0x18] sm:$0xf]
      %v1862 = vld [vmem:[%s426 + $0x1c] sm:$0xf]
      %v1863 = vld [vmem:[%s426 + $0x20] sm:$0xf]
      %v1864 = vld [vmem:[%s426 + $0x24] sm:$0xf]
      %v1865 = vld [vmem:[%s426 + $0x28] sm:$0xf]
      %v1866 = vld [vmem:[%s426 + $0x2c] sm:$0xf]
      %v1867 = vld [vmem:[%s426 + $0x30] sm:$0xf]
      %v1868 = vld [vmem:[%s426 + $0x34] sm:$0xf]
      %v1869 = vld [vmem:[%s426 + $0x38] sm:$0xf]
      %v1870 = vld [vmem:[%s426 + $0x3c] sm:$0xf]
      %v1871 = vld [vmem:[%s429] sm:$0x1]
      %v1873 = vperm.slane %v1871, 0
      %v1907 = vunpack.c.l.b16 %v1823
      %v1908 = vunpack.c.l.b16 %v1824
      %v1909 = vunpack.c.l.b16 %v1825
      %v1910 = vunpack.c.l.b16 %v1826
      %v1911 = vunpack.c.l.b16 %v1827
      %v1912 = vunpack.c.l.b16 %v1828
      %v1913 = vunpack.c.l.b16 %v1829
      %v1914 = vunpack.c.l.b16 %v1830
      %v1915 = vunpack.c.l.b16 %v1831
      %v1916 = vunpack.c.l.b16 %v1832
      %v1917 = vunpack.c.l.b16 %v1833
      %v1918 = vunpack.c.l.b16 %v1834
      %v1919 = vunpack.c.l.b16 %v1835
      %v1920 = vunpack.c.l.b16 %v1836
      %v1921 = vunpack.c.l.b16 %v1837
      %v1922 = vunpack.c.l.b16 %v1838
      %v1923 = vunpack.c.l.b16 %v1839
      %v1924 = vunpack.c.l.b16 %v1840
      %v1925 = vunpack.c.l.b16 %v1841
      %v1926 = vunpack.c.l.b16 %v1842
      %v1927 = vunpack.c.l.b16 %v1843
      %v1928 = vunpack.c.l.b16 %v1844
      %v1929 = vunpack.c.l.b16 %v1845
      %v1930 = vunpack.c.l.b16 %v1846
      %v1931 = vunpack.c.l.b16 %v1847
      %v1932 = vunpack.c.l.b16 %v1848
      %v1933 = vunpack.c.l.b16 %v1849
      %v1934 = vunpack.c.l.b16 %v1850
      %v1935 = vunpack.c.l.b16 %v1851
      %v1936 = vunpack.c.l.b16 %v1852
      %v1937 = vunpack.c.l.b16 %v1853
      %v1938 = vunpack.c.l.b16 %v1854
      %v1939 = vpack.c.b16 %v1908, %v1907
      %v1940 = vpack.c.b16 %v1910, %v1909
      %v1941 = vpack.c.b16 %v1912, %v1911
      %v1942 = vpack.c.b16 %v1914, %v1913
      %v1943 = vpack.c.b16 %v1916, %v1915
      %v1944 = vpack.c.b16 %v1918, %v1917
      %v1945 = vpack.c.b16 %v1920, %v1919
      %v1946 = vpack.c.b16 %v1922, %v1921
      %v1947 = vpack.c.b16 %v1924, %v1923
      %v1948 = vpack.c.b16 %v1926, %v1925
      %v1949 = vpack.c.b16 %v1928, %v1927
      %v1950 = vpack.c.b16 %v1930, %v1929
      %v1951 = vpack.c.b16 %v1932, %v1931
      %v1952 = vpack.c.b16 %v1934, %v1933
      %v1953 = vpack.c.b16 %v1936, %v1935
      %v1954 = vpack.c.b16 %v1938, %v1937
      %v1987 = vunpack.c.l.b16 %v1855
      %v1988 = vunpack.c.l.b16 %v1856
      %v1989 = vunpack.c.l.b16 %v1857
      %v1990 = vunpack.c.l.b16 %v1858
      %v1991 = vunpack.c.l.b16 %v1859
      %v1992 = vunpack.c.l.b16 %v1860
      %v1993 = vunpack.c.l.b16 %v1861
      %v1994 = vunpack.c.l.b16 %v1862
      %v1995 = vunpack.c.l.b16 %v1863
      %v1996 = vunpack.c.l.b16 %v1864
      %v1997 = vunpack.c.l.b16 %v1865
      %v1998 = vunpack.c.l.b16 %v1866
      %v1999 = vunpack.c.l.b16 %v1867
      %v2000 = vunpack.c.l.b16 %v1868
      %v2001 = vunpack.c.l.b16 %v1869
      %v2002 = vunpack.c.l.b16 %v1870
      %v2003 = vpack.c.b16 %v1988, %v1987
      %v2004 = vpack.c.b16 %v1990, %v1989
      %v2005 = vpack.c.b16 %v1992, %v1991
      %v2006 = vpack.c.b16 %v1994, %v1993
      %v2007 = vpack.c.b16 %v1996, %v1995
      %v2008 = vpack.c.b16 %v1998, %v1997
      %v2009 = vpack.c.b16 %v2000, %v1999
      %v2010 = vpack.c.b16 %v2002, %v2001
      %2019 = vmatpush.bf16.msra.mxu0 %v2010
      %2020 = vmatpush.bf16.msra.mxu0 %v2009
      %2021 = vmatpush.bf16.msra.mxu0 %v2008
      %2022 = vmatpush.bf16.msra.mxu0 %v2007
      %2023 = vmatpush.bf16.msra.mxu0 %v2006
      %2024 = vmatpush.bf16.msra.mxu0 %v2005
      %2025 = vmatpush.bf16.msra.mxu0 %v2004
      %2026 = vmatpush.bf16.msra.mxu0 %v2003
      %2027 = vmatmul.bf16.gmra.mxu0 %v1939
      %v2028 = vpop.f32.mrf.mxu0
      %v2029 = vadd.f32 %v1873, %v2028
      %v2030 = vpop.f32.mrf.mxu0
      %v2031 = vadd.f32 %v1873, %v2030
      %2032 = vmatmul.bf16.gmra.mxu0 %v1940
      %v2033 = vpop.f32.mrf.mxu0
      %v2034 = vadd.f32 %v1873, %v2033
      %v2035 = vpop.f32.mrf.mxu0
      %v2036 = vadd.f32 %v1873, %v2035
      %2037 = vmatmul.bf16.gmra.mxu0 %v1941
      %v2038 = vpop.f32.mrf.mxu0
      %v2039 = vadd.f32 %v1873, %v2038
      %v2040 = vpop.f32.mrf.mxu0
      %v2041 = vadd.f32 %v1873, %v2040
      %2042 = vmatmul.bf16.gmra.mxu0 %v1942
      %v2043 = vpop.f32.mrf.mxu0
      %v2044 = vadd.f32 %v1873, %v2043
      %v2045 = vpop.f32.mrf.mxu0
      %v2046 = vadd.f32 %v1873, %v2045
      %2047 = vmatmul.bf16.gmra.mxu0 %v1943
      %v2048 = vpop.f32.mrf.mxu0
      %v2049 = vadd.f32 %v1873, %v2048
      %v2050 = vpop.f32.mrf.mxu0
      %v2051 = vadd.f32 %v1873, %v2050
      %2052 = vmatmul.bf16.gmra.mxu0 %v1944
      %v2053 = vpop.f32.mrf.mxu0
      %v2054 = vadd.f32 %v1873, %v2053
      %v2055 = vpop.f32.mrf.mxu0
      %v2056 = vadd.f32 %v1873, %v2055
      %2057 = vmatmul.bf16.gmra.mxu0 %v1945
      %v2058 = vpop.f32.mrf.mxu0
      %v2059 = vadd.f32 %v1873, %v2058
      %v2060 = vpop.f32.mrf.mxu0
      %v2061 = vadd.f32 %v1873, %v2060
      %2062 = vmatmul.bf16.gmra.mxu0 %v1946
      %v2063 = vpop.f32.mrf.mxu0
      %v2064 = vadd.f32 %v1873, %v2063
      %v2065 = vpop.f32.mrf.mxu0
      %v2066 = vadd.f32 %v1873, %v2065
      %2067 = vmatmul.bf16.gmra.mxu0 %v1947
      %v2068 = vpop.f32.mrf.mxu0
      %v2069 = vadd.f32 %v1873, %v2068
      %v2070 = vpop.f32.mrf.mxu0
      %v2071 = vadd.f32 %v1873, %v2070
      %2072 = vmatmul.bf16.gmra.mxu0 %v1948
      %v2073 = vpop.f32.mrf.mxu0
      %v2074 = vadd.f32 %v1873, %v2073
      %v2075 = vpop.f32.mrf.mxu0
      %v2076 = vadd.f32 %v1873, %v2075
      %2077 = vmatmul.bf16.gmra.mxu0 %v1949
      %v2078 = vpop.f32.mrf.mxu0
      %v2079 = vadd.f32 %v1873, %v2078
      %v2080 = vpop.f32.mrf.mxu0
      %v2081 = vadd.f32 %v1873, %v2080
      %2082 = vmatmul.bf16.gmra.mxu0 %v1950
      %v2083 = vpop.f32.mrf.mxu0
      %v2084 = vadd.f32 %v1873, %v2083
      %v2085 = vpop.f32.mrf.mxu0
      %v2086 = vadd.f32 %v1873, %v2085
      %2087 = vmatmul.bf16.gmra.mxu0 %v1951
      %v2088 = vpop.f32.mrf.mxu0
      %v2089 = vadd.f32 %v1873, %v2088
      %v2090 = vpop.f32.mrf.mxu0
      %v2091 = vadd.f32 %v1873, %v2090
      %2092 = vmatmul.bf16.gmra.mxu0 %v1952
      %v2093 = vpop.f32.mrf.mxu0
      %v2094 = vadd.f32 %v1873, %v2093
      %v2095 = vpop.f32.mrf.mxu0
      %v2096 = vadd.f32 %v1873, %v2095
      %2097 = vmatmul.bf16.gmra.mxu0 %v1953
      %v2098 = vpop.f32.mrf.mxu0
      %v2099 = vadd.f32 %v1873, %v2098
      %v2100 = vpop.f32.mrf.mxu0
      %v2101 = vadd.f32 %v1873, %v2100
      %2102 = vmatmul.bf16.gmra.mxu0 %v1954
      %v2103 = vpop.f32.mrf.mxu0
      %v2104 = vadd.f32 %v1873, %v2103
      %v2105 = vpop.f32.mrf.mxu0
      %v2106 = vadd.f32 %v1873, %v2105
      %2107 = vdwg.mxu0
      %vm2108 = vcmp.gt.f32.partialorder %v2029, 0.0
      %vm2109 = vcmp.gt.f32.partialorder %v2031, 0.0
      %vm2110 = vcmp.gt.f32.partialorder %v2034, 0.0
      %vm2111 = vcmp.gt.f32.partialorder %v2036, 0.0
      %vm2112 = vcmp.gt.f32.partialorder %v2039, 0.0
      %vm2113 = vcmp.gt.f32.partialorder %v2041, 0.0
      %vm2114 = vcmp.gt.f32.partialorder %v2044, 0.0
      %vm2115 = vcmp.gt.f32.partialorder %v2046, 0.0
      %vm2116 = vcmp.gt.f32.partialorder %v2049, 0.0
      %vm2117 = vcmp.gt.f32.partialorder %v2051, 0.0
      %vm2118 = vcmp.gt.f32.partialorder %v2054, 0.0
      %vm2119 = vcmp.gt.f32.partialorder %v2056, 0.0
      %vm2120 = vcmp.gt.f32.partialorder %v2059, 0.0
      %vm2121 = vcmp.gt.f32.partialorder %v2061, 0.0
      %vm2122 = vcmp.gt.f32.partialorder %v2064, 0.0
      %vm2123 = vcmp.gt.f32.partialorder %v2066, 0.0
      %vm2124 = vcmp.gt.f32.partialorder %v2069, 0.0
      %vm2125 = vcmp.gt.f32.partialorder %v2071, 0.0
      %vm2126 = vcmp.gt.f32.partialorder %v2074, 0.0
      %vm2127 = vcmp.gt.f32.partialorder %v2076, 0.0
      %vm2128 = vcmp.gt.f32.partialorder %v2079, 0.0
      %vm2129 = vcmp.gt.f32.partialorder %v2081, 0.0
      %vm2130 = vcmp.gt.f32.partialorder %v2084, 0.0
      %vm2131 = vcmp.gt.f32.partialorder %v2086, 0.0
      %vm2132 = vcmp.gt.f32.partialorder %v2089, 0.0
      %vm2133 = vcmp.gt.f32.partialorder %v2091, 0.0
      %vm2134 = vcmp.gt.f32.partialorder %v2094, 0.0
      %vm2135 = vcmp.gt.f32.partialorder %v2096, 0.0
      %vm2136 = vcmp.gt.f32.partialorder %v2099, 0.0
      %vm2137 = vcmp.gt.f32.partialorder %v2101, 0.0
      %vm2138 = vcmp.gt.f32.partialorder %v2104, 0.0
      %vm2139 = vcmp.gt.f32.partialorder %v2106, 0.0
      %v2140 = vmul.f32 %v2029, 0.2
      %v2141 = vmul.f32 %v2031, 0.2
      %v2142 = vmul.f32 %v2034, 0.2
      %v2143 = vmul.f32 %v2036, 0.2
      %v2144 = vmul.f32 %v2039, 0.2
      %v2145 = vmul.f32 %v2041, 0.2
      %v2146 = vmul.f32 %v2044, 0.2
      %v2147 = vmul.f32 %v2046, 0.2
      %v2148 = vmul.f32 %v2049, 0.2
      %v2149 = vmul.f32 %v2051, 0.2
      %v2150 = vmul.f32 %v2054, 0.2
      %v2151 = vmul.f32 %v2056, 0.2
      %v2152 = vmul.f32 %v2059, 0.2
      %v2153 = vmul.f32 %v2061, 0.2
      %v2154 = vmul.f32 %v2064, 0.2
      %v2155 = vmul.f32 %v2066, 0.2
      %v2156 = vmul.f32 %v2069, 0.2
      %v2157 = vmul.f32 %v2071, 0.2
      %v2158 = vmul.f32 %v2074, 0.2
      %v2159 = vmul.f32 %v2076, 0.2
      %v2160 = vmul.f32 %v2079, 0.2
      %v2161 = vmul.f32 %v2081, 0.2
      %v2162 = vmul.f32 %v2084, 0.2
      %v2163 = vmul.f32 %v2086, 0.2
      %v2164 = vmul.f32 %v2089, 0.2
      %v2165 = vmul.f32 %v2091, 0.2
      %v2166 = vmul.f32 %v2094, 0.2
      %v2167 = vmul.f32 %v2096, 0.2
      %v2168 = vmul.f32 %v2099, 0.2
      %v2169 = vmul.f32 %v2101, 0.2
      %v2170 = vmul.f32 %v2104, 0.2
      %v2171 = vmul.f32 %v2106, 0.2
      %v2172 = vsel %vm2108, %v2029, %v2140
      %v2173 = vsel %vm2109, %v2031, %v2141
      %v2174 = vsel %vm2110, %v2034, %v2142
      %v2175 = vsel %vm2111, %v2036, %v2143
      %v2176 = vsel %vm2112, %v2039, %v2144
      %v2177 = vsel %vm2113, %v2041, %v2145
      %v2178 = vsel %vm2114, %v2044, %v2146
      %v2179 = vsel %vm2115, %v2046, %v2147
      %v2180 = vsel %vm2116, %v2049, %v2148
      %v2181 = vsel %vm2117, %v2051, %v2149
      %v2182 = vsel %vm2118, %v2054, %v2150
      %v2183 = vsel %vm2119, %v2056, %v2151
      %v2184 = vsel %vm2120, %v2059, %v2152
      %v2185 = vsel %vm2121, %v2061, %v2153
      %v2186 = vsel %vm2122, %v2064, %v2154
      %v2187 = vsel %vm2123, %v2066, %v2155
      %v2188 = vsel %vm2124, %v2069, %v2156
      %v2189 = vsel %vm2125, %v2071, %v2157
      %v2190 = vsel %vm2126, %v2074, %v2158
      %v2191 = vsel %vm2127, %v2076, %v2159
      %v2192 = vsel %vm2128, %v2079, %v2160
      %v2193 = vsel %vm2129, %v2081, %v2161
      %v2194 = vsel %vm2130, %v2084, %v2162
      %v2195 = vsel %vm2131, %v2086, %v2163
      %v2196 = vsel %vm2132, %v2089, %v2164
      %v2197 = vsel %vm2133, %v2091, %v2165
      %v2198 = vsel %vm2134, %v2094, %v2166
      %v2199 = vsel %vm2135, %v2096, %v2167
      %v2200 = vsel %vm2136, %v2099, %v2168
      %v2201 = vsel %vm2137, %v2101, %v2169
      %v2202 = vsel %vm2138, %v2104, %v2170
      %v2203 = vsel %vm2139, %v2106, %v2171
      %v2204 = vld [vmem:[#allocation2] sm:$0xf]
      %v2205 = vld [vmem:[#allocation2 + $0x4] sm:$0xf]
      %v2206 = vld [vmem:[#allocation2 + $0x8] sm:$0xf]
      %v2207 = vld [vmem:[#allocation2 + $0xc] sm:$0xf]
      %v2208 = vld [vmem:[#allocation2 + $0x10] sm:$0xf]
      %v2209 = vld [vmem:[#allocation2 + $0x14] sm:$0xf]
      %v2210 = vld [vmem:[#allocation2 + $0x18] sm:$0xf]
      %v2211 = vld [vmem:[#allocation2 + $0x1c] sm:$0xf]
      %v2212 = vld [vmem:[#allocation2 + $0x20] sm:$0xf]
      %v2213 = vld [vmem:[#allocation2 + $0x24] sm:$0xf]
      %v2214 = vld [vmem:[#allocation2 + $0x28] sm:$0xf]
      %v2215 = vld [vmem:[#allocation2 + $0x2c] sm:$0xf]
      %v2216 = vld [vmem:[#allocation2 + $0x30] sm:$0xf]
      %v2217 = vld [vmem:[#allocation2 + $0x34] sm:$0xf]
      %v2218 = vld [vmem:[#allocation2 + $0x38] sm:$0xf]
      %v2219 = vld [vmem:[#allocation2 + $0x3c] sm:$0xf]
      %v2220 = vld [vmem:[#allocation2 + $0x40] sm:$0xf]
      %v2221 = vld [vmem:[#allocation2 + $0x44] sm:$0xf]
      %v2222 = vld [vmem:[#allocation2 + $0x48] sm:$0xf]
      %v2223 = vld [vmem:[#allocation2 + $0x4c] sm:$0xf]
      %v2224 = vld [vmem:[#allocation2 + $0x50] sm:$0xf]
      %v2225 = vld [vmem:[#allocation2 + $0x54] sm:$0xf]
      %v2226 = vld [vmem:[#allocation2 + $0x58] sm:$0xf]
      %v2227 = vld [vmem:[#allocation2 + $0x5c] sm:$0xf]
      %v2228 = vld [vmem:[#allocation2 + $0x60] sm:$0xf]
      %v2229 = vld [vmem:[#allocation2 + $0x64] sm:$0xf]
      %v2230 = vld [vmem:[#allocation2 + $0x68] sm:$0xf]
      %v2231 = vld [vmem:[#allocation2 + $0x6c] sm:$0xf]
      %v2232 = vld [vmem:[#allocation2 + $0x70] sm:$0xf]
      %v2233 = vld [vmem:[#allocation2 + $0x74] sm:$0xf]
      %v2234 = vld [vmem:[#allocation2 + $0x78] sm:$0xf]
      %v2235 = vld [vmem:[#allocation2 + $0x7c] sm:$0xf]
      %v2236 = vld [vmem:[%s434] sm:$0xff]
      %v2237 = vld [vmem:[%s434 + $0x8] sm:$0xff]
      %v2238 = vld [vmem:[%s434 + $0x10] sm:$0xff]
      %v2239 = vld [vmem:[%s434 + $0x18] sm:$0xff]
      %v2240 = vld [vmem:[%s434 + $0x20] sm:$0xff]
      %v2241 = vld [vmem:[%s434 + $0x28] sm:$0xff]
      %v2242 = vld [vmem:[%s434 + $0x30] sm:$0xff]
      %v2243 = vld [vmem:[%s434 + $0x38] sm:$0xff]
      %v2244 = vld [vmem:[%s434 + $0x40] sm:$0xff]
      %v2245 = vld [vmem:[%s434 + $0x48] sm:$0xff]
      %v2246 = vld [vmem:[%s434 + $0x50] sm:$0xff]
      %v2247 = vld [vmem:[%s434 + $0x58] sm:$0xff]
      %v2248 = vld [vmem:[%s434 + $0x60] sm:$0xff]
      %v2249 = vld [vmem:[%s434 + $0x68] sm:$0xff]
      %v2250 = vld [vmem:[%s434 + $0x70] sm:$0xff]
      %v2251 = vld [vmem:[%s434 + $0x78] sm:$0xff]
      %v2252 = vld [vmem:[%s434 + $0x80] sm:$0xff]
      %v2253 = vld [vmem:[%s434 + $0x88] sm:$0xff]
      %v2254 = vld [vmem:[%s434 + $0x90] sm:$0xff]
      %v2255 = vld [vmem:[%s434 + $0x98] sm:$0xff]
      %v2256 = vld [vmem:[%s434 + $0xa0] sm:$0xff]
      %v2257 = vld [vmem:[%s434 + $0xa8] sm:$0xff]
      %v2258 = vld [vmem:[%s434 + $0xb0] sm:$0xff]
      %v2259 = vld [vmem:[%s434 + $0xb8] sm:$0xff]
      %v2260 = vld [vmem:[%s434 + $0xc0] sm:$0xff]
      %v2261 = vld [vmem:[%s434 + $0xc8] sm:$0xff]
      %v2262 = vld [vmem:[%s434 + $0xd0] sm:$0xff]
      %v2263 = vld [vmem:[%s434 + $0xd8] sm:$0xff]
      %v2264 = vld [vmem:[%s434 + $0xe0] sm:$0xff]
      %v2265 = vld [vmem:[%s434 + $0xe8] sm:$0xff]
      %v2266 = vld [vmem:[%s434 + $0xf0] sm:$0xff]
      %v2267 = vld [vmem:[%s434 + $0xf8] sm:$0xff]
      %v2268 = vld [vmem:[%s434 + $0x100] sm:$0xff]
      %v2269 = vld [vmem:[%s434 + $0x108] sm:$0xff]
      %v2270 = vld [vmem:[%s434 + $0x110] sm:$0xff]
      %v2271 = vld [vmem:[%s434 + $0x118] sm:$0xff]
      %v2272 = vld [vmem:[%s434 + $0x120] sm:$0xff]
      %v2273 = vld [vmem:[%s434 + $0x128] sm:$0xff]
      %v2274 = vld [vmem:[%s434 + $0x130] sm:$0xff]
      %v2275 = vld [vmem:[%s434 + $0x138] sm:$0xff]
      %v2276 = vld [vmem:[%s434 + $0x140] sm:$0xff]
      %v2277 = vld [vmem:[%s434 + $0x148] sm:$0xff]
      %v2278 = vld [vmem:[%s434 + $0x150] sm:$0xff]
      %v2279 = vld [vmem:[%s434 + $0x158] sm:$0xff]
      %v2280 = vld [vmem:[%s434 + $0x160] sm:$0xff]
      %v2281 = vld [vmem:[%s434 + $0x168] sm:$0xff]
      %v2282 = vld [vmem:[%s434 + $0x170] sm:$0xff]
      %v2283 = vld [vmem:[%s434 + $0x178] sm:$0xff]
      %v2284 = vld [vmem:[%s434 + $0x180] sm:$0xff]
      %v2285 = vld [vmem:[%s434 + $0x188] sm:$0xff]
      %v2286 = vld [vmem:[%s434 + $0x190] sm:$0xff]
      %v2287 = vld [vmem:[%s434 + $0x198] sm:$0xff]
      %v2288 = vld [vmem:[%s434 + $0x1a0] sm:$0xff]
      %v2289 = vld [vmem:[%s434 + $0x1a8] sm:$0xff]
      %v2290 = vld [vmem:[%s434 + $0x1b0] sm:$0xff]
      %v2291 = vld [vmem:[%s434 + $0x1b8] sm:$0xff]
      %v2292 = vld [vmem:[%s434 + $0x1c0] sm:$0xff]
      %v2293 = vld [vmem:[%s434 + $0x1c8] sm:$0xff]
      %v2294 = vld [vmem:[%s434 + $0x1d0] sm:$0xff]
      %v2295 = vld [vmem:[%s434 + $0x1d8] sm:$0xff]
      %v2296 = vld [vmem:[%s434 + $0x1e0] sm:$0xff]
      %v2297 = vld [vmem:[%s434 + $0x1e8] sm:$0xff]
      %v2298 = vld [vmem:[%s434 + $0x1f0] sm:$0xff]
      %v2299 = vld [vmem:[%s434 + $0x1f8] sm:$0xff]
      %v2300 = vld [vmem:[%s434 + $0x200] sm:$0xff]
      %v2301 = vld [vmem:[%s434 + $0x208] sm:$0xff]
      %v2302 = vld [vmem:[%s434 + $0x210] sm:$0xff]
      %v2303 = vld [vmem:[%s434 + $0x218] sm:$0xff]
      %v2304 = vld [vmem:[%s434 + $0x220] sm:$0xff]
      %v2305 = vld [vmem:[%s434 + $0x228] sm:$0xff]
      %v2306 = vld [vmem:[%s434 + $0x230] sm:$0xff]
      %v2307 = vld [vmem:[%s434 + $0x238] sm:$0xff]
      %v2308 = vld [vmem:[%s434 + $0x240] sm:$0xff]
      %v2309 = vld [vmem:[%s434 + $0x248] sm:$0xff]
      %v2310 = vld [vmem:[%s434 + $0x250] sm:$0xff]
      %v2311 = vld [vmem:[%s434 + $0x258] sm:$0xff]
      %v2312 = vld [vmem:[%s434 + $0x260] sm:$0xff]
      %v2313 = vld [vmem:[%s434 + $0x268] sm:$0xff]
      %v2314 = vld [vmem:[%s434 + $0x270] sm:$0xff]
      %v2315 = vld [vmem:[%s434 + $0x278] sm:$0xff]
      %v2316 = vld [vmem:[%s434 + $0x280] sm:$0xff]
      %v2317 = vld [vmem:[%s434 + $0x288] sm:$0xff]
      %v2318 = vld [vmem:[%s434 + $0x290] sm:$0xff]
      %v2319 = vld [vmem:[%s434 + $0x298] sm:$0xff]
      %v2320 = vld [vmem:[%s434 + $0x2a0] sm:$0xff]
      %v2321 = vld [vmem:[%s434 + $0x2a8] sm:$0xff]
      %v2322 = vld [vmem:[%s434 + $0x2b0] sm:$0xff]
      %v2323 = vld [vmem:[%s434 + $0x2b8] sm:$0xff]
      %v2324 = vld [vmem:[%s434 + $0x2c0] sm:$0xff]
      %v2325 = vld [vmem:[%s434 + $0x2c8] sm:$0xff]
      %v2326 = vld [vmem:[%s434 + $0x2d0] sm:$0xff]
      %v2327 = vld [vmem:[%s434 + $0x2d8] sm:$0xff]
      %v2328 = vld [vmem:[%s434 + $0x2e0] sm:$0xff]
      %v2329 = vld [vmem:[%s434 + $0x2e8] sm:$0xff]
      %v2330 = vld [vmem:[%s434 + $0x2f0] sm:$0xff]
      %v2331 = vld [vmem:[%s434 + $0x2f8] sm:$0xff]
      %v2332 = vld [vmem:[%s434 + $0x300] sm:$0xff]
      %v2333 = vld [vmem:[%s434 + $0x308] sm:$0xff]
      %v2334 = vld [vmem:[%s434 + $0x310] sm:$0xff]
      %v2335 = vld [vmem:[%s434 + $0x318] sm:$0xff]
      %v2336 = vld [vmem:[%s434 + $0x320] sm:$0xff]
      %v2337 = vld [vmem:[%s434 + $0x328] sm:$0xff]
      %v2338 = vld [vmem:[%s434 + $0x330] sm:$0xff]
      %v2339 = vld [vmem:[%s434 + $0x338] sm:$0xff]
      %v2340 = vld [vmem:[%s434 + $0x340] sm:$0xff]
      %v2341 = vld [vmem:[%s434 + $0x348] sm:$0xff]
      %v2342 = vld [vmem:[%s434 + $0x350] sm:$0xff]
      %v2343 = vld [vmem:[%s434 + $0x358] sm:$0xff]
      %v2344 = vld [vmem:[%s434 + $0x360] sm:$0xff]
      %v2345 = vld [vmem:[%s434 + $0x368] sm:$0xff]
      %v2346 = vld [vmem:[%s434 + $0x370] sm:$0xff]
      %v2347 = vld [vmem:[%s434 + $0x378] sm:$0xff]
      %v2348 = vld [vmem:[%s434 + $0x380] sm:$0xff]
      %v2349 = vld [vmem:[%s434 + $0x388] sm:$0xff]
      %v2350 = vld [vmem:[%s434 + $0x390] sm:$0xff]
      %v2351 = vld [vmem:[%s434 + $0x398] sm:$0xff]
      %v2352 = vld [vmem:[%s434 + $0x3a0] sm:$0xff]
      %v2353 = vld [vmem:[%s434 + $0x3a8] sm:$0xff]
      %v2354 = vld [vmem:[%s434 + $0x3b0] sm:$0xff]
      %v2355 = vld [vmem:[%s434 + $0x3b8] sm:$0xff]
      %v2356 = vld [vmem:[%s434 + $0x3c0] sm:$0xff]
      %v2357 = vld [vmem:[%s434 + $0x3c8] sm:$0xff]
      %v2358 = vld [vmem:[%s434 + $0x3d0] sm:$0xff]
      %v2359 = vld [vmem:[%s434 + $0x3d8] sm:$0xff]
      %v2360 = vld [vmem:[%s434 + $0x3e0] sm:$0xff]
      %v2361 = vld [vmem:[%s434 + $0x3e8] sm:$0xff]
      %v2362 = vld [vmem:[%s434 + $0x3f0] sm:$0xff]
      %v2363 = vld [vmem:[%s434 + $0x3f8] sm:$0xff]
      %v2396 = vunpack.c.l.b16 %v2204
      %v2397 = vunpack.c.l.b16 %v2205
      %v2398 = vunpack.c.l.b16 %v2206
      %v2399 = vunpack.c.l.b16 %v2207
      %v2400 = vunpack.c.l.b16 %v2208
      %v2401 = vunpack.c.l.b16 %v2209
      %v2402 = vunpack.c.l.b16 %v2210
      %v2403 = vunpack.c.l.b16 %v2211
      %v2404 = vunpack.c.l.b16 %v2212
      %v2405 = vunpack.c.l.b16 %v2213
      %v2406 = vunpack.c.l.b16 %v2214
      %v2407 = vunpack.c.l.b16 %v2215
      %v2408 = vunpack.c.l.b16 %v2216
      %v2409 = vunpack.c.l.b16 %v2217
      %v2410 = vunpack.c.l.b16 %v2218
      %v2411 = vunpack.c.l.b16 %v2219
      %v2412 = vunpack.c.l.b16 %v2220
      %v2413 = vunpack.c.l.b16 %v2221
      %v2414 = vunpack.c.l.b16 %v2222
      %v2415 = vunpack.c.l.b16 %v2223
      %v2416 = vunpack.c.l.b16 %v2224
      %v2417 = vunpack.c.l.b16 %v2225
      %v2418 = vunpack.c.l.b16 %v2226
      %v2419 = vunpack.c.l.b16 %v2227
      %v2420 = vunpack.c.l.b16 %v2228
      %v2421 = vunpack.c.l.b16 %v2229
      %v2422 = vunpack.c.l.b16 %v2230
      %v2423 = vunpack.c.l.b16 %v2231
      %v2424 = vunpack.c.l.b16 %v2232
      %v2425 = vunpack.c.l.b16 %v2233
      %v2426 = vunpack.c.l.b16 %v2234
      %v2427 = vunpack.c.l.b16 %v2235
      %v2428 = vpack.c.b16 %v2397, %v2396
      %v2429 = vpack.c.b16 %v2399, %v2398
      %v2430 = vpack.c.b16 %v2401, %v2400
      %v2431 = vpack.c.b16 %v2403, %v2402
      %v2432 = vpack.c.b16 %v2405, %v2404
      %v2433 = vpack.c.b16 %v2407, %v2406
      %v2434 = vpack.c.b16 %v2409, %v2408
      %v2435 = vpack.c.b16 %v2411, %v2410
      %v2436 = vpack.c.b16 %v2413, %v2412
      %v2437 = vpack.c.b16 %v2415, %v2414
      %v2438 = vpack.c.b16 %v2417, %v2416
      %v2439 = vpack.c.b16 %v2419, %v2418
      %v2440 = vpack.c.b16 %v2421, %v2420
      %v2441 = vpack.c.b16 %v2423, %v2422
      %v2442 = vpack.c.b16 %v2425, %v2424
      %v2443 = vpack.c.b16 %v2427, %v2426
      %v2588 = vunpack.c.l.b16 %v2236
      %v2589 = vunpack.c.h.b16 %v2236
      %v2590 = vunpack.c.l.b16 %v2237
      %v2591 = vunpack.c.h.b16 %v2237
      %v2592 = vunpack.c.l.b16 %v2238
      %v2593 = vunpack.c.h.b16 %v2238
      %v2594 = vunpack.c.l.b16 %v2239
      %v2595 = vunpack.c.h.b16 %v2239
      %v2596 = vunpack.c.l.b16 %v2240
      %v2597 = vunpack.c.h.b16 %v2240
      %v2598 = vunpack.c.l.b16 %v2241
      %v2599 = vunpack.c.h.b16 %v2241
      %v2600 = vunpack.c.l.b16 %v2242
      %v2601 = vunpack.c.h.b16 %v2242
      %v2602 = vunpack.c.l.b16 %v2243
      %v2603 = vunpack.c.h.b16 %v2243
      %v2604 = vunpack.c.l.b16 %v2244
      %v2605 = vunpack.c.h.b16 %v2244
      %v2606 = vunpack.c.l.b16 %v2245
      %v2607 = vunpack.c.h.b16 %v2245
      %v2608 = vunpack.c.l.b16 %v2246
      %v2609 = vunpack.c.h.b16 %v2246
      %v2610 = vunpack.c.l.b16 %v2247
      %v2611 = vunpack.c.h.b16 %v2247
      %v2612 = vunpack.c.l.b16 %v2248
      %v2613 = vunpack.c.h.b16 %v2248
      %v2614 = vunpack.c.l.b16 %v2249
      %v2615 = vunpack.c.h.b16 %v2249
      %v2616 = vunpack.c.l.b16 %v2250
      %v2617 = vunpack.c.h.b16 %v2250
      %v2618 = vunpack.c.l.b16 %v2251
      %v2619 = vunpack.c.h.b16 %v2251
      %v2620 = vunpack.c.l.b16 %v2252
      %v2621 = vunpack.c.h.b16 %v2252
      %v2622 = vunpack.c.l.b16 %v2253
      %v2623 = vunpack.c.h.b16 %v2253
      %v2624 = vunpack.c.l.b16 %v2254
      %v2625 = vunpack.c.h.b16 %v2254
      %v2626 = vunpack.c.l.b16 %v2255
      %v2627 = vunpack.c.h.b16 %v2255
      %v2628 = vunpack.c.l.b16 %v2256
      %v2629 = vunpack.c.h.b16 %v2256
      %v2630 = vunpack.c.l.b16 %v2257
      %v2631 = vunpack.c.h.b16 %v2257
      %v2632 = vunpack.c.l.b16 %v2258
      %v2633 = vunpack.c.h.b16 %v2258
      %v2634 = vunpack.c.l.b16 %v2259
      %v2635 = vunpack.c.h.b16 %v2259
      %v2636 = vunpack.c.l.b16 %v2260
      %v2637 = vunpack.c.h.b16 %v2260
      %v2638 = vunpack.c.l.b16 %v2261
      %v2639 = vunpack.c.h.b16 %v2261
      %v2640 = vunpack.c.l.b16 %v2262
      %v2641 = vunpack.c.h.b16 %v2262
      %v2642 = vunpack.c.l.b16 %v2263
      %v2643 = vunpack.c.h.b16 %v2263
      %v2644 = vunpack.c.l.b16 %v2264
      %v2645 = vunpack.c.h.b16 %v2264
      %v2646 = vunpack.c.l.b16 %v2265
      %v2647 = vunpack.c.h.b16 %v2265
      %v2648 = vunpack.c.l.b16 %v2266
      %v2649 = vunpack.c.h.b16 %v2266
      %v2650 = vunpack.c.l.b16 %v2267
      %v2651 = vunpack.c.h.b16 %v2267
      %v2652 = vunpack.c.l.b16 %v2268
      %v2653 = vunpack.c.h.b16 %v2268
      %v2654 = vunpack.c.l.b16 %v2269
      %v2655 = vunpack.c.h.b16 %v2269
      %v2656 = vunpack.c.l.b16 %v2270
      %v2657 = vunpack.c.h.b16 %v2270
      %v2658 = vunpack.c.l.b16 %v2271
      %v2659 = vunpack.c.h.b16 %v2271
      %v2660 = vunpack.c.l.b16 %v2272
      %v2661 = vunpack.c.h.b16 %v2272
      %v2662 = vunpack.c.l.b16 %v2273
      %v2663 = vunpack.c.h.b16 %v2273
      %v2664 = vunpack.c.l.b16 %v2274
      %v2665 = vunpack.c.h.b16 %v2274
      %v2666 = vunpack.c.l.b16 %v2275
      %v2667 = vunpack.c.h.b16 %v2275
      %v2668 = vunpack.c.l.b16 %v2276
      %v2669 = vunpack.c.h.b16 %v2276
      %v2670 = vunpack.c.l.b16 %v2277
      %v2671 = vunpack.c.h.b16 %v2277
      %v2672 = vunpack.c.l.b16 %v2278
      %v2673 = vunpack.c.h.b16 %v2278
      %v2674 = vunpack.c.l.b16 %v2279
      %v2675 = vunpack.c.h.b16 %v2279
      %v2676 = vunpack.c.l.b16 %v2280
      %v2677 = vunpack.c.h.b16 %v2280
      %v2678 = vunpack.c.l.b16 %v2281
      %v2679 = vunpack.c.h.b16 %v2281
      %v2680 = vunpack.c.l.b16 %v2282
      %v2681 = vunpack.c.h.b16 %v2282
      %v2682 = vunpack.c.l.b16 %v2283
      %v2683 = vunpack.c.h.b16 %v2283
      %v2684 = vunpack.c.l.b16 %v2284
      %v2685 = vunpack.c.h.b16 %v2284
      %v2686 = vunpack.c.l.b16 %v2285
      %v2687 = vunpack.c.h.b16 %v2285
      %v2688 = vunpack.c.l.b16 %v2286
      %v2689 = vunpack.c.h.b16 %v2286
      %v2690 = vunpack.c.l.b16 %v2287
      %v2691 = vunpack.c.h.b16 %v2287
      %v2692 = vunpack.c.l.b16 %v2288
      %v2693 = vunpack.c.h.b16 %v2288
      %v2694 = vunpack.c.l.b16 %v2289
      %v2695 = vunpack.c.h.b16 %v2289
      %v2696 = vunpack.c.l.b16 %v2290
      %v2697 = vunpack.c.h.b16 %v2290
      %v2698 = vunpack.c.l.b16 %v2291
      %v2699 = vunpack.c.h.b16 %v2291
      %v2700 = vunpack.c.l.b16 %v2292
      %v2701 = vunpack.c.h.b16 %v2292
      %v2702 = vunpack.c.l.b16 %v2293
      %v2703 = vunpack.c.h.b16 %v2293
      %v2704 = vunpack.c.l.b16 %v2294
      %v2705 = vunpack.c.h.b16 %v2294
      %v2706 = vunpack.c.l.b16 %v2295
      %v2707 = vunpack.c.h.b16 %v2295
      %v2708 = vunpack.c.l.b16 %v2296
      %v2709 = vunpack.c.h.b16 %v2296
      %v2710 = vunpack.c.l.b16 %v2297
      %v2711 = vunpack.c.h.b16 %v2297
      %v2712 = vunpack.c.l.b16 %v2298
      %v2713 = vunpack.c.h.b16 %v2298
      %v2714 = vunpack.c.l.b16 %v2299
      %v2715 = vunpack.c.h.b16 %v2299
      %v2716 = vunpack.c.l.b16 %v2300
      %v2717 = vunpack.c.h.b16 %v2300
      %v2718 = vunpack.c.l.b16 %v2301
      %v2719 = vunpack.c.h.b16 %v2301
      %v2720 = vunpack.c.l.b16 %v2302
      %v2721 = vunpack.c.h.b16 %v2302
      %v2722 = vunpack.c.l.b16 %v2303
      %v2723 = vunpack.c.h.b16 %v2303
      %v2724 = vunpack.c.l.b16 %v2304
      %v2725 = vunpack.c.h.b16 %v2304
      %v2726 = vunpack.c.l.b16 %v2305
      %v2727 = vunpack.c.h.b16 %v2305
      %v2728 = vunpack.c.l.b16 %v2306
      %v2729 = vunpack.c.h.b16 %v2306
      %v2730 = vunpack.c.l.b16 %v2307
      %v2731 = vunpack.c.h.b16 %v2307
      %v2732 = vunpack.c.l.b16 %v2308
      %v2733 = vunpack.c.h.b16 %v2308
      %v2734 = vunpack.c.l.b16 %v2309
      %v2735 = vunpack.c.h.b16 %v2309
      %v2736 = vunpack.c.l.b16 %v2310
      %v2737 = vunpack.c.h.b16 %v2310
      %v2738 = vunpack.c.l.b16 %v2311
      %v2739 = vunpack.c.h.b16 %v2311
      %v2740 = vunpack.c.l.b16 %v2312
      %v2741 = vunpack.c.h.b16 %v2312
      %v2742 = vunpack.c.l.b16 %v2313
      %v2743 = vunpack.c.h.b16 %v2313
      %v2744 = vunpack.c.l.b16 %v2314
      %v2745 = vunpack.c.h.b16 %v2314
      %v2746 = vunpack.c.l.b16 %v2315
      %v2747 = vunpack.c.h.b16 %v2315
      %v2748 = vunpack.c.l.b16 %v2316
      %v2749 = vunpack.c.h.b16 %v2316
      %v2750 = vunpack.c.l.b16 %v2317
      %v2751 = vunpack.c.h.b16 %v2317
      %v2752 = vunpack.c.l.b16 %v2318
      %v2753 = vunpack.c.h.b16 %v2318
      %v2754 = vunpack.c.l.b16 %v2319
      %v2755 = vunpack.c.h.b16 %v2319
      %v2756 = vunpack.c.l.b16 %v2320
      %v2757 = vunpack.c.h.b16 %v2320
      %v2758 = vunpack.c.l.b16 %v2321
      %v2759 = vunpack.c.h.b16 %v2321
      %v2760 = vunpack.c.l.b16 %v2322
      %v2761 = vunpack.c.h.b16 %v2322
      %v2762 = vunpack.c.l.b16 %v2323
      %v2763 = vunpack.c.h.b16 %v2323
      %v2764 = vunpack.c.l.b16 %v2324
      %v2765 = vunpack.c.h.b16 %v2324
      %v2766 = vunpack.c.l.b16 %v2325
      %v2767 = vunpack.c.h.b16 %v2325
      %v2768 = vunpack.c.l.b16 %v2326
      %v2769 = vunpack.c.h.b16 %v2326
      %v2770 = vunpack.c.l.b16 %v2327
      %v2771 = vunpack.c.h.b16 %v2327
      %v2772 = vunpack.c.l.b16 %v2328
      %v2773 = vunpack.c.h.b16 %v2328
      %v2774 = vunpack.c.l.b16 %v2329
      %v2775 = vunpack.c.h.b16 %v2329
      %v2776 = vunpack.c.l.b16 %v2330
      %v2777 = vunpack.c.h.b16 %v2330
      %v2778 = vunpack.c.l.b16 %v2331
      %v2779 = vunpack.c.h.b16 %v2331
      %v2780 = vunpack.c.l.b16 %v2332
      %v2781 = vunpack.c.h.b16 %v2332
      %v2782 = vunpack.c.l.b16 %v2333
      %v2783 = vunpack.c.h.b16 %v2333
      %v2784 = vunpack.c.l.b16 %v2334
      %v2785 = vunpack.c.h.b16 %v2334
      %v2786 = vunpack.c.l.b16 %v2335
      %v2787 = vunpack.c.h.b16 %v2335
      %v2788 = vunpack.c.l.b16 %v2336
      %v2789 = vunpack.c.h.b16 %v2336
      %v2790 = vunpack.c.l.b16 %v2337
      %v2791 = vunpack.c.h.b16 %v2337
      %v2792 = vunpack.c.l.b16 %v2338
      %v2793 = vunpack.c.h.b16 %v2338
      %v2794 = vunpack.c.l.b16 %v2339
      %v2795 = vunpack.c.h.b16 %v2339
      %v2796 = vunpack.c.l.b16 %v2340
      %v2797 = vunpack.c.h.b16 %v2340
      %v2798 = vunpack.c.l.b16 %v2341
      %v2799 = vunpack.c.h.b16 %v2341
      %v2800 = vunpack.c.l.b16 %v2342
      %v2801 = vunpack.c.h.b16 %v2342
      %v2802 = vunpack.c.l.b16 %v2343
      %v2803 = vunpack.c.h.b16 %v2343
      %v2804 = vunpack.c.l.b16 %v2344
      %v2805 = vunpack.c.h.b16 %v2344
      %v2806 = vunpack.c.l.b16 %v2345
      %v2807 = vunpack.c.h.b16 %v2345
      %v2808 = vunpack.c.l.b16 %v2346
      %v2809 = vunpack.c.h.b16 %v2346
      %v2810 = vunpack.c.l.b16 %v2347
      %v2811 = vunpack.c.h.b16 %v2347
      %v2812 = vunpack.c.l.b16 %v2348
      %v2813 = vunpack.c.h.b16 %v2348
      %v2814 = vunpack.c.l.b16 %v2349
      %v2815 = vunpack.c.h.b16 %v2349
      %v2816 = vunpack.c.l.b16 %v2350
      %v2817 = vunpack.c.h.b16 %v2350
      %v2818 = vunpack.c.l.b16 %v2351
      %v2819 = vunpack.c.h.b16 %v2351
      %v2820 = vunpack.c.l.b16 %v2352
      %v2821 = vunpack.c.h.b16 %v2352
      %v2822 = vunpack.c.l.b16 %v2353
      %v2823 = vunpack.c.h.b16 %v2353
      %v2824 = vunpack.c.l.b16 %v2354
      %v2825 = vunpack.c.h.b16 %v2354
      %v2826 = vunpack.c.l.b16 %v2355
      %v2827 = vunpack.c.h.b16 %v2355
      %v2828 = vunpack.c.l.b16 %v2356
      %v2829 = vunpack.c.h.b16 %v2356
      %v2830 = vunpack.c.l.b16 %v2357
      %v2831 = vunpack.c.h.b16 %v2357
      %v2832 = vunpack.c.l.b16 %v2358
      %v2833 = vunpack.c.h.b16 %v2358
      %v2834 = vunpack.c.l.b16 %v2359
      %v2835 = vunpack.c.h.b16 %v2359
      %v2836 = vunpack.c.l.b16 %v2360
      %v2837 = vunpack.c.h.b16 %v2360
      %v2838 = vunpack.c.l.b16 %v2361
      %v2839 = vunpack.c.h.b16 %v2361
      %v2840 = vunpack.c.l.b16 %v2362
      %v2841 = vunpack.c.h.b16 %v2362
      %v2842 = vunpack.c.l.b16 %v2363
      %v2843 = vunpack.c.h.b16 %v2363
      %v2844 = vpack.c.b16 %v2604, %v2588
      %v2845 = vpack.c.b16 %v2605, %v2589
      %v2846 = vpack.c.b16 %v2606, %v2590
      %v2847 = vpack.c.b16 %v2607, %v2591
      %v2848 = vpack.c.b16 %v2608, %v2592
      %v2849 = vpack.c.b16 %v2609, %v2593
      %v2850 = vpack.c.b16 %v2610, %v2594
      %v2851 = vpack.c.b16 %v2611, %v2595
      %v2852 = vpack.c.b16 %v2612, %v2596
      %v2853 = vpack.c.b16 %v2613, %v2597
      %v2854 = vpack.c.b16 %v2614, %v2598
      %v2855 = vpack.c.b16 %v2615, %v2599
      %v2856 = vpack.c.b16 %v2616, %v2600
      %v2857 = vpack.c.b16 %v2617, %v2601
      %v2858 = vpack.c.b16 %v2618, %v2602
      %v2859 = vpack.c.b16 %v2619, %v2603
      %v2860 = vpack.c.b16 %v2636, %v2620
      %v2861 = vpack.c.b16 %v2637, %v2621
      %v2862 = vpack.c.b16 %v2638, %v2622
      %v2863 = vpack.c.b16 %v2639, %v2623
      %v2864 = vpack.c.b16 %v2640, %v2624
      %v2865 = vpack.c.b16 %v2641, %v2625
      %v2866 = vpack.c.b16 %v2642, %v2626
      %v2867 = vpack.c.b16 %v2643, %v2627
      %v2868 = vpack.c.b16 %v2644, %v2628
      %v2869 = vpack.c.b16 %v2645, %v2629
      %v2870 = vpack.c.b16 %v2646, %v2630
      %v2871 = vpack.c.b16 %v2647, %v2631
      %v2872 = vpack.c.b16 %v2648, %v2632
      %v2873 = vpack.c.b16 %v2649, %v2633
      %v2874 = vpack.c.b16 %v2650, %v2634
      %v2875 = vpack.c.b16 %v2651, %v2635
      %v2876 = vpack.c.b16 %v2668, %v2652
      %v2877 = vpack.c.b16 %v2669, %v2653
      %v2878 = vpack.c.b16 %v2670, %v2654
      %v2879 = vpack.c.b16 %v2671, %v2655
      %v2880 = vpack.c.b16 %v2672, %v2656
      %v2881 = vpack.c.b16 %v2673, %v2657
      %v2882 = vpack.c.b16 %v2674, %v2658
      %v2883 = vpack.c.b16 %v2675, %v2659
      %v2884 = vpack.c.b16 %v2676, %v2660
      %v2885 = vpack.c.b16 %v2677, %v2661
      %v2886 = vpack.c.b16 %v2678, %v2662
      %v2887 = vpack.c.b16 %v2679, %v2663
      %v2888 = vpack.c.b16 %v2680, %v2664
      %v2889 = vpack.c.b16 %v2681, %v2665
      %v2890 = vpack.c.b16 %v2682, %v2666
      %v2891 = vpack.c.b16 %v2683, %v2667
      %v2892 = vpack.c.b16 %v2700, %v2684
      %v2893 = vpack.c.b16 %v2701, %v2685
      %v2894 = vpack.c.b16 %v2702, %v2686
      %v2895 = vpack.c.b16 %v2703, %v2687
      %v2896 = vpack.c.b16 %v2704, %v2688
      %v2897 = vpack.c.b16 %v2705, %v2689
      %v2898 = vpack.c.b16 %v2706, %v2690
      %v2899 = vpack.c.b16 %v2707, %v2691
      %v2900 = vpack.c.b16 %v2708, %v2692
      %v2901 = vpack.c.b16 %v2709, %v2693
      %v2902 = vpack.c.b16 %v2710, %v2694
      %v2903 = vpack.c.b16 %v2711, %v2695
      %v2904 = vpack.c.b16 %v2712, %v2696
      %v2905 = vpack.c.b16 %v2713, %v2697
      %v2906 = vpack.c.b16 %v2714, %v2698
      %v2907 = vpack.c.b16 %v2715, %v2699
      %v2908 = vpack.c.b16 %v2732, %v2716
      %v2909 = vpack.c.b16 %v2733, %v2717
      %v2910 = vpack.c.b16 %v2734, %v2718
      %v2911 = vpack.c.b16 %v2735, %v2719
      %v2912 = vpack.c.b16 %v2736, %v2720
      %v2913 = vpack.c.b16 %v2737, %v2721
      %v2914 = vpack.c.b16 %v2738, %v2722
      %v2915 = vpack.c.b16 %v2739, %v2723
      %v2916 = vpack.c.b16 %v2740, %v2724
      %v2917 = vpack.c.b16 %v2741, %v2725
      %v2918 = vpack.c.b16 %v2742, %v2726
      %v2919 = vpack.c.b16 %v2743, %v2727
      %v2920 = vpack.c.b16 %v2744, %v2728
      %v2921 = vpack.c.b16 %v2745, %v2729
      %v2922 = vpack.c.b16 %v2746, %v2730
      %v2923 = vpack.c.b16 %v2747, %v2731
      %v2924 = vpack.c.b16 %v2764, %v2748
      %v2925 = vpack.c.b16 %v2765, %v2749
      %v2926 = vpack.c.b16 %v2766, %v2750
      %v2927 = vpack.c.b16 %v2767, %v2751
      %v2928 = vpack.c.b16 %v2768, %v2752
      %v2929 = vpack.c.b16 %v2769, %v2753
      %v2930 = vpack.c.b16 %v2770, %v2754
      %v2931 = vpack.c.b16 %v2771, %v2755
      %v2932 = vpack.c.b16 %v2772, %v2756
      %v2933 = vpack.c.b16 %v2773, %v2757
      %v2934 = vpack.c.b16 %v2774, %v2758
      %v2935 = vpack.c.b16 %v2775, %v2759
      %v2936 = vpack.c.b16 %v2776, %v2760
      %v2937 = vpack.c.b16 %v2777, %v2761
      %v2938 = vpack.c.b16 %v2778, %v2762
      %v2939 = vpack.c.b16 %v2779, %v2763
      %v2940 = vpack.c.b16 %v2796, %v2780
      %v2941 = vpack.c.b16 %v2797, %v2781
      %v2942 = vpack.c.b16 %v2798, %v2782
      %v2943 = vpack.c.b16 %v2799, %v2783
      %v2944 = vpack.c.b16 %v2800, %v2784
      %v2945 = vpack.c.b16 %v2801, %v2785
      %v2946 = vpack.c.b16 %v2802, %v2786
      %v2947 = vpack.c.b16 %v2803, %v2787
      %v2948 = vpack.c.b16 %v2804, %v2788
      %v2949 = vpack.c.b16 %v2805, %v2789
      %v2950 = vpack.c.b16 %v2806, %v2790
      %v2951 = vpack.c.b16 %v2807, %v2791
      %v2952 = vpack.c.b16 %v2808, %v2792
      %v2953 = vpack.c.b16 %v2809, %v2793
      %v2954 = vpack.c.b16 %v2810, %v2794
      %v2955 = vpack.c.b16 %v2811, %v2795
      %v2956 = vpack.c.b16 %v2828, %v2812
      %v2957 = vpack.c.b16 %v2829, %v2813
      %v2958 = vpack.c.b16 %v2830, %v2814
      %v2959 = vpack.c.b16 %v2831, %v2815
      %v2960 = vpack.c.b16 %v2832, %v2816
      %v2961 = vpack.c.b16 %v2833, %v2817
      %v2962 = vpack.c.b16 %v2834, %v2818
      %v2963 = vpack.c.b16 %v2835, %v2819
      %v2964 = vpack.c.b16 %v2836, %v2820
      %v2965 = vpack.c.b16 %v2837, %v2821
      %v2966 = vpack.c.b16 %v2838, %v2822
      %v2967 = vpack.c.b16 %v2839, %v2823
      %v2968 = vpack.c.b16 %v2840, %v2824
      %v2969 = vpack.c.b16 %v2841, %v2825
      %v2970 = vpack.c.b16 %v2842, %v2826
      %v2971 = vpack.c.b16 %v2843, %v2827
      %3100 = vmatpush.bf16.msra.mxu0 %v2956
      %3101 = vmatpush.bf16.msra.mxu0 %v2940
      %3102 = vmatpush.bf16.msra.mxu0 %v2924
      %3103 = vmatpush.bf16.msra.mxu0 %v2908
      %3104 = vmatpush.bf16.msra.mxu0 %v2892
      %3105 = vmatpush.bf16.msra.mxu0 %v2876
      %3106 = vmatpush.bf16.msra.mxu0 %v2860
      %3107 = vmatpush.bf16.msra.mxu0 %v2844
      %3108 = vmatmul.bf16.gmra.mxu0 %v2428
      %v3109 = vpop.f32.mrf.mxu0
      %v3110 = vadd.f32 0.0, %v3109
      %v3111 = vpop.f32.mrf.mxu0
      %v3112 = vadd.f32 0.0, %v3111
      %3113 = vmatmul.bf16.gmra.mxu0 %v2429
      %v3114 = vpop.f32.mrf.mxu0
      %v3115 = vadd.f32 0.0, %v3114
      %v3116 = vpop.f32.mrf.mxu0
      %v3117 = vadd.f32 0.0, %v3116
      %3118 = vmatmul.bf16.gmra.mxu0 %v2430
      %v3119 = vpop.f32.mrf.mxu0
      %v3120 = vadd.f32 0.0, %v3119
      %v3121 = vpop.f32.mrf.mxu0
      %v3122 = vadd.f32 0.0, %v3121
      %3123 = vmatmul.bf16.gmra.mxu0 %v2431
      %v3124 = vpop.f32.mrf.mxu0
      %v3125 = vadd.f32 0.0, %v3124
      %v3126 = vpop.f32.mrf.mxu0
      %v3127 = vadd.f32 0.0, %v3126
      %3128 = vmatmul.bf16.gmra.mxu0 %v2432
      %v3129 = vpop.f32.mrf.mxu0
      %v3130 = vadd.f32 0.0, %v3129
      %v3131 = vpop.f32.mrf.mxu0
      %v3132 = vadd.f32 0.0, %v3131
      %3133 = vmatmul.bf16.gmra.mxu0 %v2433
      %v3134 = vpop.f32.mrf.mxu0
      %v3135 = vadd.f32 0.0, %v3134
      %v3136 = vpop.f32.mrf.mxu0
      %v3137 = vadd.f32 0.0, %v3136
      %3138 = vmatmul.bf16.gmra.mxu0 %v2434
      %v3139 = vpop.f32.mrf.mxu0
      %v3140 = vadd.f32 0.0, %v3139
      %v3141 = vpop.f32.mrf.mxu0
      %v3142 = vadd.f32 0.0, %v3141
      %3143 = vmatmul.bf16.gmra.mxu0 %v2435
      %v3144 = vpop.f32.mrf.mxu0
      %v3145 = vadd.f32 0.0, %v3144
      %v3146 = vpop.f32.mrf.mxu0
      %v3147 = vadd.f32 0.0, %v3146
      %3148 = vmatmul.bf16.gmra.mxu0 %v2436
      %v3149 = vpop.f32.mrf.mxu0
      %v3150 = vadd.f32 0.0, %v3149
      %v3151 = vpop.f32.mrf.mxu0
      %v3152 = vadd.f32 0.0, %v3151
      %3153 = vmatmul.bf16.gmra.mxu0 %v2437
      %v3154 = vpop.f32.mrf.mxu0
      %v3155 = vadd.f32 0.0, %v3154
      %v3156 = vpop.f32.mrf.mxu0
      %v3157 = vadd.f32 0.0, %v3156
      %3158 = vmatmul.bf16.gmra.mxu0 %v2438
      %v3159 = vpop.f32.mrf.mxu0
      %v3160 = vadd.f32 0.0, %v3159
      %v3161 = vpop.f32.mrf.mxu0
      %v3162 = vadd.f32 0.0, %v3161
      %3163 = vmatmul.bf16.gmra.mxu0 %v2439
      %v3164 = vpop.f32.mrf.mxu0
      %v3165 = vadd.f32 0.0, %v3164
      %v3166 = vpop.f32.mrf.mxu0
      %v3167 = vadd.f32 0.0, %v3166
      %3168 = vmatmul.bf16.gmra.mxu0 %v2440
      %v3169 = vpop.f32.mrf.mxu0
      %v3170 = vadd.f32 0.0, %v3169
      %v3171 = vpop.f32.mrf.mxu0
      %v3172 = vadd.f32 0.0, %v3171
      %3173 = vmatmul.bf16.gmra.mxu0 %v2441
      %v3174 = vpop.f32.mrf.mxu0
      %v3175 = vadd.f32 0.0, %v3174
      %v3176 = vpop.f32.mrf.mxu0
      %v3177 = vadd.f32 0.0, %v3176
      %3178 = vmatmul.bf16.gmra.mxu0 %v2442
      %v3179 = vpop.f32.mrf.mxu0
      %v3180 = vadd.f32 0.0, %v3179
      %v3181 = vpop.f32.mrf.mxu0
      %v3182 = vadd.f32 0.0, %v3181
      %3183 = vmatmul.bf16.gmra.mxu0 %v2443
      %v3184 = vpop.f32.mrf.mxu0
      %v3185 = vadd.f32 0.0, %v3184
      %v3186 = vpop.f32.mrf.mxu0
      %v3187 = vadd.f32 0.0, %v3186
      %3188 = vdwg.mxu0
      %3189 = vmatpush.bf16.msra.mxu0 %v2957
      %3190 = vmatpush.bf16.msra.mxu0 %v2941
      %3191 = vmatpush.bf16.msra.mxu0 %v2925
      %3192 = vmatpush.bf16.msra.mxu0 %v2909
      %3193 = vmatpush.bf16.msra.mxu0 %v2893
      %3194 = vmatpush.bf16.msra.mxu0 %v2877
      %3195 = vmatpush.bf16.msra.mxu0 %v2861
      %3196 = vmatpush.bf16.msra.mxu0 %v2845
      %3197 = vmatmul.bf16.gmra.mxu0 %v2428
      %v3198 = vpop.f32.mrf.mxu0
      %v3199 = vadd.f32 0.0, %v3198
      %v3200 = vpop.f32.mrf.mxu0
      %v3201 = vadd.f32 0.0, %v3200
      %3202 = vmatmul.bf16.gmra.mxu0 %v2429
      %v3203 = vpop.f32.mrf.mxu0
      %v3204 = vadd.f32 0.0, %v3203
      %v3205 = vpop.f32.mrf.mxu0
      %v3206 = vadd.f32 0.0, %v3205
      %3207 = vmatmul.bf16.gmra.mxu0 %v2430
      %v3208 = vpop.f32.mrf.mxu0
      %v3209 = vadd.f32 0.0, %v3208
      %v3210 = vpop.f32.mrf.mxu0
      %v3211 = vadd.f32 0.0, %v3210
      %3212 = vmatmul.bf16.gmra.mxu0 %v2431
      %v3213 = vpop.f32.mrf.mxu0
      %v3214 = vadd.f32 0.0, %v3213
      %v3215 = vpop.f32.mrf.mxu0
      %v3216 = vadd.f32 0.0, %v3215
      %3217 = vmatmul.bf16.gmra.mxu0 %v2432
      %v3218 = vpop.f32.mrf.mxu0
      %v3219 = vadd.f32 0.0, %v3218
      %v3220 = vpop.f32.mrf.mxu0
      %v3221 = vadd.f32 0.0, %v3220
      %3222 = vmatmul.bf16.gmra.mxu0 %v2433
      %v3223 = vpop.f32.mrf.mxu0
      %v3224 = vadd.f32 0.0, %v3223
      %v3225 = vpop.f32.mrf.mxu0
      %v3226 = vadd.f32 0.0, %v3225
      %3227 = vmatmul.bf16.gmra.mxu0 %v2434
      %v3228 = vpop.f32.mrf.mxu0
      %v3229 = vadd.f32 0.0, %v3228
      %v3230 = vpop.f32.mrf.mxu0
      %v3231 = vadd.f32 0.0, %v3230
      %3232 = vmatmul.bf16.gmra.mxu0 %v2435
      %v3233 = vpop.f32.mrf.mxu0
      %v3234 = vadd.f32 0.0, %v3233
      %v3235 = vpop.f32.mrf.mxu0
      %v3236 = vadd.f32 0.0, %v3235
      %3237 = vmatmul.bf16.gmra.mxu0 %v2436
      %v3238 = vpop.f32.mrf.mxu0
      %v3239 = vadd.f32 0.0, %v3238
      %v3240 = vpop.f32.mrf.mxu0
      %v3241 = vadd.f32 0.0, %v3240
      %3242 = vmatmul.bf16.gmra.mxu0 %v2437
      %v3243 = vpop.f32.mrf.mxu0
      %v3244 = vadd.f32 0.0, %v3243
      %v3245 = vpop.f32.mrf.mxu0
      %v3246 = vadd.f32 0.0, %v3245
      %3247 = vmatmul.bf16.gmra.mxu0 %v2438
      %v3248 = vpop.f32.mrf.mxu0
      %v3249 = vadd.f32 0.0, %v3248
      %v3250 = vpop.f32.mrf.mxu0
      %v3251 = vadd.f32 0.0, %v3250
      %3252 = vmatmul.bf16.gmra.mxu0 %v2439
      %v3253 = vpop.f32.mrf.mxu0
      %v3254 = vadd.f32 0.0, %v3253
      %v3255 = vpop.f32.mrf.mxu0
      %v3256 = vadd.f32 0.0, %v3255
      %3257 = vmatmul.bf16.gmra.mxu0 %v2440
      %v3258 = vpop.f32.mrf.mxu0
      %v3259 = vadd.f32 0.0, %v3258
      %v3260 = vpop.f32.mrf.mxu0
      %v3261 = vadd.f32 0.0, %v3260
      %3262 = vmatmul.bf16.gmra.mxu0 %v2441
      %v3263 = vpop.f32.mrf.mxu0
      %v3264 = vadd.f32 0.0, %v3263
      %v3265 = vpop.f32.mrf.mxu0
      %v3266 = vadd.f32 0.0, %v3265
      %3267 = vmatmul.bf16.gmra.mxu0 %v2442
      %v3268 = vpop.f32.mrf.mxu0
      %v3269 = vadd.f32 0.0, %v3268
      %v3270 = vpop.f32.mrf.mxu0
      %v3271 = vadd.f32 0.0, %v3270
      %3272 = vmatmul.bf16.gmra.mxu0 %v2443
      %v3273 = vpop.f32.mrf.mxu0
      %v3274 = vadd.f32 0.0, %v3273
      %v3275 = vpop.f32.mrf.mxu0
      %v3276 = vadd.f32 0.0, %v3275
      %3277 = vdwg.mxu0
      %3278 = vmatpush.bf16.msra.mxu0 %v2958
      %3279 = vmatpush.bf16.msra.mxu0 %v2942
      %3280 = vmatpush.bf16.msra.mxu0 %v2926
      %3281 = vmatpush.bf16.msra.mxu0 %v2910
      %3282 = vmatpush.bf16.msra.mxu0 %v2894
      %3283 = vmatpush.bf16.msra.mxu0 %v2878
      %3284 = vmatpush.bf16.msra.mxu0 %v2862
      %3285 = vmatpush.bf16.msra.mxu0 %v2846
      %3286 = vmatmul.bf16.gmra.mxu0 %v2428
      %v3287 = vpop.f32.mrf.mxu0
      %v3288 = vadd.f32 0.0, %v3287
      %v3289 = vpop.f32.mrf.mxu0
      %v3290 = vadd.f32 0.0, %v3289
      %3291 = vmatmul.bf16.gmra.mxu0 %v2429
      %v3292 = vpop.f32.mrf.mxu0
      %v3293 = vadd.f32 0.0, %v3292
      %v3294 = vpop.f32.mrf.mxu0
      %v3295 = vadd.f32 0.0, %v3294
      %3296 = vmatmul.bf16.gmra.mxu0 %v2430
      %v3297 = vpop.f32.mrf.mxu0
      %v3298 = vadd.f32 0.0, %v3297
      %v3299 = vpop.f32.mrf.mxu0
      %v3300 = vadd.f32 0.0, %v3299
      %3301 = vmatmul.bf16.gmra.mxu0 %v2431
      %v3302 = vpop.f32.mrf.mxu0
      %v3303 = vadd.f32 0.0, %v3302
      %v3304 = vpop.f32.mrf.mxu0
      %v3305 = vadd.f32 0.0, %v3304
      %3306 = vmatmul.bf16.gmra.mxu0 %v2432
      %v3307 = vpop.f32.mrf.mxu0
      %v3308 = vadd.f32 0.0, %v3307
      %v3309 = vpop.f32.mrf.mxu0
      %v3310 = vadd.f32 0.0, %v3309
      %3311 = vmatmul.bf16.gmra.mxu0 %v2433
      %v3312 = vpop.f32.mrf.mxu0
      %v3313 = vadd.f32 0.0, %v3312
      %v3314 = vpop.f32.mrf.mxu0
      %v3315 = vadd.f32 0.0, %v3314
      %3316 = vmatmul.bf16.gmra.mxu0 %v2434
      %v3317 = vpop.f32.mrf.mxu0
      %v3318 = vadd.f32 0.0, %v3317
      %v3319 = vpop.f32.mrf.mxu0
      %v3320 = vadd.f32 0.0, %v3319
      %3321 = vmatmul.bf16.gmra.mxu0 %v2435
      %v3322 = vpop.f32.mrf.mxu0
      %v3323 = vadd.f32 0.0, %v3322
      %v3324 = vpop.f32.mrf.mxu0
      %v3325 = vadd.f32 0.0, %v3324
      %3326 = vmatmul.bf16.gmra.mxu0 %v2436
      %v3327 = vpop.f32.mrf.mxu0
      %v3328 = vadd.f32 0.0, %v3327
      %v3329 = vpop.f32.mrf.mxu0
      %v3330 = vadd.f32 0.0, %v3329
      %3331 = vmatmul.bf16.gmra.mxu0 %v2437
      %v3332 = vpop.f32.mrf.mxu0
      %v3333 = vadd.f32 0.0, %v3332
      %v3334 = vpop.f32.mrf.mxu0
      %v3335 = vadd.f32 0.0, %v3334
      %3336 = vmatmul.bf16.gmra.mxu0 %v2438
      %v3337 = vpop.f32.mrf.mxu0
      %v3338 = vadd.f32 0.0, %v3337
      %v3339 = vpop.f32.mrf.mxu0
      %v3340 = vadd.f32 0.0, %v3339
      %3341 = vmatmul.bf16.gmra.mxu0 %v2439
      %v3342 = vpop.f32.mrf.mxu0
      %v3343 = vadd.f32 0.0, %v3342
      %v3344 = vpop.f32.mrf.mxu0
      %v3345 = vadd.f32 0.0, %v3344
      %3346 = vmatmul.bf16.gmra.mxu0 %v2440
      %v3347 = vpop.f32.mrf.mxu0
      %v3348 = vadd.f32 0.0, %v3347
      %v3349 = vpop.f32.mrf.mxu0
      %v3350 = vadd.f32 0.0, %v3349
      %3351 = vmatmul.bf16.gmra.mxu0 %v2441
      %v3352 = vpop.f32.mrf.mxu0
      %v3353 = vadd.f32 0.0, %v3352
      %v3354 = vpop.f32.mrf.mxu0
      %v3355 = vadd.f32 0.0, %v3354
      %3356 = vmatmul.bf16.gmra.mxu0 %v2442
      %v3357 = vpop.f32.mrf.mxu0
      %v3358 = vadd.f32 0.0, %v3357
      %v3359 = vpop.f32.mrf.mxu0
      %v3360 = vadd.f32 0.0, %v3359
      %3361 = vmatmul.bf16.gmra.mxu0 %v2443
      %v3362 = vpop.f32.mrf.mxu0
      %v3363 = vadd.f32 0.0, %v3362
      %v3364 = vpop.f32.mrf.mxu0
      %v3365 = vadd.f32 0.0, %v3364
      %3366 = vdwg.mxu0
      %3367 = vmatpush.bf16.msra.mxu0 %v2959
      %3368 = vmatpush.bf16.msra.mxu0 %v2943
      %3369 = vmatpush.bf16.msra.mxu0 %v2927
      %3370 = vmatpush.bf16.msra.mxu0 %v2911
      %3371 = vmatpush.bf16.msra.mxu0 %v2895
      %3372 = vmatpush.bf16.msra.mxu0 %v2879
      %3373 = vmatpush.bf16.msra.mxu0 %v2863
      %3374 = vmatpush.bf16.msra.mxu0 %v2847
      %3375 = vmatmul.bf16.gmra.mxu0 %v2428
      %v3376 = vpop.f32.mrf.mxu0
      %v3377 = vadd.f32 0.0, %v3376
      %v3378 = vpop.f32.mrf.mxu0
      %v3379 = vadd.f32 0.0, %v3378
      %3380 = vmatmul.bf16.gmra.mxu0 %v2429
      %v3381 = vpop.f32.mrf.mxu0
      %v3382 = vadd.f32 0.0, %v3381
      %v3383 = vpop.f32.mrf.mxu0
      %v3384 = vadd.f32 0.0, %v3383
      %3385 = vmatmul.bf16.gmra.mxu0 %v2430
      %v3386 = vpop.f32.mrf.mxu0
      %v3387 = vadd.f32 0.0, %v3386
      %v3388 = vpop.f32.mrf.mxu0
      %v3389 = vadd.f32 0.0, %v3388
      %3390 = vmatmul.bf16.gmra.mxu0 %v2431
      %v3391 = vpop.f32.mrf.mxu0
      %v3392 = vadd.f32 0.0, %v3391
      %v3393 = vpop.f32.mrf.mxu0
      %v3394 = vadd.f32 0.0, %v3393
      %3395 = vmatmul.bf16.gmra.mxu0 %v2432
      %v3396 = vpop.f32.mrf.mxu0
      %v3397 = vadd.f32 0.0, %v3396
      %v3398 = vpop.f32.mrf.mxu0
      %v3399 = vadd.f32 0.0, %v3398
      %3400 = vmatmul.bf16.gmra.mxu0 %v2433
      %v3401 = vpop.f32.mrf.mxu0
      %v3402 = vadd.f32 0.0, %v3401
      %v3403 = vpop.f32.mrf.mxu0
      %v3404 = vadd.f32 0.0, %v3403
      %3405 = vmatmul.bf16.gmra.mxu0 %v2434
      %v3406 = vpop.f32.mrf.mxu0
      %v3407 = vadd.f32 0.0, %v3406
      %v3408 = vpop.f32.mrf.mxu0
      %v3409 = vadd.f32 0.0, %v3408
      %3410 = vmatmul.bf16.gmra.mxu0 %v2435
      %v3411 = vpop.f32.mrf.mxu0
      %v3412 = vadd.f32 0.0, %v3411
      %v3413 = vpop.f32.mrf.mxu0
      %v3414 = vadd.f32 0.0, %v3413
      %3415 = vmatmul.bf16.gmra.mxu0 %v2436
      %v3416 = vpop.f32.mrf.mxu0
      %v3417 = vadd.f32 0.0, %v3416
      %v3418 = vpop.f32.mrf.mxu0
      %v3419 = vadd.f32 0.0, %v3418
      %3420 = vmatmul.bf16.gmra.mxu0 %v2437
      %v3421 = vpop.f32.mrf.mxu0
      %v3422 = vadd.f32 0.0, %v3421
      %v3423 = vpop.f32.mrf.mxu0
      %v3424 = vadd.f32 0.0, %v3423
      %3425 = vmatmul.bf16.gmra.mxu0 %v2438
      %v3426 = vpop.f32.mrf.mxu0
      %v3427 = vadd.f32 0.0, %v3426
      %v3428 = vpop.f32.mrf.mxu0
      %v3429 = vadd.f32 0.0, %v3428
      %3430 = vmatmul.bf16.gmra.mxu0 %v2439
      %v3431 = vpop.f32.mrf.mxu0
      %v3432 = vadd.f32 0.0, %v3431
      %v3433 = vpop.f32.mrf.mxu0
      %v3434 = vadd.f32 0.0, %v3433
      %3435 = vmatmul.bf16.gmra.mxu0 %v2440
      %v3436 = vpop.f32.mrf.mxu0
      %v3437 = vadd.f32 0.0, %v3436
      %v3438 = vpop.f32.mrf.mxu0
      %v3439 = vadd.f32 0.0, %v3438
      %3440 = vmatmul.bf16.gmra.mxu0 %v2441
      %v3441 = vpop.f32.mrf.mxu0
      %v3442 = vadd.f32 0.0, %v3441
      %v3443 = vpop.f32.mrf.mxu0
      %v3444 = vadd.f32 0.0, %v3443
      %3445 = vmatmul.bf16.gmra.mxu0 %v2442
      %v3446 = vpop.f32.mrf.mxu0
      %v3447 = vadd.f32 0.0, %v3446
      %v3448 = vpop.f32.mrf.mxu0
      %v3449 = vadd.f32 0.0, %v3448
      %3450 = vmatmul.bf16.gmra.mxu0 %v2443
      %v3451 = vpop.f32.mrf.mxu0
      %v3452 = vadd.f32 0.0, %v3451
      %v3453 = vpop.f32.mrf.mxu0
      %v3454 = vadd.f32 0.0, %v3453
      %3455 = vdwg.mxu0
      %3456 = vmatpush.bf16.msra.mxu0 %v2960
      %3457 = vmatpush.bf16.msra.mxu0 %v2944
      %3458 = vmatpush.bf16.msra.mxu0 %v2928
      %3459 = vmatpush.bf16.msra.mxu0 %v2912
      %3460 = vmatpush.bf16.msra.mxu0 %v2896
      %3461 = vmatpush.bf16.msra.mxu0 %v2880
      %3462 = vmatpush.bf16.msra.mxu0 %v2864
      %3463 = vmatpush.bf16.msra.mxu0 %v2848
      %3464 = vmatmul.bf16.gmra.mxu0 %v2428
      %v3465 = vpop.f32.mrf.mxu0
      %v3466 = vadd.f32 0.0, %v3465
      %v3467 = vpop.f32.mrf.mxu0
      %v3468 = vadd.f32 0.0, %v3467
      %3469 = vmatmul.bf16.gmra.mxu0 %v2429
      %v3470 = vpop.f32.mrf.mxu0
      %v3471 = vadd.f32 0.0, %v3470
      %v3472 = vpop.f32.mrf.mxu0
      %v3473 = vadd.f32 0.0, %v3472
      %3474 = vmatmul.bf16.gmra.mxu0 %v2430
      %v3475 = vpop.f32.mrf.mxu0
      %v3476 = vadd.f32 0.0, %v3475
      %v3477 = vpop.f32.mrf.mxu0
      %v3478 = vadd.f32 0.0, %v3477
      %3479 = vmatmul.bf16.gmra.mxu0 %v2431
      %v3480 = vpop.f32.mrf.mxu0
      %v3481 = vadd.f32 0.0, %v3480
      %v3482 = vpop.f32.mrf.mxu0
      %v3483 = vadd.f32 0.0, %v3482
      %3484 = vmatmul.bf16.gmra.mxu0 %v2432
      %v3485 = vpop.f32.mrf.mxu0
      %v3486 = vadd.f32 0.0, %v3485
      %v3487 = vpop.f32.mrf.mxu0
      %v3488 = vadd.f32 0.0, %v3487
      %3489 = vmatmul.bf16.gmra.mxu0 %v2433
      %v3490 = vpop.f32.mrf.mxu0
      %v3491 = vadd.f32 0.0, %v3490
      %v3492 = vpop.f32.mrf.mxu0
      %v3493 = vadd.f32 0.0, %v3492
      %3494 = vmatmul.bf16.gmra.mxu0 %v2434
      %v3495 = vpop.f32.mrf.mxu0
      %v3496 = vadd.f32 0.0, %v3495
      %v3497 = vpop.f32.mrf.mxu0
      %v3498 = vadd.f32 0.0, %v3497
      %3499 = vmatmul.bf16.gmra.mxu0 %v2435
      %v3500 = vpop.f32.mrf.mxu0
      %v3501 = vadd.f32 0.0, %v3500
      %v3502 = vpop.f32.mrf.mxu0
      %v3503 = vadd.f32 0.0, %v3502
      %3504 = vmatmul.bf16.gmra.mxu0 %v2436
      %v3505 = vpop.f32.mrf.mxu0
      %v3506 = vadd.f32 0.0, %v3505
      %v3507 = vpop.f32.mrf.mxu0
      %v3508 = vadd.f32 0.0, %v3507
      %3509 = vmatmul.bf16.gmra.mxu0 %v2437
      %v3510 = vpop.f32.mrf.mxu0
      %v3511 = vadd.f32 0.0, %v3510
      %v3512 = vpop.f32.mrf.mxu0
      %v3513 = vadd.f32 0.0, %v3512
      %3514 = vmatmul.bf16.gmra.mxu0 %v2438
      %v3515 = vpop.f32.mrf.mxu0
      %v3516 = vadd.f32 0.0, %v3515
      %v3517 = vpop.f32.mrf.mxu0
      %v3518 = vadd.f32 0.0, %v3517
      %3519 = vmatmul.bf16.gmra.mxu0 %v2439
      %v3520 = vpop.f32.mrf.mxu0
      %v3521 = vadd.f32 0.0, %v3520
      %v3522 = vpop.f32.mrf.mxu0
      %v3523 = vadd.f32 0.0, %v3522
      %3524 = vmatmul.bf16.gmra.mxu0 %v2440
      %v3525 = vpop.f32.mrf.mxu0
      %v3526 = vadd.f32 0.0, %v3525
      %v3527 = vpop.f32.mrf.mxu0
      %v3528 = vadd.f32 0.0, %v3527
      %3529 = vmatmul.bf16.gmra.mxu0 %v2441
      %v3530 = vpop.f32.mrf.mxu0
      %v3531 = vadd.f32 0.0, %v3530
      %v3532 = vpop.f32.mrf.mxu0
      %v3533 = vadd.f32 0.0, %v3532
      %3534 = vmatmul.bf16.gmra.mxu0 %v2442
      %v3535 = vpop.f32.mrf.mxu0
      %v3536 = vadd.f32 0.0, %v3535
      %v3537 = vpop.f32.mrf.mxu0
      %v3538 = vadd.f32 0.0, %v3537
      %3539 = vmatmul.bf16.gmra.mxu0 %v2443
      %v3540 = vpop.f32.mrf.mxu0
      %v3541 = vadd.f32 0.0, %v3540
      %v3542 = vpop.f32.mrf.mxu0
      %v3543 = vadd.f32 0.0, %v3542
      %3544 = vdwg.mxu0
      %3545 = vmatpush.bf16.msra.mxu0 %v2961
      %3546 = vmatpush.bf16.msra.mxu0 %v2945
      %3547 = vmatpush.bf16.msra.mxu0 %v2929
      %3548 = vmatpush.bf16.msra.mxu0 %v2913
      %3549 = vmatpush.bf16.msra.mxu0 %v2897
      %3550 = vmatpush.bf16.msra.mxu0 %v2881
      %3551 = vmatpush.bf16.msra.mxu0 %v2865
      %3552 = vmatpush.bf16.msra.mxu0 %v2849
      %3553 = vmatmul.bf16.gmra.mxu0 %v2428
      %v3554 = vpop.f32.mrf.mxu0
      %v3555 = vadd.f32 0.0, %v3554
      %v3556 = vpop.f32.mrf.mxu0
      %v3557 = vadd.f32 0.0, %v3556
      %3558 = vmatmul.bf16.gmra.mxu0 %v2429
      %v3559 = vpop.f32.mrf.mxu0
      %v3560 = vadd.f32 0.0, %v3559
      %v3561 = vpop.f32.mrf.mxu0
      %v3562 = vadd.f32 0.0, %v3561
      %3563 = vmatmul.bf16.gmra.mxu0 %v2430
      %v3564 = vpop.f32.mrf.mxu0
      %v3565 = vadd.f32 0.0, %v3564
      %v3566 = vpop.f32.mrf.mxu0
      %v3567 = vadd.f32 0.0, %v3566
      %3568 = vmatmul.bf16.gmra.mxu0 %v2431
      %v3569 = vpop.f32.mrf.mxu0
      %v3570 = vadd.f32 0.0, %v3569
      %v3571 = vpop.f32.mrf.mxu0
      %v3572 = vadd.f32 0.0, %v3571
      %3573 = vmatmul.bf16.gmra.mxu0 %v2432
      %v3574 = vpop.f32.mrf.mxu0
      %v3575 = vadd.f32 0.0, %v3574
      %v3576 = vpop.f32.mrf.mxu0
      %v3577 = vadd.f32 0.0, %v3576
      %3578 = vmatmul.bf16.gmra.mxu0 %v2433
      %v3579 = vpop.f32.mrf.mxu0
      %v3580 = vadd.f32 0.0, %v3579
      %v3581 = vpop.f32.mrf.mxu0
      %v3582 = vadd.f32 0.0, %v3581
      %3583 = vmatmul.bf16.gmra.mxu0 %v2434
      %v3584 = vpop.f32.mrf.mxu0
      %v3585 = vadd.f32 0.0, %v3584
      %v3586 = vpop.f32.mrf.mxu0
      %v3587 = vadd.f32 0.0, %v3586
      %3588 = vmatmul.bf16.gmra.mxu0 %v2435
      %v3589 = vpop.f32.mrf.mxu0
      %v3590 = vadd.f32 0.0, %v3589
      %v3591 = vpop.f32.mrf.mxu0
      %v3592 = vadd.f32 0.0, %v3591
      %3593 = vmatmul.bf16.gmra.mxu0 %v2436
      %v3594 = vpop.f32.mrf.mxu0
      %v3595 = vadd.f32 0.0, %v3594
      %v3596 = vpop.f32.mrf.mxu0
      %v3597 = vadd.f32 0.0, %v3596
      %3598 = vmatmul.bf16.gmra.mxu0 %v2437
      %v3599 = vpop.f32.mrf.mxu0
      %v3600 = vadd.f32 0.0, %v3599
      %v3601 = vpop.f32.mrf.mxu0
      %v3602 = vadd.f32 0.0, %v3601
      %3603 = vmatmul.bf16.gmra.mxu0 %v2438
      %v3604 = vpop.f32.mrf.mxu0
      %v3605 = vadd.f32 0.0, %v3604
      %v3606 = vpop.f32.mrf.mxu0
      %v3607 = vadd.f32 0.0, %v3606
      %3608 = vmatmul.bf16.gmra.mxu0 %v2439
      %v3609 = vpop.f32.mrf.mxu0
      %v3610 = vadd.f32 0.0, %v3609
      %v3611 = vpop.f32.mrf.mxu0
      %v3612 = vadd.f32 0.0, %v3611
      %3613 = vmatmul.bf16.gmra.mxu0 %v2440
      %v3614 = vpop.f32.mrf.mxu0
      %v3615 = vadd.f32 0.0, %v3614
      %v3616 = vpop.f32.mrf.mxu0
      %v3617 = vadd.f32 0.0, %v3616
      %3618 = vmatmul.bf16.gmra.mxu0 %v2441
      %v3619 = vpop.f32.mrf.mxu0
      %v3620 = vadd.f32 0.0, %v3619
      %v3621 = vpop.f32.mrf.mxu0
      %v3622 = vadd.f32 0.0, %v3621
      %3623 = vmatmul.bf16.gmra.mxu0 %v2442
      %v3624 = vpop.f32.mrf.mxu0
      %v3625 = vadd.f32 0.0, %v3624
      %v3626 = vpop.f32.mrf.mxu0
      %v3627 = vadd.f32 0.0, %v3626
      %3628 = vmatmul.bf16.gmra.mxu0 %v2443
      %v3629 = vpop.f32.mrf.mxu0
      %v3630 = vadd.f32 0.0, %v3629
      %v3631 = vpop.f32.mrf.mxu0
      %v3632 = vadd.f32 0.0, %v3631
      %3633 = vdwg.mxu0
      %3634 = vmatpush.bf16.msra.mxu0 %v2962
      %3635 = vmatpush.bf16.msra.mxu0 %v2946
      %3636 = vmatpush.bf16.msra.mxu0 %v2930
      %3637 = vmatpush.bf16.msra.mxu0 %v2914
      %3638 = vmatpush.bf16.msra.mxu0 %v2898
      %3639 = vmatpush.bf16.msra.mxu0 %v2882
      %3640 = vmatpush.bf16.msra.mxu0 %v2866
      %3641 = vmatpush.bf16.msra.mxu0 %v2850
      %3642 = vmatmul.bf16.gmra.mxu0 %v2428
      %v3643 = vpop.f32.mrf.mxu0
      %v3644 = vadd.f32 0.0, %v3643
      %v3645 = vpop.f32.mrf.mxu0
      %v3646 = vadd.f32 0.0, %v3645
      %3647 = vmatmul.bf16.gmra.mxu0 %v2429
      %v3648 = vpop.f32.mrf.mxu0
      %v3649 = vadd.f32 0.0, %v3648
      %v3650 = vpop.f32.mrf.mxu0
      %v3651 = vadd.f32 0.0, %v3650
      %3652 = vmatmul.bf16.gmra.mxu0 %v2430
      %v3653 = vpop.f32.mrf.mxu0
      %v3654 = vadd.f32 0.0, %v3653
      %v3655 = vpop.f32.mrf.mxu0
      %v3656 = vadd.f32 0.0, %v3655
      %3657 = vmatmul.bf16.gmra.mxu0 %v2431
      %v3658 = vpop.f32.mrf.mxu0
      %v3659 = vadd.f32 0.0, %v3658
      %v3660 = vpop.f32.mrf.mxu0
      %v3661 = vadd.f32 0.0, %v3660
      %3662 = vmatmul.bf16.gmra.mxu0 %v2432
      %v3663 = vpop.f32.mrf.mxu0
      %v3664 = vadd.f32 0.0, %v3663
      %v3665 = vpop.f32.mrf.mxu0
      %v3666 = vadd.f32 0.0, %v3665
      %3667 = vmatmul.bf16.gmra.mxu0 %v2433
      %v3668 = vpop.f32.mrf.mxu0
      %v3669 = vadd.f32 0.0, %v3668
      %v3670 = vpop.f32.mrf.mxu0
      %v3671 = vadd.f32 0.0, %v3670
      %3672 = vmatmul.bf16.gmra.mxu0 %v2434
      %v3673 = vpop.f32.mrf.mxu0
      %v3674 = vadd.f32 0.0, %v3673
      %v3675 = vpop.f32.mrf.mxu0
      %v3676 = vadd.f32 0.0, %v3675
      %3677 = vmatmul.bf16.gmra.mxu0 %v2435
      %v3678 = vpop.f32.mrf.mxu0
      %v3679 = vadd.f32 0.0, %v3678
      %v3680 = vpop.f32.mrf.mxu0
      %v3681 = vadd.f32 0.0, %v3680
      %3682 = vmatmul.bf16.gmra.mxu0 %v2436
      %v3683 = vpop.f32.mrf.mxu0
      %v3684 = vadd.f32 0.0, %v3683
      %v3685 = vpop.f32.mrf.mxu0
      %v3686 = vadd.f32 0.0, %v3685
      %3687 = vmatmul.bf16.gmra.mxu0 %v2437
      %v3688 = vpop.f32.mrf.mxu0
      %v3689 = vadd.f32 0.0, %v3688
      %v3690 = vpop.f32.mrf.mxu0
      %v3691 = vadd.f32 0.0, %v3690
      %3692 = vmatmul.bf16.gmra.mxu0 %v2438
      %v3693 = vpop.f32.mrf.mxu0
      %v3694 = vadd.f32 0.0, %v3693
      %v3695 = vpop.f32.mrf.mxu0
      %v3696 = vadd.f32 0.0, %v3695
      %3697 = vmatmul.bf16.gmra.mxu0 %v2439
      %v3698 = vpop.f32.mrf.mxu0
      %v3699 = vadd.f32 0.0, %v3698
      %v3700 = vpop.f32.mrf.mxu0
      %v3701 = vadd.f32 0.0, %v3700
      %3702 = vmatmul.bf16.gmra.mxu0 %v2440
      %v3703 = vpop.f32.mrf.mxu0
      %v3704 = vadd.f32 0.0, %v3703
      %v3705 = vpop.f32.mrf.mxu0
      %v3706 = vadd.f32 0.0, %v3705
      %3707 = vmatmul.bf16.gmra.mxu0 %v2441
      %v3708 = vpop.f32.mrf.mxu0
      %v3709 = vadd.f32 0.0, %v3708
      %v3710 = vpop.f32.mrf.mxu0
      %v3711 = vadd.f32 0.0, %v3710
      %3712 = vmatmul.bf16.gmra.mxu0 %v2442
      %v3713 = vpop.f32.mrf.mxu0
      %v3714 = vadd.f32 0.0, %v3713
      %v3715 = vpop.f32.mrf.mxu0
      %v3716 = vadd.f32 0.0, %v3715
      %3717 = vmatmul.bf16.gmra.mxu0 %v2443
      %v3718 = vpop.f32.mrf.mxu0
      %v3719 = vadd.f32 0.0, %v3718
      %v3720 = vpop.f32.mrf.mxu0
      %v3721 = vadd.f32 0.0, %v3720
      %3722 = vdwg.mxu0
      %3723 = vmatpush.bf16.msra.mxu0 %v2963
      %3724 = vmatpush.bf16.msra.mxu0 %v2947
      %3725 = vmatpush.bf16.msra.mxu0 %v2931
      %3726 = vmatpush.bf16.msra.mxu0 %v2915
      %3727 = vmatpush.bf16.msra.mxu0 %v2899
      %3728 = vmatpush.bf16.msra.mxu0 %v2883
      %3729 = vmatpush.bf16.msra.mxu0 %v2867
      %3730 = vmatpush.bf16.msra.mxu0 %v2851
      %3731 = vmatmul.bf16.gmra.mxu0 %v2428
      %v3732 = vpop.f32.mrf.mxu0
      %v3733 = vadd.f32 0.0, %v3732
      %v3734 = vpop.f32.mrf.mxu0
      %v3735 = vadd.f32 0.0, %v3734
      %3736 = vmatmul.bf16.gmra.mxu0 %v2429
      %v3737 = vpop.f32.mrf.mxu0
      %v3738 = vadd.f32 0.0, %v3737
      %v3739 = vpop.f32.mrf.mxu0
      %v3740 = vadd.f32 0.0, %v3739
      %3741 = vmatmul.bf16.gmra.mxu0 %v2430
      %v3742 = vpop.f32.mrf.mxu0
      %v3743 = vadd.f32 0.0, %v3742
      %v3744 = vpop.f32.mrf.mxu0
      %v3745 = vadd.f32 0.0, %v3744
      %3746 = vmatmul.bf16.gmra.mxu0 %v2431
      %v3747 = vpop.f32.mrf.mxu0
      %v3748 = vadd.f32 0.0, %v3747
      %v3749 = vpop.f32.mrf.mxu0
      %v3750 = vadd.f32 0.0, %v3749
      %3751 = vmatmul.bf16.gmra.mxu0 %v2432
      %v3752 = vpop.f32.mrf.mxu0
      %v3753 = vadd.f32 0.0, %v3752
      %v3754 = vpop.f32.mrf.mxu0
      %v3755 = vadd.f32 0.0, %v3754
      %3756 = vmatmul.bf16.gmra.mxu0 %v2433
      %v3757 = vpop.f32.mrf.mxu0
      %v3758 = vadd.f32 0.0, %v3757
      %v3759 = vpop.f32.mrf.mxu0
      %v3760 = vadd.f32 0.0, %v3759
      %3761 = vmatmul.bf16.gmra.mxu0 %v2434
      %v3762 = vpop.f32.mrf.mxu0
      %v3763 = vadd.f32 0.0, %v3762
      %v3764 = vpop.f32.mrf.mxu0
      %v3765 = vadd.f32 0.0, %v3764
      %3766 = vmatmul.bf16.gmra.mxu0 %v2435
      %v3767 = vpop.f32.mrf.mxu0
      %v3768 = vadd.f32 0.0, %v3767
      %v3769 = vpop.f32.mrf.mxu0
      %v3770 = vadd.f32 0.0, %v3769
      %3771 = vmatmul.bf16.gmra.mxu0 %v2436
      %v3772 = vpop.f32.mrf.mxu0
      %v3773 = vadd.f32 0.0, %v3772
      %v3774 = vpop.f32.mrf.mxu0
      %v3775 = vadd.f32 0.0, %v3774
      %3776 = vmatmul.bf16.gmra.mxu0 %v2437
      %v3777 = vpop.f32.mrf.mxu0
      %v3778 = vadd.f32 0.0, %v3777
      %v3779 = vpop.f32.mrf.mxu0
      %v3780 = vadd.f32 0.0, %v3779
      %3781 = vmatmul.bf16.gmra.mxu0 %v2438
      %v3782 = vpop.f32.mrf.mxu0
      %v3783 = vadd.f32 0.0, %v3782
      %v3784 = vpop.f32.mrf.mxu0
      %v3785 = vadd.f32 0.0, %v3784
      %3786 = vmatmul.bf16.gmra.mxu0 %v2439
      %v3787 = vpop.f32.mrf.mxu0
      %v3788 = vadd.f32 0.0, %v3787
      %v3789 = vpop.f32.mrf.mxu0
      %v3790 = vadd.f32 0.0, %v3789
      %3791 = vmatmul.bf16.gmra.mxu0 %v2440
      %v3792 = vpop.f32.mrf.mxu0
      %v3793 = vadd.f32 0.0, %v3792
      %v3794 = vpop.f32.mrf.mxu0
      %v3795 = vadd.f32 0.0, %v3794
      %3796 = vmatmul.bf16.gmra.mxu0 %v2441
      %v3797 = vpop.f32.mrf.mxu0
      %v3798 = vadd.f32 0.0, %v3797
      %v3799 = vpop.f32.mrf.mxu0
      %v3800 = vadd.f32 0.0, %v3799
      %3801 = vmatmul.bf16.gmra.mxu0 %v2442
      %v3802 = vpop.f32.mrf.mxu0
      %v3803 = vadd.f32 0.0, %v3802
      %v3804 = vpop.f32.mrf.mxu0
      %v3805 = vadd.f32 0.0, %v3804
      %3806 = vmatmul.bf16.gmra.mxu0 %v2443
      %v3807 = vpop.f32.mrf.mxu0
      %v3808 = vadd.f32 0.0, %v3807
      %v3809 = vpop.f32.mrf.mxu0
      %v3810 = vadd.f32 0.0, %v3809
      %3811 = vdwg.mxu0
      %3812 = vmatpush.bf16.msra.mxu0 %v2964
      %3813 = vmatpush.bf16.msra.mxu0 %v2948
      %3814 = vmatpush.bf16.msra.mxu0 %v2932
      %3815 = vmatpush.bf16.msra.mxu0 %v2916
      %3816 = vmatpush.bf16.msra.mxu0 %v2900
      %3817 = vmatpush.bf16.msra.mxu0 %v2884
      %3818 = vmatpush.bf16.msra.mxu0 %v2868
      %3819 = vmatpush.bf16.msra.mxu0 %v2852
      %3820 = vmatmul.bf16.gmra.mxu0 %v2428
      %v3821 = vpop.f32.mrf.mxu0
      %v3822 = vadd.f32 0.0, %v3821
      %v3823 = vpop.f32.mrf.mxu0
      %v3824 = vadd.f32 0.0, %v3823
      %3825 = vmatmul.bf16.gmra.mxu0 %v2429
      %v3826 = vpop.f32.mrf.mxu0
      %v3827 = vadd.f32 0.0, %v3826
      %v3828 = vpop.f32.mrf.mxu0
      %v3829 = vadd.f32 0.0, %v3828
      %3830 = vmatmul.bf16.gmra.mxu0 %v2430
      %v3831 = vpop.f32.mrf.mxu0
      %v3832 = vadd.f32 0.0, %v3831
      %v3833 = vpop.f32.mrf.mxu0
      %v3834 = vadd.f32 0.0, %v3833
      %3835 = vmatmul.bf16.gmra.mxu0 %v2431
      %v3836 = vpop.f32.mrf.mxu0
      %v3837 = vadd.f32 0.0, %v3836
      %v3838 = vpop.f32.mrf.mxu0
      %v3839 = vadd.f32 0.0, %v3838
      %3840 = vmatmul.bf16.gmra.mxu0 %v2432
      %v3841 = vpop.f32.mrf.mxu0
      %v3842 = vadd.f32 0.0, %v3841
      %v3843 = vpop.f32.mrf.mxu0
      %v3844 = vadd.f32 0.0, %v3843
      %3845 = vmatmul.bf16.gmra.mxu0 %v2433
      %v3846 = vpop.f32.mrf.mxu0
      %v3847 = vadd.f32 0.0, %v3846
      %v3848 = vpop.f32.mrf.mxu0
      %v3849 = vadd.f32 0.0, %v3848
      %3850 = vmatmul.bf16.gmra.mxu0 %v2434
      %v3851 = vpop.f32.mrf.mxu0
      %v3852 = vadd.f32 0.0, %v3851
      %v3853 = vpop.f32.mrf.mxu0
      %v3854 = vadd.f32 0.0, %v3853
      %3855 = vmatmul.bf16.gmra.mxu0 %v2435
      %v3856 = vpop.f32.mrf.mxu0
      %v3857 = vadd.f32 0.0, %v3856
      %v3858 = vpop.f32.mrf.mxu0
      %v3859 = vadd.f32 0.0, %v3858
      %3860 = vmatmul.bf16.gmra.mxu0 %v2436
      %v3861 = vpop.f32.mrf.mxu0
      %v3862 = vadd.f32 0.0, %v3861
      %v3863 = vpop.f32.mrf.mxu0
      %v3864 = vadd.f32 0.0, %v3863
      %3865 = vmatmul.bf16.gmra.mxu0 %v2437
      %v3866 = vpop.f32.mrf.mxu0
      %v3867 = vadd.f32 0.0, %v3866
      %v3868 = vpop.f32.mrf.mxu0
      %v3869 = vadd.f32 0.0, %v3868
      %3870 = vmatmul.bf16.gmra.mxu0 %v2438
      %v3871 = vpop.f32.mrf.mxu0
      %v3872 = vadd.f32 0.0, %v3871
      %v3873 = vpop.f32.mrf.mxu0
      %v3874 = vadd.f32 0.0, %v3873
      %3875 = vmatmul.bf16.gmra.mxu0 %v2439
      %v3876 = vpop.f32.mrf.mxu0
      %v3877 = vadd.f32 0.0, %v3876
      %v3878 = vpop.f32.mrf.mxu0
      %v3879 = vadd.f32 0.0, %v3878
      %3880 = vmatmul.bf16.gmra.mxu0 %v2440
      %v3881 = vpop.f32.mrf.mxu0
      %v3882 = vadd.f32 0.0, %v3881
      %v3883 = vpop.f32.mrf.mxu0
      %v3884 = vadd.f32 0.0, %v3883
      %3885 = vmatmul.bf16.gmra.mxu0 %v2441
      %v3886 = vpop.f32.mrf.mxu0
      %v3887 = vadd.f32 0.0, %v3886
      %v3888 = vpop.f32.mrf.mxu0
      %v3889 = vadd.f32 0.0, %v3888
      %3890 = vmatmul.bf16.gmra.mxu0 %v2442
      %v3891 = vpop.f32.mrf.mxu0
      %v3892 = vadd.f32 0.0, %v3891
      %v3893 = vpop.f32.mrf.mxu0
      %v3894 = vadd.f32 0.0, %v3893
      %3895 = vmatmul.bf16.gmra.mxu0 %v2443
      %v3896 = vpop.f32.mrf.mxu0
      %v3897 = vadd.f32 0.0, %v3896
      %v3898 = vpop.f32.mrf.mxu0
      %v3899 = vadd.f32 0.0, %v3898
      %3900 = vdwg.mxu0
      %3901 = vmatpush.bf16.msra.mxu0 %v2965
      %3902 = vmatpush.bf16.msra.mxu0 %v2949
      %3903 = vmatpush.bf16.msra.mxu0 %v2933
      %3904 = vmatpush.bf16.msra.mxu0 %v2917
      %3905 = vmatpush.bf16.msra.mxu0 %v2901
      %3906 = vmatpush.bf16.msra.mxu0 %v2885
      %3907 = vmatpush.bf16.msra.mxu0 %v2869
      %3908 = vmatpush.bf16.msra.mxu0 %v2853
      %3909 = vmatmul.bf16.gmra.mxu0 %v2428
      %v3910 = vpop.f32.mrf.mxu0
      %v3911 = vadd.f32 0.0, %v3910
      %v3912 = vpop.f32.mrf.mxu0
      %v3913 = vadd.f32 0.0, %v3912
      %3914 = vmatmul.bf16.gmra.mxu0 %v2429
      %v3915 = vpop.f32.mrf.mxu0
      %v3916 = vadd.f32 0.0, %v3915
      %v3917 = vpop.f32.mrf.mxu0
      %v3918 = vadd.f32 0.0, %v3917
      %3919 = vmatmul.bf16.gmra.mxu0 %v2430
      %v3920 = vpop.f32.mrf.mxu0
      %v3921 = vadd.f32 0.0, %v3920
      %v3922 = vpop.f32.mrf.mxu0
      %v3923 = vadd.f32 0.0, %v3922
      %3924 = vmatmul.bf16.gmra.mxu0 %v2431
      %v3925 = vpop.f32.mrf.mxu0
      %v3926 = vadd.f32 0.0, %v3925
      %v3927 = vpop.f32.mrf.mxu0
      %v3928 = vadd.f32 0.0, %v3927
      %3929 = vmatmul.bf16.gmra.mxu0 %v2432
      %v3930 = vpop.f32.mrf.mxu0
      %v3931 = vadd.f32 0.0, %v3930
      %v3932 = vpop.f32.mrf.mxu0
      %v3933 = vadd.f32 0.0, %v3932
      %3934 = vmatmul.bf16.gmra.mxu0 %v2433
      %v3935 = vpop.f32.mrf.mxu0
      %v3936 = vadd.f32 0.0, %v3935
      %v3937 = vpop.f32.mrf.mxu0
      %v3938 = vadd.f32 0.0, %v3937
      %3939 = vmatmul.bf16.gmra.mxu0 %v2434
      %v3940 = vpop.f32.mrf.mxu0
      %v3941 = vadd.f32 0.0, %v3940
      %v3942 = vpop.f32.mrf.mxu0
      %v3943 = vadd.f32 0.0, %v3942
      %3944 = vmatmul.bf16.gmra.mxu0 %v2435
      %v3945 = vpop.f32.mrf.mxu0
      %v3946 = vadd.f32 0.0, %v3945
      %v3947 = vpop.f32.mrf.mxu0
      %v3948 = vadd.f32 0.0, %v3947
      %3949 = vmatmul.bf16.gmra.mxu0 %v2436
      %v3950 = vpop.f32.mrf.mxu0
      %v3951 = vadd.f32 0.0, %v3950
      %v3952 = vpop.f32.mrf.mxu0
      %v3953 = vadd.f32 0.0, %v3952
      %3954 = vmatmul.bf16.gmra.mxu0 %v2437
      %v3955 = vpop.f32.mrf.mxu0
      %v3956 = vadd.f32 0.0, %v3955
      %v3957 = vpop.f32.mrf.mxu0
      %v3958 = vadd.f32 0.0, %v3957
      %3959 = vmatmul.bf16.gmra.mxu0 %v2438
      %v3960 = vpop.f32.mrf.mxu0
      %v3961 = vadd.f32 0.0, %v3960
      %v3962 = vpop.f32.mrf.mxu0
      %v3963 = vadd.f32 0.0, %v3962
      %3964 = vmatmul.bf16.gmra.mxu0 %v2439
      %v3965 = vpop.f32.mrf.mxu0
      %v3966 = vadd.f32 0.0, %v3965
      %v3967 = vpop.f32.mrf.mxu0
      %v3968 = vadd.f32 0.0, %v3967
      %3969 = vmatmul.bf16.gmra.mxu0 %v2440
      %v3970 = vpop.f32.mrf.mxu0
      %v3971 = vadd.f32 0.0, %v3970
      %v3972 = vpop.f32.mrf.mxu0
      %v3973 = vadd.f32 0.0, %v3972
      %3974 = vmatmul.bf16.gmra.mxu0 %v2441
      %v3975 = vpop.f32.mrf.mxu0
      %v3976 = vadd.f32 0.0, %v3975
      %v3977 = vpop.f32.mrf.mxu0
      %v3978 = vadd.f32 0.0, %v3977
      %3979 = vmatmul.bf16.gmra.mxu0 %v2442
      %v3980 = vpop.f32.mrf.mxu0
      %v3981 = vadd.f32 0.0, %v3980
      %v3982 = vpop.f32.mrf.mxu0
      %v3983 = vadd.f32 0.0, %v3982
      %3984 = vmatmul.bf16.gmra.mxu0 %v2443
      %v3985 = vpop.f32.mrf.mxu0
      %v3986 = vadd.f32 0.0, %v3985
      %v3987 = vpop.f32.mrf.mxu0
      %v3988 = vadd.f32 0.0, %v3987
      %3989 = vdwg.mxu0
      %3990 = vmatpush.bf16.msra.mxu0 %v2966
      %3991 = vmatpush.bf16.msra.mxu0 %v2950
      %3992 = vmatpush.bf16.msra.mxu0 %v2934
      %3993 = vmatpush.bf16.msra.mxu0 %v2918
      %3994 = vmatpush.bf16.msra.mxu0 %v2902
      %3995 = vmatpush.bf16.msra.mxu0 %v2886
      %3996 = vmatpush.bf16.msra.mxu0 %v2870
      %3997 = vmatpush.bf16.msra.mxu0 %v2854
      %3998 = vmatmul.bf16.gmra.mxu0 %v2428
      %v3999 = vpop.f32.mrf.mxu0
      %v4000 = vadd.f32 0.0, %v3999
      %v4001 = vpop.f32.mrf.mxu0
      %v4002 = vadd.f32 0.0, %v4001
      %4003 = vmatmul.bf16.gmra.mxu0 %v2429
      %v4004 = vpop.f32.mrf.mxu0
      %v4005 = vadd.f32 0.0, %v4004
      %v4006 = vpop.f32.mrf.mxu0
      %v4007 = vadd.f32 0.0, %v4006
      %4008 = vmatmul.bf16.gmra.mxu0 %v2430
      %v4009 = vpop.f32.mrf.mxu0
      %v4010 = vadd.f32 0.0, %v4009
      %v4011 = vpop.f32.mrf.mxu0
      %v4012 = vadd.f32 0.0, %v4011
      %4013 = vmatmul.bf16.gmra.mxu0 %v2431
      %v4014 = vpop.f32.mrf.mxu0
      %v4015 = vadd.f32 0.0, %v4014
      %v4016 = vpop.f32.mrf.mxu0
      %v4017 = vadd.f32 0.0, %v4016
      %4018 = vmatmul.bf16.gmra.mxu0 %v2432
      %v4019 = vpop.f32.mrf.mxu0
      %v4020 = vadd.f32 0.0, %v4019
      %v4021 = vpop.f32.mrf.mxu0
      %v4022 = vadd.f32 0.0, %v4021
      %4023 = vmatmul.bf16.gmra.mxu0 %v2433
      %v4024 = vpop.f32.mrf.mxu0
      %v4025 = vadd.f32 0.0, %v4024
      %v4026 = vpop.f32.mrf.mxu0
      %v4027 = vadd.f32 0.0, %v4026
      %4028 = vmatmul.bf16.gmra.mxu0 %v2434
      %v4029 = vpop.f32.mrf.mxu0
      %v4030 = vadd.f32 0.0, %v4029
      %v4031 = vpop.f32.mrf.mxu0
      %v4032 = vadd.f32 0.0, %v4031
      %4033 = vmatmul.bf16.gmra.mxu0 %v2435
      %v4034 = vpop.f32.mrf.mxu0
      %v4035 = vadd.f32 0.0, %v4034
      %v4036 = vpop.f32.mrf.mxu0
      %v4037 = vadd.f32 0.0, %v4036
      %4038 = vmatmul.bf16.gmra.mxu0 %v2436
      %v4039 = vpop.f32.mrf.mxu0
      %v4040 = vadd.f32 0.0, %v4039
      %v4041 = vpop.f32.mrf.mxu0
      %v4042 = vadd.f32 0.0, %v4041
      %4043 = vmatmul.bf16.gmra.mxu0 %v2437
      %v4044 = vpop.f32.mrf.mxu0
      %v4045 = vadd.f32 0.0, %v4044
      %v4046 = vpop.f32.mrf.mxu0
      %v4047 = vadd.f32 0.0, %v4046
      %4048 = vmatmul.bf16.gmra.mxu0 %v2438
      %v4049 = vpop.f32.mrf.mxu0
      %v4050 = vadd.f32 0.0, %v4049
      %v4051 = vpop.f32.mrf.mxu0
      %v4052 = vadd.f32 0.0, %v4051
      %4053 = vmatmul.bf16.gmra.mxu0 %v2439
      %v4054 = vpop.f32.mrf.mxu0
      %v4055 = vadd.f32 0.0, %v4054
      %v4056 = vpop.f32.mrf.mxu0
      %v4057 = vadd.f32 0.0, %v4056
      %4058 = vmatmul.bf16.gmra.mxu0 %v2440
      %v4059 = vpop.f32.mrf.mxu0
      %v4060 = vadd.f32 0.0, %v4059
      %v4061 = vpop.f32.mrf.mxu0
      %v4062 = vadd.f32 0.0, %v4061
      %4063 = vmatmul.bf16.gmra.mxu0 %v2441
      %v4064 = vpop.f32.mrf.mxu0
      %v4065 = vadd.f32 0.0, %v4064
      %v4066 = vpop.f32.mrf.mxu0
      %v4067 = vadd.f32 0.0, %v4066
      %4068 = vmatmul.bf16.gmra.mxu0 %v2442
      %v4069 = vpop.f32.mrf.mxu0
      %v4070 = vadd.f32 0.0, %v4069
      %v4071 = vpop.f32.mrf.mxu0
      %v4072 = vadd.f32 0.0, %v4071
      %4073 = vmatmul.bf16.gmra.mxu0 %v2443
      %v4074 = vpop.f32.mrf.mxu0
      %v4075 = vadd.f32 0.0, %v4074
      %v4076 = vpop.f32.mrf.mxu0
      %v4077 = vadd.f32 0.0, %v4076
      %4078 = vdwg.mxu0
      %4079 = vmatpush.bf16.msra.mxu0 %v2967
      %4080 = vmatpush.bf16.msra.mxu0 %v2951
      %4081 = vmatpush.bf16.msra.mxu0 %v2935
      %4082 = vmatpush.bf16.msra.mxu0 %v2919
      %4083 = vmatpush.bf16.msra.mxu0 %v2903
      %4084 = vmatpush.bf16.msra.mxu0 %v2887
      %4085 = vmatpush.bf16.msra.mxu0 %v2871
      %4086 = vmatpush.bf16.msra.mxu0 %v2855
      %4087 = vmatmul.bf16.gmra.mxu0 %v2428
      %v4088 = vpop.f32.mrf.mxu0
      %v4089 = vadd.f32 0.0, %v4088
      %v4090 = vpop.f32.mrf.mxu0
      %v4091 = vadd.f32 0.0, %v4090
      %4092 = vmatmul.bf16.gmra.mxu0 %v2429
      %v4093 = vpop.f32.mrf.mxu0
      %v4094 = vadd.f32 0.0, %v4093
      %v4095 = vpop.f32.mrf.mxu0
      %v4096 = vadd.f32 0.0, %v4095
      %4097 = vmatmul.bf16.gmra.mxu0 %v2430
      %v4098 = vpop.f32.mrf.mxu0
      %v4099 = vadd.f32 0.0, %v4098
      %v4100 = vpop.f32.mrf.mxu0
      %v4101 = vadd.f32 0.0, %v4100
      %4102 = vmatmul.bf16.gmra.mxu0 %v2431
      %v4103 = vpop.f32.mrf.mxu0
      %v4104 = vadd.f32 0.0, %v4103
      %v4105 = vpop.f32.mrf.mxu0
      %v4106 = vadd.f32 0.0, %v4105
      %4107 = vmatmul.bf16.gmra.mxu0 %v2432
      %v4108 = vpop.f32.mrf.mxu0
      %v4109 = vadd.f32 0.0, %v4108
      %v4110 = vpop.f32.mrf.mxu0
      %v4111 = vadd.f32 0.0, %v4110
      %4112 = vmatmul.bf16.gmra.mxu0 %v2433
      %v4113 = vpop.f32.mrf.mxu0
      %v4114 = vadd.f32 0.0, %v4113
      %v4115 = vpop.f32.mrf.mxu0
      %v4116 = vadd.f32 0.0, %v4115
      %4117 = vmatmul.bf16.gmra.mxu0 %v2434
      %v4118 = vpop.f32.mrf.mxu0
      %v4119 = vadd.f32 0.0, %v4118
      %v4120 = vpop.f32.mrf.mxu0
      %v4121 = vadd.f32 0.0, %v4120
      %4122 = vmatmul.bf16.gmra.mxu0 %v2435
      %v4123 = vpop.f32.mrf.mxu0
      %v4124 = vadd.f32 0.0, %v4123
      %v4125 = vpop.f32.mrf.mxu0
      %v4126 = vadd.f32 0.0, %v4125
      %4127 = vmatmul.bf16.gmra.mxu0 %v2436
      %v4128 = vpop.f32.mrf.mxu0
      %v4129 = vadd.f32 0.0, %v4128
      %v4130 = vpop.f32.mrf.mxu0
      %v4131 = vadd.f32 0.0, %v4130
      %4132 = vmatmul.bf16.gmra.mxu0 %v2437
      %v4133 = vpop.f32.mrf.mxu0
      %v4134 = vadd.f32 0.0, %v4133
      %v4135 = vpop.f32.mrf.mxu0
      %v4136 = vadd.f32 0.0, %v4135
      %4137 = vmatmul.bf16.gmra.mxu0 %v2438
      %v4138 = vpop.f32.mrf.mxu0
      %v4139 = vadd.f32 0.0, %v4138
      %v4140 = vpop.f32.mrf.mxu0
      %v4141 = vadd.f32 0.0, %v4140
      %4142 = vmatmul.bf16.gmra.mxu0 %v2439
      %v4143 = vpop.f32.mrf.mxu0
      %v4144 = vadd.f32 0.0, %v4143
      %v4145 = vpop.f32.mrf.mxu0
      %v4146 = vadd.f32 0.0, %v4145
      %4147 = vmatmul.bf16.gmra.mxu0 %v2440
      %v4148 = vpop.f32.mrf.mxu0
      %v4149 = vadd.f32 0.0, %v4148
      %v4150 = vpop.f32.mrf.mxu0
      %v4151 = vadd.f32 0.0, %v4150
      %4152 = vmatmul.bf16.gmra.mxu0 %v2441
      %v4153 = vpop.f32.mrf.mxu0
      %v4154 = vadd.f32 0.0, %v4153
      %v4155 = vpop.f32.mrf.mxu0
      %v4156 = vadd.f32 0.0, %v4155
      %4157 = vmatmul.bf16.gmra.mxu0 %v2442
      %v4158 = vpop.f32.mrf.mxu0
      %v4159 = vadd.f32 0.0, %v4158
      %v4160 = vpop.f32.mrf.mxu0
      %v4161 = vadd.f32 0.0, %v4160
      %4162 = vmatmul.bf16.gmra.mxu0 %v2443
      %v4163 = vpop.f32.mrf.mxu0
      %v4164 = vadd.f32 0.0, %v4163
      %v4165 = vpop.f32.mrf.mxu0
      %v4166 = vadd.f32 0.0, %v4165
      %4167 = vdwg.mxu0
      %4168 = vmatpush.bf16.msra.mxu0 %v2968
      %4169 = vmatpush.bf16.msra.mxu0 %v2952
      %4170 = vmatpush.bf16.msra.mxu0 %v2936
      %4171 = vmatpush.bf16.msra.mxu0 %v2920
      %4172 = vmatpush.bf16.msra.mxu0 %v2904
      %4173 = vmatpush.bf16.msra.mxu0 %v2888
      %4174 = vmatpush.bf16.msra.mxu0 %v2872
      %4175 = vmatpush.bf16.msra.mxu0 %v2856
      %4176 = vmatmul.bf16.gmra.mxu0 %v2428
      %v4177 = vpop.f32.mrf.mxu0
      %v4178 = vadd.f32 0.0, %v4177
      %v4179 = vpop.f32.mrf.mxu0
      %v4180 = vadd.f32 0.0, %v4179
      %4181 = vmatmul.bf16.gmra.mxu0 %v2429
      %v4182 = vpop.f32.mrf.mxu0
      %v4183 = vadd.f32 0.0, %v4182
      %v4184 = vpop.f32.mrf.mxu0
      %v4185 = vadd.f32 0.0, %v4184
      %4186 = vmatmul.bf16.gmra.mxu0 %v2430
      %v4187 = vpop.f32.mrf.mxu0
      %v4188 = vadd.f32 0.0, %v4187
      %v4189 = vpop.f32.mrf.mxu0
      %v4190 = vadd.f32 0.0, %v4189
      %4191 = vmatmul.bf16.gmra.mxu0 %v2431
      %v4192 = vpop.f32.mrf.mxu0
      %v4193 = vadd.f32 0.0, %v4192
      %v4194 = vpop.f32.mrf.mxu0
      %v4195 = vadd.f32 0.0, %v4194
      %4196 = vmatmul.bf16.gmra.mxu0 %v2432
      %v4197 = vpop.f32.mrf.mxu0
      %v4198 = vadd.f32 0.0, %v4197
      %v4199 = vpop.f32.mrf.mxu0
      %v4200 = vadd.f32 0.0, %v4199
      %4201 = vmatmul.bf16.gmra.mxu0 %v2433
      %v4202 = vpop.f32.mrf.mxu0
      %v4203 = vadd.f32 0.0, %v4202
      %v4204 = vpop.f32.mrf.mxu0
      %v4205 = vadd.f32 0.0, %v4204
      %4206 = vmatmul.bf16.gmra.mxu0 %v2434
      %v4207 = vpop.f32.mrf.mxu0
      %v4208 = vadd.f32 0.0, %v4207
      %v4209 = vpop.f32.mrf.mxu0
      %v4210 = vadd.f32 0.0, %v4209
      %4211 = vmatmul.bf16.gmra.mxu0 %v2435
      %v4212 = vpop.f32.mrf.mxu0
      %v4213 = vadd.f32 0.0, %v4212
      %v4214 = vpop.f32.mrf.mxu0
      %v4215 = vadd.f32 0.0, %v4214
      %4216 = vmatmul.bf16.gmra.mxu0 %v2436
      %v4217 = vpop.f32.mrf.mxu0
      %v4218 = vadd.f32 0.0, %v4217
      %v4219 = vpop.f32.mrf.mxu0
      %v4220 = vadd.f32 0.0, %v4219
      %4221 = vmatmul.bf16.gmra.mxu0 %v2437
      %v4222 = vpop.f32.mrf.mxu0
      %v4223 = vadd.f32 0.0, %v4222
      %v4224 = vpop.f32.mrf.mxu0
      %v4225 = vadd.f32 0.0, %v4224
      %4226 = vmatmul.bf16.gmra.mxu0 %v2438
      %v4227 = vpop.f32.mrf.mxu0
      %v4228 = vadd.f32 0.0, %v4227
      %v4229 = vpop.f32.mrf.mxu0
      %v4230 = vadd.f32 0.0, %v4229
      %4231 = vmatmul.bf16.gmra.mxu0 %v2439
      %v4232 = vpop.f32.mrf.mxu0
      %v4233 = vadd.f32 0.0, %v4232
      %v4234 = vpop.f32.mrf.mxu0
      %v4235 = vadd.f32 0.0, %v4234
      %4236 = vmatmul.bf16.gmra.mxu0 %v2440
      %v4237 = vpop.f32.mrf.mxu0
      %v4238 = vadd.f32 0.0, %v4237
      %v4239 = vpop.f32.mrf.mxu0
      %v4240 = vadd.f32 0.0, %v4239
      %4241 = vmatmul.bf16.gmra.mxu0 %v2441
      %v4242 = vpop.f32.mrf.mxu0
      %v4243 = vadd.f32 0.0, %v4242
      %v4244 = vpop.f32.mrf.mxu0
      %v4245 = vadd.f32 0.0, %v4244
      %4246 = vmatmul.bf16.gmra.mxu0 %v2442
      %v4247 = vpop.f32.mrf.mxu0
      %v4248 = vadd.f32 0.0, %v4247
      %v4249 = vpop.f32.mrf.mxu0
      %v4250 = vadd.f32 0.0, %v4249
      %4251 = vmatmul.bf16.gmra.mxu0 %v2443
      %v4252 = vpop.f32.mrf.mxu0
      %v4253 = vadd.f32 0.0, %v4252
      %v4254 = vpop.f32.mrf.mxu0
      %v4255 = vadd.f32 0.0, %v4254
      %4256 = vdwg.mxu0
      %4257 = vmatpush.bf16.msra.mxu0 %v2969
      %4258 = vmatpush.bf16.msra.mxu0 %v2953
      %4259 = vmatpush.bf16.msra.mxu0 %v2937
      %4260 = vmatpush.bf16.msra.mxu0 %v2921
      %4261 = vmatpush.bf16.msra.mxu0 %v2905
      %4262 = vmatpush.bf16.msra.mxu0 %v2889
      %4263 = vmatpush.bf16.msra.mxu0 %v2873
      %4264 = vmatpush.bf16.msra.mxu0 %v2857
      %4265 = vmatmul.bf16.gmra.mxu0 %v2428
      %v4266 = vpop.f32.mrf.mxu0
      %v4267 = vadd.f32 0.0, %v4266
      %v4268 = vpop.f32.mrf.mxu0
      %v4269 = vadd.f32 0.0, %v4268
      %4270 = vmatmul.bf16.gmra.mxu0 %v2429
      %v4271 = vpop.f32.mrf.mxu0
      %v4272 = vadd.f32 0.0, %v4271
      %v4273 = vpop.f32.mrf.mxu0
      %v4274 = vadd.f32 0.0, %v4273
      %4275 = vmatmul.bf16.gmra.mxu0 %v2430
      %v4276 = vpop.f32.mrf.mxu0
      %v4277 = vadd.f32 0.0, %v4276
      %v4278 = vpop.f32.mrf.mxu0
      %v4279 = vadd.f32 0.0, %v4278
      %4280 = vmatmul.bf16.gmra.mxu0 %v2431
      %v4281 = vpop.f32.mrf.mxu0
      %v4282 = vadd.f32 0.0, %v4281
      %v4283 = vpop.f32.mrf.mxu0
      %v4284 = vadd.f32 0.0, %v4283
      %4285 = vmatmul.bf16.gmra.mxu0 %v2432
      %v4286 = vpop.f32.mrf.mxu0
      %v4287 = vadd.f32 0.0, %v4286
      %v4288 = vpop.f32.mrf.mxu0
      %v4289 = vadd.f32 0.0, %v4288
      %4290 = vmatmul.bf16.gmra.mxu0 %v2433
      %v4291 = vpop.f32.mrf.mxu0
      %v4292 = vadd.f32 0.0, %v4291
      %v4293 = vpop.f32.mrf.mxu0
      %v4294 = vadd.f32 0.0, %v4293
      %4295 = vmatmul.bf16.gmra.mxu0 %v2434
      %v4296 = vpop.f32.mrf.mxu0
      %v4297 = vadd.f32 0.0, %v4296
      %v4298 = vpop.f32.mrf.mxu0
      %v4299 = vadd.f32 0.0, %v4298
      %4300 = vmatmul.bf16.gmra.mxu0 %v2435
      %v4301 = vpop.f32.mrf.mxu0
      %v4302 = vadd.f32 0.0, %v4301
      %v4303 = vpop.f32.mrf.mxu0
      %v4304 = vadd.f32 0.0, %v4303
      %4305 = vmatmul.bf16.gmra.mxu0 %v2436
      %v4306 = vpop.f32.mrf.mxu0
      %v4307 = vadd.f32 0.0, %v4306
      %v4308 = vpop.f32.mrf.mxu0
      %v4309 = vadd.f32 0.0, %v4308
      %4310 = vmatmul.bf16.gmra.mxu0 %v2437
      %v4311 = vpop.f32.mrf.mxu0
      %v4312 = vadd.f32 0.0, %v4311
      %v4313 = vpop.f32.mrf.mxu0
      %v4314 = vadd.f32 0.0, %v4313
      %4315 = vmatmul.bf16.gmra.mxu0 %v2438
      %v4316 = vpop.f32.mrf.mxu0
      %v4317 = vadd.f32 0.0, %v4316
      %v4318 = vpop.f32.mrf.mxu0
      %v4319 = vadd.f32 0.0, %v4318
      %4320 = vmatmul.bf16.gmra.mxu0 %v2439
      %v4321 = vpop.f32.mrf.mxu0
      %v4322 = vadd.f32 0.0, %v4321
      %v4323 = vpop.f32.mrf.mxu0
      %v4324 = vadd.f32 0.0, %v4323
      %4325 = vmatmul.bf16.gmra.mxu0 %v2440
      %v4326 = vpop.f32.mrf.mxu0
      %v4327 = vadd.f32 0.0, %v4326
      %v4328 = vpop.f32.mrf.mxu0
      %v4329 = vadd.f32 0.0, %v4328
      %4330 = vmatmul.bf16.gmra.mxu0 %v2441
      %v4331 = vpop.f32.mrf.mxu0
      %v4332 = vadd.f32 0.0, %v4331
      %v4333 = vpop.f32.mrf.mxu0
      %v4334 = vadd.f32 0.0, %v4333
      %4335 = vmatmul.bf16.gmra.mxu0 %v2442
      %v4336 = vpop.f32.mrf.mxu0
      %v4337 = vadd.f32 0.0, %v4336
      %v4338 = vpop.f32.mrf.mxu0
      %v4339 = vadd.f32 0.0, %v4338
      %4340 = vmatmul.bf16.gmra.mxu0 %v2443
      %v4341 = vpop.f32.mrf.mxu0
      %v4342 = vadd.f32 0.0, %v4341
      %v4343 = vpop.f32.mrf.mxu0
      %v4344 = vadd.f32 0.0, %v4343
      %4345 = vdwg.mxu0
      %4346 = vmatpush.bf16.msra.mxu0 %v2970
      %4347 = vmatpush.bf16.msra.mxu0 %v2954
      %4348 = vmatpush.bf16.msra.mxu0 %v2938
      %4349 = vmatpush.bf16.msra.mxu0 %v2922
      %4350 = vmatpush.bf16.msra.mxu0 %v2906
      %4351 = vmatpush.bf16.msra.mxu0 %v2890
      %4352 = vmatpush.bf16.msra.mxu0 %v2874
      %4353 = vmatpush.bf16.msra.mxu0 %v2858
      %4354 = vmatmul.bf16.gmra.mxu0 %v2428
      %v4355 = vpop.f32.mrf.mxu0
      %v4356 = vadd.f32 0.0, %v4355
      %v4357 = vpop.f32.mrf.mxu0
      %v4358 = vadd.f32 0.0, %v4357
      %4359 = vmatmul.bf16.gmra.mxu0 %v2429
      %v4360 = vpop.f32.mrf.mxu0
      %v4361 = vadd.f32 0.0, %v4360
      %v4362 = vpop.f32.mrf.mxu0
      %v4363 = vadd.f32 0.0, %v4362
      %4364 = vmatmul.bf16.gmra.mxu0 %v2430
      %v4365 = vpop.f32.mrf.mxu0
      %v4366 = vadd.f32 0.0, %v4365
      %v4367 = vpop.f32.mrf.mxu0
      %v4368 = vadd.f32 0.0, %v4367
      %4369 = vmatmul.bf16.gmra.mxu0 %v2431
      %v4370 = vpop.f32.mrf.mxu0
      %v4371 = vadd.f32 0.0, %v4370
      %v4372 = vpop.f32.mrf.mxu0
      %v4373 = vadd.f32 0.0, %v4372
      %4374 = vmatmul.bf16.gmra.mxu0 %v2432
      %v4375 = vpop.f32.mrf.mxu0
      %v4376 = vadd.f32 0.0, %v4375
      %v4377 = vpop.f32.mrf.mxu0
      %v4378 = vadd.f32 0.0, %v4377
      %4379 = vmatmul.bf16.gmra.mxu0 %v2433
      %v4380 = vpop.f32.mrf.mxu0
      %v4381 = vadd.f32 0.0, %v4380
      %v4382 = vpop.f32.mrf.mxu0
      %v4383 = vadd.f32 0.0, %v4382
      %4384 = vmatmul.bf16.gmra.mxu0 %v2434
      %v4385 = vpop.f32.mrf.mxu0
      %v4386 = vadd.f32 0.0, %v4385
      %v4387 = vpop.f32.mrf.mxu0
      %v4388 = vadd.f32 0.0, %v4387
      %4389 = vmatmul.bf16.gmra.mxu0 %v2435
      %v4390 = vpop.f32.mrf.mxu0
      %v4391 = vadd.f32 0.0, %v4390
      %v4392 = vpop.f32.mrf.mxu0
      %v4393 = vadd.f32 0.0, %v4392
      %4394 = vmatmul.bf16.gmra.mxu0 %v2436
      %v4395 = vpop.f32.mrf.mxu0
      %v4396 = vadd.f32 0.0, %v4395
      %v4397 = vpop.f32.mrf.mxu0
      %v4398 = vadd.f32 0.0, %v4397
      %4399 = vmatmul.bf16.gmra.mxu0 %v2437
      %v4400 = vpop.f32.mrf.mxu0
      %v4401 = vadd.f32 0.0, %v4400
      %v4402 = vpop.f32.mrf.mxu0
      %v4403 = vadd.f32 0.0, %v4402
      %4404 = vmatmul.bf16.gmra.mxu0 %v2438
      %v4405 = vpop.f32.mrf.mxu0
      %v4406 = vadd.f32 0.0, %v4405
      %v4407 = vpop.f32.mrf.mxu0
      %v4408 = vadd.f32 0.0, %v4407
      %4409 = vmatmul.bf16.gmra.mxu0 %v2439
      %v4410 = vpop.f32.mrf.mxu0
      %v4411 = vadd.f32 0.0, %v4410
      %v4412 = vpop.f32.mrf.mxu0
      %v4413 = vadd.f32 0.0, %v4412
      %4414 = vmatmul.bf16.gmra.mxu0 %v2440
      %v4415 = vpop.f32.mrf.mxu0
      %v4416 = vadd.f32 0.0, %v4415
      %v4417 = vpop.f32.mrf.mxu0
      %v4418 = vadd.f32 0.0, %v4417
      %4419 = vmatmul.bf16.gmra.mxu0 %v2441
      %v4420 = vpop.f32.mrf.mxu0
      %v4421 = vadd.f32 0.0, %v4420
      %v4422 = vpop.f32.mrf.mxu0
      %v4423 = vadd.f32 0.0, %v4422
      %4424 = vmatmul.bf16.gmra.mxu0 %v2442
      %v4425 = vpop.f32.mrf.mxu0
      %v4426 = vadd.f32 0.0, %v4425
      %v4427 = vpop.f32.mrf.mxu0
      %v4428 = vadd.f32 0.0, %v4427
      %4429 = vmatmul.bf16.gmra.mxu0 %v2443
      %v4430 = vpop.f32.mrf.mxu0
      %v4431 = vadd.f32 0.0, %v4430
      %v4432 = vpop.f32.mrf.mxu0
      %v4433 = vadd.f32 0.0, %v4432
      %4434 = vdwg.mxu0
      %4435 = vmatpush.bf16.msra.mxu0 %v2971
      %4436 = vmatpush.bf16.msra.mxu0 %v2955
      %4437 = vmatpush.bf16.msra.mxu0 %v2939
      %4438 = vmatpush.bf16.msra.mxu0 %v2923
      %4439 = vmatpush.bf16.msra.mxu0 %v2907
      %4440 = vmatpush.bf16.msra.mxu0 %v2891
      %4441 = vmatpush.bf16.msra.mxu0 %v2875
      %4442 = vmatpush.bf16.msra.mxu0 %v2859
      %4443 = vmatmul.bf16.gmra.mxu0 %v2428
      %v4444 = vpop.f32.mrf.mxu0
      %v4445 = vadd.f32 0.0, %v4444
      %v4446 = vpop.f32.mrf.mxu0
      %v4447 = vadd.f32 0.0, %v4446
      %4448 = vmatmul.bf16.gmra.mxu0 %v2429
      %v4449 = vpop.f32.mrf.mxu0
      %v4450 = vadd.f32 0.0, %v4449
      %v4451 = vpop.f32.mrf.mxu0
      %v4452 = vadd.f32 0.0, %v4451
      %4453 = vmatmul.bf16.gmra.mxu0 %v2430
      %v4454 = vpop.f32.mrf.mxu0
      %v4455 = vadd.f32 0.0, %v4454
      %v4456 = vpop.f32.mrf.mxu0
      %v4457 = vadd.f32 0.0, %v4456
      %4458 = vmatmul.bf16.gmra.mxu0 %v2431
      %v4459 = vpop.f32.mrf.mxu0
      %v4460 = vadd.f32 0.0, %v4459
      %v4461 = vpop.f32.mrf.mxu0
      %v4462 = vadd.f32 0.0, %v4461
      %4463 = vmatmul.bf16.gmra.mxu0 %v2432
      %v4464 = vpop.f32.mrf.mxu0
      %v4465 = vadd.f32 0.0, %v4464
      %v4466 = vpop.f32.mrf.mxu0
      %v4467 = vadd.f32 0.0, %v4466
      %4468 = vmatmul.bf16.gmra.mxu0 %v2433
      %v4469 = vpop.f32.mrf.mxu0
      %v4470 = vadd.f32 0.0, %v4469
      %v4471 = vpop.f32.mrf.mxu0
      %v4472 = vadd.f32 0.0, %v4471
      %4473 = vmatmul.bf16.gmra.mxu0 %v2434
      %v4474 = vpop.f32.mrf.mxu0
      %v4475 = vadd.f32 0.0, %v4474
      %v4476 = vpop.f32.mrf.mxu0
      %v4477 = vadd.f32 0.0, %v4476
      %4478 = vmatmul.bf16.gmra.mxu0 %v2435
      %v4479 = vpop.f32.mrf.mxu0
      %v4480 = vadd.f32 0.0, %v4479
      %v4481 = vpop.f32.mrf.mxu0
      %v4482 = vadd.f32 0.0, %v4481
      %4483 = vmatmul.bf16.gmra.mxu0 %v2436
      %v4484 = vpop.f32.mrf.mxu0
      %v4485 = vadd.f32 0.0, %v4484
      %v4486 = vpop.f32.mrf.mxu0
      %v4487 = vadd.f32 0.0, %v4486
      %4488 = vmatmul.bf16.gmra.mxu0 %v2437
      %v4489 = vpop.f32.mrf.mxu0
      %v4490 = vadd.f32 0.0, %v4489
      %v4491 = vpop.f32.mrf.mxu0
      %v4492 = vadd.f32 0.0, %v4491
      %4493 = vmatmul.bf16.gmra.mxu0 %v2438
      %v4494 = vpop.f32.mrf.mxu0
      %v4495 = vadd.f32 0.0, %v4494
      %v4496 = vpop.f32.mrf.mxu0
      %v4497 = vadd.f32 0.0, %v4496
      %4498 = vmatmul.bf16.gmra.mxu0 %v2439
      %v4499 = vpop.f32.mrf.mxu0
      %v4500 = vadd.f32 0.0, %v4499
      %v4501 = vpop.f32.mrf.mxu0
      %v4502 = vadd.f32 0.0, %v4501
      %4503 = vmatmul.bf16.gmra.mxu0 %v2440
      %v4504 = vpop.f32.mrf.mxu0
      %v4505 = vadd.f32 0.0, %v4504
      %v4506 = vpop.f32.mrf.mxu0
      %v4507 = vadd.f32 0.0, %v4506
      %4508 = vmatmul.bf16.gmra.mxu0 %v2441
      %v4509 = vpop.f32.mrf.mxu0
      %v4510 = vadd.f32 0.0, %v4509
      %v4511 = vpop.f32.mrf.mxu0
      %v4512 = vadd.f32 0.0, %v4511
      %4513 = vmatmul.bf16.gmra.mxu0 %v2442
      %v4514 = vpop.f32.mrf.mxu0
      %v4515 = vadd.f32 0.0, %v4514
      %v4516 = vpop.f32.mrf.mxu0
      %v4517 = vadd.f32 0.0, %v4516
      %4518 = vmatmul.bf16.gmra.mxu0 %v2443
      %v4519 = vpop.f32.mrf.mxu0
      %v4520 = vadd.f32 0.0, %v4519
      %v4521 = vpop.f32.mrf.mxu0
      %v4522 = vadd.f32 0.0, %v4521
      %4523 = vdwg.mxu0
      %4525 = vset.pattern.permute.xlu0 0
      %4526 = vperm.xlu0 %4525, %v2172
      %v4527 = vpop.permute.xlu0 %4526
      %4530 = vset.pattern.permute.xlu0 0
      %4531 = vperm.xlu0 %4530, %v2173
      %v4532 = vpop.permute.xlu0 %4531
      %4535 = vset.pattern.permute.xlu0 0
      %4536 = vperm.xlu0 %4535, %v2174
      %v4537 = vpop.permute.xlu0 %4536
      %4540 = vset.pattern.permute.xlu0 0
      %4541 = vperm.xlu0 %4540, %v2175
      %v4542 = vpop.permute.xlu0 %4541
      %4545 = vset.pattern.permute.xlu0 0
      %4546 = vperm.xlu0 %4545, %v2176
      %v4547 = vpop.permute.xlu0 %4546
      %4550 = vset.pattern.permute.xlu0 0
      %4551 = vperm.xlu0 %4550, %v2177
      %v4552 = vpop.permute.xlu0 %4551
      %4555 = vset.pattern.permute.xlu0 0
      %4556 = vperm.xlu0 %4555, %v2178
      %v4557 = vpop.permute.xlu0 %4556
      %4560 = vset.pattern.permute.xlu0 0
      %4561 = vperm.xlu0 %4560, %v2179
      %v4562 = vpop.permute.xlu0 %4561
      %4565 = vset.pattern.permute.xlu0 0
      %4566 = vperm.xlu0 %4565, %v2180
      %v4567 = vpop.permute.xlu0 %4566
      %4570 = vset.pattern.permute.xlu0 0
      %4571 = vperm.xlu0 %4570, %v2181
      %v4572 = vpop.permute.xlu0 %4571
      %4575 = vset.pattern.permute.xlu0 0
      %4576 = vperm.xlu0 %4575, %v2182
      %v4577 = vpop.permute.xlu0 %4576
      %4580 = vset.pattern.permute.xlu0 0
      %4581 = vperm.xlu0 %4580, %v2183
      %v4582 = vpop.permute.xlu0 %4581
      %4585 = vset.pattern.permute.xlu0 0
      %4586 = vperm.xlu0 %4585, %v2184
      %v4587 = vpop.permute.xlu0 %4586
      %4590 = vset.pattern.permute.xlu0 0
      %4591 = vperm.xlu0 %4590, %v2185
      %v4592 = vpop.permute.xlu0 %4591
      %4595 = vset.pattern.permute.xlu0 0
      %4596 = vperm.xlu0 %4595, %v2186
      %v4597 = vpop.permute.xlu0 %4596
      %4600 = vset.pattern.permute.xlu0 0
      %4601 = vperm.xlu0 %4600, %v2187
      %v4602 = vpop.permute.xlu0 %4601
      %4605 = vset.pattern.permute.xlu0 0
      %4606 = vperm.xlu0 %4605, %v2188
      %v4607 = vpop.permute.xlu0 %4606
      %4610 = vset.pattern.permute.xlu0 0
      %4611 = vperm.xlu0 %4610, %v2189
      %v4612 = vpop.permute.xlu0 %4611
      %4615 = vset.pattern.permute.xlu0 0
      %4616 = vperm.xlu0 %4615, %v2190
      %v4617 = vpop.permute.xlu0 %4616
      %4620 = vset.pattern.permute.xlu0 0
      %4621 = vperm.xlu0 %4620, %v2191
      %v4622 = vpop.permute.xlu0 %4621
      %4625 = vset.pattern.permute.xlu0 0
      %4626 = vperm.xlu0 %4625, %v2192
      %v4627 = vpop.permute.xlu0 %4626
      %4630 = vset.pattern.permute.xlu0 0
      %4631 = vperm.xlu0 %4630, %v2193
      %v4632 = vpop.permute.xlu0 %4631
      %4635 = vset.pattern.permute.xlu0 0
      %4636 = vperm.xlu0 %4635, %v2194
      %v4637 = vpop.permute.xlu0 %4636
      %4640 = vset.pattern.permute.xlu0 0
      %4641 = vperm.xlu0 %4640, %v2195
      %v4642 = vpop.permute.xlu0 %4641
      %4645 = vset.pattern.permute.xlu0 0
      %4646 = vperm.xlu0 %4645, %v2196
      %v4647 = vpop.permute.xlu0 %4646
      %4650 = vset.pattern.permute.xlu0 0
      %4651 = vperm.xlu0 %4650, %v2197
      %v4652 = vpop.permute.xlu0 %4651
      %4655 = vset.pattern.permute.xlu0 0
      %4656 = vperm.xlu0 %4655, %v2198
      %v4657 = vpop.permute.xlu0 %4656
      %4660 = vset.pattern.permute.xlu0 0
      %4661 = vperm.xlu0 %4660, %v2199
      %v4662 = vpop.permute.xlu0 %4661
      %4665 = vset.pattern.permute.xlu0 0
      %4666 = vperm.xlu0 %4665, %v2200
      %v4667 = vpop.permute.xlu0 %4666
      %4670 = vset.pattern.permute.xlu0 0
      %4671 = vperm.xlu0 %4670, %v2201
      %v4672 = vpop.permute.xlu0 %4671
      %4675 = vset.pattern.permute.xlu0 0
      %4676 = vperm.xlu0 %4675, %v2202
      %v4677 = vpop.permute.xlu0 %4676
      %4680 = vset.pattern.permute.xlu0 0
      %4681 = vperm.xlu0 %4680, %v2203
      %v4682 = vpop.permute.xlu0 %4681
      %v4684 = vmul.f32 %v4527, %v3110
      %v4685 = vmul.f32 %v4532, %v3112
      %v4686 = vmul.f32 %v4537, %v3115
      %v4687 = vmul.f32 %v4542, %v3117
      %v4688 = vmul.f32 %v4547, %v3120
      %v4689 = vmul.f32 %v4552, %v3122
      %v4690 = vmul.f32 %v4557, %v3125
      %v4691 = vmul.f32 %v4562, %v3127
      %v4692 = vmul.f32 %v4567, %v3130
      %v4693 = vmul.f32 %v4572, %v3132
      %v4694 = vmul.f32 %v4577, %v3135
      %v4695 = vmul.f32 %v4582, %v3137
      %v4696 = vmul.f32 %v4587, %v3140
      %v4697 = vmul.f32 %v4592, %v3142
      %v4698 = vmul.f32 %v4597, %v3145
      %v4699 = vmul.f32 %v4602, %v3147
      %v4700 = vmul.f32 %v4607, %v3150
      %v4701 = vmul.f32 %v4612, %v3152
      %v4702 = vmul.f32 %v4617, %v3155
      %v4703 = vmul.f32 %v4622, %v3157
      %v4704 = vmul.f32 %v4627, %v3160
      %v4705 = vmul.f32 %v4632, %v3162
      %v4706 = vmul.f32 %v4637, %v3165
      %v4707 = vmul.f32 %v4642, %v3167
      %v4708 = vmul.f32 %v4647, %v3170
      %v4709 = vmul.f32 %v4652, %v3172
      %v4710 = vmul.f32 %v4657, %v3175
      %v4711 = vmul.f32 %v4662, %v3177
      %v4712 = vmul.f32 %v4667, %v3180
      %v4713 = vmul.f32 %v4672, %v3182
      %v4714 = vmul.f32 %v4677, %v3185
      %v4715 = vmul.f32 %v4682, %v3187
      %v4716 = vadd.f32 %v4684, 0.0
      %v4717 = vadd.f32 %v4685, 0.0
      %v4718 = vadd.f32 %v4686, 0.0
      %v4719 = vadd.f32 %v4687, 0.0
      %v4720 = vadd.f32 %v4688, 0.0
      %v4721 = vadd.f32 %v4689, 0.0
      %v4722 = vadd.f32 %v4690, 0.0
      %v4723 = vadd.f32 %v4691, 0.0
      %v4724 = vadd.f32 %v4692, 0.0
      %v4725 = vadd.f32 %v4693, 0.0
      %v4726 = vadd.f32 %v4694, 0.0
      %v4727 = vadd.f32 %v4695, 0.0
      %v4728 = vadd.f32 %v4696, 0.0
      %v4729 = vadd.f32 %v4697, 0.0
      %v4730 = vadd.f32 %v4698, 0.0
      %v4731 = vadd.f32 %v4699, 0.0
      %v4732 = vadd.f32 %v4700, 0.0
      %v4733 = vadd.f32 %v4701, 0.0
      %v4734 = vadd.f32 %v4702, 0.0
      %v4735 = vadd.f32 %v4703, 0.0
      %v4736 = vadd.f32 %v4704, 0.0
      %v4737 = vadd.f32 %v4705, 0.0
      %v4738 = vadd.f32 %v4706, 0.0
      %v4739 = vadd.f32 %v4707, 0.0
      %v4740 = vadd.f32 %v4708, 0.0
      %v4741 = vadd.f32 %v4709, 0.0
      %v4742 = vadd.f32 %v4710, 0.0
      %v4743 = vadd.f32 %v4711, 0.0
      %v4744 = vadd.f32 %v4712, 0.0
      %v4745 = vadd.f32 %v4713, 0.0
      %v4746 = vadd.f32 %v4714, 0.0
      %v4747 = vadd.f32 %v4715, 0.0
      %4748 = vset.pattern.permute.xlu0 1
      %4749 = vperm.xlu0 %4748, %v2172
      %v4750 = vpop.permute.xlu0 %4749
      %4752 = vset.pattern.permute.xlu0 1
      %4753 = vperm.xlu0 %4752, %v2173
      %v4754 = vpop.permute.xlu0 %4753
      %4756 = vset.pattern.permute.xlu0 1
      %4757 = vperm.xlu0 %4756, %v2174
      %v4758 = vpop.permute.xlu0 %4757
      %4760 = vset.pattern.permute.xlu0 1
      %4761 = vperm.xlu0 %4760, %v2175
      %v4762 = vpop.permute.xlu0 %4761
      %4764 = vset.pattern.permute.xlu0 1
      %4765 = vperm.xlu0 %4764, %v2176
      %v4766 = vpop.permute.xlu0 %4765
      %4768 = vset.pattern.permute.xlu0 1
      %4769 = vperm.xlu0 %4768, %v2177
      %v4770 = vpop.permute.xlu0 %4769
      %4772 = vset.pattern.permute.xlu0 1
      %4773 = vperm.xlu0 %4772, %v2178
      %v4774 = vpop.permute.xlu0 %4773
      %4776 = vset.pattern.permute.xlu0 1
      %4777 = vperm.xlu0 %4776, %v2179
      %v4778 = vpop.permute.xlu0 %4777
      %4780 = vset.pattern.permute.xlu0 1
      %4781 = vperm.xlu0 %4780, %v2180
      %v4782 = vpop.permute.xlu0 %4781
      %4784 = vset.pattern.permute.xlu0 1
      %4785 = vperm.xlu0 %4784, %v2181
      %v4786 = vpop.permute.xlu0 %4785
      %4788 = vset.pattern.permute.xlu0 1
      %4789 = vperm.xlu0 %4788, %v2182
      %v4790 = vpop.permute.xlu0 %4789
      %4792 = vset.pattern.permute.xlu0 1
      %4793 = vperm.xlu0 %4792, %v2183
      %v4794 = vpop.permute.xlu0 %4793
      %4796 = vset.pattern.permute.xlu0 1
      %4797 = vperm.xlu0 %4796, %v2184
      %v4798 = vpop.permute.xlu0 %4797
      %4800 = vset.pattern.permute.xlu0 1
      %4801 = vperm.xlu0 %4800, %v2185
      %v4802 = vpop.permute.xlu0 %4801
      %4804 = vset.pattern.permute.xlu0 1
      %4805 = vperm.xlu0 %4804, %v2186
      %v4806 = vpop.permute.xlu0 %4805
      %4808 = vset.pattern.permute.xlu0 1
      %4809 = vperm.xlu0 %4808, %v2187
      %v4810 = vpop.permute.xlu0 %4809
      %4812 = vset.pattern.permute.xlu0 1
      %4813 = vperm.xlu0 %4812, %v2188
      %v4814 = vpop.permute.xlu0 %4813
      %4816 = vset.pattern.permute.xlu0 1
      %4817 = vperm.xlu0 %4816, %v2189
      %v4818 = vpop.permute.xlu0 %4817
      %4820 = vset.pattern.permute.xlu0 1
      %4821 = vperm.xlu0 %4820, %v2190
      %v4822 = vpop.permute.xlu0 %4821
      %4824 = vset.pattern.permute.xlu0 1
      %4825 = vperm.xlu0 %4824, %v2191
      %v4826 = vpop.permute.xlu0 %4825
      %4828 = vset.pattern.permute.xlu0 1
      %4829 = vperm.xlu0 %4828, %v2192
      %v4830 = vpop.permute.xlu0 %4829
      %4832 = vset.pattern.permute.xlu0 1
      %4833 = vperm.xlu0 %4832, %v2193
      %v4834 = vpop.permute.xlu0 %4833
      %4836 = vset.pattern.permute.xlu0 1
      %4837 = vperm.xlu0 %4836, %v2194
      %v4838 = vpop.permute.xlu0 %4837
      %4840 = vset.pattern.permute.xlu0 1
      %4841 = vperm.xlu0 %4840, %v2195
      %v4842 = vpop.permute.xlu0 %4841
      %4844 = vset.pattern.permute.xlu0 1
      %4845 = vperm.xlu0 %4844, %v2196
      %v4846 = vpop.permute.xlu0 %4845
      %4848 = vset.pattern.permute.xlu0 1
      %4849 = vperm.xlu0 %4848, %v2197
      %v4850 = vpop.permute.xlu0 %4849
      %4852 = vset.pattern.permute.xlu0 1
      %4853 = vperm.xlu0 %4852, %v2198
      %v4854 = vpop.permute.xlu0 %4853
      %4856 = vset.pattern.permute.xlu0 1
      %4857 = vperm.xlu0 %4856, %v2199
      %v4858 = vpop.permute.xlu0 %4857
      %4860 = vset.pattern.permute.xlu0 1
      %4861 = vperm.xlu0 %4860, %v2200
      %v4862 = vpop.permute.xlu0 %4861
      %4864 = vset.pattern.permute.xlu0 1
      %4865 = vperm.xlu0 %4864, %v2201
      %v4866 = vpop.permute.xlu0 %4865
      %4868 = vset.pattern.permute.xlu0 1
      %4869 = vperm.xlu0 %4868, %v2202
      %v4870 = vpop.permute.xlu0 %4869
      %4872 = vset.pattern.permute.xlu0 1
      %4873 = vperm.xlu0 %4872, %v2203
      %v4874 = vpop.permute.xlu0 %4873
      %v4876 = vmul.f32 %v4750, %v3199
      %v4877 = vmul.f32 %v4754, %v3201
      %v4878 = vmul.f32 %v4758, %v3204
      %v4879 = vmul.f32 %v4762, %v3206
      %v4880 = vmul.f32 %v4766, %v3209
      %v4881 = vmul.f32 %v4770, %v3211
      %v4882 = vmul.f32 %v4774, %v3214
      %v4883 = vmul.f32 %v4778, %v3216
      %v4884 = vmul.f32 %v4782, %v3219
      %v4885 = vmul.f32 %v4786, %v3221
      %v4886 = vmul.f32 %v4790, %v3224
      %v4887 = vmul.f32 %v4794, %v3226
      %v4888 = vmul.f32 %v4798, %v3229
      %v4889 = vmul.f32 %v4802, %v3231
      %v4890 = vmul.f32 %v4806, %v3234
      %v4891 = vmul.f32 %v4810, %v3236
      %v4892 = vmul.f32 %v4814, %v3239
      %v4893 = vmul.f32 %v4818, %v3241
      %v4894 = vmul.f32 %v4822, %v3244
      %v4895 = vmul.f32 %v4826, %v3246
      %v4896 = vmul.f32 %v4830, %v3249
      %v4897 = vmul.f32 %v4834, %v3251
      %v4898 = vmul.f32 %v4838, %v3254
      %v4899 = vmul.f32 %v4842, %v3256
      %v4900 = vmul.f32 %v4846, %v3259
      %v4901 = vmul.f32 %v4850, %v3261
      %v4902 = vmul.f32 %v4854, %v3264
      %v4903 = vmul.f32 %v4858, %v3266
      %v4904 = vmul.f32 %v4862, %v3269
      %v4905 = vmul.f32 %v4866, %v3271
      %v4906 = vmul.f32 %v4870, %v3274
      %v4907 = vmul.f32 %v4874, %v3276
      %v4908 = vadd.f32 %v4716, %v4876
      %v4909 = vadd.f32 %v4717, %v4877
      %v4910 = vadd.f32 %v4718, %v4878
      %v4911 = vadd.f32 %v4719, %v4879
      %v4912 = vadd.f32 %v4720, %v4880
      %v4913 = vadd.f32 %v4721, %v4881
      %v4914 = vadd.f32 %v4722, %v4882
      %v4915 = vadd.f32 %v4723, %v4883
      %v4916 = vadd.f32 %v4724, %v4884
      %v4917 = vadd.f32 %v4725, %v4885
      %v4918 = vadd.f32 %v4726, %v4886
      %v4919 = vadd.f32 %v4727, %v4887
      %v4920 = vadd.f32 %v4728, %v4888
      %v4921 = vadd.f32 %v4729, %v4889
      %v4922 = vadd.f32 %v4730, %v4890
      %v4923 = vadd.f32 %v4731, %v4891
      %v4924 = vadd.f32 %v4732, %v4892
      %v4925 = vadd.f32 %v4733, %v4893
      %v4926 = vadd.f32 %v4734, %v4894
      %v4927 = vadd.f32 %v4735, %v4895
      %v4928 = vadd.f32 %v4736, %v4896
      %v4929 = vadd.f32 %v4737, %v4897
      %v4930 = vadd.f32 %v4738, %v4898
      %v4931 = vadd.f32 %v4739, %v4899
      %v4932 = vadd.f32 %v4740, %v4900
      %v4933 = vadd.f32 %v4741, %v4901
      %v4934 = vadd.f32 %v4742, %v4902
      %v4935 = vadd.f32 %v4743, %v4903
      %v4936 = vadd.f32 %v4744, %v4904
      %v4937 = vadd.f32 %v4745, %v4905
      %v4938 = vadd.f32 %v4746, %v4906
      %v4939 = vadd.f32 %v4747, %v4907
      %4940 = vset.pattern.permute.xlu0 2
      %4941 = vperm.xlu0 %4940, %v2172
      %v4942 = vpop.permute.xlu0 %4941
      %4944 = vset.pattern.permute.xlu0 2
      %4945 = vperm.xlu0 %4944, %v2173
      %v4946 = vpop.permute.xlu0 %4945
      %4948 = vset.pattern.permute.xlu0 2
      %4949 = vperm.xlu0 %4948, %v2174
      %v4950 = vpop.permute.xlu0 %4949
      %4952 = vset.pattern.permute.xlu0 2
      %4953 = vperm.xlu0 %4952, %v2175
      %v4954 = vpop.permute.xlu0 %4953
      %4956 = vset.pattern.permute.xlu0 2
      %4957 = vperm.xlu0 %4956, %v2176
      %v4958 = vpop.permute.xlu0 %4957
      %4960 = vset.pattern.permute.xlu0 2
      %4961 = vperm.xlu0 %4960, %v2177
      %v4962 = vpop.permute.xlu0 %4961
      %4964 = vset.pattern.permute.xlu0 2
      %4965 = vperm.xlu0 %4964, %v2178
      %v4966 = vpop.permute.xlu0 %4965
      %4968 = vset.pattern.permute.xlu0 2
      %4969 = vperm.xlu0 %4968, %v2179
      %v4970 = vpop.permute.xlu0 %4969
      %4972 = vset.pattern.permute.xlu0 2
      %4973 = vperm.xlu0 %4972, %v2180
      %v4974 = vpop.permute.xlu0 %4973
      %4976 = vset.pattern.permute.xlu0 2
      %4977 = vperm.xlu0 %4976, %v2181
      %v4978 = vpop.permute.xlu0 %4977
      %4980 = vset.pattern.permute.xlu0 2
      %4981 = vperm.xlu0 %4980, %v2182
      %v4982 = vpop.permute.xlu0 %4981
      %4984 = vset.pattern.permute.xlu0 2
      %4985 = vperm.xlu0 %4984, %v2183
      %v4986 = vpop.permute.xlu0 %4985
      %4988 = vset.pattern.permute.xlu0 2
      %4989 = vperm.xlu0 %4988, %v2184
      %v4990 = vpop.permute.xlu0 %4989
      %4992 = vset.pattern.permute.xlu0 2
      %4993 = vperm.xlu0 %4992, %v2185
      %v4994 = vpop.permute.xlu0 %4993
      %4996 = vset.pattern.permute.xlu0 2
      %4997 = vperm.xlu0 %4996, %v2186
      %v4998 = vpop.permute.xlu0 %4997
      %5000 = vset.pattern.permute.xlu0 2
      %5001 = vperm.xlu0 %5000, %v2187
      %v5002 = vpop.permute.xlu0 %5001
      %5004 = vset.pattern.permute.xlu0 2
      %5005 = vperm.xlu0 %5004, %v2188
      %v5006 = vpop.permute.xlu0 %5005
      %5008 = vset.pattern.permute.xlu0 2
      %5009 = vperm.xlu0 %5008, %v2189
      %v5010 = vpop.permute.xlu0 %5009
      %5012 = vset.pattern.permute.xlu0 2
      %5013 = vperm.xlu0 %5012, %v2190
      %v5014 = vpop.permute.xlu0 %5013
      %5016 = vset.pattern.permute.xlu0 2
      %5017 = vperm.xlu0 %5016, %v2191
      %v5018 = vpop.permute.xlu0 %5017
      %5020 = vset.pattern.permute.xlu0 2
      %5021 = vperm.xlu0 %5020, %v2192
      %v5022 = vpop.permute.xlu0 %5021
      %5024 = vset.pattern.permute.xlu0 2
      %5025 = vperm.xlu0 %5024, %v2193
      %v5026 = vpop.permute.xlu0 %5025
      %5028 = vset.pattern.permute.xlu0 2
      %5029 = vperm.xlu0 %5028, %v2194
      %v5030 = vpop.permute.xlu0 %5029
      %5032 = vset.pattern.permute.xlu0 2
      %5033 = vperm.xlu0 %5032, %v2195
      %v5034 = vpop.permute.xlu0 %5033
      %5036 = vset.pattern.permute.xlu0 2
      %5037 = vperm.xlu0 %5036, %v2196
      %v5038 = vpop.permute.xlu0 %5037
      %5040 = vset.pattern.permute.xlu0 2
      %5041 = vperm.xlu0 %5040, %v2197
      %v5042 = vpop.permute.xlu0 %5041
      %5044 = vset.pattern.permute.xlu0 2
      %5045 = vperm.xlu0 %5044, %v2198
      %v5046 = vpop.permute.xlu0 %5045
      %5048 = vset.pattern.permute.xlu0 2
      %5049 = vperm.xlu0 %5048, %v2199
      %v5050 = vpop.permute.xlu0 %5049
      %5052 = vset.pattern.permute.xlu0 2
      %5053 = vperm.xlu0 %5052, %v2200
      %v5054 = vpop.permute.xlu0 %5053
      %5056 = vset.pattern.permute.xlu0 2
      %5057 = vperm.xlu0 %5056, %v2201
      %v5058 = vpop.permute.xlu0 %5057
      %5060 = vset.pattern.permute.xlu0 2
      %5061 = vperm.xlu0 %5060, %v2202
      %v5062 = vpop.permute.xlu0 %5061
      %5064 = vset.pattern.permute.xlu0 2
      %5065 = vperm.xlu0 %5064, %v2203
      %v5066 = vpop.permute.xlu0 %5065
      %v5068 = vmul.f32 %v4942, %v3288
      %v5069 = vmul.f32 %v4946, %v3290
      %v5070 = vmul.f32 %v4950, %v3293
      %v5071 = vmul.f32 %v4954, %v3295
      %v5072 = vmul.f32 %v4958, %v3298
      %v5073 = vmul.f32 %v4962, %v3300
      %v5074 = vmul.f32 %v4966, %v3303
      %v5075 = vmul.f32 %v4970, %v3305
      %v5076 = vmul.f32 %v4974, %v3308
      %v5077 = vmul.f32 %v4978, %v3310
      %v5078 = vmul.f32 %v4982, %v3313
      %v5079 = vmul.f32 %v4986, %v3315
      %v5080 = vmul.f32 %v4990, %v3318
      %v5081 = vmul.f32 %v4994, %v3320
      %v5082 = vmul.f32 %v4998, %v3323
      %v5083 = vmul.f32 %v5002, %v3325
      %v5084 = vmul.f32 %v5006, %v3328
      %v5085 = vmul.f32 %v5010, %v3330
      %v5086 = vmul.f32 %v5014, %v3333
      %v5087 = vmul.f32 %v5018, %v3335
      %v5088 = vmul.f32 %v5022, %v3338
      %v5089 = vmul.f32 %v5026, %v3340
      %v5090 = vmul.f32 %v5030, %v3343
      %v5091 = vmul.f32 %v5034, %v3345
      %v5092 = vmul.f32 %v5038, %v3348
      %v5093 = vmul.f32 %v5042, %v3350
      %v5094 = vmul.f32 %v5046, %v3353
      %v5095 = vmul.f32 %v5050, %v3355
      %v5096 = vmul.f32 %v5054, %v3358
      %v5097 = vmul.f32 %v5058, %v3360
      %v5098 = vmul.f32 %v5062, %v3363
      %v5099 = vmul.f32 %v5066, %v3365
      %v5100 = vadd.f32 %v4908, %v5068
      %v5101 = vadd.f32 %v4909, %v5069
      %v5102 = vadd.f32 %v4910, %v5070
      %v5103 = vadd.f32 %v4911, %v5071
      %v5104 = vadd.f32 %v4912, %v5072
      %v5105 = vadd.f32 %v4913, %v5073
      %v5106 = vadd.f32 %v4914, %v5074
      %v5107 = vadd.f32 %v4915, %v5075
      %v5108 = vadd.f32 %v4916, %v5076
      %v5109 = vadd.f32 %v4917, %v5077
      %v5110 = vadd.f32 %v4918, %v5078
      %v5111 = vadd.f32 %v4919, %v5079
      %v5112 = vadd.f32 %v4920, %v5080
      %v5113 = vadd.f32 %v4921, %v5081
      %v5114 = vadd.f32 %v4922, %v5082
      %v5115 = vadd.f32 %v4923, %v5083
      %v5116 = vadd.f32 %v4924, %v5084
      %v5117 = vadd.f32 %v4925, %v5085
      %v5118 = vadd.f32 %v4926, %v5086
      %v5119 = vadd.f32 %v4927, %v5087
      %v5120 = vadd.f32 %v4928, %v5088
      %v5121 = vadd.f32 %v4929, %v5089
      %v5122 = vadd.f32 %v4930, %v5090
      %v5123 = vadd.f32 %v4931, %v5091
      %v5124 = vadd.f32 %v4932, %v5092
      %v5125 = vadd.f32 %v4933, %v5093
      %v5126 = vadd.f32 %v4934, %v5094
      %v5127 = vadd.f32 %v4935, %v5095
      %v5128 = vadd.f32 %v4936, %v5096
      %v5129 = vadd.f32 %v4937, %v5097
      %v5130 = vadd.f32 %v4938, %v5098
      %v5131 = vadd.f32 %v4939, %v5099
      %5132 = vset.pattern.permute.xlu0 3
      %5133 = vperm.xlu0 %5132, %v2172
      %v5134 = vpop.permute.xlu0 %5133
      %5136 = vset.pattern.permute.xlu0 3
      %5137 = vperm.xlu0 %5136, %v2173
      %v5138 = vpop.permute.xlu0 %5137
      %5140 = vset.pattern.permute.xlu0 3
      %5141 = vperm.xlu0 %5140, %v2174
      %v5142 = vpop.permute.xlu0 %5141
      %5144 = vset.pattern.permute.xlu0 3
      %5145 = vperm.xlu0 %5144, %v2175
      %v5146 = vpop.permute.xlu0 %5145
      %5148 = vset.pattern.permute.xlu0 3
      %5149 = vperm.xlu0 %5148, %v2176
      %v5150 = vpop.permute.xlu0 %5149
      %5152 = vset.pattern.permute.xlu0 3
      %5153 = vperm.xlu0 %5152, %v2177
      %v5154 = vpop.permute.xlu0 %5153
      %5156 = vset.pattern.permute.xlu0 3
      %5157 = vperm.xlu0 %5156, %v2178
      %v5158 = vpop.permute.xlu0 %5157
      %5160 = vset.pattern.permute.xlu0 3
      %5161 = vperm.xlu0 %5160, %v2179
      %v5162 = vpop.permute.xlu0 %5161
      %5164 = vset.pattern.permute.xlu0 3
      %5165 = vperm.xlu0 %5164, %v2180
      %v5166 = vpop.permute.xlu0 %5165
      %5168 = vset.pattern.permute.xlu0 3
      %5169 = vperm.xlu0 %5168, %v2181
      %v5170 = vpop.permute.xlu0 %5169
      %5172 = vset.pattern.permute.xlu0 3
      %5173 = vperm.xlu0 %5172, %v2182
      %v5174 = vpop.permute.xlu0 %5173
      %5176 = vset.pattern.permute.xlu0 3
      %5177 = vperm.xlu0 %5176, %v2183
      %v5178 = vpop.permute.xlu0 %5177
      %5180 = vset.pattern.permute.xlu0 3
      %5181 = vperm.xlu0 %5180, %v2184
      %v5182 = vpop.permute.xlu0 %5181
      %5184 = vset.pattern.permute.xlu0 3
      %5185 = vperm.xlu0 %5184, %v2185
      %v5186 = vpop.permute.xlu0 %5185
      %5188 = vset.pattern.permute.xlu0 3
      %5189 = vperm.xlu0 %5188, %v2186
      %v5190 = vpop.permute.xlu0 %5189
      %5192 = vset.pattern.permute.xlu0 3
      %5193 = vperm.xlu0 %5192, %v2187
      %v5194 = vpop.permute.xlu0 %5193
      %5196 = vset.pattern.permute.xlu0 3
      %5197 = vperm.xlu0 %5196, %v2188
      %v5198 = vpop.permute.xlu0 %5197
      %5200 = vset.pattern.permute.xlu0 3
      %5201 = vperm.xlu0 %5200, %v2189
      %v5202 = vpop.permute.xlu0 %5201
      %5204 = vset.pattern.permute.xlu0 3
      %5205 = vperm.xlu0 %5204, %v2190
      %v5206 = vpop.permute.xlu0 %5205
      %5208 = vset.pattern.permute.xlu0 3
      %5209 = vperm.xlu0 %5208, %v2191
      %v5210 = vpop.permute.xlu0 %5209
      %5212 = vset.pattern.permute.xlu0 3
      %5213 = vperm.xlu0 %5212, %v2192
      %v5214 = vpop.permute.xlu0 %5213
      %5216 = vset.pattern.permute.xlu0 3
      %5217 = vperm.xlu0 %5216, %v2193
      %v5218 = vpop.permute.xlu0 %5217
      %5220 = vset.pattern.permute.xlu0 3
      %5221 = vperm.xlu0 %5220, %v2194
      %v5222 = vpop.permute.xlu0 %5221
      %5224 = vset.pattern.permute.xlu0 3
      %5225 = vperm.xlu0 %5224, %v2195
      %v5226 = vpop.permute.xlu0 %5225
      %5228 = vset.pattern.permute.xlu0 3
      %5229 = vperm.xlu0 %5228, %v2196
      %v5230 = vpop.permute.xlu0 %5229
      %5232 = vset.pattern.permute.xlu0 3
      %5233 = vperm.xlu0 %5232, %v2197
      %v5234 = vpop.permute.xlu0 %5233
      %5236 = vset.pattern.permute.xlu0 3
      %5237 = vperm.xlu0 %5236, %v2198
      %v5238 = vpop.permute.xlu0 %5237
      %5240 = vset.pattern.permute.xlu0 3
      %5241 = vperm.xlu0 %5240, %v2199
      %v5242 = vpop.permute.xlu0 %5241
      %5244 = vset.pattern.permute.xlu0 3
      %5245 = vperm.xlu0 %5244, %v2200
      %v5246 = vpop.permute.xlu0 %5245
      %5248 = vset.pattern.permute.xlu0 3
      %5249 = vperm.xlu0 %5248, %v2201
      %v5250 = vpop.permute.xlu0 %5249
      %5252 = vset.pattern.permute.xlu0 3
      %5253 = vperm.xlu0 %5252, %v2202
      %v5254 = vpop.permute.xlu0 %5253
      %5256 = vset.pattern.permute.xlu0 3
      %5257 = vperm.xlu0 %5256, %v2203
      %v5258 = vpop.permute.xlu0 %5257
      %v5260 = vmul.f32 %v5134, %v3377
      %v5261 = vmul.f32 %v5138, %v3379
      %v5262 = vmul.f32 %v5142, %v3382
      %v5263 = vmul.f32 %v5146, %v3384
      %v5264 = vmul.f32 %v5150, %v3387
      %v5265 = vmul.f32 %v5154, %v3389
      %v5266 = vmul.f32 %v5158, %v3392
      %v5267 = vmul.f32 %v5162, %v3394
      %v5268 = vmul.f32 %v5166, %v3397
      %v5269 = vmul.f32 %v5170, %v3399
      %v5270 = vmul.f32 %v5174, %v3402
      %v5271 = vmul.f32 %v5178, %v3404
      %v5272 = vmul.f32 %v5182, %v3407
      %v5273 = vmul.f32 %v5186, %v3409
      %v5274 = vmul.f32 %v5190, %v3412
      %v5275 = vmul.f32 %v5194, %v3414
      %v5276 = vmul.f32 %v5198, %v3417
      %v5277 = vmul.f32 %v5202, %v3419
      %v5278 = vmul.f32 %v5206, %v3422
      %v5279 = vmul.f32 %v5210, %v3424
      %v5280 = vmul.f32 %v5214, %v3427
      %v5281 = vmul.f32 %v5218, %v3429
      %v5282 = vmul.f32 %v5222, %v3432
      %v5283 = vmul.f32 %v5226, %v3434
      %v5284 = vmul.f32 %v5230, %v3437
      %v5285 = vmul.f32 %v5234, %v3439
      %v5286 = vmul.f32 %v5238, %v3442
      %v5287 = vmul.f32 %v5242, %v3444
      %v5288 = vmul.f32 %v5246, %v3447
      %v5289 = vmul.f32 %v5250, %v3449
      %v5290 = vmul.f32 %v5254, %v3452
      %v5291 = vmul.f32 %v5258, %v3454
      %v5292 = vadd.f32 %v5100, %v5260
      %v5293 = vadd.f32 %v5101, %v5261
      %v5294 = vadd.f32 %v5102, %v5262
      %v5295 = vadd.f32 %v5103, %v5263
      %v5296 = vadd.f32 %v5104, %v5264
      %v5297 = vadd.f32 %v5105, %v5265
      %v5298 = vadd.f32 %v5106, %v5266
      %v5299 = vadd.f32 %v5107, %v5267
      %v5300 = vadd.f32 %v5108, %v5268
      %v5301 = vadd.f32 %v5109, %v5269
      %v5302 = vadd.f32 %v5110, %v5270
      %v5303 = vadd.f32 %v5111, %v5271
      %v5304 = vadd.f32 %v5112, %v5272
      %v5305 = vadd.f32 %v5113, %v5273
      %v5306 = vadd.f32 %v5114, %v5274
      %v5307 = vadd.f32 %v5115, %v5275
      %v5308 = vadd.f32 %v5116, %v5276
      %v5309 = vadd.f32 %v5117, %v5277
      %v5310 = vadd.f32 %v5118, %v5278
      %v5311 = vadd.f32 %v5119, %v5279
      %v5312 = vadd.f32 %v5120, %v5280
      %v5313 = vadd.f32 %v5121, %v5281
      %v5314 = vadd.f32 %v5122, %v5282
      %v5315 = vadd.f32 %v5123, %v5283
      %v5316 = vadd.f32 %v5124, %v5284
      %v5317 = vadd.f32 %v5125, %v5285
      %v5318 = vadd.f32 %v5126, %v5286
      %v5319 = vadd.f32 %v5127, %v5287
      %v5320 = vadd.f32 %v5128, %v5288
      %v5321 = vadd.f32 %v5129, %v5289
      %v5322 = vadd.f32 %v5130, %v5290
      %v5323 = vadd.f32 %v5131, %v5291
      %5324 = vset.pattern.permute.xlu0 4
      %5325 = vperm.xlu0 %5324, %v2172
      %v5326 = vpop.permute.xlu0 %5325
      %5328 = vset.pattern.permute.xlu0 4
      %5329 = vperm.xlu0 %5328, %v2173
      %v5330 = vpop.permute.xlu0 %5329
      %5332 = vset.pattern.permute.xlu0 4
      %5333 = vperm.xlu0 %5332, %v2174
      %v5334 = vpop.permute.xlu0 %5333
      %5336 = vset.pattern.permute.xlu0 4
      %5337 = vperm.xlu0 %5336, %v2175
      %v5338 = vpop.permute.xlu0 %5337
      %5340 = vset.pattern.permute.xlu0 4
      %5341 = vperm.xlu0 %5340, %v2176
      %v5342 = vpop.permute.xlu0 %5341
      %5344 = vset.pattern.permute.xlu0 4
      %5345 = vperm.xlu0 %5344, %v2177
      %v5346 = vpop.permute.xlu0 %5345
      %5348 = vset.pattern.permute.xlu0 4
      %5349 = vperm.xlu0 %5348, %v2178
      %v5350 = vpop.permute.xlu0 %5349
      %5352 = vset.pattern.permute.xlu0 4
      %5353 = vperm.xlu0 %5352, %v2179
      %v5354 = vpop.permute.xlu0 %5353
      %5356 = vset.pattern.permute.xlu0 4
      %5357 = vperm.xlu0 %5356, %v2180
      %v5358 = vpop.permute.xlu0 %5357
      %5360 = vset.pattern.permute.xlu0 4
      %5361 = vperm.xlu0 %5360, %v2181
      %v5362 = vpop.permute.xlu0 %5361
      %5364 = vset.pattern.permute.xlu0 4
      %5365 = vperm.xlu0 %5364, %v2182
      %v5366 = vpop.permute.xlu0 %5365
      %5368 = vset.pattern.permute.xlu0 4
      %5369 = vperm.xlu0 %5368, %v2183
      %v5370 = vpop.permute.xlu0 %5369
      %5372 = vset.pattern.permute.xlu0 4
      %5373 = vperm.xlu0 %5372, %v2184
      %v5374 = vpop.permute.xlu0 %5373
      %5376 = vset.pattern.permute.xlu0 4
      %5377 = vperm.xlu0 %5376, %v2185
      %v5378 = vpop.permute.xlu0 %5377
      %5380 = vset.pattern.permute.xlu0 4
      %5381 = vperm.xlu0 %5380, %v2186
      %v5382 = vpop.permute.xlu0 %5381
      %5384 = vset.pattern.permute.xlu0 4
      %5385 = vperm.xlu0 %5384, %v2187
      %v5386 = vpop.permute.xlu0 %5385
      %5388 = vset.pattern.permute.xlu0 4
      %5389 = vperm.xlu0 %5388, %v2188
      %v5390 = vpop.permute.xlu0 %5389
      %5392 = vset.pattern.permute.xlu0 4
      %5393 = vperm.xlu0 %5392, %v2189
      %v5394 = vpop.permute.xlu0 %5393
      %5396 = vset.pattern.permute.xlu0 4
      %5397 = vperm.xlu0 %5396, %v2190
      %v5398 = vpop.permute.xlu0 %5397
      %5400 = vset.pattern.permute.xlu0 4
      %5401 = vperm.xlu0 %5400, %v2191
      %v5402 = vpop.permute.xlu0 %5401
      %5404 = vset.pattern.permute.xlu0 4
      %5405 = vperm.xlu0 %5404, %v2192
      %v5406 = vpop.permute.xlu0 %5405
      %5408 = vset.pattern.permute.xlu0 4
      %5409 = vperm.xlu0 %5408, %v2193
      %v5410 = vpop.permute.xlu0 %5409
      %5412 = vset.pattern.permute.xlu0 4
      %5413 = vperm.xlu0 %5412, %v2194
      %v5414 = vpop.permute.xlu0 %5413
      %5416 = vset.pattern.permute.xlu0 4
      %5417 = vperm.xlu0 %5416, %v2195
      %v5418 = vpop.permute.xlu0 %5417
      %5420 = vset.pattern.permute.xlu0 4
      %5421 = vperm.xlu0 %5420, %v2196
      %v5422 = vpop.permute.xlu0 %5421
      %5424 = vset.pattern.permute.xlu0 4
      %5425 = vperm.xlu0 %5424, %v2197
      %v5426 = vpop.permute.xlu0 %5425
      %5428 = vset.pattern.permute.xlu0 4
      %5429 = vperm.xlu0 %5428, %v2198
      %v5430 = vpop.permute.xlu0 %5429
      %5432 = vset.pattern.permute.xlu0 4
      %5433 = vperm.xlu0 %5432, %v2199
      %v5434 = vpop.permute.xlu0 %5433
      %5436 = vset.pattern.permute.xlu0 4
      %5437 = vperm.xlu0 %5436, %v2200
      %v5438 = vpop.permute.xlu0 %5437
      %5440 = vset.pattern.permute.xlu0 4
      %5441 = vperm.xlu0 %5440, %v2201
      %v5442 = vpop.permute.xlu0 %5441
      %5444 = vset.pattern.permute.xlu0 4
      %5445 = vperm.xlu0 %5444, %v2202
      %v5446 = vpop.permute.xlu0 %5445
      %5448 = vset.pattern.permute.xlu0 4
      %5449 = vperm.xlu0 %5448, %v2203
      %v5450 = vpop.permute.xlu0 %5449
      %v5452 = vmul.f32 %v5326, %v3466
      %v5453 = vmul.f32 %v5330, %v3468
      %v5454 = vmul.f32 %v5334, %v3471
      %v5455 = vmul.f32 %v5338, %v3473
      %v5456 = vmul.f32 %v5342, %v3476
      %v5457 = vmul.f32 %v5346, %v3478
      %v5458 = vmul.f32 %v5350, %v3481
      %v5459 = vmul.f32 %v5354, %v3483
      %v5460 = vmul.f32 %v5358, %v3486
      %v5461 = vmul.f32 %v5362, %v3488
      %v5462 = vmul.f32 %v5366, %v3491
      %v5463 = vmul.f32 %v5370, %v3493
      %v5464 = vmul.f32 %v5374, %v3496
      %v5465 = vmul.f32 %v5378, %v3498
      %v5466 = vmul.f32 %v5382, %v3501
      %v5467 = vmul.f32 %v5386, %v3503
      %v5468 = vmul.f32 %v5390, %v3506
      %v5469 = vmul.f32 %v5394, %v3508
      %v5470 = vmul.f32 %v5398, %v3511
      %v5471 = vmul.f32 %v5402, %v3513
      %v5472 = vmul.f32 %v5406, %v3516
      %v5473 = vmul.f32 %v5410, %v3518
      %v5474 = vmul.f32 %v5414, %v3521
      %v5475 = vmul.f32 %v5418, %v3523
      %v5476 = vmul.f32 %v5422, %v3526
      %v5477 = vmul.f32 %v5426, %v3528
      %v5478 = vmul.f32 %v5430, %v3531
      %v5479 = vmul.f32 %v5434, %v3533
      %v5480 = vmul.f32 %v5438, %v3536
      %v5481 = vmul.f32 %v5442, %v3538
      %v5482 = vmul.f32 %v5446, %v3541
      %v5483 = vmul.f32 %v5450, %v3543
      %v5484 = vadd.f32 %v5292, %v5452
      %v5485 = vadd.f32 %v5293, %v5453
      %v5486 = vadd.f32 %v5294, %v5454
      %v5487 = vadd.f32 %v5295, %v5455
      %v5488 = vadd.f32 %v5296, %v5456
      %v5489 = vadd.f32 %v5297, %v5457
      %v5490 = vadd.f32 %v5298, %v5458
      %v5491 = vadd.f32 %v5299, %v5459
      %v5492 = vadd.f32 %v5300, %v5460
      %v5493 = vadd.f32 %v5301, %v5461
      %v5494 = vadd.f32 %v5302, %v5462
      %v5495 = vadd.f32 %v5303, %v5463
      %v5496 = vadd.f32 %v5304, %v5464
      %v5497 = vadd.f32 %v5305, %v5465
      %v5498 = vadd.f32 %v5306, %v5466
      %v5499 = vadd.f32 %v5307, %v5467
      %v5500 = vadd.f32 %v5308, %v5468
      %v5501 = vadd.f32 %v5309, %v5469
      %v5502 = vadd.f32 %v5310, %v5470
      %v5503 = vadd.f32 %v5311, %v5471
      %v5504 = vadd.f32 %v5312, %v5472
      %v5505 = vadd.f32 %v5313, %v5473
      %v5506 = vadd.f32 %v5314, %v5474
      %v5507 = vadd.f32 %v5315, %v5475
      %v5508 = vadd.f32 %v5316, %v5476
      %v5509 = vadd.f32 %v5317, %v5477
      %v5510 = vadd.f32 %v5318, %v5478
      %v5511 = vadd.f32 %v5319, %v5479
      %v5512 = vadd.f32 %v5320, %v5480
      %v5513 = vadd.f32 %v5321, %v5481
      %v5514 = vadd.f32 %v5322, %v5482
      %v5515 = vadd.f32 %v5323, %v5483
      %5516 = vset.pattern.permute.xlu0 5
      %5517 = vperm.xlu0 %5516, %v2172
      %v5518 = vpop.permute.xlu0 %5517
      %5520 = vset.pattern.permute.xlu0 5
      %5521 = vperm.xlu0 %5520, %v2173
      %v5522 = vpop.permute.xlu0 %5521
      %5524 = vset.pattern.permute.xlu0 5
      %5525 = vperm.xlu0 %5524, %v2174
      %v5526 = vpop.permute.xlu0 %5525
      %5528 = vset.pattern.permute.xlu0 5
      %5529 = vperm.xlu0 %5528, %v2175
      %v5530 = vpop.permute.xlu0 %5529
      %5532 = vset.pattern.permute.xlu0 5
      %5533 = vperm.xlu0 %5532, %v2176
      %v5534 = vpop.permute.xlu0 %5533
      %5536 = vset.pattern.permute.xlu0 5
      %5537 = vperm.xlu0 %5536, %v2177
      %v5538 = vpop.permute.xlu0 %5537
      %5540 = vset.pattern.permute.xlu0 5
      %5541 = vperm.xlu0 %5540, %v2178
      %v5542 = vpop.permute.xlu0 %5541
      %5544 = vset.pattern.permute.xlu0 5
      %5545 = vperm.xlu0 %5544, %v2179
      %v5546 = vpop.permute.xlu0 %5545
      %5548 = vset.pattern.permute.xlu0 5
      %5549 = vperm.xlu0 %5548, %v2180
      %v5550 = vpop.permute.xlu0 %5549
      %5552 = vset.pattern.permute.xlu0 5
      %5553 = vperm.xlu0 %5552, %v2181
      %v5554 = vpop.permute.xlu0 %5553
      %5556 = vset.pattern.permute.xlu0 5
      %5557 = vperm.xlu0 %5556, %v2182
      %v5558 = vpop.permute.xlu0 %5557
      %5560 = vset.pattern.permute.xlu0 5
      %5561 = vperm.xlu0 %5560, %v2183
      %v5562 = vpop.permute.xlu0 %5561
      %5564 = vset.pattern.permute.xlu0 5
      %5565 = vperm.xlu0 %5564, %v2184
      %v5566 = vpop.permute.xlu0 %5565
      %5568 = vset.pattern.permute.xlu0 5
      %5569 = vperm.xlu0 %5568, %v2185
      %v5570 = vpop.permute.xlu0 %5569
      %5572 = vset.pattern.permute.xlu0 5
      %5573 = vperm.xlu0 %5572, %v2186
      %v5574 = vpop.permute.xlu0 %5573
      %5576 = vset.pattern.permute.xlu0 5
      %5577 = vperm.xlu0 %5576, %v2187
      %v5578 = vpop.permute.xlu0 %5577
      %5580 = vset.pattern.permute.xlu0 5
      %5581 = vperm.xlu0 %5580, %v2188
      %v5582 = vpop.permute.xlu0 %5581
      %5584 = vset.pattern.permute.xlu0 5
      %5585 = vperm.xlu0 %5584, %v2189
      %v5586 = vpop.permute.xlu0 %5585
      %5588 = vset.pattern.permute.xlu0 5
      %5589 = vperm.xlu0 %5588, %v2190
      %v5590 = vpop.permute.xlu0 %5589
      %5592 = vset.pattern.permute.xlu0 5
      %5593 = vperm.xlu0 %5592, %v2191
      %v5594 = vpop.permute.xlu0 %5593
      %5596 = vset.pattern.permute.xlu0 5
      %5597 = vperm.xlu0 %5596, %v2192
      %v5598 = vpop.permute.xlu0 %5597
      %5600 = vset.pattern.permute.xlu0 5
      %5601 = vperm.xlu0 %5600, %v2193
      %v5602 = vpop.permute.xlu0 %5601
      %5604 = vset.pattern.permute.xlu0 5
      %5605 = vperm.xlu0 %5604, %v2194
      %v5606 = vpop.permute.xlu0 %5605
      %5608 = vset.pattern.permute.xlu0 5
      %5609 = vperm.xlu0 %5608, %v2195
      %v5610 = vpop.permute.xlu0 %5609
      %5612 = vset.pattern.permute.xlu0 5
      %5613 = vperm.xlu0 %5612, %v2196
      %v5614 = vpop.permute.xlu0 %5613
      %5616 = vset.pattern.permute.xlu0 5
      %5617 = vperm.xlu0 %5616, %v2197
      %v5618 = vpop.permute.xlu0 %5617
      %5620 = vset.pattern.permute.xlu0 5
      %5621 = vperm.xlu0 %5620, %v2198
      %v5622 = vpop.permute.xlu0 %5621
      %5624 = vset.pattern.permute.xlu0 5
      %5625 = vperm.xlu0 %5624, %v2199
      %v5626 = vpop.permute.xlu0 %5625
      %5628 = vset.pattern.permute.xlu0 5
      %5629 = vperm.xlu0 %5628, %v2200
      %v5630 = vpop.permute.xlu0 %5629
      %5632 = vset.pattern.permute.xlu0 5
      %5633 = vperm.xlu0 %5632, %v2201
      %v5634 = vpop.permute.xlu0 %5633
      %5636 = vset.pattern.permute.xlu0 5
      %5637 = vperm.xlu0 %5636, %v2202
      %v5638 = vpop.permute.xlu0 %5637
      %5640 = vset.pattern.permute.xlu0 5
      %5641 = vperm.xlu0 %5640, %v2203
      %v5642 = vpop.permute.xlu0 %5641
      %v5644 = vmul.f32 %v5518, %v3555
      %v5645 = vmul.f32 %v5522, %v3557
      %v5646 = vmul.f32 %v5526, %v3560
      %v5647 = vmul.f32 %v5530, %v3562
      %v5648 = vmul.f32 %v5534, %v3565
      %v5649 = vmul.f32 %v5538, %v3567
      %v5650 = vmul.f32 %v5542, %v3570
      %v5651 = vmul.f32 %v5546, %v3572
      %v5652 = vmul.f32 %v5550, %v3575
      %v5653 = vmul.f32 %v5554, %v3577
      %v5654 = vmul.f32 %v5558, %v3580
      %v5655 = vmul.f32 %v5562, %v3582
      %v5656 = vmul.f32 %v5566, %v3585
      %v5657 = vmul.f32 %v5570, %v3587
      %v5658 = vmul.f32 %v5574, %v3590
      %v5659 = vmul.f32 %v5578, %v3592
      %v5660 = vmul.f32 %v5582, %v3595
      %v5661 = vmul.f32 %v5586, %v3597
      %v5662 = vmul.f32 %v5590, %v3600
      %v5663 = vmul.f32 %v5594, %v3602
      %v5664 = vmul.f32 %v5598, %v3605
      %v5665 = vmul.f32 %v5602, %v3607
      %v5666 = vmul.f32 %v5606, %v3610
      %v5667 = vmul.f32 %v5610, %v3612
      %v5668 = vmul.f32 %v5614, %v3615
      %v5669 = vmul.f32 %v5618, %v3617
      %v5670 = vmul.f32 %v5622, %v3620
      %v5671 = vmul.f32 %v5626, %v3622
      %v5672 = vmul.f32 %v5630, %v3625
      %v5673 = vmul.f32 %v5634, %v3627
      %v5674 = vmul.f32 %v5638, %v3630
      %v5675 = vmul.f32 %v5642, %v3632
      %v5676 = vadd.f32 %v5484, %v5644
      %v5677 = vadd.f32 %v5485, %v5645
      %v5678 = vadd.f32 %v5486, %v5646
      %v5679 = vadd.f32 %v5487, %v5647
      %v5680 = vadd.f32 %v5488, %v5648
      %v5681 = vadd.f32 %v5489, %v5649
      %v5682 = vadd.f32 %v5490, %v5650
      %v5683 = vadd.f32 %v5491, %v5651
      %v5684 = vadd.f32 %v5492, %v5652
      %v5685 = vadd.f32 %v5493, %v5653
      %v5686 = vadd.f32 %v5494, %v5654
      %v5687 = vadd.f32 %v5495, %v5655
      %v5688 = vadd.f32 %v5496, %v5656
      %v5689 = vadd.f32 %v5497, %v5657
      %v5690 = vadd.f32 %v5498, %v5658
      %v5691 = vadd.f32 %v5499, %v5659
      %v5692 = vadd.f32 %v5500, %v5660
      %v5693 = vadd.f32 %v5501, %v5661
      %v5694 = vadd.f32 %v5502, %v5662
      %v5695 = vadd.f32 %v5503, %v5663
      %v5696 = vadd.f32 %v5504, %v5664
      %v5697 = vadd.f32 %v5505, %v5665
      %v5698 = vadd.f32 %v5506, %v5666
      %v5699 = vadd.f32 %v5507, %v5667
      %v5700 = vadd.f32 %v5508, %v5668
      %v5701 = vadd.f32 %v5509, %v5669
      %v5702 = vadd.f32 %v5510, %v5670
      %v5703 = vadd.f32 %v5511, %v5671
      %v5704 = vadd.f32 %v5512, %v5672
      %v5705 = vadd.f32 %v5513, %v5673
      %v5706 = vadd.f32 %v5514, %v5674
      %v5707 = vadd.f32 %v5515, %v5675
      %5708 = vset.pattern.permute.xlu0 6
      %5709 = vperm.xlu0 %5708, %v2172
      %v5710 = vpop.permute.xlu0 %5709
      %5712 = vset.pattern.permute.xlu0 6
      %5713 = vperm.xlu0 %5712, %v2173
      %v5714 = vpop.permute.xlu0 %5713
      %5716 = vset.pattern.permute.xlu0 6
      %5717 = vperm.xlu0 %5716, %v2174
      %v5718 = vpop.permute.xlu0 %5717
      %5720 = vset.pattern.permute.xlu0 6
      %5721 = vperm.xlu0 %5720, %v2175
      %v5722 = vpop.permute.xlu0 %5721
      %5724 = vset.pattern.permute.xlu0 6
      %5725 = vperm.xlu0 %5724, %v2176
      %v5726 = vpop.permute.xlu0 %5725
      %5728 = vset.pattern.permute.xlu0 6
      %5729 = vperm.xlu0 %5728, %v2177
      %v5730 = vpop.permute.xlu0 %5729
      %5732 = vset.pattern.permute.xlu0 6
      %5733 = vperm.xlu0 %5732, %v2178
      %v5734 = vpop.permute.xlu0 %5733
      %5736 = vset.pattern.permute.xlu0 6
      %5737 = vperm.xlu0 %5736, %v2179
      %v5738 = vpop.permute.xlu0 %5737
      %5740 = vset.pattern.permute.xlu0 6
      %5741 = vperm.xlu0 %5740, %v2180
      %v5742 = vpop.permute.xlu0 %5741
      %5744 = vset.pattern.permute.xlu0 6
      %5745 = vperm.xlu0 %5744, %v2181
      %v5746 = vpop.permute.xlu0 %5745
      %5748 = vset.pattern.permute.xlu0 6
      %5749 = vperm.xlu0 %5748, %v2182
      %v5750 = vpop.permute.xlu0 %5749
      %5752 = vset.pattern.permute.xlu0 6
      %5753 = vperm.xlu0 %5752, %v2183
      %v5754 = vpop.permute.xlu0 %5753
      %5756 = vset.pattern.permute.xlu0 6
      %5757 = vperm.xlu0 %5756, %v2184
      %v5758 = vpop.permute.xlu0 %5757
      %5760 = vset.pattern.permute.xlu0 6
      %5761 = vperm.xlu0 %5760, %v2185
      %v5762 = vpop.permute.xlu0 %5761
      %5764 = vset.pattern.permute.xlu0 6
      %5765 = vperm.xlu0 %5764, %v2186
      %v5766 = vpop.permute.xlu0 %5765
      %5768 = vset.pattern.permute.xlu0 6
      %5769 = vperm.xlu0 %5768, %v2187
      %v5770 = vpop.permute.xlu0 %5769
      %5772 = vset.pattern.permute.xlu0 6
      %5773 = vperm.xlu0 %5772, %v2188
      %v5774 = vpop.permute.xlu0 %5773
      %5776 = vset.pattern.permute.xlu0 6
      %5777 = vperm.xlu0 %5776, %v2189
      %v5778 = vpop.permute.xlu0 %5777
      %5780 = vset.pattern.permute.xlu0 6
      %5781 = vperm.xlu0 %5780, %v2190
      %v5782 = vpop.permute.xlu0 %5781
      %5784 = vset.pattern.permute.xlu0 6
      %5785 = vperm.xlu0 %5784, %v2191
      %v5786 = vpop.permute.xlu0 %5785
      %5788 = vset.pattern.permute.xlu0 6
      %5789 = vperm.xlu0 %5788, %v2192
      %v5790 = vpop.permute.xlu0 %5789
      %5792 = vset.pattern.permute.xlu0 6
      %5793 = vperm.xlu0 %5792, %v2193
      %v5794 = vpop.permute.xlu0 %5793
      %5796 = vset.pattern.permute.xlu0 6
      %5797 = vperm.xlu0 %5796, %v2194
      %v5798 = vpop.permute.xlu0 %5797
      %5800 = vset.pattern.permute.xlu0 6
      %5801 = vperm.xlu0 %5800, %v2195
      %v5802 = vpop.permute.xlu0 %5801
      %5804 = vset.pattern.permute.xlu0 6
      %5805 = vperm.xlu0 %5804, %v2196
      %v5806 = vpop.permute.xlu0 %5805
      %5808 = vset.pattern.permute.xlu0 6
      %5809 = vperm.xlu0 %5808, %v2197
      %v5810 = vpop.permute.xlu0 %5809
      %5812 = vset.pattern.permute.xlu0 6
      %5813 = vperm.xlu0 %5812, %v2198
      %v5814 = vpop.permute.xlu0 %5813
      %5816 = vset.pattern.permute.xlu0 6
      %5817 = vperm.xlu0 %5816, %v2199
      %v5818 = vpop.permute.xlu0 %5817
      %5820 = vset.pattern.permute.xlu0 6
      %5821 = vperm.xlu0 %5820, %v2200
      %v5822 = vpop.permute.xlu0 %5821
      %5824 = vset.pattern.permute.xlu0 6
      %5825 = vperm.xlu0 %5824, %v2201
      %v5826 = vpop.permute.xlu0 %5825
      %5828 = vset.pattern.permute.xlu0 6
      %5829 = vperm.xlu0 %5828, %v2202
      %v5830 = vpop.permute.xlu0 %5829
      %5832 = vset.pattern.permute.xlu0 6
      %5833 = vperm.xlu0 %5832, %v2203
      %v5834 = vpop.permute.xlu0 %5833
      %v5836 = vmul.f32 %v5710, %v3644
      %v5837 = vmul.f32 %v5714, %v3646
      %v5838 = vmul.f32 %v5718, %v3649
      %v5839 = vmul.f32 %v5722, %v3651
      %v5840 = vmul.f32 %v5726, %v3654
      %v5841 = vmul.f32 %v5730, %v3656
      %v5842 = vmul.f32 %v5734, %v3659
      %v5843 = vmul.f32 %v5738, %v3661
      %v5844 = vmul.f32 %v5742, %v3664
      %v5845 = vmul.f32 %v5746, %v3666
      %v5846 = vmul.f32 %v5750, %v3669
      %v5847 = vmul.f32 %v5754, %v3671
      %v5848 = vmul.f32 %v5758, %v3674
      %v5849 = vmul.f32 %v5762, %v3676
      %v5850 = vmul.f32 %v5766, %v3679
      %v5851 = vmul.f32 %v5770, %v3681
      %v5852 = vmul.f32 %v5774, %v3684
      %v5853 = vmul.f32 %v5778, %v3686
      %v5854 = vmul.f32 %v5782, %v3689
      %v5855 = vmul.f32 %v5786, %v3691
      %v5856 = vmul.f32 %v5790, %v3694
      %v5857 = vmul.f32 %v5794, %v3696
      %v5858 = vmul.f32 %v5798, %v3699
      %v5859 = vmul.f32 %v5802, %v3701
      %v5860 = vmul.f32 %v5806, %v3704
      %v5861 = vmul.f32 %v5810, %v3706
      %v5862 = vmul.f32 %v5814, %v3709
      %v5863 = vmul.f32 %v5818, %v3711
      %v5864 = vmul.f32 %v5822, %v3714
      %v5865 = vmul.f32 %v5826, %v3716
      %v5866 = vmul.f32 %v5830, %v3719
      %v5867 = vmul.f32 %v5834, %v3721
      %v5868 = vadd.f32 %v5676, %v5836
      %v5869 = vadd.f32 %v5677, %v5837
      %v5870 = vadd.f32 %v5678, %v5838
      %v5871 = vadd.f32 %v5679, %v5839
      %v5872 = vadd.f32 %v5680, %v5840
      %v5873 = vadd.f32 %v5681, %v5841
      %v5874 = vadd.f32 %v5682, %v5842
      %v5875 = vadd.f32 %v5683, %v5843
      %v5876 = vadd.f32 %v5684, %v5844
      %v5877 = vadd.f32 %v5685, %v5845
      %v5878 = vadd.f32 %v5686, %v5846
      %v5879 = vadd.f32 %v5687, %v5847
      %v5880 = vadd.f32 %v5688, %v5848
      %v5881 = vadd.f32 %v5689, %v5849
      %v5882 = vadd.f32 %v5690, %v5850
      %v5883 = vadd.f32 %v5691, %v5851
      %v5884 = vadd.f32 %v5692, %v5852
      %v5885 = vadd.f32 %v5693, %v5853
      %v5886 = vadd.f32 %v5694, %v5854
      %v5887 = vadd.f32 %v5695, %v5855
      %v5888 = vadd.f32 %v5696, %v5856
      %v5889 = vadd.f32 %v5697, %v5857
      %v5890 = vadd.f32 %v5698, %v5858
      %v5891 = vadd.f32 %v5699, %v5859
      %v5892 = vadd.f32 %v5700, %v5860
      %v5893 = vadd.f32 %v5701, %v5861
      %v5894 = vadd.f32 %v5702, %v5862
      %v5895 = vadd.f32 %v5703, %v5863
      %v5896 = vadd.f32 %v5704, %v5864
      %v5897 = vadd.f32 %v5705, %v5865
      %v5898 = vadd.f32 %v5706, %v5866
      %v5899 = vadd.f32 %v5707, %v5867
      %5900 = vset.pattern.permute.xlu0 7
      %5901 = vperm.xlu0 %5900, %v2172
      %v5902 = vpop.permute.xlu0 %5901
      %5904 = vset.pattern.permute.xlu0 7
      %5905 = vperm.xlu0 %5904, %v2173
      %v5906 = vpop.permute.xlu0 %5905
      %5908 = vset.pattern.permute.xlu0 7
      %5909 = vperm.xlu0 %5908, %v2174
      %v5910 = vpop.permute.xlu0 %5909
      %5912 = vset.pattern.permute.xlu0 7
      %5913 = vperm.xlu0 %5912, %v2175
      %v5914 = vpop.permute.xlu0 %5913
      %5916 = vset.pattern.permute.xlu0 7
      %5917 = vperm.xlu0 %5916, %v2176
      %v5918 = vpop.permute.xlu0 %5917
      %5920 = vset.pattern.permute.xlu0 7
      %5921 = vperm.xlu0 %5920, %v2177
      %v5922 = vpop.permute.xlu0 %5921
      %5924 = vset.pattern.permute.xlu0 7
      %5925 = vperm.xlu0 %5924, %v2178
      %v5926 = vpop.permute.xlu0 %5925
      %5928 = vset.pattern.permute.xlu0 7
      %5929 = vperm.xlu0 %5928, %v2179
      %v5930 = vpop.permute.xlu0 %5929
      %5932 = vset.pattern.permute.xlu0 7
      %5933 = vperm.xlu0 %5932, %v2180
      %v5934 = vpop.permute.xlu0 %5933
      %5936 = vset.pattern.permute.xlu0 7
      %5937 = vperm.xlu0 %5936, %v2181
      %v5938 = vpop.permute.xlu0 %5937
      %5940 = vset.pattern.permute.xlu0 7
      %5941 = vperm.xlu0 %5940, %v2182
      %v5942 = vpop.permute.xlu0 %5941
      %5944 = vset.pattern.permute.xlu0 7
      %5945 = vperm.xlu0 %5944, %v2183
      %v5946 = vpop.permute.xlu0 %5945
      %5948 = vset.pattern.permute.xlu0 7
      %5949 = vperm.xlu0 %5948, %v2184
      %v5950 = vpop.permute.xlu0 %5949
      %5952 = vset.pattern.permute.xlu0 7
      %5953 = vperm.xlu0 %5952, %v2185
      %v5954 = vpop.permute.xlu0 %5953
      %5956 = vset.pattern.permute.xlu0 7
      %5957 = vperm.xlu0 %5956, %v2186
      %v5958 = vpop.permute.xlu0 %5957
      %5960 = vset.pattern.permute.xlu0 7
      %5961 = vperm.xlu0 %5960, %v2187
      %v5962 = vpop.permute.xlu0 %5961
      %5964 = vset.pattern.permute.xlu0 7
      %5965 = vperm.xlu0 %5964, %v2188
      %v5966 = vpop.permute.xlu0 %5965
      %5968 = vset.pattern.permute.xlu0 7
      %5969 = vperm.xlu0 %5968, %v2189
      %v5970 = vpop.permute.xlu0 %5969
      %5972 = vset.pattern.permute.xlu0 7
      %5973 = vperm.xlu0 %5972, %v2190
      %v5974 = vpop.permute.xlu0 %5973
      %5976 = vset.pattern.permute.xlu0 7
      %5977 = vperm.xlu0 %5976, %v2191
      %v5978 = vpop.permute.xlu0 %5977
      %5980 = vset.pattern.permute.xlu0 7
      %5981 = vperm.xlu0 %5980, %v2192
      %v5982 = vpop.permute.xlu0 %5981
      %5984 = vset.pattern.permute.xlu0 7
      %5985 = vperm.xlu0 %5984, %v2193
      %v5986 = vpop.permute.xlu0 %5985
      %5988 = vset.pattern.permute.xlu0 7
      %5989 = vperm.xlu0 %5988, %v2194
      %v5990 = vpop.permute.xlu0 %5989
      %5992 = vset.pattern.permute.xlu0 7
      %5993 = vperm.xlu0 %5992, %v2195
      %v5994 = vpop.permute.xlu0 %5993
      %5996 = vset.pattern.permute.xlu0 7
      %5997 = vperm.xlu0 %5996, %v2196
      %v5998 = vpop.permute.xlu0 %5997
      %6000 = vset.pattern.permute.xlu0 7
      %6001 = vperm.xlu0 %6000, %v2197
      %v6002 = vpop.permute.xlu0 %6001
      %6004 = vset.pattern.permute.xlu0 7
      %6005 = vperm.xlu0 %6004, %v2198
      %v6006 = vpop.permute.xlu0 %6005
      %6008 = vset.pattern.permute.xlu0 7
      %6009 = vperm.xlu0 %6008, %v2199
      %v6010 = vpop.permute.xlu0 %6009
      %6012 = vset.pattern.permute.xlu0 7
      %6013 = vperm.xlu0 %6012, %v2200
      %v6014 = vpop.permute.xlu0 %6013
      %6016 = vset.pattern.permute.xlu0 7
      %6017 = vperm.xlu0 %6016, %v2201
      %v6018 = vpop.permute.xlu0 %6017
      %6020 = vset.pattern.permute.xlu0 7
      %6021 = vperm.xlu0 %6020, %v2202
      %v6022 = vpop.permute.xlu0 %6021
      %6024 = vset.pattern.permute.xlu0 7
      %6025 = vperm.xlu0 %6024, %v2203
      %v6026 = vpop.permute.xlu0 %6025
      %v6028 = vmul.f32 %v5902, %v3733
      %v6029 = vmul.f32 %v5906, %v3735
      %v6030 = vmul.f32 %v5910, %v3738
      %v6031 = vmul.f32 %v5914, %v3740
      %v6032 = vmul.f32 %v5918, %v3743
      %v6033 = vmul.f32 %v5922, %v3745
      %v6034 = vmul.f32 %v5926, %v3748
      %v6035 = vmul.f32 %v5930, %v3750
      %v6036 = vmul.f32 %v5934, %v3753
      %v6037 = vmul.f32 %v5938, %v3755
      %v6038 = vmul.f32 %v5942, %v3758
      %v6039 = vmul.f32 %v5946, %v3760
      %v6040 = vmul.f32 %v5950, %v3763
      %v6041 = vmul.f32 %v5954, %v3765
      %v6042 = vmul.f32 %v5958, %v3768
      %v6043 = vmul.f32 %v5962, %v3770
      %v6044 = vmul.f32 %v5966, %v3773
      %v6045 = vmul.f32 %v5970, %v3775
      %v6046 = vmul.f32 %v5974, %v3778
      %v6047 = vmul.f32 %v5978, %v3780
      %v6048 = vmul.f32 %v5982, %v3783
      %v6049 = vmul.f32 %v5986, %v3785
      %v6050 = vmul.f32 %v5990, %v3788
      %v6051 = vmul.f32 %v5994, %v3790
      %v6052 = vmul.f32 %v5998, %v3793
      %v6053 = vmul.f32 %v6002, %v3795
      %v6054 = vmul.f32 %v6006, %v3798
      %v6055 = vmul.f32 %v6010, %v3800
      %v6056 = vmul.f32 %v6014, %v3803
      %v6057 = vmul.f32 %v6018, %v3805
      %v6058 = vmul.f32 %v6022, %v3808
      %v6059 = vmul.f32 %v6026, %v3810
      %v6060 = vadd.f32 %v5868, %v6028
      %v6061 = vadd.f32 %v5869, %v6029
      %v6062 = vadd.f32 %v5870, %v6030
      %v6063 = vadd.f32 %v5871, %v6031
      %v6064 = vadd.f32 %v5872, %v6032
      %v6065 = vadd.f32 %v5873, %v6033
      %v6066 = vadd.f32 %v5874, %v6034
      %v6067 = vadd.f32 %v5875, %v6035
      %v6068 = vadd.f32 %v5876, %v6036
      %v6069 = vadd.f32 %v5877, %v6037
      %v6070 = vadd.f32 %v5878, %v6038
      %v6071 = vadd.f32 %v5879, %v6039
      %v6072 = vadd.f32 %v5880, %v6040
      %v6073 = vadd.f32 %v5881, %v6041
      %v6074 = vadd.f32 %v5882, %v6042
      %v6075 = vadd.f32 %v5883, %v6043
      %v6076 = vadd.f32 %v5884, %v6044
      %v6077 = vadd.f32 %v5885, %v6045
      %v6078 = vadd.f32 %v5886, %v6046
      %v6079 = vadd.f32 %v5887, %v6047
      %v6080 = vadd.f32 %v5888, %v6048
      %v6081 = vadd.f32 %v5889, %v6049
      %v6082 = vadd.f32 %v5890, %v6050
      %v6083 = vadd.f32 %v5891, %v6051
      %v6084 = vadd.f32 %v5892, %v6052
      %v6085 = vadd.f32 %v5893, %v6053
      %v6086 = vadd.f32 %v5894, %v6054
      %v6087 = vadd.f32 %v5895, %v6055
      %v6088 = vadd.f32 %v5896, %v6056
      %v6089 = vadd.f32 %v5897, %v6057
      %v6090 = vadd.f32 %v5898, %v6058
      %v6091 = vadd.f32 %v5899, %v6059
      %6092 = vset.pattern.permute.xlu0 8
      %6093 = vperm.xlu0 %6092, %v2172
      %v6094 = vpop.permute.xlu0 %6093
      %6096 = vset.pattern.permute.xlu0 8
      %6097 = vperm.xlu0 %6096, %v2173
      %v6098 = vpop.permute.xlu0 %6097
      %6100 = vset.pattern.permute.xlu0 8
      %6101 = vperm.xlu0 %6100, %v2174
      %v6102 = vpop.permute.xlu0 %6101
      %6104 = vset.pattern.permute.xlu0 8
      %6105 = vperm.xlu0 %6104, %v2175
      %v6106 = vpop.permute.xlu0 %6105
      %6108 = vset.pattern.permute.xlu0 8
      %6109 = vperm.xlu0 %6108, %v2176
      %v6110 = vpop.permute.xlu0 %6109
      %6112 = vset.pattern.permute.xlu0 8
      %6113 = vperm.xlu0 %6112, %v2177
      %v6114 = vpop.permute.xlu0 %6113
      %6116 = vset.pattern.permute.xlu0 8
      %6117 = vperm.xlu0 %6116, %v2178
      %v6118 = vpop.permute.xlu0 %6117
      %6120 = vset.pattern.permute.xlu0 8
      %6121 = vperm.xlu0 %6120, %v2179
      %v6122 = vpop.permute.xlu0 %6121
      %6124 = vset.pattern.permute.xlu0 8
      %6125 = vperm.xlu0 %6124, %v2180
      %v6126 = vpop.permute.xlu0 %6125
      %6128 = vset.pattern.permute.xlu0 8
      %6129 = vperm.xlu0 %6128, %v2181
      %v6130 = vpop.permute.xlu0 %6129
      %6132 = vset.pattern.permute.xlu0 8
      %6133 = vperm.xlu0 %6132, %v2182
      %v6134 = vpop.permute.xlu0 %6133
      %6136 = vset.pattern.permute.xlu0 8
      %6137 = vperm.xlu0 %6136, %v2183
      %v6138 = vpop.permute.xlu0 %6137
      %6140 = vset.pattern.permute.xlu0 8
      %6141 = vperm.xlu0 %6140, %v2184
      %v6142 = vpop.permute.xlu0 %6141
      %6144 = vset.pattern.permute.xlu0 8
      %6145 = vperm.xlu0 %6144, %v2185
      %v6146 = vpop.permute.xlu0 %6145
      %6148 = vset.pattern.permute.xlu0 8
      %6149 = vperm.xlu0 %6148, %v2186
      %v6150 = vpop.permute.xlu0 %6149
      %6152 = vset.pattern.permute.xlu0 8
      %6153 = vperm.xlu0 %6152, %v2187
      %v6154 = vpop.permute.xlu0 %6153
      %6156 = vset.pattern.permute.xlu0 8
      %6157 = vperm.xlu0 %6156, %v2188
      %v6158 = vpop.permute.xlu0 %6157
      %6160 = vset.pattern.permute.xlu0 8
      %6161 = vperm.xlu0 %6160, %v2189
      %v6162 = vpop.permute.xlu0 %6161
      %6164 = vset.pattern.permute.xlu0 8
      %6165 = vperm.xlu0 %6164, %v2190
      %v6166 = vpop.permute.xlu0 %6165
      %6168 = vset.pattern.permute.xlu0 8
      %6169 = vperm.xlu0 %6168, %v2191
      %v6170 = vpop.permute.xlu0 %6169
      %6172 = vset.pattern.permute.xlu0 8
      %6173 = vperm.xlu0 %6172, %v2192
      %v6174 = vpop.permute.xlu0 %6173
      %6176 = vset.pattern.permute.xlu0 8
      %6177 = vperm.xlu0 %6176, %v2193
      %v6178 = vpop.permute.xlu0 %6177
      %6180 = vset.pattern.permute.xlu0 8
      %6181 = vperm.xlu0 %6180, %v2194
      %v6182 = vpop.permute.xlu0 %6181
      %6184 = vset.pattern.permute.xlu0 8
      %6185 = vperm.xlu0 %6184, %v2195
      %v6186 = vpop.permute.xlu0 %6185
      %6188 = vset.pattern.permute.xlu0 8
      %6189 = vperm.xlu0 %6188, %v2196
      %v6190 = vpop.permute.xlu0 %6189
      %6192 = vset.pattern.permute.xlu0 8
      %6193 = vperm.xlu0 %6192, %v2197
      %v6194 = vpop.permute.xlu0 %6193
      %6196 = vset.pattern.permute.xlu0 8
      %6197 = vperm.xlu0 %6196, %v2198
      %v6198 = vpop.permute.xlu0 %6197
      %6200 = vset.pattern.permute.xlu0 8
      %6201 = vperm.xlu0 %6200, %v2199
      %v6202 = vpop.permute.xlu0 %6201
      %6204 = vset.pattern.permute.xlu0 8
      %6205 = vperm.xlu0 %6204, %v2200
      %v6206 = vpop.permute.xlu0 %6205
      %6208 = vset.pattern.permute.xlu0 8
      %6209 = vperm.xlu0 %6208, %v2201
      %v6210 = vpop.permute.xlu0 %6209
      %6212 = vset.pattern.permute.xlu0 8
      %6213 = vperm.xlu0 %6212, %v2202
      %v6214 = vpop.permute.xlu0 %6213
      %6216 = vset.pattern.permute.xlu0 8
      %6217 = vperm.xlu0 %6216, %v2203
      %v6218 = vpop.permute.xlu0 %6217
      %v6220 = vmul.f32 %v6094, %v3822
      %v6221 = vmul.f32 %v6098, %v3824
      %v6222 = vmul.f32 %v6102, %v3827
      %v6223 = vmul.f32 %v6106, %v3829
      %v6224 = vmul.f32 %v6110, %v3832
      %v6225 = vmul.f32 %v6114, %v3834
      %v6226 = vmul.f32 %v6118, %v3837
      %v6227 = vmul.f32 %v6122, %v3839
      %v6228 = vmul.f32 %v6126, %v3842
      %v6229 = vmul.f32 %v6130, %v3844
      %v6230 = vmul.f32 %v6134, %v3847
      %v6231 = vmul.f32 %v6138, %v3849
      %v6232 = vmul.f32 %v6142, %v3852
      %v6233 = vmul.f32 %v6146, %v3854
      %v6234 = vmul.f32 %v6150, %v3857
      %v6235 = vmul.f32 %v6154, %v3859
      %v6236 = vmul.f32 %v6158, %v3862
      %v6237 = vmul.f32 %v6162, %v3864
      %v6238 = vmul.f32 %v6166, %v3867
      %v6239 = vmul.f32 %v6170, %v3869
      %v6240 = vmul.f32 %v6174, %v3872
      %v6241 = vmul.f32 %v6178, %v3874
      %v6242 = vmul.f32 %v6182, %v3877
      %v6243 = vmul.f32 %v6186, %v3879
      %v6244 = vmul.f32 %v6190, %v3882
      %v6245 = vmul.f32 %v6194, %v3884
      %v6246 = vmul.f32 %v6198, %v3887
      %v6247 = vmul.f32 %v6202, %v3889
      %v6248 = vmul.f32 %v6206, %v3892
      %v6249 = vmul.f32 %v6210, %v3894
      %v6250 = vmul.f32 %v6214, %v3897
      %v6251 = vmul.f32 %v6218, %v3899
      %v6252 = vadd.f32 %v6060, %v6220
      %v6253 = vadd.f32 %v6061, %v6221
      %v6254 = vadd.f32 %v6062, %v6222
      %v6255 = vadd.f32 %v6063, %v6223
      %v6256 = vadd.f32 %v6064, %v6224
      %v6257 = vadd.f32 %v6065, %v6225
      %v6258 = vadd.f32 %v6066, %v6226
      %v6259 = vadd.f32 %v6067, %v6227
      %v6260 = vadd.f32 %v6068, %v6228
      %v6261 = vadd.f32 %v6069, %v6229
      %v6262 = vadd.f32 %v6070, %v6230
      %v6263 = vadd.f32 %v6071, %v6231
      %v6264 = vadd.f32 %v6072, %v6232
      %v6265 = vadd.f32 %v6073, %v6233
      %v6266 = vadd.f32 %v6074, %v6234
      %v6267 = vadd.f32 %v6075, %v6235
      %v6268 = vadd.f32 %v6076, %v6236
      %v6269 = vadd.f32 %v6077, %v6237
      %v6270 = vadd.f32 %v6078, %v6238
      %v6271 = vadd.f32 %v6079, %v6239
      %v6272 = vadd.f32 %v6080, %v6240
      %v6273 = vadd.f32 %v6081, %v6241
      %v6274 = vadd.f32 %v6082, %v6242
      %v6275 = vadd.f32 %v6083, %v6243
      %v6276 = vadd.f32 %v6084, %v6244
      %v6277 = vadd.f32 %v6085, %v6245
      %v6278 = vadd.f32 %v6086, %v6246
      %v6279 = vadd.f32 %v6087, %v6247
      %v6280 = vadd.f32 %v6088, %v6248
      %v6281 = vadd.f32 %v6089, %v6249
      %v6282 = vadd.f32 %v6090, %v6250
      %v6283 = vadd.f32 %v6091, %v6251
      %6284 = vset.pattern.permute.xlu0 9
      %6285 = vperm.xlu0 %6284, %v2172
      %v6286 = vpop.permute.xlu0 %6285
      %6288 = vset.pattern.permute.xlu0 9
      %6289 = vperm.xlu0 %6288, %v2173
      %v6290 = vpop.permute.xlu0 %6289
      %6292 = vset.pattern.permute.xlu0 9
      %6293 = vperm.xlu0 %6292, %v2174
      %v6294 = vpop.permute.xlu0 %6293
      %6296 = vset.pattern.permute.xlu0 9
      %6297 = vperm.xlu0 %6296, %v2175
      %v6298 = vpop.permute.xlu0 %6297
      %6300 = vset.pattern.permute.xlu0 9
      %6301 = vperm.xlu0 %6300, %v2176
      %v6302 = vpop.permute.xlu0 %6301
      %6304 = vset.pattern.permute.xlu0 9
      %6305 = vperm.xlu0 %6304, %v2177
      %v6306 = vpop.permute.xlu0 %6305
      %6308 = vset.pattern.permute.xlu0 9
      %6309 = vperm.xlu0 %6308, %v2178
      %v6310 = vpop.permute.xlu0 %6309
      %6312 = vset.pattern.permute.xlu0 9
      %6313 = vperm.xlu0 %6312, %v2179
      %v6314 = vpop.permute.xlu0 %6313
      %6316 = vset.pattern.permute.xlu0 9
      %6317 = vperm.xlu0 %6316, %v2180
      %v6318 = vpop.permute.xlu0 %6317
      %6320 = vset.pattern.permute.xlu0 9
      %6321 = vperm.xlu0 %6320, %v2181
      %v6322 = vpop.permute.xlu0 %6321
      %6324 = vset.pattern.permute.xlu0 9
      %6325 = vperm.xlu0 %6324, %v2182
      %v6326 = vpop.permute.xlu0 %6325
      %6328 = vset.pattern.permute.xlu0 9
      %6329 = vperm.xlu0 %6328, %v2183
      %v6330 = vpop.permute.xlu0 %6329
      %6332 = vset.pattern.permute.xlu0 9
      %6333 = vperm.xlu0 %6332, %v2184
      %v6334 = vpop.permute.xlu0 %6333
      %6336 = vset.pattern.permute.xlu0 9
      %6337 = vperm.xlu0 %6336, %v2185
      %v6338 = vpop.permute.xlu0 %6337
      %6340 = vset.pattern.permute.xlu0 9
      %6341 = vperm.xlu0 %6340, %v2186
      %v6342 = vpop.permute.xlu0 %6341
      %6344 = vset.pattern.permute.xlu0 9
      %6345 = vperm.xlu0 %6344, %v2187
      %v6346 = vpop.permute.xlu0 %6345
      %6348 = vset.pattern.permute.xlu0 9
      %6349 = vperm.xlu0 %6348, %v2188
      %v6350 = vpop.permute.xlu0 %6349
      %6352 = vset.pattern.permute.xlu0 9
      %6353 = vperm.xlu0 %6352, %v2189
      %v6354 = vpop.permute.xlu0 %6353
      %6356 = vset.pattern.permute.xlu0 9
      %6357 = vperm.xlu0 %6356, %v2190
      %v6358 = vpop.permute.xlu0 %6357
      %6360 = vset.pattern.permute.xlu0 9
      %6361 = vperm.xlu0 %6360, %v2191
      %v6362 = vpop.permute.xlu0 %6361
      %6364 = vset.pattern.permute.xlu0 9
      %6365 = vperm.xlu0 %6364, %v2192
      %v6366 = vpop.permute.xlu0 %6365
      %6368 = vset.pattern.permute.xlu0 9
      %6369 = vperm.xlu0 %6368, %v2193
      %v6370 = vpop.permute.xlu0 %6369
      %6372 = vset.pattern.permute.xlu0 9
      %6373 = vperm.xlu0 %6372, %v2194
      %v6374 = vpop.permute.xlu0 %6373
      %6376 = vset.pattern.permute.xlu0 9
      %6377 = vperm.xlu0 %6376, %v2195
      %v6378 = vpop.permute.xlu0 %6377
      %6380 = vset.pattern.permute.xlu0 9
      %6381 = vperm.xlu0 %6380, %v2196
      %v6382 = vpop.permute.xlu0 %6381
      %6384 = vset.pattern.permute.xlu0 9
      %6385 = vperm.xlu0 %6384, %v2197
      %v6386 = vpop.permute.xlu0 %6385
      %6388 = vset.pattern.permute.xlu0 9
      %6389 = vperm.xlu0 %6388, %v2198
      %v6390 = vpop.permute.xlu0 %6389
      %6392 = vset.pattern.permute.xlu0 9
      %6393 = vperm.xlu0 %6392, %v2199
      %v6394 = vpop.permute.xlu0 %6393
      %6396 = vset.pattern.permute.xlu0 9
      %6397 = vperm.xlu0 %6396, %v2200
      %v6398 = vpop.permute.xlu0 %6397
      %6400 = vset.pattern.permute.xlu0 9
      %6401 = vperm.xlu0 %6400, %v2201
      %v6402 = vpop.permute.xlu0 %6401
      %6404 = vset.pattern.permute.xlu0 9
      %6405 = vperm.xlu0 %6404, %v2202
      %v6406 = vpop.permute.xlu0 %6405
      %6408 = vset.pattern.permute.xlu0 9
      %6409 = vperm.xlu0 %6408, %v2203
      %v6410 = vpop.permute.xlu0 %6409
      %v6412 = vmul.f32 %v6286, %v3911
      %v6413 = vmul.f32 %v6290, %v3913
      %v6414 = vmul.f32 %v6294, %v3916
      %v6415 = vmul.f32 %v6298, %v3918
      %v6416 = vmul.f32 %v6302, %v3921
      %v6417 = vmul.f32 %v6306, %v3923
      %v6418 = vmul.f32 %v6310, %v3926
      %v6419 = vmul.f32 %v6314, %v3928
      %v6420 = vmul.f32 %v6318, %v3931
      %v6421 = vmul.f32 %v6322, %v3933
      %v6422 = vmul.f32 %v6326, %v3936
      %v6423 = vmul.f32 %v6330, %v3938
      %v6424 = vmul.f32 %v6334, %v3941
      %v6425 = vmul.f32 %v6338, %v3943
      %v6426 = vmul.f32 %v6342, %v3946
      %v6427 = vmul.f32 %v6346, %v3948
      %v6428 = vmul.f32 %v6350, %v3951
      %v6429 = vmul.f32 %v6354, %v3953
      %v6430 = vmul.f32 %v6358, %v3956
      %v6431 = vmul.f32 %v6362, %v3958
      %v6432 = vmul.f32 %v6366, %v3961
      %v6433 = vmul.f32 %v6370, %v3963
      %v6434 = vmul.f32 %v6374, %v3966
      %v6435 = vmul.f32 %v6378, %v3968
      %v6436 = vmul.f32 %v6382, %v3971
      %v6437 = vmul.f32 %v6386, %v3973
      %v6438 = vmul.f32 %v6390, %v3976
      %v6439 = vmul.f32 %v6394, %v3978
      %v6440 = vmul.f32 %v6398, %v3981
      %v6441 = vmul.f32 %v6402, %v3983
      %v6442 = vmul.f32 %v6406, %v3986
      %v6443 = vmul.f32 %v6410, %v3988
      %v6444 = vadd.f32 %v6252, %v6412
      %v6445 = vadd.f32 %v6253, %v6413
      %v6446 = vadd.f32 %v6254, %v6414
      %v6447 = vadd.f32 %v6255, %v6415
      %v6448 = vadd.f32 %v6256, %v6416
      %v6449 = vadd.f32 %v6257, %v6417
      %v6450 = vadd.f32 %v6258, %v6418
      %v6451 = vadd.f32 %v6259, %v6419
      %v6452 = vadd.f32 %v6260, %v6420
      %v6453 = vadd.f32 %v6261, %v6421
      %v6454 = vadd.f32 %v6262, %v6422
      %v6455 = vadd.f32 %v6263, %v6423
      %v6456 = vadd.f32 %v6264, %v6424
      %v6457 = vadd.f32 %v6265, %v6425
      %v6458 = vadd.f32 %v6266, %v6426
      %v6459 = vadd.f32 %v6267, %v6427
      %v6460 = vadd.f32 %v6268, %v6428
      %v6461 = vadd.f32 %v6269, %v6429
      %v6462 = vadd.f32 %v6270, %v6430
      %v6463 = vadd.f32 %v6271, %v6431
      %v6464 = vadd.f32 %v6272, %v6432
      %v6465 = vadd.f32 %v6273, %v6433
      %v6466 = vadd.f32 %v6274, %v6434
      %v6467 = vadd.f32 %v6275, %v6435
      %v6468 = vadd.f32 %v6276, %v6436
      %v6469 = vadd.f32 %v6277, %v6437
      %v6470 = vadd.f32 %v6278, %v6438
      %v6471 = vadd.f32 %v6279, %v6439
      %v6472 = vadd.f32 %v6280, %v6440
      %v6473 = vadd.f32 %v6281, %v6441
      %v6474 = vadd.f32 %v6282, %v6442
      %v6475 = vadd.f32 %v6283, %v6443
      %6476 = vset.pattern.permute.xlu0 10
      %6477 = vperm.xlu0 %6476, %v2172
      %v6478 = vpop.permute.xlu0 %6477
      %6480 = vset.pattern.permute.xlu0 10
      %6481 = vperm.xlu0 %6480, %v2173
      %v6482 = vpop.permute.xlu0 %6481
      %6484 = vset.pattern.permute.xlu0 10
      %6485 = vperm.xlu0 %6484, %v2174
      %v6486 = vpop.permute.xlu0 %6485
      %6488 = vset.pattern.permute.xlu0 10
      %6489 = vperm.xlu0 %6488, %v2175
      %v6490 = vpop.permute.xlu0 %6489
      %6492 = vset.pattern.permute.xlu0 10
      %6493 = vperm.xlu0 %6492, %v2176
      %v6494 = vpop.permute.xlu0 %6493
      %6496 = vset.pattern.permute.xlu0 10
      %6497 = vperm.xlu0 %6496, %v2177
      %v6498 = vpop.permute.xlu0 %6497
      %6500 = vset.pattern.permute.xlu0 10
      %6501 = vperm.xlu0 %6500, %v2178
      %v6502 = vpop.permute.xlu0 %6501
      %6504 = vset.pattern.permute.xlu0 10
      %6505 = vperm.xlu0 %6504, %v2179
      %v6506 = vpop.permute.xlu0 %6505
      %6508 = vset.pattern.permute.xlu0 10
      %6509 = vperm.xlu0 %6508, %v2180
      %v6510 = vpop.permute.xlu0 %6509
      %6512 = vset.pattern.permute.xlu0 10
      %6513 = vperm.xlu0 %6512, %v2181
      %v6514 = vpop.permute.xlu0 %6513
      %6516 = vset.pattern.permute.xlu0 10
      %6517 = vperm.xlu0 %6516, %v2182
      %v6518 = vpop.permute.xlu0 %6517
      %6520 = vset.pattern.permute.xlu0 10
      %6521 = vperm.xlu0 %6520, %v2183
      %v6522 = vpop.permute.xlu0 %6521
      %6524 = vset.pattern.permute.xlu0 10
      %6525 = vperm.xlu0 %6524, %v2184
      %v6526 = vpop.permute.xlu0 %6525
      %6528 = vset.pattern.permute.xlu0 10
      %6529 = vperm.xlu0 %6528, %v2185
      %v6530 = vpop.permute.xlu0 %6529
      %6532 = vset.pattern.permute.xlu0 10
      %6533 = vperm.xlu0 %6532, %v2186
      %v6534 = vpop.permute.xlu0 %6533
      %6536 = vset.pattern.permute.xlu0 10
      %6537 = vperm.xlu0 %6536, %v2187
      %v6538 = vpop.permute.xlu0 %6537
      %6540 = vset.pattern.permute.xlu0 10
      %6541 = vperm.xlu0 %6540, %v2188
      %v6542 = vpop.permute.xlu0 %6541
      %6544 = vset.pattern.permute.xlu0 10
      %6545 = vperm.xlu0 %6544, %v2189
      %v6546 = vpop.permute.xlu0 %6545
      %6548 = vset.pattern.permute.xlu0 10
      %6549 = vperm.xlu0 %6548, %v2190
      %v6550 = vpop.permute.xlu0 %6549
      %6552 = vset.pattern.permute.xlu0 10
      %6553 = vperm.xlu0 %6552, %v2191
      %v6554 = vpop.permute.xlu0 %6553
      %6556 = vset.pattern.permute.xlu0 10
      %6557 = vperm.xlu0 %6556, %v2192
      %v6558 = vpop.permute.xlu0 %6557
      %6560 = vset.pattern.permute.xlu0 10
      %6561 = vperm.xlu0 %6560, %v2193
      %v6562 = vpop.permute.xlu0 %6561
      %6564 = vset.pattern.permute.xlu0 10
      %6565 = vperm.xlu0 %6564, %v2194
      %v6566 = vpop.permute.xlu0 %6565
      %6568 = vset.pattern.permute.xlu0 10
      %6569 = vperm.xlu0 %6568, %v2195
      %v6570 = vpop.permute.xlu0 %6569
      %6572 = vset.pattern.permute.xlu0 10
      %6573 = vperm.xlu0 %6572, %v2196
      %v6574 = vpop.permute.xlu0 %6573
      %6576 = vset.pattern.permute.xlu0 10
      %6577 = vperm.xlu0 %6576, %v2197
      %v6578 = vpop.permute.xlu0 %6577
      %6580 = vset.pattern.permute.xlu0 10
      %6581 = vperm.xlu0 %6580, %v2198
      %v6582 = vpop.permute.xlu0 %6581
      %6584 = vset.pattern.permute.xlu0 10
      %6585 = vperm.xlu0 %6584, %v2199
      %v6586 = vpop.permute.xlu0 %6585
      %6588 = vset.pattern.permute.xlu0 10
      %6589 = vperm.xlu0 %6588, %v2200
      %v6590 = vpop.permute.xlu0 %6589
      %6592 = vset.pattern.permute.xlu0 10
      %6593 = vperm.xlu0 %6592, %v2201
      %v6594 = vpop.permute.xlu0 %6593
      %6596 = vset.pattern.permute.xlu0 10
      %6597 = vperm.xlu0 %6596, %v2202
      %v6598 = vpop.permute.xlu0 %6597
      %6600 = vset.pattern.permute.xlu0 10
      %6601 = vperm.xlu0 %6600, %v2203
      %v6602 = vpop.permute.xlu0 %6601
      %v6604 = vmul.f32 %v6478, %v4000
      %v6605 = vmul.f32 %v6482, %v4002
      %v6606 = vmul.f32 %v6486, %v4005
      %v6607 = vmul.f32 %v6490, %v4007
      %v6608 = vmul.f32 %v6494, %v4010
      %v6609 = vmul.f32 %v6498, %v4012
      %v6610 = vmul.f32 %v6502, %v4015
      %v6611 = vmul.f32 %v6506, %v4017
      %v6612 = vmul.f32 %v6510, %v4020
      %v6613 = vmul.f32 %v6514, %v4022
      %v6614 = vmul.f32 %v6518, %v4025
      %v6615 = vmul.f32 %v6522, %v4027
      %v6616 = vmul.f32 %v6526, %v4030
      %v6617 = vmul.f32 %v6530, %v4032
      %v6618 = vmul.f32 %v6534, %v4035
      %v6619 = vmul.f32 %v6538, %v4037
      %v6620 = vmul.f32 %v6542, %v4040
      %v6621 = vmul.f32 %v6546, %v4042
      %v6622 = vmul.f32 %v6550, %v4045
      %v6623 = vmul.f32 %v6554, %v4047
      %v6624 = vmul.f32 %v6558, %v4050
      %v6625 = vmul.f32 %v6562, %v4052
      %v6626 = vmul.f32 %v6566, %v4055
      %v6627 = vmul.f32 %v6570, %v4057
      %v6628 = vmul.f32 %v6574, %v4060
      %v6629 = vmul.f32 %v6578, %v4062
      %v6630 = vmul.f32 %v6582, %v4065
      %v6631 = vmul.f32 %v6586, %v4067
      %v6632 = vmul.f32 %v6590, %v4070
      %v6633 = vmul.f32 %v6594, %v4072
      %v6634 = vmul.f32 %v6598, %v4075
      %v6635 = vmul.f32 %v6602, %v4077
      %v6636 = vadd.f32 %v6444, %v6604
      %v6637 = vadd.f32 %v6445, %v6605
      %v6638 = vadd.f32 %v6446, %v6606
      %v6639 = vadd.f32 %v6447, %v6607
      %v6640 = vadd.f32 %v6448, %v6608
      %v6641 = vadd.f32 %v6449, %v6609
      %v6642 = vadd.f32 %v6450, %v6610
      %v6643 = vadd.f32 %v6451, %v6611
      %v6644 = vadd.f32 %v6452, %v6612
      %v6645 = vadd.f32 %v6453, %v6613
      %v6646 = vadd.f32 %v6454, %v6614
      %v6647 = vadd.f32 %v6455, %v6615
      %v6648 = vadd.f32 %v6456, %v6616
      %v6649 = vadd.f32 %v6457, %v6617
      %v6650 = vadd.f32 %v6458, %v6618
      %v6651 = vadd.f32 %v6459, %v6619
      %v6652 = vadd.f32 %v6460, %v6620
      %v6653 = vadd.f32 %v6461, %v6621
      %v6654 = vadd.f32 %v6462, %v6622
      %v6655 = vadd.f32 %v6463, %v6623
      %v6656 = vadd.f32 %v6464, %v6624
      %v6657 = vadd.f32 %v6465, %v6625
      %v6658 = vadd.f32 %v6466, %v6626
      %v6659 = vadd.f32 %v6467, %v6627
      %v6660 = vadd.f32 %v6468, %v6628
      %v6661 = vadd.f32 %v6469, %v6629
      %v6662 = vadd.f32 %v6470, %v6630
      %v6663 = vadd.f32 %v6471, %v6631
      %v6664 = vadd.f32 %v6472, %v6632
      %v6665 = vadd.f32 %v6473, %v6633
      %v6666 = vadd.f32 %v6474, %v6634
      %v6667 = vadd.f32 %v6475, %v6635
      %6668 = vset.pattern.permute.xlu0 11
      %6669 = vperm.xlu0 %6668, %v2172
      %v6670 = vpop.permute.xlu0 %6669
      %6672 = vset.pattern.permute.xlu0 11
      %6673 = vperm.xlu0 %6672, %v2173
      %v6674 = vpop.permute.xlu0 %6673
      %6676 = vset.pattern.permute.xlu0 11
      %6677 = vperm.xlu0 %6676, %v2174
      %v6678 = vpop.permute.xlu0 %6677
      %6680 = vset.pattern.permute.xlu0 11
      %6681 = vperm.xlu0 %6680, %v2175
      %v6682 = vpop.permute.xlu0 %6681
      %6684 = vset.pattern.permute.xlu0 11
      %6685 = vperm.xlu0 %6684, %v2176
      %v6686 = vpop.permute.xlu0 %6685
      %6688 = vset.pattern.permute.xlu0 11
      %6689 = vperm.xlu0 %6688, %v2177
      %v6690 = vpop.permute.xlu0 %6689
      %6692 = vset.pattern.permute.xlu0 11
      %6693 = vperm.xlu0 %6692, %v2178
      %v6694 = vpop.permute.xlu0 %6693
      %6696 = vset.pattern.permute.xlu0 11
      %6697 = vperm.xlu0 %6696, %v2179
      %v6698 = vpop.permute.xlu0 %6697
      %6700 = vset.pattern.permute.xlu0 11
      %6701 = vperm.xlu0 %6700, %v2180
      %v6702 = vpop.permute.xlu0 %6701
      %6704 = vset.pattern.permute.xlu0 11
      %6705 = vperm.xlu0 %6704, %v2181
      %v6706 = vpop.permute.xlu0 %6705
      %6708 = vset.pattern.permute.xlu0 11
      %6709 = vperm.xlu0 %6708, %v2182
      %v6710 = vpop.permute.xlu0 %6709
      %6712 = vset.pattern.permute.xlu0 11
      %6713 = vperm.xlu0 %6712, %v2183
      %v6714 = vpop.permute.xlu0 %6713
      %6716 = vset.pattern.permute.xlu0 11
      %6717 = vperm.xlu0 %6716, %v2184
      %v6718 = vpop.permute.xlu0 %6717
      %6720 = vset.pattern.permute.xlu0 11
      %6721 = vperm.xlu0 %6720, %v2185
      %v6722 = vpop.permute.xlu0 %6721
      %6724 = vset.pattern.permute.xlu0 11
      %6725 = vperm.xlu0 %6724, %v2186
      %v6726 = vpop.permute.xlu0 %6725
      %6728 = vset.pattern.permute.xlu0 11
      %6729 = vperm.xlu0 %6728, %v2187
      %v6730 = vpop.permute.xlu0 %6729
      %6732 = vset.pattern.permute.xlu0 11
      %6733 = vperm.xlu0 %6732, %v2188
      %v6734 = vpop.permute.xlu0 %6733
      %6736 = vset.pattern.permute.xlu0 11
      %6737 = vperm.xlu0 %6736, %v2189
      %v6738 = vpop.permute.xlu0 %6737
      %6740 = vset.pattern.permute.xlu0 11
      %6741 = vperm.xlu0 %6740, %v2190
      %v6742 = vpop.permute.xlu0 %6741
      %6744 = vset.pattern.permute.xlu0 11
      %6745 = vperm.xlu0 %6744, %v2191
      %v6746 = vpop.permute.xlu0 %6745
      %6748 = vset.pattern.permute.xlu0 11
      %6749 = vperm.xlu0 %6748, %v2192
      %v6750 = vpop.permute.xlu0 %6749
      %6752 = vset.pattern.permute.xlu0 11
      %6753 = vperm.xlu0 %6752, %v2193
      %v6754 = vpop.permute.xlu0 %6753
      %6756 = vset.pattern.permute.xlu0 11
      %6757 = vperm.xlu0 %6756, %v2194
      %v6758 = vpop.permute.xlu0 %6757
      %6760 = vset.pattern.permute.xlu0 11
      %6761 = vperm.xlu0 %6760, %v2195
      %v6762 = vpop.permute.xlu0 %6761
      %6764 = vset.pattern.permute.xlu0 11
      %6765 = vperm.xlu0 %6764, %v2196
      %v6766 = vpop.permute.xlu0 %6765
      %6768 = vset.pattern.permute.xlu0 11
      %6769 = vperm.xlu0 %6768, %v2197
      %v6770 = vpop.permute.xlu0 %6769
      %6772 = vset.pattern.permute.xlu0 11
      %6773 = vperm.xlu0 %6772, %v2198
      %v6774 = vpop.permute.xlu0 %6773
      %6776 = vset.pattern.permute.xlu0 11
      %6777 = vperm.xlu0 %6776, %v2199
      %v6778 = vpop.permute.xlu0 %6777
      %6780 = vset.pattern.permute.xlu0 11
      %6781 = vperm.xlu0 %6780, %v2200
      %v6782 = vpop.permute.xlu0 %6781
      %6784 = vset.pattern.permute.xlu0 11
      %6785 = vperm.xlu0 %6784, %v2201
      %v6786 = vpop.permute.xlu0 %6785
      %6788 = vset.pattern.permute.xlu0 11
      %6789 = vperm.xlu0 %6788, %v2202
      %v6790 = vpop.permute.xlu0 %6789
      %6792 = vset.pattern.permute.xlu0 11
      %6793 = vperm.xlu0 %6792, %v2203
      %v6794 = vpop.permute.xlu0 %6793
      %v6796 = vmul.f32 %v6670, %v4089
      %v6797 = vmul.f32 %v6674, %v4091
      %v6798 = vmul.f32 %v6678, %v4094
      %v6799 = vmul.f32 %v6682, %v4096
      %v6800 = vmul.f32 %v6686, %v4099
      %v6801 = vmul.f32 %v6690, %v4101
      %v6802 = vmul.f32 %v6694, %v4104
      %v6803 = vmul.f32 %v6698, %v4106
      %v6804 = vmul.f32 %v6702, %v4109
      %v6805 = vmul.f32 %v6706, %v4111
      %v6806 = vmul.f32 %v6710, %v4114
      %v6807 = vmul.f32 %v6714, %v4116
      %v6808 = vmul.f32 %v6718, %v4119
      %v6809 = vmul.f32 %v6722, %v4121
      %v6810 = vmul.f32 %v6726, %v4124
      %v6811 = vmul.f32 %v6730, %v4126
      %v6812 = vmul.f32 %v6734, %v4129
      %v6813 = vmul.f32 %v6738, %v4131
      %v6814 = vmul.f32 %v6742, %v4134
      %v6815 = vmul.f32 %v6746, %v4136
      %v6816 = vmul.f32 %v6750, %v4139
      %v6817 = vmul.f32 %v6754, %v4141
      %v6818 = vmul.f32 %v6758, %v4144
      %v6819 = vmul.f32 %v6762, %v4146
      %v6820 = vmul.f32 %v6766, %v4149
      %v6821 = vmul.f32 %v6770, %v4151
      %v6822 = vmul.f32 %v6774, %v4154
      %v6823 = vmul.f32 %v6778, %v4156
      %v6824 = vmul.f32 %v6782, %v4159
      %v6825 = vmul.f32 %v6786, %v4161
      %v6826 = vmul.f32 %v6790, %v4164
      %v6827 = vmul.f32 %v6794, %v4166
      %v6828 = vadd.f32 %v6636, %v6796
      %v6829 = vadd.f32 %v6637, %v6797
      %v6830 = vadd.f32 %v6638, %v6798
      %v6831 = vadd.f32 %v6639, %v6799
      %v6832 = vadd.f32 %v6640, %v6800
      %v6833 = vadd.f32 %v6641, %v6801
      %v6834 = vadd.f32 %v6642, %v6802
      %v6835 = vadd.f32 %v6643, %v6803
      %v6836 = vadd.f32 %v6644, %v6804
      %v6837 = vadd.f32 %v6645, %v6805
      %v6838 = vadd.f32 %v6646, %v6806
      %v6839 = vadd.f32 %v6647, %v6807
      %v6840 = vadd.f32 %v6648, %v6808
      %v6841 = vadd.f32 %v6649, %v6809
      %v6842 = vadd.f32 %v6650, %v6810
      %v6843 = vadd.f32 %v6651, %v6811
      %v6844 = vadd.f32 %v6652, %v6812
      %v6845 = vadd.f32 %v6653, %v6813
      %v6846 = vadd.f32 %v6654, %v6814
      %v6847 = vadd.f32 %v6655, %v6815
      %v6848 = vadd.f32 %v6656, %v6816
      %v6849 = vadd.f32 %v6657, %v6817
      %v6850 = vadd.f32 %v6658, %v6818
      %v6851 = vadd.f32 %v6659, %v6819
      %v6852 = vadd.f32 %v6660, %v6820
      %v6853 = vadd.f32 %v6661, %v6821
      %v6854 = vadd.f32 %v6662, %v6822
      %v6855 = vadd.f32 %v6663, %v6823
      %v6856 = vadd.f32 %v6664, %v6824
      %v6857 = vadd.f32 %v6665, %v6825
      %v6858 = vadd.f32 %v6666, %v6826
      %v6859 = vadd.f32 %v6667, %v6827
      %6860 = vset.pattern.permute.xlu0 12
      %6861 = vperm.xlu0 %6860, %v2172
      %v6862 = vpop.permute.xlu0 %6861
      %6864 = vset.pattern.permute.xlu0 12
      %6865 = vperm.xlu0 %6864, %v2173
      %v6866 = vpop.permute.xlu0 %6865
      %6868 = vset.pattern.permute.xlu0 12
      %6869 = vperm.xlu0 %6868, %v2174
      %v6870 = vpop.permute.xlu0 %6869
      %6872 = vset.pattern.permute.xlu0 12
      %6873 = vperm.xlu0 %6872, %v2175
      %v6874 = vpop.permute.xlu0 %6873
      %6876 = vset.pattern.permute.xlu0 12
      %6877 = vperm.xlu0 %6876, %v2176
      %v6878 = vpop.permute.xlu0 %6877
      %6880 = vset.pattern.permute.xlu0 12
      %6881 = vperm.xlu0 %6880, %v2177
      %v6882 = vpop.permute.xlu0 %6881
      %6884 = vset.pattern.permute.xlu0 12
      %6885 = vperm.xlu0 %6884, %v2178
      %v6886 = vpop.permute.xlu0 %6885
      %6888 = vset.pattern.permute.xlu0 12
      %6889 = vperm.xlu0 %6888, %v2179
      %v6890 = vpop.permute.xlu0 %6889
      %6892 = vset.pattern.permute.xlu0 12
      %6893 = vperm.xlu0 %6892, %v2180
      %v6894 = vpop.permute.xlu0 %6893
      %6896 = vset.pattern.permute.xlu0 12
      %6897 = vperm.xlu0 %6896, %v2181
      %v6898 = vpop.permute.xlu0 %6897
      %6900 = vset.pattern.permute.xlu0 12
      %6901 = vperm.xlu0 %6900, %v2182
      %v6902 = vpop.permute.xlu0 %6901
      %6904 = vset.pattern.permute.xlu0 12
      %6905 = vperm.xlu0 %6904, %v2183
      %v6906 = vpop.permute.xlu0 %6905
      %6908 = vset.pattern.permute.xlu0 12
      %6909 = vperm.xlu0 %6908, %v2184
      %v6910 = vpop.permute.xlu0 %6909
      %6912 = vset.pattern.permute.xlu0 12
      %6913 = vperm.xlu0 %6912, %v2185
      %v6914 = vpop.permute.xlu0 %6913
      %6916 = vset.pattern.permute.xlu0 12
      %6917 = vperm.xlu0 %6916, %v2186
      %v6918 = vpop.permute.xlu0 %6917
      %6920 = vset.pattern.permute.xlu0 12
      %6921 = vperm.xlu0 %6920, %v2187
      %v6922 = vpop.permute.xlu0 %6921
      %6924 = vset.pattern.permute.xlu0 12
      %6925 = vperm.xlu0 %6924, %v2188
      %v6926 = vpop.permute.xlu0 %6925
      %6928 = vset.pattern.permute.xlu0 12
      %6929 = vperm.xlu0 %6928, %v2189
      %v6930 = vpop.permute.xlu0 %6929
      %6932 = vset.pattern.permute.xlu0 12
      %6933 = vperm.xlu0 %6932, %v2190
      %v6934 = vpop.permute.xlu0 %6933
      %6936 = vset.pattern.permute.xlu0 12
      %6937 = vperm.xlu0 %6936, %v2191
      %v6938 = vpop.permute.xlu0 %6937
      %6940 = vset.pattern.permute.xlu0 12
      %6941 = vperm.xlu0 %6940, %v2192
      %v6942 = vpop.permute.xlu0 %6941
      %6944 = vset.pattern.permute.xlu0 12
      %6945 = vperm.xlu0 %6944, %v2193
      %v6946 = vpop.permute.xlu0 %6945
      %6948 = vset.pattern.permute.xlu0 12
      %6949 = vperm.xlu0 %6948, %v2194
      %v6950 = vpop.permute.xlu0 %6949
      %6952 = vset.pattern.permute.xlu0 12
      %6953 = vperm.xlu0 %6952, %v2195
      %v6954 = vpop.permute.xlu0 %6953
      %6956 = vset.pattern.permute.xlu0 12
      %6957 = vperm.xlu0 %6956, %v2196
      %v6958 = vpop.permute.xlu0 %6957
      %6960 = vset.pattern.permute.xlu0 12
      %6961 = vperm.xlu0 %6960, %v2197
      %v6962 = vpop.permute.xlu0 %6961
      %6964 = vset.pattern.permute.xlu0 12
      %6965 = vperm.xlu0 %6964, %v2198
      %v6966 = vpop.permute.xlu0 %6965
      %6968 = vset.pattern.permute.xlu0 12
      %6969 = vperm.xlu0 %6968, %v2199
      %v6970 = vpop.permute.xlu0 %6969
      %6972 = vset.pattern.permute.xlu0 12
      %6973 = vperm.xlu0 %6972, %v2200
      %v6974 = vpop.permute.xlu0 %6973
      %6976 = vset.pattern.permute.xlu0 12
      %6977 = vperm.xlu0 %6976, %v2201
      %v6978 = vpop.permute.xlu0 %6977
      %6980 = vset.pattern.permute.xlu0 12
      %6981 = vperm.xlu0 %6980, %v2202
      %v6982 = vpop.permute.xlu0 %6981
      %6984 = vset.pattern.permute.xlu0 12
      %6985 = vperm.xlu0 %6984, %v2203
      %v6986 = vpop.permute.xlu0 %6985
      %v6988 = vmul.f32 %v6862, %v4178
      %v6989 = vmul.f32 %v6866, %v4180
      %v6990 = vmul.f32 %v6870, %v4183
      %v6991 = vmul.f32 %v6874, %v4185
      %v6992 = vmul.f32 %v6878, %v4188
      %v6993 = vmul.f32 %v6882, %v4190
      %v6994 = vmul.f32 %v6886, %v4193
      %v6995 = vmul.f32 %v6890, %v4195
      %v6996 = vmul.f32 %v6894, %v4198
      %v6997 = vmul.f32 %v6898, %v4200
      %v6998 = vmul.f32 %v6902, %v4203
      %v6999 = vmul.f32 %v6906, %v4205
      %v7000 = vmul.f32 %v6910, %v4208
      %v7001 = vmul.f32 %v6914, %v4210
      %v7002 = vmul.f32 %v6918, %v4213
      %v7003 = vmul.f32 %v6922, %v4215
      %v7004 = vmul.f32 %v6926, %v4218
      %v7005 = vmul.f32 %v6930, %v4220
      %v7006 = vmul.f32 %v6934, %v4223
      %v7007 = vmul.f32 %v6938, %v4225
      %v7008 = vmul.f32 %v6942, %v4228
      %v7009 = vmul.f32 %v6946, %v4230
      %v7010 = vmul.f32 %v6950, %v4233
      %v7011 = vmul.f32 %v6954, %v4235
      %v7012 = vmul.f32 %v6958, %v4238
      %v7013 = vmul.f32 %v6962, %v4240
      %v7014 = vmul.f32 %v6966, %v4243
      %v7015 = vmul.f32 %v6970, %v4245
      %v7016 = vmul.f32 %v6974, %v4248
      %v7017 = vmul.f32 %v6978, %v4250
      %v7018 = vmul.f32 %v6982, %v4253
      %v7019 = vmul.f32 %v6986, %v4255
      %v7020 = vadd.f32 %v6828, %v6988
      %v7021 = vadd.f32 %v6829, %v6989
      %v7022 = vadd.f32 %v6830, %v6990
      %v7023 = vadd.f32 %v6831, %v6991
      %v7024 = vadd.f32 %v6832, %v6992
      %v7025 = vadd.f32 %v6833, %v6993
      %v7026 = vadd.f32 %v6834, %v6994
      %v7027 = vadd.f32 %v6835, %v6995
      %v7028 = vadd.f32 %v6836, %v6996
      %v7029 = vadd.f32 %v6837, %v6997
      %v7030 = vadd.f32 %v6838, %v6998
      %v7031 = vadd.f32 %v6839, %v6999
      %v7032 = vadd.f32 %v6840, %v7000
      %v7033 = vadd.f32 %v6841, %v7001
      %v7034 = vadd.f32 %v6842, %v7002
      %v7035 = vadd.f32 %v6843, %v7003
      %v7036 = vadd.f32 %v6844, %v7004
      %v7037 = vadd.f32 %v6845, %v7005
      %v7038 = vadd.f32 %v6846, %v7006
      %v7039 = vadd.f32 %v6847, %v7007
      %v7040 = vadd.f32 %v6848, %v7008
      %v7041 = vadd.f32 %v6849, %v7009
      %v7042 = vadd.f32 %v6850, %v7010
      %v7043 = vadd.f32 %v6851, %v7011
      %v7044 = vadd.f32 %v6852, %v7012
      %v7045 = vadd.f32 %v6853, %v7013
      %v7046 = vadd.f32 %v6854, %v7014
      %v7047 = vadd.f32 %v6855, %v7015
      %v7048 = vadd.f32 %v6856, %v7016
      %v7049 = vadd.f32 %v6857, %v7017
      %v7050 = vadd.f32 %v6858, %v7018
      %v7051 = vadd.f32 %v6859, %v7019
      %7052 = vset.pattern.permute.xlu0 13
      %7053 = vperm.xlu0 %7052, %v2172
      %v7054 = vpop.permute.xlu0 %7053
      %7056 = vset.pattern.permute.xlu0 13
      %7057 = vperm.xlu0 %7056, %v2173
      %v7058 = vpop.permute.xlu0 %7057
      %7060 = vset.pattern.permute.xlu0 13
      %7061 = vperm.xlu0 %7060, %v2174
      %v7062 = vpop.permute.xlu0 %7061
      %7064 = vset.pattern.permute.xlu0 13
      %7065 = vperm.xlu0 %7064, %v2175
      %v7066 = vpop.permute.xlu0 %7065
      %7068 = vset.pattern.permute.xlu0 13
      %7069 = vperm.xlu0 %7068, %v2176
      %v7070 = vpop.permute.xlu0 %7069
      %7072 = vset.pattern.permute.xlu0 13
      %7073 = vperm.xlu0 %7072, %v2177
      %v7074 = vpop.permute.xlu0 %7073
      %7076 = vset.pattern.permute.xlu0 13
      %7077 = vperm.xlu0 %7076, %v2178
      %v7078 = vpop.permute.xlu0 %7077
      %7080 = vset.pattern.permute.xlu0 13
      %7081 = vperm.xlu0 %7080, %v2179
      %v7082 = vpop.permute.xlu0 %7081
      %7084 = vset.pattern.permute.xlu0 13
      %7085 = vperm.xlu0 %7084, %v2180
      %v7086 = vpop.permute.xlu0 %7085
      %7088 = vset.pattern.permute.xlu0 13
      %7089 = vperm.xlu0 %7088, %v2181
      %v7090 = vpop.permute.xlu0 %7089
      %7092 = vset.pattern.permute.xlu0 13
      %7093 = vperm.xlu0 %7092, %v2182
      %v7094 = vpop.permute.xlu0 %7093
      %7096 = vset.pattern.permute.xlu0 13
      %7097 = vperm.xlu0 %7096, %v2183
      %v7098 = vpop.permute.xlu0 %7097
      %7100 = vset.pattern.permute.xlu0 13
      %7101 = vperm.xlu0 %7100, %v2184
      %v7102 = vpop.permute.xlu0 %7101
      %7104 = vset.pattern.permute.xlu0 13
      %7105 = vperm.xlu0 %7104, %v2185
      %v7106 = vpop.permute.xlu0 %7105
      %7108 = vset.pattern.permute.xlu0 13
      %7109 = vperm.xlu0 %7108, %v2186
      %v7110 = vpop.permute.xlu0 %7109
      %7112 = vset.pattern.permute.xlu0 13
      %7113 = vperm.xlu0 %7112, %v2187
      %v7114 = vpop.permute.xlu0 %7113
      %7116 = vset.pattern.permute.xlu0 13
      %7117 = vperm.xlu0 %7116, %v2188
      %v7118 = vpop.permute.xlu0 %7117
      %7120 = vset.pattern.permute.xlu0 13
      %7121 = vperm.xlu0 %7120, %v2189
      %v7122 = vpop.permute.xlu0 %7121
      %7124 = vset.pattern.permute.xlu0 13
      %7125 = vperm.xlu0 %7124, %v2190
      %v7126 = vpop.permute.xlu0 %7125
      %7128 = vset.pattern.permute.xlu0 13
      %7129 = vperm.xlu0 %7128, %v2191
      %v7130 = vpop.permute.xlu0 %7129
      %7132 = vset.pattern.permute.xlu0 13
      %7133 = vperm.xlu0 %7132, %v2192
      %v7134 = vpop.permute.xlu0 %7133
      %7136 = vset.pattern.permute.xlu0 13
      %7137 = vperm.xlu0 %7136, %v2193
      %v7138 = vpop.permute.xlu0 %7137
      %7140 = vset.pattern.permute.xlu0 13
      %7141 = vperm.xlu0 %7140, %v2194
      %v7142 = vpop.permute.xlu0 %7141
      %7144 = vset.pattern.permute.xlu0 13
      %7145 = vperm.xlu0 %7144, %v2195
      %v7146 = vpop.permute.xlu0 %7145
      %7148 = vset.pattern.permute.xlu0 13
      %7149 = vperm.xlu0 %7148, %v2196
      %v7150 = vpop.permute.xlu0 %7149
      %7152 = vset.pattern.permute.xlu0 13
      %7153 = vperm.xlu0 %7152, %v2197
      %v7154 = vpop.permute.xlu0 %7153
      %7156 = vset.pattern.permute.xlu0 13
      %7157 = vperm.xlu0 %7156, %v2198
      %v7158 = vpop.permute.xlu0 %7157
      %7160 = vset.pattern.permute.xlu0 13
      %7161 = vperm.xlu0 %7160, %v2199
      %v7162 = vpop.permute.xlu0 %7161
      %7164 = vset.pattern.permute.xlu0 13
      %7165 = vperm.xlu0 %7164, %v2200
      %v7166 = vpop.permute.xlu0 %7165
      %7168 = vset.pattern.permute.xlu0 13
      %7169 = vperm.xlu0 %7168, %v2201
      %v7170 = vpop.permute.xlu0 %7169
      %7172 = vset.pattern.permute.xlu0 13
      %7173 = vperm.xlu0 %7172, %v2202
      %v7174 = vpop.permute.xlu0 %7173
      %7176 = vset.pattern.permute.xlu0 13
      %7177 = vperm.xlu0 %7176, %v2203
      %v7178 = vpop.permute.xlu0 %7177
      %v7180 = vmul.f32 %v7054, %v4267
      %v7181 = vmul.f32 %v7058, %v4269
      %v7182 = vmul.f32 %v7062, %v4272
      %v7183 = vmul.f32 %v7066, %v4274
      %v7184 = vmul.f32 %v7070, %v4277
      %v7185 = vmul.f32 %v7074, %v4279
      %v7186 = vmul.f32 %v7078, %v4282
      %v7187 = vmul.f32 %v7082, %v4284
      %v7188 = vmul.f32 %v7086, %v4287
      %v7189 = vmul.f32 %v7090, %v4289
      %v7190 = vmul.f32 %v7094, %v4292
      %v7191 = vmul.f32 %v7098, %v4294
      %v7192 = vmul.f32 %v7102, %v4297
      %v7193 = vmul.f32 %v7106, %v4299
      %v7194 = vmul.f32 %v7110, %v4302
      %v7195 = vmul.f32 %v7114, %v4304
      %v7196 = vmul.f32 %v7118, %v4307
      %v7197 = vmul.f32 %v7122, %v4309
      %v7198 = vmul.f32 %v7126, %v4312
      %v7199 = vmul.f32 %v7130, %v4314
      %v7200 = vmul.f32 %v7134, %v4317
      %v7201 = vmul.f32 %v7138, %v4319
      %v7202 = vmul.f32 %v7142, %v4322
      %v7203 = vmul.f32 %v7146, %v4324
      %v7204 = vmul.f32 %v7150, %v4327
      %v7205 = vmul.f32 %v7154, %v4329
      %v7206 = vmul.f32 %v7158, %v4332
      %v7207 = vmul.f32 %v7162, %v4334
      %v7208 = vmul.f32 %v7166, %v4337
      %v7209 = vmul.f32 %v7170, %v4339
      %v7210 = vmul.f32 %v7174, %v4342
      %v7211 = vmul.f32 %v7178, %v4344
      %v7212 = vadd.f32 %v7020, %v7180
      %v7213 = vadd.f32 %v7021, %v7181
      %v7214 = vadd.f32 %v7022, %v7182
      %v7215 = vadd.f32 %v7023, %v7183
      %v7216 = vadd.f32 %v7024, %v7184
      %v7217 = vadd.f32 %v7025, %v7185
      %v7218 = vadd.f32 %v7026, %v7186
      %v7219 = vadd.f32 %v7027, %v7187
      %v7220 = vadd.f32 %v7028, %v7188
      %v7221 = vadd.f32 %v7029, %v7189
      %v7222 = vadd.f32 %v7030, %v7190
      %v7223 = vadd.f32 %v7031, %v7191
      %v7224 = vadd.f32 %v7032, %v7192
      %v7225 = vadd.f32 %v7033, %v7193
      %v7226 = vadd.f32 %v7034, %v7194
      %v7227 = vadd.f32 %v7035, %v7195
      %v7228 = vadd.f32 %v7036, %v7196
      %v7229 = vadd.f32 %v7037, %v7197
      %v7230 = vadd.f32 %v7038, %v7198
      %v7231 = vadd.f32 %v7039, %v7199
      %v7232 = vadd.f32 %v7040, %v7200
      %v7233 = vadd.f32 %v7041, %v7201
      %v7234 = vadd.f32 %v7042, %v7202
      %v7235 = vadd.f32 %v7043, %v7203
      %v7236 = vadd.f32 %v7044, %v7204
      %v7237 = vadd.f32 %v7045, %v7205
      %v7238 = vadd.f32 %v7046, %v7206
      %v7239 = vadd.f32 %v7047, %v7207
      %v7240 = vadd.f32 %v7048, %v7208
      %v7241 = vadd.f32 %v7049, %v7209
      %v7242 = vadd.f32 %v7050, %v7210
      %v7243 = vadd.f32 %v7051, %v7211
      %7244 = vset.pattern.permute.xlu0 14
      %7245 = vperm.xlu0 %7244, %v2172
      %v7246 = vpop.permute.xlu0 %7245
      %7248 = vset.pattern.permute.xlu0 14
      %7249 = vperm.xlu0 %7248, %v2173
      %v7250 = vpop.permute.xlu0 %7249
      %7252 = vset.pattern.permute.xlu0 14
      %7253 = vperm.xlu0 %7252, %v2174
      %v7254 = vpop.permute.xlu0 %7253
      %7256 = vset.pattern.permute.xlu0 14
      %7257 = vperm.xlu0 %7256, %v2175
      %v7258 = vpop.permute.xlu0 %7257
      %7260 = vset.pattern.permute.xlu0 14
      %7261 = vperm.xlu0 %7260, %v2176
      %v7262 = vpop.permute.xlu0 %7261
      %7264 = vset.pattern.permute.xlu0 14
      %7265 = vperm.xlu0 %7264, %v2177
      %v7266 = vpop.permute.xlu0 %7265
      %7268 = vset.pattern.permute.xlu0 14
      %7269 = vperm.xlu0 %7268, %v2178
      %v7270 = vpop.permute.xlu0 %7269
      %7272 = vset.pattern.permute.xlu0 14
      %7273 = vperm.xlu0 %7272, %v2179
      %v7274 = vpop.permute.xlu0 %7273
      %7276 = vset.pattern.permute.xlu0 14
      %7277 = vperm.xlu0 %7276, %v2180
      %v7278 = vpop.permute.xlu0 %7277
      %7280 = vset.pattern.permute.xlu0 14
      %7281 = vperm.xlu0 %7280, %v2181
      %v7282 = vpop.permute.xlu0 %7281
      %7284 = vset.pattern.permute.xlu0 14
      %7285 = vperm.xlu0 %7284, %v2182
      %v7286 = vpop.permute.xlu0 %7285
      %7288 = vset.pattern.permute.xlu0 14
      %7289 = vperm.xlu0 %7288, %v2183
      %v7290 = vpop.permute.xlu0 %7289
      %7292 = vset.pattern.permute.xlu0 14
      %7293 = vperm.xlu0 %7292, %v2184
      %v7294 = vpop.permute.xlu0 %7293
      %7296 = vset.pattern.permute.xlu0 14
      %7297 = vperm.xlu0 %7296, %v2185
      %v7298 = vpop.permute.xlu0 %7297
      %7300 = vset.pattern.permute.xlu0 14
      %7301 = vperm.xlu0 %7300, %v2186
      %v7302 = vpop.permute.xlu0 %7301
      %7304 = vset.pattern.permute.xlu0 14
      %7305 = vperm.xlu0 %7304, %v2187
      %v7306 = vpop.permute.xlu0 %7305
      %7308 = vset.pattern.permute.xlu0 14
      %7309 = vperm.xlu0 %7308, %v2188
      %v7310 = vpop.permute.xlu0 %7309
      %7312 = vset.pattern.permute.xlu0 14
      %7313 = vperm.xlu0 %7312, %v2189
      %v7314 = vpop.permute.xlu0 %7313
      %7316 = vset.pattern.permute.xlu0 14
      %7317 = vperm.xlu0 %7316, %v2190
      %v7318 = vpop.permute.xlu0 %7317
      %7320 = vset.pattern.permute.xlu0 14
      %7321 = vperm.xlu0 %7320, %v2191
      %v7322 = vpop.permute.xlu0 %7321
      %7324 = vset.pattern.permute.xlu0 14
      %7325 = vperm.xlu0 %7324, %v2192
      %v7326 = vpop.permute.xlu0 %7325
      %7328 = vset.pattern.permute.xlu0 14
      %7329 = vperm.xlu0 %7328, %v2193
      %v7330 = vpop.permute.xlu0 %7329
      %7332 = vset.pattern.permute.xlu0 14
      %7333 = vperm.xlu0 %7332, %v2194
      %v7334 = vpop.permute.xlu0 %7333
      %7336 = vset.pattern.permute.xlu0 14
      %7337 = vperm.xlu0 %7336, %v2195
      %v7338 = vpop.permute.xlu0 %7337
      %7340 = vset.pattern.permute.xlu0 14
      %7341 = vperm.xlu0 %7340, %v2196
      %v7342 = vpop.permute.xlu0 %7341
      %7344 = vset.pattern.permute.xlu0 14
      %7345 = vperm.xlu0 %7344, %v2197
      %v7346 = vpop.permute.xlu0 %7345
      %7348 = vset.pattern.permute.xlu0 14
      %7349 = vperm.xlu0 %7348, %v2198
      %v7350 = vpop.permute.xlu0 %7349
      %7352 = vset.pattern.permute.xlu0 14
      %7353 = vperm.xlu0 %7352, %v2199
      %v7354 = vpop.permute.xlu0 %7353
      %7356 = vset.pattern.permute.xlu0 14
      %7357 = vperm.xlu0 %7356, %v2200
      %v7358 = vpop.permute.xlu0 %7357
      %7360 = vset.pattern.permute.xlu0 14
      %7361 = vperm.xlu0 %7360, %v2201
      %v7362 = vpop.permute.xlu0 %7361
      %7364 = vset.pattern.permute.xlu0 14
      %7365 = vperm.xlu0 %7364, %v2202
      %v7366 = vpop.permute.xlu0 %7365
      %7368 = vset.pattern.permute.xlu0 14
      %7369 = vperm.xlu0 %7368, %v2203
      %v7370 = vpop.permute.xlu0 %7369
      %v7372 = vmul.f32 %v7246, %v4356
      %v7373 = vmul.f32 %v7250, %v4358
      %v7374 = vmul.f32 %v7254, %v4361
      %v7375 = vmul.f32 %v7258, %v4363
      %v7376 = vmul.f32 %v7262, %v4366
      %v7377 = vmul.f32 %v7266, %v4368
      %v7378 = vmul.f32 %v7270, %v4371
      %v7379 = vmul.f32 %v7274, %v4373
      %v7380 = vmul.f32 %v7278, %v4376
      %v7381 = vmul.f32 %v7282, %v4378
      %v7382 = vmul.f32 %v7286, %v4381
      %v7383 = vmul.f32 %v7290, %v4383
      %v7384 = vmul.f32 %v7294, %v4386
      %v7385 = vmul.f32 %v7298, %v4388
      %v7386 = vmul.f32 %v7302, %v4391
      %v7387 = vmul.f32 %v7306, %v4393
      %v7388 = vmul.f32 %v7310, %v4396
      %v7389 = vmul.f32 %v7314, %v4398
      %v7390 = vmul.f32 %v7318, %v4401
      %v7391 = vmul.f32 %v7322, %v4403
      %v7392 = vmul.f32 %v7326, %v4406
      %v7393 = vmul.f32 %v7330, %v4408
      %v7394 = vmul.f32 %v7334, %v4411
      %v7395 = vmul.f32 %v7338, %v4413
      %v7396 = vmul.f32 %v7342, %v4416
      %v7397 = vmul.f32 %v7346, %v4418
      %v7398 = vmul.f32 %v7350, %v4421
      %v7399 = vmul.f32 %v7354, %v4423
      %v7400 = vmul.f32 %v7358, %v4426
      %v7401 = vmul.f32 %v7362, %v4428
      %v7402 = vmul.f32 %v7366, %v4431
      %v7403 = vmul.f32 %v7370, %v4433
      %v7404 = vadd.f32 %v7212, %v7372
      %v7405 = vadd.f32 %v7213, %v7373
      %v7406 = vadd.f32 %v7214, %v7374
      %v7407 = vadd.f32 %v7215, %v7375
      %v7408 = vadd.f32 %v7216, %v7376
      %v7409 = vadd.f32 %v7217, %v7377
      %v7410 = vadd.f32 %v7218, %v7378
      %v7411 = vadd.f32 %v7219, %v7379
      %v7412 = vadd.f32 %v7220, %v7380
      %v7413 = vadd.f32 %v7221, %v7381
      %v7414 = vadd.f32 %v7222, %v7382
      %v7415 = vadd.f32 %v7223, %v7383
      %v7416 = vadd.f32 %v7224, %v7384
      %v7417 = vadd.f32 %v7225, %v7385
      %v7418 = vadd.f32 %v7226, %v7386
      %v7419 = vadd.f32 %v7227, %v7387
      %v7420 = vadd.f32 %v7228, %v7388
      %v7421 = vadd.f32 %v7229, %v7389
      %v7422 = vadd.f32 %v7230, %v7390
      %v7423 = vadd.f32 %v7231, %v7391
      %v7424 = vadd.f32 %v7232, %v7392
      %v7425 = vadd.f32 %v7233, %v7393
      %v7426 = vadd.f32 %v7234, %v7394
      %v7427 = vadd.f32 %v7235, %v7395
      %v7428 = vadd.f32 %v7236, %v7396
      %v7429 = vadd.f32 %v7237, %v7397
      %v7430 = vadd.f32 %v7238, %v7398
      %v7431 = vadd.f32 %v7239, %v7399
      %v7432 = vadd.f32 %v7240, %v7400
      %v7433 = vadd.f32 %v7241, %v7401
      %v7434 = vadd.f32 %v7242, %v7402
      %v7435 = vadd.f32 %v7243, %v7403
      %7436 = vset.pattern.permute.xlu0 15
      %7437 = vperm.xlu0 %7436, %v2172
      %v7438 = vpop.permute.xlu0 %7437
      %7440 = vset.pattern.permute.xlu0 15
      %7441 = vperm.xlu0 %7440, %v2173
      %v7442 = vpop.permute.xlu0 %7441
      %7444 = vset.pattern.permute.xlu0 15
      %7445 = vperm.xlu0 %7444, %v2174
      %v7446 = vpop.permute.xlu0 %7445
      %7448 = vset.pattern.permute.xlu0 15
      %7449 = vperm.xlu0 %7448, %v2175
      %v7450 = vpop.permute.xlu0 %7449
      %7452 = vset.pattern.permute.xlu0 15
      %7453 = vperm.xlu0 %7452, %v2176
      %v7454 = vpop.permute.xlu0 %7453
      %7456 = vset.pattern.permute.xlu0 15
      %7457 = vperm.xlu0 %7456, %v2177
      %v7458 = vpop.permute.xlu0 %7457
      %7460 = vset.pattern.permute.xlu0 15
      %7461 = vperm.xlu0 %7460, %v2178
      %v7462 = vpop.permute.xlu0 %7461
      %7464 = vset.pattern.permute.xlu0 15
      %7465 = vperm.xlu0 %7464, %v2179
      %v7466 = vpop.permute.xlu0 %7465
      %7468 = vset.pattern.permute.xlu0 15
      %7469 = vperm.xlu0 %7468, %v2180
      %v7470 = vpop.permute.xlu0 %7469
      %7472 = vset.pattern.permute.xlu0 15
      %7473 = vperm.xlu0 %7472, %v2181
      %v7474 = vpop.permute.xlu0 %7473
      %7476 = vset.pattern.permute.xlu0 15
      %7477 = vperm.xlu0 %7476, %v2182
      %v7478 = vpop.permute.xlu0 %7477
      %7480 = vset.pattern.permute.xlu0 15
      %7481 = vperm.xlu0 %7480, %v2183
      %v7482 = vpop.permute.xlu0 %7481
      %7484 = vset.pattern.permute.xlu0 15
      %7485 = vperm.xlu0 %7484, %v2184
      %v7486 = vpop.permute.xlu0 %7485
      %7488 = vset.pattern.permute.xlu0 15
      %7489 = vperm.xlu0 %7488, %v2185
      %v7490 = vpop.permute.xlu0 %7489
      %7492 = vset.pattern.permute.xlu0 15
      %7493 = vperm.xlu0 %7492, %v2186
      %v7494 = vpop.permute.xlu0 %7493
      %7496 = vset.pattern.permute.xlu0 15
      %7497 = vperm.xlu0 %7496, %v2187
      %v7498 = vpop.permute.xlu0 %7497
      %7500 = vset.pattern.permute.xlu0 15
      %7501 = vperm.xlu0 %7500, %v2188
      %v7502 = vpop.permute.xlu0 %7501
      %7504 = vset.pattern.permute.xlu0 15
      %7505 = vperm.xlu0 %7504, %v2189
      %v7506 = vpop.permute.xlu0 %7505
      %7508 = vset.pattern.permute.xlu0 15
      %7509 = vperm.xlu0 %7508, %v2190
      %v7510 = vpop.permute.xlu0 %7509
      %7512 = vset.pattern.permute.xlu0 15
      %7513 = vperm.xlu0 %7512, %v2191
      %v7514 = vpop.permute.xlu0 %7513
      %7516 = vset.pattern.permute.xlu0 15
      %7517 = vperm.xlu0 %7516, %v2192
      %v7518 = vpop.permute.xlu0 %7517
      %7520 = vset.pattern.permute.xlu0 15
      %7521 = vperm.xlu0 %7520, %v2193
      %v7522 = vpop.permute.xlu0 %7521
      %7524 = vset.pattern.permute.xlu0 15
      %7525 = vperm.xlu0 %7524, %v2194
      %v7526 = vpop.permute.xlu0 %7525
      %7528 = vset.pattern.permute.xlu0 15
      %7529 = vperm.xlu0 %7528, %v2195
      %v7530 = vpop.permute.xlu0 %7529
      %7532 = vset.pattern.permute.xlu0 15
      %7533 = vperm.xlu0 %7532, %v2196
      %v7534 = vpop.permute.xlu0 %7533
      %7536 = vset.pattern.permute.xlu0 15
      %7537 = vperm.xlu0 %7536, %v2197
      %v7538 = vpop.permute.xlu0 %7537
      %7540 = vset.pattern.permute.xlu0 15
      %7541 = vperm.xlu0 %7540, %v2198
      %v7542 = vpop.permute.xlu0 %7541
      %7544 = vset.pattern.permute.xlu0 15
      %7545 = vperm.xlu0 %7544, %v2199
      %v7546 = vpop.permute.xlu0 %7545
      %7548 = vset.pattern.permute.xlu0 15
      %7549 = vperm.xlu0 %7548, %v2200
      %v7550 = vpop.permute.xlu0 %7549
      %7552 = vset.pattern.permute.xlu0 15
      %7553 = vperm.xlu0 %7552, %v2201
      %v7554 = vpop.permute.xlu0 %7553
      %7556 = vset.pattern.permute.xlu0 15
      %7557 = vperm.xlu0 %7556, %v2202
      %v7558 = vpop.permute.xlu0 %7557
      %7560 = vset.pattern.permute.xlu0 15
      %7561 = vperm.xlu0 %7560, %v2203
      %v7562 = vpop.permute.xlu0 %7561
      %v7564 = vmul.f32 %v7438, %v4445
      %v7565 = vmul.f32 %v7442, %v4447
      %v7566 = vmul.f32 %v7446, %v4450
      %v7567 = vmul.f32 %v7450, %v4452
      %v7568 = vmul.f32 %v7454, %v4455
      %v7569 = vmul.f32 %v7458, %v4457
      %v7570 = vmul.f32 %v7462, %v4460
      %v7571 = vmul.f32 %v7466, %v4462
      %v7572 = vmul.f32 %v7470, %v4465
      %v7573 = vmul.f32 %v7474, %v4467
      %v7574 = vmul.f32 %v7478, %v4470
      %v7575 = vmul.f32 %v7482, %v4472
      %v7576 = vmul.f32 %v7486, %v4475
      %v7577 = vmul.f32 %v7490, %v4477
      %v7578 = vmul.f32 %v7494, %v4480
      %v7579 = vmul.f32 %v7498, %v4482
      %v7580 = vmul.f32 %v7502, %v4485
      %v7581 = vmul.f32 %v7506, %v4487
      %v7582 = vmul.f32 %v7510, %v4490
      %v7583 = vmul.f32 %v7514, %v4492
      %v7584 = vmul.f32 %v7518, %v4495
      %v7585 = vmul.f32 %v7522, %v4497
      %v7586 = vmul.f32 %v7526, %v4500
      %v7587 = vmul.f32 %v7530, %v4502
      %v7588 = vmul.f32 %v7534, %v4505
      %v7589 = vmul.f32 %v7538, %v4507
      %v7590 = vmul.f32 %v7542, %v4510
      %v7591 = vmul.f32 %v7546, %v4512
      %v7592 = vmul.f32 %v7550, %v4515
      %v7593 = vmul.f32 %v7554, %v4517
      %v7594 = vmul.f32 %v7558, %v4520
      %v7595 = vmul.f32 %v7562, %v4522
      %v7596 = vadd.f32 %v7404, %v7564
      %v7597 = vadd.f32 %v7405, %v7565
      %v7598 = vadd.f32 %v7406, %v7566
      %v7599 = vadd.f32 %v7407, %v7567
      %v7600 = vadd.f32 %v7408, %v7568
      %v7601 = vadd.f32 %v7409, %v7569
      %v7602 = vadd.f32 %v7410, %v7570
      %v7603 = vadd.f32 %v7411, %v7571
      %v7604 = vadd.f32 %v7412, %v7572
      %v7605 = vadd.f32 %v7413, %v7573
      %v7606 = vadd.f32 %v7414, %v7574
      %v7607 = vadd.f32 %v7415, %v7575
      %v7608 = vadd.f32 %v7416, %v7576
      %v7609 = vadd.f32 %v7417, %v7577
      %v7610 = vadd.f32 %v7418, %v7578
      %v7611 = vadd.f32 %v7419, %v7579
      %v7612 = vadd.f32 %v7420, %v7580
      %v7613 = vadd.f32 %v7421, %v7581
      %v7614 = vadd.f32 %v7422, %v7582
      %v7615 = vadd.f32 %v7423, %v7583
      %v7616 = vadd.f32 %v7424, %v7584
      %v7617 = vadd.f32 %v7425, %v7585
      %v7618 = vadd.f32 %v7426, %v7586
      %v7619 = vadd.f32 %v7427, %v7587
      %v7620 = vadd.f32 %v7428, %v7588
      %v7621 = vadd.f32 %v7429, %v7589
      %v7622 = vadd.f32 %v7430, %v7590
      %v7623 = vadd.f32 %v7431, %v7591
      %v7624 = vadd.f32 %v7432, %v7592
      %v7625 = vadd.f32 %v7433, %v7593
      %v7626 = vadd.f32 %v7434, %v7594
      %v7627 = vadd.f32 %v7435, %v7595
      %v7628 = vld [vmem:[#allocation5] sm:$0xff]
      %v7629 = vld [vmem:[#allocation5 + $0x8] sm:$0xff]
      %v7630 = vld [vmem:[#allocation5 + $0x10] sm:$0xff]
      %v7631 = vld [vmem:[#allocation5 + $0x18] sm:$0xff]
      %v7632 = vld [vmem:[#allocation5 + $0x20] sm:$0xff]
      %v7633 = vld [vmem:[#allocation5 + $0x28] sm:$0xff]
      %v7634 = vld [vmem:[#allocation5 + $0x30] sm:$0xff]
      %v7635 = vld [vmem:[#allocation5 + $0x38] sm:$0xff]
      %v7636 = vld [vmem:[#allocation5 + $0x40] sm:$0xff]
      %v7637 = vld [vmem:[#allocation5 + $0x48] sm:$0xff]
      %v7638 = vld [vmem:[#allocation5 + $0x50] sm:$0xff]
      %v7639 = vld [vmem:[#allocation5 + $0x58] sm:$0xff]
      %v7640 = vld [vmem:[#allocation5 + $0x60] sm:$0xff]
      %v7641 = vld [vmem:[#allocation5 + $0x68] sm:$0xff]
      %v7642 = vld [vmem:[#allocation5 + $0x70] sm:$0xff]
      %v7643 = vld [vmem:[#allocation5 + $0x78] sm:$0xff]
      %v7644 = vld [vmem:[#allocation5 + $0x80] sm:$0xff]
      %v7645 = vld [vmem:[#allocation5 + $0x88] sm:$0xff]
      %v7646 = vld [vmem:[#allocation5 + $0x90] sm:$0xff]
      %v7647 = vld [vmem:[#allocation5 + $0x98] sm:$0xff]
      %v7648 = vld [vmem:[#allocation5 + $0xa0] sm:$0xff]
      %v7649 = vld [vmem:[#allocation5 + $0xa8] sm:$0xff]
      %v7650 = vld [vmem:[#allocation5 + $0xb0] sm:$0xff]
      %v7651 = vld [vmem:[#allocation5 + $0xb8] sm:$0xff]
      %v7652 = vld [vmem:[#allocation5 + $0xc0] sm:$0xff]
      %v7653 = vld [vmem:[#allocation5 + $0xc8] sm:$0xff]
      %v7654 = vld [vmem:[#allocation5 + $0xd0] sm:$0xff]
      %v7655 = vld [vmem:[#allocation5 + $0xd8] sm:$0xff]
      %v7656 = vld [vmem:[#allocation5 + $0xe0] sm:$0xff]
      %v7657 = vld [vmem:[#allocation5 + $0xe8] sm:$0xff]
      %v7658 = vld [vmem:[#allocation5 + $0xf0] sm:$0xff]
      %v7659 = vld [vmem:[#allocation5 + $0xf8] sm:$0xff]
      %7661 = vset.pattern.permute.xlu0 2
      %7662 = vperm.xlu0 %7661, %v1791
      %v7663 = vpop.permute.xlu0 %7662
      %7666 = vset.pattern.permute.xlu0 2
      %7667 = vperm.xlu0 %7666, %v1792
      %v7668 = vpop.permute.xlu0 %7667
      %7671 = vset.pattern.permute.xlu0 2
      %7672 = vperm.xlu0 %7671, %v1793
      %v7673 = vpop.permute.xlu0 %7672
      %7676 = vset.pattern.permute.xlu0 2
      %7677 = vperm.xlu0 %7676, %v1794
      %v7678 = vpop.permute.xlu0 %7677
      %7681 = vset.pattern.permute.xlu0 2
      %7682 = vperm.xlu0 %7681, %v1795
      %v7683 = vpop.permute.xlu0 %7682
      %7686 = vset.pattern.permute.xlu0 2
      %7687 = vperm.xlu0 %7686, %v1796
      %v7688 = vpop.permute.xlu0 %7687
      %7691 = vset.pattern.permute.xlu0 2
      %7692 = vperm.xlu0 %7691, %v1797
      %v7693 = vpop.permute.xlu0 %7692
      %7696 = vset.pattern.permute.xlu0 2
      %7697 = vperm.xlu0 %7696, %v1798
      %v7698 = vpop.permute.xlu0 %7697
      %7701 = vset.pattern.permute.xlu0 2
      %7702 = vperm.xlu0 %7701, %v1799
      %v7703 = vpop.permute.xlu0 %7702
      %7706 = vset.pattern.permute.xlu0 2
      %7707 = vperm.xlu0 %7706, %v1800
      %v7708 = vpop.permute.xlu0 %7707
      %7711 = vset.pattern.permute.xlu0 2
      %7712 = vperm.xlu0 %7711, %v1801
      %v7713 = vpop.permute.xlu0 %7712
      %7716 = vset.pattern.permute.xlu0 2
      %7717 = vperm.xlu0 %7716, %v1802
      %v7718 = vpop.permute.xlu0 %7717
      %7721 = vset.pattern.permute.xlu0 2
      %7722 = vperm.xlu0 %7721, %v1803
      %v7723 = vpop.permute.xlu0 %7722
      %7726 = vset.pattern.permute.xlu0 2
      %7727 = vperm.xlu0 %7726, %v1804
      %v7728 = vpop.permute.xlu0 %7727
      %7731 = vset.pattern.permute.xlu0 2
      %7732 = vperm.xlu0 %7731, %v1805
      %v7733 = vpop.permute.xlu0 %7732
      %7736 = vset.pattern.permute.xlu0 2
      %7737 = vperm.xlu0 %7736, %v1806
      %v7738 = vpop.permute.xlu0 %7737
      %7741 = vset.pattern.permute.xlu0 2
      %7742 = vperm.xlu0 %7741, %v1807
      %v7743 = vpop.permute.xlu0 %7742
      %7746 = vset.pattern.permute.xlu0 2
      %7747 = vperm.xlu0 %7746, %v1808
      %v7748 = vpop.permute.xlu0 %7747
      %7751 = vset.pattern.permute.xlu0 2
      %7752 = vperm.xlu0 %7751, %v1809
      %v7753 = vpop.permute.xlu0 %7752
      %7756 = vset.pattern.permute.xlu0 2
      %7757 = vperm.xlu0 %7756, %v1810
      %v7758 = vpop.permute.xlu0 %7757
      %7761 = vset.pattern.permute.xlu0 2
      %7762 = vperm.xlu0 %7761, %v1811
      %v7763 = vpop.permute.xlu0 %7762
      %7766 = vset.pattern.permute.xlu0 2
      %7767 = vperm.xlu0 %7766, %v1812
      %v7768 = vpop.permute.xlu0 %7767
      %7771 = vset.pattern.permute.xlu0 2
      %7772 = vperm.xlu0 %7771, %v1813
      %v7773 = vpop.permute.xlu0 %7772
      %7776 = vset.pattern.permute.xlu0 2
      %7777 = vperm.xlu0 %7776, %v1814
      %v7778 = vpop.permute.xlu0 %7777
      %7781 = vset.pattern.permute.xlu0 2
      %7782 = vperm.xlu0 %7781, %v1815
      %v7783 = vpop.permute.xlu0 %7782
      %7786 = vset.pattern.permute.xlu0 2
      %7787 = vperm.xlu0 %7786, %v1816
      %v7788 = vpop.permute.xlu0 %7787
      %7791 = vset.pattern.permute.xlu0 2
      %7792 = vperm.xlu0 %7791, %v1817
      %v7793 = vpop.permute.xlu0 %7792
      %7796 = vset.pattern.permute.xlu0 2
      %7797 = vperm.xlu0 %7796, %v1818
      %v7798 = vpop.permute.xlu0 %7797
      %7801 = vset.pattern.permute.xlu0 2
      %7802 = vperm.xlu0 %7801, %v1819
      %v7803 = vpop.permute.xlu0 %7802
      %7806 = vset.pattern.permute.xlu0 2
      %7807 = vperm.xlu0 %7806, %v1820
      %v7808 = vpop.permute.xlu0 %7807
      %7811 = vset.pattern.permute.xlu0 2
      %7812 = vperm.xlu0 %7811, %v1821
      %v7813 = vpop.permute.xlu0 %7812
      %7816 = vset.pattern.permute.xlu0 2
      %7817 = vperm.xlu0 %7816, %v1822
      %v7818 = vpop.permute.xlu0 %7817
      %v7820 = vmul.f32 %v7663, %v7596
      %v7821 = vmul.f32 %v7668, %v7597
      %v7822 = vmul.f32 %v7673, %v7598
      %v7823 = vmul.f32 %v7678, %v7599
      %v7824 = vmul.f32 %v7683, %v7600
      %v7825 = vmul.f32 %v7688, %v7601
      %v7826 = vmul.f32 %v7693, %v7602
      %v7827 = vmul.f32 %v7698, %v7603
      %v7828 = vmul.f32 %v7703, %v7604
      %v7829 = vmul.f32 %v7708, %v7605
      %v7830 = vmul.f32 %v7713, %v7606
      %v7831 = vmul.f32 %v7718, %v7607
      %v7832 = vmul.f32 %v7723, %v7608
      %v7833 = vmul.f32 %v7728, %v7609
      %v7834 = vmul.f32 %v7733, %v7610
      %v7835 = vmul.f32 %v7738, %v7611
      %v7836 = vmul.f32 %v7743, %v7612
      %v7837 = vmul.f32 %v7748, %v7613
      %v7838 = vmul.f32 %v7753, %v7614
      %v7839 = vmul.f32 %v7758, %v7615
      %v7840 = vmul.f32 %v7763, %v7616
      %v7841 = vmul.f32 %v7768, %v7617
      %v7842 = vmul.f32 %v7773, %v7618
      %v7843 = vmul.f32 %v7778, %v7619
      %v7844 = vmul.f32 %v7783, %v7620
      %v7845 = vmul.f32 %v7788, %v7621
      %v7846 = vmul.f32 %v7793, %v7622
      %v7847 = vmul.f32 %v7798, %v7623
      %v7848 = vmul.f32 %v7803, %v7624
      %v7849 = vmul.f32 %v7808, %v7625
      %v7850 = vmul.f32 %v7813, %v7626
      %v7851 = vmul.f32 %v7818, %v7627
      %v7852 = vadd.f32 %v7628, %v7820
      %v7853 = vadd.f32 %v7629, %v7821
      %v7854 = vadd.f32 %v7630, %v7822
      %v7855 = vadd.f32 %v7631, %v7823
      %v7856 = vadd.f32 %v7632, %v7824
      %v7857 = vadd.f32 %v7633, %v7825
      %v7858 = vadd.f32 %v7634, %v7826
      %v7859 = vadd.f32 %v7635, %v7827
      %v7860 = vadd.f32 %v7636, %v7828
      %v7861 = vadd.f32 %v7637, %v7829
      %v7862 = vadd.f32 %v7638, %v7830
      %v7863 = vadd.f32 %v7639, %v7831
      %v7864 = vadd.f32 %v7640, %v7832
      %v7865 = vadd.f32 %v7641, %v7833
      %v7866 = vadd.f32 %v7642, %v7834
      %v7867 = vadd.f32 %v7643, %v7835
      %v7868 = vadd.f32 %v7644, %v7836
      %v7869 = vadd.f32 %v7645, %v7837
      %v7870 = vadd.f32 %v7646, %v7838
      %v7871 = vadd.f32 %v7647, %v7839
      %v7872 = vadd.f32 %v7648, %v7840
      %v7873 = vadd.f32 %v7649, %v7841
      %v7874 = vadd.f32 %v7650, %v7842
      %v7875 = vadd.f32 %v7651, %v7843
      %v7876 = vadd.f32 %v7652, %v7844
      %v7877 = vadd.f32 %v7653, %v7845
      %v7878 = vadd.f32 %v7654, %v7846
      %v7879 = vadd.f32 %v7655, %v7847
      %v7880 = vadd.f32 %v7656, %v7848
      %v7881 = vadd.f32 %v7657, %v7849
      %v7882 = vadd.f32 %v7658, %v7850
      %v7883 = vadd.f32 %v7659, %v7851
      %7884 = vst [vmem:[#allocation5] sm:$0xff] %v7852
      %7885 = vst [vmem:[#allocation5 + $0x8] sm:$0xff] %v7853
      %7886 = vst [vmem:[#allocation5 + $0x10] sm:$0xff] %v7854
      %7887 = vst [vmem:[#allocation5 + $0x18] sm:$0xff] %v7855
      %7888 = vst [vmem:[#allocation5 + $0x20] sm:$0xff] %v7856
      %7889 = vst [vmem:[#allocation5 + $0x28] sm:$0xff] %v7857
      %7890 = vst [vmem:[#allocation5 + $0x30] sm:$0xff] %v7858
      %7891 = vst [vmem:[#allocation5 + $0x38] sm:$0xff] %v7859
      %7892 = vst [vmem:[#allocation5 + $0x40] sm:$0xff] %v7860
      %7893 = vst [vmem:[#allocation5 + $0x48] sm:$0xff] %v7861
      %7894 = vst [vmem:[#allocation5 + $0x50] sm:$0xff] %v7862
      %7895 = vst [vmem:[#allocation5 + $0x58] sm:$0xff] %v7863
      %7896 = vst [vmem:[#allocation5 + $0x60] sm:$0xff] %v7864
      %7897 = vst [vmem:[#allocation5 + $0x68] sm:$0xff] %v7865
      %7898 = vst [vmem:[#allocation5 + $0x70] sm:$0xff] %v7866
      %7899 = vst [vmem:[#allocation5 + $0x78] sm:$0xff] %v7867
      %7900 = vst [vmem:[#allocation5 + $0x80] sm:$0xff] %v7868
      %7901 = vst [vmem:[#allocation5 + $0x88] sm:$0xff] %v7869
      %7902 = vst [vmem:[#allocation5 + $0x90] sm:$0xff] %v7870
      %7903 = vst [vmem:[#allocation5 + $0x98] sm:$0xff] %v7871
      %7904 = vst [vmem:[#allocation5 + $0xa0] sm:$0xff] %v7872
      %7905 = vst [vmem:[#allocation5 + $0xa8] sm:$0xff] %v7873
      %7906 = vst [vmem:[#allocation5 + $0xb0] sm:$0xff] %v7874
      %7907 = vst [vmem:[#allocation5 + $0xb8] sm:$0xff] %v7875
      %7908 = vst [vmem:[#allocation5 + $0xc0] sm:$0xff] %v7876
      %7909 = vst [vmem:[#allocation5 + $0xc8] sm:$0xff] %v7877
      %7910 = vst [vmem:[#allocation5 + $0xd0] sm:$0xff] %v7878
      %7911 = vst [vmem:[#allocation5 + $0xd8] sm:$0xff] %v7879
      %7912 = vst [vmem:[#allocation5 + $0xe0] sm:$0xff] %v7880
      %7913 = vst [vmem:[#allocation5 + $0xe8] sm:$0xff] %v7881
      %7914 = vst [vmem:[#allocation5 + $0xf0] sm:$0xff] %v7882
      %7915 = vst [vmem:[#allocation5 + $0xf8] sm:$0xff] %v7883
      %p7916 = scmp.eq.s32.totalorder %s26, 2
      // Predicated region
      $region69: #{gnn_layer_forward.1} parent=59 // pred_check
        %p7917 = pneg %p7916
      $region70: #{gnn_layer_forward.1} parent=59 // pred_check_branch
        %7919 = sbr.rel (%p7917) target = $region72
      $region71: #{gnn_layer_forward.1} parent=59 // pred_region
        %v7920 = vld [vmem:[%s10] sm:$0xff]
        %v7921 = vld [vmem:[%s10 + $0x8] sm:$0xff]
        %v7922 = vld [vmem:[%s10 + $0x10] sm:$0xff]
        %v7923 = vld [vmem:[%s10 + $0x18] sm:$0xff]
        %v7924 = vld [vmem:[%s10 + $0x20] sm:$0xff]
        %v7925 = vld [vmem:[%s10 + $0x28] sm:$0xff]
        %v7926 = vld [vmem:[%s10 + $0x30] sm:$0xff]
        %v7927 = vld [vmem:[%s10 + $0x38] sm:$0xff]
        %v7928 = vld [vmem:[%s10 + $0x40] sm:$0xff]
        %v7929 = vld [vmem:[%s10 + $0x48] sm:$0xff]
        %v7930 = vld [vmem:[%s10 + $0x50] sm:$0xff]
        %v7931 = vld [vmem:[%s10 + $0x58] sm:$0xff]
        %v7932 = vld [vmem:[%s10 + $0x60] sm:$0xff]
        %v7933 = vld [vmem:[%s10 + $0x68] sm:$0xff]
        %v7934 = vld [vmem:[%s10 + $0x70] sm:$0xff]
        %v7935 = vld [vmem:[%s10 + $0x78] sm:$0xff]
        %v7936 = vld [vmem:[#allocation4] sm:$0xff]
        %v7937 = vld [vmem:[#allocation4 + $0x8] sm:$0xff]
        %v7938 = vld [vmem:[#allocation4 + $0x10] sm:$0xff]
        %v7939 = vld [vmem:[#allocation4 + $0x18] sm:$0xff]
        %v7940 = vld [vmem:[#allocation4 + $0x20] sm:$0xff]
        %v7941 = vld [vmem:[#allocation4 + $0x28] sm:$0xff]
        %v7942 = vld [vmem:[#allocation4 + $0x30] sm:$0xff]
        %v7943 = vld [vmem:[#allocation4 + $0x38] sm:$0xff]
        %v7944 = vld [vmem:[#allocation4 + $0x40] sm:$0xff]
        %v7945 = vld [vmem:[#allocation4 + $0x48] sm:$0xff]
        %v7946 = vld [vmem:[#allocation4 + $0x50] sm:$0xff]
        %v7947 = vld [vmem:[#allocation4 + $0x58] sm:$0xff]
        %v7948 = vld [vmem:[#allocation4 + $0x60] sm:$0xff]
        %v7949 = vld [vmem:[#allocation4 + $0x68] sm:$0xff]
        %v7950 = vld [vmem:[#allocation4 + $0x70] sm:$0xff]
        %v7951 = vld [vmem:[#allocation4 + $0x78] sm:$0xff]
        %v7952 = vld [vmem:[#allocation5] sm:$0xff]
        %v7953 = vld [vmem:[#allocation5 + $0x8] sm:$0xff]
        %v7954 = vld [vmem:[#allocation5 + $0x10] sm:$0xff]
        %v7955 = vld [vmem:[#allocation5 + $0x18] sm:$0xff]
        %v7956 = vld [vmem:[#allocation5 + $0x20] sm:$0xff]
        %v7957 = vld [vmem:[#allocation5 + $0x28] sm:$0xff]
        %v7958 = vld [vmem:[#allocation5 + $0x30] sm:$0xff]
        %v7959 = vld [vmem:[#allocation5 + $0x38] sm:$0xff]
        %v7960 = vld [vmem:[#allocation5 + $0x40] sm:$0xff]
        %v7961 = vld [vmem:[#allocation5 + $0x48] sm:$0xff]
        %v7962 = vld [vmem:[#allocation5 + $0x50] sm:$0xff]
        %v7963 = vld [vmem:[#allocation5 + $0x58] sm:$0xff]
        %v7964 = vld [vmem:[#allocation5 + $0x60] sm:$0xff]
        %v7965 = vld [vmem:[#allocation5 + $0x68] sm:$0xff]
        %v7966 = vld [vmem:[#allocation5 + $0x70] sm:$0xff]
        %v7967 = vld [vmem:[#allocation5 + $0x78] sm:$0xff]
        %v7968 = vld [vmem:[#allocation5 + $0x80] sm:$0xff]
        %v7969 = vld [vmem:[#allocation5 + $0x88] sm:$0xff]
        %v7970 = vld [vmem:[#allocation5 + $0x90] sm:$0xff]
        %v7971 = vld [vmem:[#allocation5 + $0x98] sm:$0xff]
        %v7972 = vld [vmem:[#allocation5 + $0xa0] sm:$0xff]
        %v7973 = vld [vmem:[#allocation5 + $0xa8] sm:$0xff]
        %v7974 = vld [vmem:[#allocation5 + $0xb0] sm:$0xff]
        %v7975 = vld [vmem:[#allocation5 + $0xb8] sm:$0xff]
        %v7976 = vld [vmem:[#allocation5 + $0xc0] sm:$0xff]
        %v7977 = vld [vmem:[#allocation5 + $0xc8] sm:$0xff]
        %v7978 = vld [vmem:[#allocation5 + $0xd0] sm:$0xff]
        %v7979 = vld [vmem:[#allocation5 + $0xd8] sm:$0xff]
        %v7980 = vld [vmem:[#allocation5 + $0xe0] sm:$0xff]
        %v7981 = vld [vmem:[#allocation5 + $0xe8] sm:$0xff]
        %v7982 = vld [vmem:[#allocation5 + $0xf0] sm:$0xff]
        %v7983 = vld [vmem:[#allocation5 + $0xf8] sm:$0xff]
        %v7984 = vpack.c.bf16 %v7953, %v7952
        %v7985 = vpack.c.bf16 %v7955, %v7954
        %v7986 = vpack.c.bf16 %v7957, %v7956
        %v7987 = vpack.c.bf16 %v7959, %v7958
        %v7988 = vpack.c.bf16 %v7961, %v7960
        %v7989 = vpack.c.bf16 %v7963, %v7962
        %v7990 = vpack.c.bf16 %v7965, %v7964
        %v7991 = vpack.c.bf16 %v7967, %v7966
        %v7992 = vpack.c.bf16 %v7969, %v7968
        %v7993 = vpack.c.bf16 %v7971, %v7970
        %v7994 = vpack.c.bf16 %v7973, %v7972
        %v7995 = vpack.c.bf16 %v7975, %v7974
        %v7996 = vpack.c.bf16 %v7977, %v7976
        %v7997 = vpack.c.bf16 %v7979, %v7978
        %v7998 = vpack.c.bf16 %v7981, %v7980
        %v7999 = vpack.c.bf16 %v7983, %v7982
        %v8016 = vunpack.c.l.b16 %v7936
        %v8017 = vunpack.c.h.b16 %v7936
        %v8018 = vunpack.c.l.b16 %v7937
        %v8019 = vunpack.c.h.b16 %v7937
        %v8020 = vunpack.c.l.b16 %v7938
        %v8021 = vunpack.c.h.b16 %v7938
        %v8022 = vunpack.c.l.b16 %v7939
        %v8023 = vunpack.c.h.b16 %v7939
        %v8024 = vunpack.c.l.b16 %v7940
        %v8025 = vunpack.c.h.b16 %v7940
        %v8026 = vunpack.c.l.b16 %v7941
        %v8027 = vunpack.c.h.b16 %v7941
        %v8028 = vunpack.c.l.b16 %v7942
        %v8029 = vunpack.c.h.b16 %v7942
        %v8030 = vunpack.c.l.b16 %v7943
        %v8031 = vunpack.c.h.b16 %v7943
        %v8032 = vunpack.c.l.b16 %v7944
        %v8033 = vunpack.c.h.b16 %v7944
        %v8034 = vunpack.c.l.b16 %v7945
        %v8035 = vunpack.c.h.b16 %v7945
        %v8036 = vunpack.c.l.b16 %v7946
        %v8037 = vunpack.c.h.b16 %v7946
        %v8038 = vunpack.c.l.b16 %v7947
        %v8039 = vunpack.c.h.b16 %v7947
        %v8040 = vunpack.c.l.b16 %v7948
        %v8041 = vunpack.c.h.b16 %v7948
        %v8042 = vunpack.c.l.b16 %v7949
        %v8043 = vunpack.c.h.b16 %v7949
        %v8044 = vunpack.c.l.b16 %v7950
        %v8045 = vunpack.c.h.b16 %v7950
        %v8046 = vunpack.c.l.b16 %v7951
        %v8047 = vunpack.c.h.b16 %v7951
        %v8048 = vpack.c.b16 %v8018, %v8016
        %v8049 = vpack.c.b16 %v8019, %v8017
        %v8050 = vpack.c.b16 %v8022, %v8020
        %v8051 = vpack.c.b16 %v8023, %v8021
        %v8052 = vpack.c.b16 %v8026, %v8024
        %v8053 = vpack.c.b16 %v8027, %v8025
        %v8054 = vpack.c.b16 %v8030, %v8028
        %v8055 = vpack.c.b16 %v8031, %v8029
        %v8056 = vpack.c.b16 %v8034, %v8032
        %v8057 = vpack.c.b16 %v8035, %v8033
        %v8058 = vpack.c.b16 %v8038, %v8036
        %v8059 = vpack.c.b16 %v8039, %v8037
        %v8060 = vpack.c.b16 %v8042, %v8040
        %v8061 = vpack.c.b16 %v8043, %v8041
        %v8062 = vpack.c.b16 %v8046, %v8044
        %v8063 = vpack.c.b16 %v8047, %v8045
        %8080 = vmatpush.bf16.msra.mxu0 %v7991
        %8081 = vmatpush.bf16.msra.mxu0 %v7990
        %8082 = vmatpush.bf16.msra.mxu0 %v7989
        %8083 = vmatpush.bf16.msra.mxu0 %v7988
        %8084 = vmatpush.bf16.msra.mxu0 %v7987
        %8085 = vmatpush.bf16.msra.mxu0 %v7986
        %8086 = vmatpush.bf16.msra.mxu0 %v7985
        %8087 = vmatpush.bf16.msra.mxu0 %v7984
        %8088 = vmatmul.bf16.gmra.mxu0 %v8048
        %v8089 = vpop.f32.mrf.mxu0
        %v8090 = vadd.f32 0.0, %v8089
        %v8091 = vpop.f32.mrf.mxu0
        %v8092 = vadd.f32 0.0, %v8091
        %8093 = vmatmul.bf16.gmra.mxu0 %v8050
        %v8094 = vpop.f32.mrf.mxu0
        %v8095 = vadd.f32 0.0, %v8094
        %v8096 = vpop.f32.mrf.mxu0
        %v8097 = vadd.f32 0.0, %v8096
        %8098 = vmatmul.bf16.gmra.mxu0 %v8052
        %v8099 = vpop.f32.mrf.mxu0
        %v8100 = vadd.f32 0.0, %v8099
        %v8101 = vpop.f32.mrf.mxu0
        %v8102 = vadd.f32 0.0, %v8101
        %8103 = vmatmul.bf16.gmra.mxu0 %v8054
        %v8104 = vpop.f32.mrf.mxu0
        %v8105 = vadd.f32 0.0, %v8104
        %v8106 = vpop.f32.mrf.mxu0
        %v8107 = vadd.f32 0.0, %v8106
        %8108 = vmatmul.bf16.gmra.mxu0 %v8056
        %v8109 = vpop.f32.mrf.mxu0
        %v8110 = vadd.f32 0.0, %v8109
        %v8111 = vpop.f32.mrf.mxu0
        %v8112 = vadd.f32 0.0, %v8111
        %8113 = vmatmul.bf16.gmra.mxu0 %v8058
        %v8114 = vpop.f32.mrf.mxu0
        %v8115 = vadd.f32 0.0, %v8114
        %v8116 = vpop.f32.mrf.mxu0
        %v8117 = vadd.f32 0.0, %v8116
        %8118 = vmatmul.bf16.gmra.mxu0 %v8060
        %v8119 = vpop.f32.mrf.mxu0
        %v8120 = vadd.f32 0.0, %v8119
        %v8121 = vpop.f32.mrf.mxu0
        %v8122 = vadd.f32 0.0, %v8121
        %8123 = vmatmul.bf16.gmra.mxu0 %v8062
        %v8124 = vpop.f32.mrf.mxu0
        %v8125 = vadd.f32 0.0, %v8124
        %v8126 = vpop.f32.mrf.mxu0
        %v8127 = vadd.f32 0.0, %v8126
        %8128 = vdwg.mxu0
        %8129 = vmatpush.bf16.msra.mxu0 %v7999
        %8130 = vmatpush.bf16.msra.mxu0 %v7998
        %8131 = vmatpush.bf16.msra.mxu0 %v7997
        %8132 = vmatpush.bf16.msra.mxu0 %v7996
        %8133 = vmatpush.bf16.msra.mxu0 %v7995
        %8134 = vmatpush.bf16.msra.mxu0 %v7994
        %8135 = vmatpush.bf16.msra.mxu0 %v7993
        %8136 = vmatpush.bf16.msra.mxu0 %v7992
        %8137 = vmatmul.bf16.gmra.mxu0 %v8049
        %v8138 = vpop.f32.mrf.mxu0
        %v8139 = vadd.f32 %v8090, %v8138
        %v8140 = vpop.f32.mrf.mxu0
        %v8141 = vadd.f32 %v8092, %v8140
        %8142 = vmatmul.bf16.gmra.mxu0 %v8051
        %v8143 = vpop.f32.mrf.mxu0
        %v8144 = vadd.f32 %v8095, %v8143
        %v8145 = vpop.f32.mrf.mxu0
        %v8146 = vadd.f32 %v8097, %v8145
        %8147 = vmatmul.bf16.gmra.mxu0 %v8053
        %v8148 = vpop.f32.mrf.mxu0
        %v8149 = vadd.f32 %v8100, %v8148
        %v8150 = vpop.f32.mrf.mxu0
        %v8151 = vadd.f32 %v8102, %v8150
        %8152 = vmatmul.bf16.gmra.mxu0 %v8055
        %v8153 = vpop.f32.mrf.mxu0
        %v8154 = vadd.f32 %v8105, %v8153
        %v8155 = vpop.f32.mrf.mxu0
        %v8156 = vadd.f32 %v8107, %v8155
        %8157 = vmatmul.bf16.gmra.mxu0 %v8057
        %v8158 = vpop.f32.mrf.mxu0
        %v8159 = vadd.f32 %v8110, %v8158
        %v8160 = vpop.f32.mrf.mxu0
        %v8161 = vadd.f32 %v8112, %v8160
        %8162 = vmatmul.bf16.gmra.mxu0 %v8059
        %v8163 = vpop.f32.mrf.mxu0
        %v8164 = vadd.f32 %v8115, %v8163
        %v8165 = vpop.f32.mrf.mxu0
        %v8166 = vadd.f32 %v8117, %v8165
        %8167 = vmatmul.bf16.gmra.mxu0 %v8061
        %v8168 = vpop.f32.mrf.mxu0
        %v8169 = vadd.f32 %v8120, %v8168
        %v8170 = vpop.f32.mrf.mxu0
        %v8171 = vadd.f32 %v8122, %v8170
        %8172 = vmatmul.bf16.gmra.mxu0 %v8063
        %v8173 = vpop.f32.mrf.mxu0
        %v8174 = vadd.f32 %v8125, %v8173
        %v8175 = vpop.f32.mrf.mxu0
        %v8176 = vadd.f32 %v8127, %v8175
        %8177 = vdwg.mxu0
        %v8178 = vadd.f32 %v7920, %v8139
        %v8179 = vadd.f32 %v7921, %v8141
        %v8180 = vadd.f32 %v7922, %v8144
        %v8181 = vadd.f32 %v7923, %v8146
        %v8182 = vadd.f32 %v7924, %v8149
        %v8183 = vadd.f32 %v7925, %v8151
        %v8184 = vadd.f32 %v7926, %v8154
        %v8185 = vadd.f32 %v7927, %v8156
        %v8186 = vadd.f32 %v7928, %v8159
        %v8187 = vadd.f32 %v7929, %v8161
        %v8188 = vadd.f32 %v7930, %v8164
        %v8189 = vadd.f32 %v7931, %v8166
        %v8190 = vadd.f32 %v7932, %v8169
        %v8191 = vadd.f32 %v7933, %v8171
        %v8192 = vadd.f32 %v7934, %v8174
        %v8193 = vadd.f32 %v7935, %v8176
        %8194 = vst [vmem:[%s10] sm:$0xff] %v8178
        %8195 = vst [vmem:[%s10 + $0x8] sm:$0xff] %v8179
        %8196 = vst [vmem:[%s10 + $0x10] sm:$0xff] %v8180
        %8197 = vst [vmem:[%s10 + $0x18] sm:$0xff] %v8181
        %8198 = vst [vmem:[%s10 + $0x20] sm:$0xff] %v8182
        %8199 = vst [vmem:[%s10 + $0x28] sm:$0xff] %v8183
        %8200 = vst [vmem:[%s10 + $0x30] sm:$0xff] %v8184
        %8201 = vst [vmem:[%s10 + $0x38] sm:$0xff] %v8185
        %8202 = vst [vmem:[%s10 + $0x40] sm:$0xff] %v8186
        %8203 = vst [vmem:[%s10 + $0x48] sm:$0xff] %v8187
        %8204 = vst [vmem:[%s10 + $0x50] sm:$0xff] %v8188
        %8205 = vst [vmem:[%s10 + $0x58] sm:$0xff] %v8189
        %8206 = vst [vmem:[%s10 + $0x60] sm:$0xff] %v8190
        %8207 = vst [vmem:[%s10 + $0x68] sm:$0xff] %v8191
        %8208 = vst [vmem:[%s10 + $0x70] sm:$0xff] %v8192
        %8209 = vst [vmem:[%s10 + $0x78] sm:$0xff] %v8193
      $region72: #{gnn_layer_forward.1} parent=59 // pred_fallthru
        _
      %p8210 = pnand %p435, %p7916
      %p8211 = pneg %p8210
      // Predicated region
      $region73: #{gnn_layer_forward.1} parent=59 // pred_check
        _
      $region74: #{gnn_layer_forward.1} parent=59 // pred_check_branch
        %8213 = sbr.rel (%p8210) target = $region76
      $region75: #{gnn_layer_forward.1} parent=59 // pred_region
        %v8214 = vld [vmem:[%s10] sm:$0xff]
        %v8215 = vld [vmem:[%s10 + $0x8] sm:$0xff]
        %v8216 = vld [vmem:[%s10 + $0x10] sm:$0xff]
        %v8217 = vld [vmem:[%s10 + $0x18] sm:$0xff]
        %v8218 = vld [vmem:[%s10 + $0x20] sm:$0xff]
        %v8219 = vld [vmem:[%s10 + $0x28] sm:$0xff]
        %v8220 = vld [vmem:[%s10 + $0x30] sm:$0xff]
        %v8221 = vld [vmem:[%s10 + $0x38] sm:$0xff]
        %v8222 = vld [vmem:[%s10 + $0x40] sm:$0xff]
        %v8223 = vld [vmem:[%s10 + $0x48] sm:$0xff]
        %v8224 = vld [vmem:[%s10 + $0x50] sm:$0xff]
        %v8225 = vld [vmem:[%s10 + $0x58] sm:$0xff]
        %v8226 = vld [vmem:[%s10 + $0x60] sm:$0xff]
        %v8227 = vld [vmem:[%s10 + $0x68] sm:$0xff]
        %v8228 = vld [vmem:[%s10 + $0x70] sm:$0xff]
        %v8229 = vld [vmem:[%s10 + $0x78] sm:$0xff]
        %v8230 = vmax.f32 %v8214, 1.0
        %v8231 = vmax.f32 %v8215, 1.0
        %v8232 = vmax.f32 %v8216, 1.0
        %v8233 = vmax.f32 %v8217, 1.0
        %v8234 = vmax.f32 %v8218, 1.0
        %v8235 = vmax.f32 %v8219, 1.0
        %v8236 = vmax.f32 %v8220, 1.0
        %v8237 = vmax.f32 %v8221, 1.0
        %v8238 = vmax.f32 %v8222, 1.0
        %v8239 = vmax.f32 %v8223, 1.0
        %v8240 = vmax.f32 %v8224, 1.0
        %v8241 = vmax.f32 %v8225, 1.0
        %v8242 = vmax.f32 %v8226, 1.0
        %v8243 = vmax.f32 %v8227, 1.0
        %v8244 = vmax.f32 %v8228, 1.0
        %v8245 = vmax.f32 %v8229, 1.0
        %v8246 = vrcp.pop %v8230
        %v8247 = vrcp.pop %v8231
        %v8248 = vrcp.pop %v8232
        %v8249 = vrcp.pop %v8233
        %v8250 = vrcp.pop %v8234
        %v8251 = vrcp.pop %v8235
        %v8252 = vrcp.pop %v8236
        %v8253 = vrcp.pop %v8237
        %v8254 = vrcp.pop %v8238
        %v8255 = vrcp.pop %v8239
        %v8256 = vrcp.pop %v8240
        %v8257 = vrcp.pop %v8241
        %v8258 = vrcp.pop %v8242
        %v8259 = vrcp.pop %v8243
        %v8260 = vrcp.pop %v8244
        %v8261 = vrcp.pop %v8245
        %vm8262 = vcmp.gt.f32.partialorder %v8214, 0.0
        %vm8263 = vcmp.gt.f32.partialorder %v8215, 0.0
        %vm8264 = vcmp.gt.f32.partialorder %v8216, 0.0
        %vm8265 = vcmp.gt.f32.partialorder %v8217, 0.0
        %vm8266 = vcmp.gt.f32.partialorder %v8218, 0.0
        %vm8267 = vcmp.gt.f32.partialorder %v8219, 0.0
        %vm8268 = vcmp.gt.f32.partialorder %v8220, 0.0
        %vm8269 = vcmp.gt.f32.partialorder %v8221, 0.0
        %vm8270 = vcmp.gt.f32.partialorder %v8222, 0.0
        %vm8271 = vcmp.gt.f32.partialorder %v8223, 0.0
        %vm8272 = vcmp.gt.f32.partialorder %v8224, 0.0
        %vm8273 = vcmp.gt.f32.partialorder %v8225, 0.0
        %vm8274 = vcmp.gt.f32.partialorder %v8226, 0.0
        %vm8275 = vcmp.gt.f32.partialorder %v8227, 0.0
        %vm8276 = vcmp.gt.f32.partialorder %v8228, 0.0
        %vm8277 = vcmp.gt.f32.partialorder %v8229, 0.0
        %8279 = vset.pattern.permute.xlu0 32
        %8280 = vperm.xlu0 %8279, %v8246
        %v8281 = vpop.permute.xlu0 %8280
        %8284 = vset.pattern.permute.xlu0 32
        %8285 = vperm.xlu0 %8284, %v8247
        %v8286 = vpop.permute.xlu0 %8285
        %8289 = vset.pattern.permute.xlu0 32
        %8290 = vperm.xlu0 %8289, %v8248
        %v8291 = vpop.permute.xlu0 %8290
        %8294 = vset.pattern.permute.xlu0 32
        %8295 = vperm.xlu0 %8294, %v8249
        %v8296 = vpop.permute.xlu0 %8295
        %8299 = vset.pattern.permute.xlu0 32
        %8300 = vperm.xlu0 %8299, %v8250
        %v8301 = vpop.permute.xlu0 %8300
        %8304 = vset.pattern.permute.xlu0 32
        %8305 = vperm.xlu0 %8304, %v8251
        %v8306 = vpop.permute.xlu0 %8305
        %8309 = vset.pattern.permute.xlu0 32
        %8310 = vperm.xlu0 %8309, %v8252
        %v8311 = vpop.permute.xlu0 %8310
        %8314 = vset.pattern.permute.xlu0 32
        %8315 = vperm.xlu0 %8314, %v8253
        %v8316 = vpop.permute.xlu0 %8315
        %8319 = vset.pattern.permute.xlu0 32
        %8320 = vperm.xlu0 %8319, %v8254
        %v8321 = vpop.permute.xlu0 %8320
        %8324 = vset.pattern.permute.xlu0 32
        %8325 = vperm.xlu0 %8324, %v8255
        %v8326 = vpop.permute.xlu0 %8325
        %8329 = vset.pattern.permute.xlu0 32
        %8330 = vperm.xlu0 %8329, %v8256
        %v8331 = vpop.permute.xlu0 %8330
        %8334 = vset.pattern.permute.xlu0 32
        %8335 = vperm.xlu0 %8334, %v8257
        %v8336 = vpop.permute.xlu0 %8335
        %8339 = vset.pattern.permute.xlu0 32
        %8340 = vperm.xlu0 %8339, %v8258
        %v8341 = vpop.permute.xlu0 %8340
        %8344 = vset.pattern.permute.xlu0 32
        %8345 = vperm.xlu0 %8344, %v8259
        %v8346 = vpop.permute.xlu0 %8345
        %8349 = vset.pattern.permute.xlu0 32
        %8350 = vperm.xlu0 %8349, %v8260
        %v8351 = vpop.permute.xlu0 %8350
        %8354 = vset.pattern.permute.xlu0 32
        %8355 = vperm.xlu0 %8354, %v8261
        %v8356 = vpop.permute.xlu0 %8355
        %v8358 = vmul.f32 %v8214, %v8281
        %v8359 = vmul.f32 %v8215, %v8286
        %v8360 = vmul.f32 %v8216, %v8291
        %v8361 = vmul.f32 %v8217, %v8296
        %v8362 = vmul.f32 %v8218, %v8301
        %v8363 = vmul.f32 %v8219, %v8306
        %v8364 = vmul.f32 %v8220, %v8311
        %v8365 = vmul.f32 %v8221, %v8316
        %v8366 = vmul.f32 %v8222, %v8321
        %v8367 = vmul.f32 %v8223, %v8326
        %v8368 = vmul.f32 %v8224, %v8331
        %v8369 = vmul.f32 %v8225, %v8336
        %v8370 = vmul.f32 %v8226, %v8341
        %v8371 = vmul.f32 %v8227, %v8346
        %v8372 = vmul.f32 %v8228, %v8351
        %v8373 = vmul.f32 %v8229, %v8356
        %v8374 = vsel %vm8262, 1, 0
        %v8375 = vsel %vm8263, 1, 0
        %v8376 = vsel %vm8264, 1, 0
        %v8377 = vsel %vm8265, 1, 0
        %v8378 = vsel %vm8266, 1, 0
        %v8379 = vsel %vm8267, 1, 0
        %v8380 = vsel %vm8268, 1, 0
        %v8381 = vsel %vm8269, 1, 0
        %v8382 = vsel %vm8270, 1, 0
        %v8383 = vsel %vm8271, 1, 0
        %v8384 = vsel %vm8272, 1, 0
        %v8385 = vsel %vm8273, 1, 0
        %v8386 = vsel %vm8274, 1, 0
        %v8387 = vsel %vm8275, 1, 0
        %v8388 = vsel %vm8276, 1, 0
        %v8389 = vsel %vm8277, 1, 0
        %8390 = vset.pattern.permute.xlu0 32
        %8391 = vperm.xlu0 %8390, %v8374
        %v8392 = vpop.permute.xlu0 %8391
        %8393 = vset.pattern.permute.xlu0 32
        %8394 = vperm.xlu0 %8393, %v8375
        %v8395 = vpop.permute.xlu0 %8394
        %8396 = vset.pattern.permute.xlu0 32
        %8397 = vperm.xlu0 %8396, %v8376
        %v8398 = vpop.permute.xlu0 %8397
        %8399 = vset.pattern.permute.xlu0 32
        %8400 = vperm.xlu0 %8399, %v8377
        %v8401 = vpop.permute.xlu0 %8400
        %8402 = vset.pattern.permute.xlu0 32
        %8403 = vperm.xlu0 %8402, %v8378
        %v8404 = vpop.permute.xlu0 %8403
        %8405 = vset.pattern.permute.xlu0 32
        %8406 = vperm.xlu0 %8405, %v8379
        %v8407 = vpop.permute.xlu0 %8406
        %8408 = vset.pattern.permute.xlu0 32
        %8409 = vperm.xlu0 %8408, %v8380
        %v8410 = vpop.permute.xlu0 %8409
        %8411 = vset.pattern.permute.xlu0 32
        %8412 = vperm.xlu0 %8411, %v8381
        %v8413 = vpop.permute.xlu0 %8412
        %8414 = vset.pattern.permute.xlu0 32
        %8415 = vperm.xlu0 %8414, %v8382
        %v8416 = vpop.permute.xlu0 %8415
        %8417 = vset.pattern.permute.xlu0 32
        %8418 = vperm.xlu0 %8417, %v8383
        %v8419 = vpop.permute.xlu0 %8418
        %8420 = vset.pattern.permute.xlu0 32
        %8421 = vperm.xlu0 %8420, %v8384
        %v8422 = vpop.permute.xlu0 %8421
        %8423 = vset.pattern.permute.xlu0 32
        %8424 = vperm.xlu0 %8423, %v8385
        %v8425 = vpop.permute.xlu0 %8424
        %8426 = vset.pattern.permute.xlu0 32
        %8427 = vperm.xlu0 %8426, %v8386
        %v8428 = vpop.permute.xlu0 %8427
        %8429 = vset.pattern.permute.xlu0 32
        %8430 = vperm.xlu0 %8429, %v8387
        %v8431 = vpop.permute.xlu0 %8430
        %8432 = vset.pattern.permute.xlu0 32
        %8433 = vperm.xlu0 %8432, %v8388
        %v8434 = vpop.permute.xlu0 %8433
        %8435 = vset.pattern.permute.xlu0 32
        %8436 = vperm.xlu0 %8435, %v8389
        %v8437 = vpop.permute.xlu0 %8436
        %vm8438 = vcmp.eq.s32.totalorder %v8392, 1
        %vm8439 = vcmp.eq.s32.totalorder %v8395, 1
        %vm8440 = vcmp.eq.s32.totalorder %v8398, 1
        %vm8441 = vcmp.eq.s32.totalorder %v8401, 1
        %vm8442 = vcmp.eq.s32.totalorder %v8404, 1
        %vm8443 = vcmp.eq.s32.totalorder %v8407, 1
        %vm8444 = vcmp.eq.s32.totalorder %v8410, 1
        %vm8445 = vcmp.eq.s32.totalorder %v8413, 1
        %vm8446 = vcmp.eq.s32.totalorder %v8416, 1
        %vm8447 = vcmp.eq.s32.totalorder %v8419, 1
        %vm8448 = vcmp.eq.s32.totalorder %v8422, 1
        %vm8449 = vcmp.eq.s32.totalorder %v8425, 1
        %vm8450 = vcmp.eq.s32.totalorder %v8428, 1
        %vm8451 = vcmp.eq.s32.totalorder %v8431, 1
        %vm8452 = vcmp.eq.s32.totalorder %v8434, 1
        %vm8453 = vcmp.eq.s32.totalorder %v8437, 1
        %v8454 = vsel %vm8438, %v8358, 0.0
        %v8455 = vsel %vm8439, %v8359, 0.0
        %v8456 = vsel %vm8440, %v8360, 0.0
        %v8457 = vsel %vm8441, %v8361, 0.0
        %v8458 = vsel %vm8442, %v8362, 0.0
        %v8459 = vsel %vm8443, %v8363, 0.0
        %v8460 = vsel %vm8444, %v8364, 0.0
        %v8461 = vsel %vm8445, %v8365, 0.0
        %v8462 = vsel %vm8446, %v8366, 0.0
        %v8463 = vsel %vm8447, %v8367, 0.0
        %v8464 = vsel %vm8448, %v8368, 0.0
        %v8465 = vsel %vm8449, %v8369, 0.0
        %v8466 = vsel %vm8450, %v8370, 0.0
        %v8467 = vsel %vm8451, %v8371, 0.0
        %v8468 = vsel %vm8452, %v8372, 0.0
        %v8469 = vsel %vm8453, %v8373, 0.0
        %v8470 = vld [vmem:[%s2] sm:$0xf]
        %v8471 = vld [vmem:[%s2 + $0x4] sm:$0xf]
        %v8472 = vld [vmem:[%s2 + $0x8] sm:$0xf]
        %v8473 = vld [vmem:[%s2 + $0xc] sm:$0xf]
        %v8474 = vld [vmem:[%s2 + $0x10] sm:$0xf]
        %v8475 = vld [vmem:[%s2 + $0x14] sm:$0xf]
        %v8476 = vld [vmem:[%s2 + $0x18] sm:$0xf]
        %v8477 = vld [vmem:[%s2 + $0x1c] sm:$0xf]
        %v8478 = vld [vmem:[%s2 + $0x20] sm:$0xf]
        %v8479 = vld [vmem:[%s2 + $0x24] sm:$0xf]
        %v8480 = vld [vmem:[%s2 + $0x28] sm:$0xf]
        %v8481 = vld [vmem:[%s2 + $0x2c] sm:$0xf]
        %v8482 = vld [vmem:[%s2 + $0x30] sm:$0xf]
        %v8483 = vld [vmem:[%s2 + $0x34] sm:$0xf]
        %v8484 = vld [vmem:[%s2 + $0x38] sm:$0xf]
        %v8485 = vld [vmem:[%s2 + $0x3c] sm:$0xf]
        %v8486 = vld [vmem:[%s6] sm:$0xf]
        %v8487 = vld [vmem:[%s6 + $0x4] sm:$0xf]
        %v8488 = vld [vmem:[%s6 + $0x8] sm:$0xf]
        %v8489 = vld [vmem:[%s6 + $0xc] sm:$0xf]
        %v8490 = vld [vmem:[%s6 + $0x10] sm:$0xf]
        %v8491 = vld [vmem:[%s6 + $0x14] sm:$0xf]
        %v8492 = vld [vmem:[%s6 + $0x18] sm:$0xf]
        %v8493 = vld [vmem:[%s6 + $0x1c] sm:$0xf]
        %v8494 = vld [vmem:[%s6 + $0x20] sm:$0xf]
        %v8495 = vld [vmem:[%s6 + $0x24] sm:$0xf]
        %v8496 = vld [vmem:[%s6 + $0x28] sm:$0xf]
        %v8497 = vld [vmem:[%s6 + $0x2c] sm:$0xf]
        %v8498 = vld [vmem:[%s6 + $0x30] sm:$0xf]
        %v8499 = vld [vmem:[%s6 + $0x34] sm:$0xf]
        %v8500 = vld [vmem:[%s6 + $0x38] sm:$0xf]
        %v8501 = vld [vmem:[%s6 + $0x3c] sm:$0xf]
        %v8502 = vld [vmem:[%s7] sm:$0x1]
        %v8504 = vperm.slane %v8502, 0
        %v8522 = vunpack.c.l.b16 %v8470
        %v8523 = vunpack.c.l.b16 %v8471
        %v8524 = vunpack.c.l.b16 %v8472
        %v8525 = vunpack.c.l.b16 %v8473
        %v8526 = vunpack.c.l.b16 %v8474
        %v8527 = vunpack.c.l.b16 %v8475
        %v8528 = vunpack.c.l.b16 %v8476
        %v8529 = vunpack.c.l.b16 %v8477
        %v8530 = vunpack.c.l.b16 %v8478
        %v8531 = vunpack.c.l.b16 %v8479
        %v8532 = vunpack.c.l.b16 %v8480
        %v8533 = vunpack.c.l.b16 %v8481
        %v8534 = vunpack.c.l.b16 %v8482
        %v8535 = vunpack.c.l.b16 %v8483
        %v8536 = vunpack.c.l.b16 %v8484
        %v8537 = vunpack.c.l.b16 %v8485
        %v8538 = vpack.c.b16 %v8523, %v8522
        %v8539 = vpack.c.b16 %v8525, %v8524
        %v8540 = vpack.c.b16 %v8527, %v8526
        %v8541 = vpack.c.b16 %v8529, %v8528
        %v8542 = vpack.c.b16 %v8531, %v8530
        %v8543 = vpack.c.b16 %v8533, %v8532
        %v8544 = vpack.c.b16 %v8535, %v8534
        %v8545 = vpack.c.b16 %v8537, %v8536
        %v8570 = vunpack.c.l.b16 %v8486
        %v8571 = vunpack.c.l.b16 %v8487
        %v8572 = vunpack.c.l.b16 %v8488
        %v8573 = vunpack.c.l.b16 %v8489
        %v8574 = vunpack.c.l.b16 %v8490
        %v8575 = vunpack.c.l.b16 %v8491
        %v8576 = vunpack.c.l.b16 %v8492
        %v8577 = vunpack.c.l.b16 %v8493
        %v8578 = vunpack.c.l.b16 %v8494
        %v8579 = vunpack.c.l.b16 %v8495
        %v8580 = vunpack.c.l.b16 %v8496
        %v8581 = vunpack.c.l.b16 %v8497
        %v8582 = vunpack.c.l.b16 %v8498
        %v8583 = vunpack.c.l.b16 %v8499
        %v8584 = vunpack.c.l.b16 %v8500
        %v8585 = vunpack.c.l.b16 %v8501
        %v8586 = vpack.c.b16 %v8571, %v8570
        %v8587 = vpack.c.b16 %v8573, %v8572
        %v8588 = vpack.c.b16 %v8575, %v8574
        %v8589 = vpack.c.b16 %v8577, %v8576
        %v8590 = vpack.c.b16 %v8579, %v8578
        %v8591 = vpack.c.b16 %v8581, %v8580
        %v8592 = vpack.c.b16 %v8583, %v8582
        %v8593 = vpack.c.b16 %v8585, %v8584
        %8602 = vmatpush.bf16.msra.mxu0 %v8593
        %8603 = vmatpush.bf16.msra.mxu0 %v8592
        %8604 = vmatpush.bf16.msra.mxu0 %v8591
        %8605 = vmatpush.bf16.msra.mxu0 %v8590
        %8606 = vmatpush.bf16.msra.mxu0 %v8589
        %8607 = vmatpush.bf16.msra.mxu0 %v8588
        %8608 = vmatpush.bf16.msra.mxu0 %v8587
        %8609 = vmatpush.bf16.msra.mxu0 %v8586
        %8610 = vmatmul.bf16.gmra.mxu0 %v8538
        %v8611 = vpop.f32.mrf.mxu0
        %v8612 = vadd.f32 %v8504, %v8611
        %v8613 = vpop.f32.mrf.mxu0
        %v8614 = vadd.f32 %v8504, %v8613
        %8615 = vmatmul.bf16.gmra.mxu0 %v8539
        %v8616 = vpop.f32.mrf.mxu0
        %v8617 = vadd.f32 %v8504, %v8616
        %v8618 = vpop.f32.mrf.mxu0
        %v8619 = vadd.f32 %v8504, %v8618
        %8620 = vmatmul.bf16.gmra.mxu0 %v8540
        %v8621 = vpop.f32.mrf.mxu0
        %v8622 = vadd.f32 %v8504, %v8621
        %v8623 = vpop.f32.mrf.mxu0
        %v8624 = vadd.f32 %v8504, %v8623
        %8625 = vmatmul.bf16.gmra.mxu0 %v8541
        %v8626 = vpop.f32.mrf.mxu0
        %v8627 = vadd.f32 %v8504, %v8626
        %v8628 = vpop.f32.mrf.mxu0
        %v8629 = vadd.f32 %v8504, %v8628
        %8630 = vmatmul.bf16.gmra.mxu0 %v8542
        %v8631 = vpop.f32.mrf.mxu0
        %v8632 = vadd.f32 %v8504, %v8631
        %v8633 = vpop.f32.mrf.mxu0
        %v8634 = vadd.f32 %v8504, %v8633
        %8635 = vmatmul.bf16.gmra.mxu0 %v8543
        %v8636 = vpop.f32.mrf.mxu0
        %v8637 = vadd.f32 %v8504, %v8636
        %v8638 = vpop.f32.mrf.mxu0
        %v8639 = vadd.f32 %v8504, %v8638
        %8640 = vmatmul.bf16.gmra.mxu0 %v8544
        %v8641 = vpop.f32.mrf.mxu0
        %v8642 = vadd.f32 %v8504, %v8641
        %v8643 = vpop.f32.mrf.mxu0
        %v8644 = vadd.f32 %v8504, %v8643
        %8645 = vmatmul.bf16.gmra.mxu0 %v8545
        %v8646 = vpop.f32.mrf.mxu0
        %v8647 = vadd.f32 %v8504, %v8646
        %v8648 = vpop.f32.mrf.mxu0
        %v8649 = vadd.f32 %v8504, %v8648
        %8650 = vdwg.mxu0
        %vm8651 = vcmp.gt.f32.partialorder %v8612, 0.0
        %vm8652 = vcmp.gt.f32.partialorder %v8614, 0.0
        %vm8653 = vcmp.gt.f32.partialorder %v8617, 0.0
        %vm8654 = vcmp.gt.f32.partialorder %v8619, 0.0
        %vm8655 = vcmp.gt.f32.partialorder %v8622, 0.0
        %vm8656 = vcmp.gt.f32.partialorder %v8624, 0.0
        %vm8657 = vcmp.gt.f32.partialorder %v8627, 0.0
        %vm8658 = vcmp.gt.f32.partialorder %v8629, 0.0
        %vm8659 = vcmp.gt.f32.partialorder %v8632, 0.0
        %vm8660 = vcmp.gt.f32.partialorder %v8634, 0.0
        %vm8661 = vcmp.gt.f32.partialorder %v8637, 0.0
        %vm8662 = vcmp.gt.f32.partialorder %v8639, 0.0
        %vm8663 = vcmp.gt.f32.partialorder %v8642, 0.0
        %vm8664 = vcmp.gt.f32.partialorder %v8644, 0.0
        %vm8665 = vcmp.gt.f32.partialorder %v8647, 0.0
        %vm8666 = vcmp.gt.f32.partialorder %v8649, 0.0
        %v8667 = vmul.f32 %v8612, 0.2
        %v8668 = vmul.f32 %v8614, 0.2
        %v8669 = vmul.f32 %v8617, 0.2
        %v8670 = vmul.f32 %v8619, 0.2
        %v8671 = vmul.f32 %v8622, 0.2
        %v8672 = vmul.f32 %v8624, 0.2
        %v8673 = vmul.f32 %v8627, 0.2
        %v8674 = vmul.f32 %v8629, 0.2
        %v8675 = vmul.f32 %v8632, 0.2
        %v8676 = vmul.f32 %v8634, 0.2
        %v8677 = vmul.f32 %v8637, 0.2
        %v8678 = vmul.f32 %v8639, 0.2
        %v8679 = vmul.f32 %v8642, 0.2
        %v8680 = vmul.f32 %v8644, 0.2
        %v8681 = vmul.f32 %v8647, 0.2
        %v8682 = vmul.f32 %v8649, 0.2
        %v8683 = vsel %vm8651, %v8612, %v8667
        %v8684 = vsel %vm8652, %v8614, %v8668
        %v8685 = vsel %vm8653, %v8617, %v8669
        %v8686 = vsel %vm8654, %v8619, %v8670
        %v8687 = vsel %vm8655, %v8622, %v8671
        %v8688 = vsel %vm8656, %v8624, %v8672
        %v8689 = vsel %vm8657, %v8627, %v8673
        %v8690 = vsel %vm8658, %v8629, %v8674
        %v8691 = vsel %vm8659, %v8632, %v8675
        %v8692 = vsel %vm8660, %v8634, %v8676
        %v8693 = vsel %vm8661, %v8637, %v8677
        %v8694 = vsel %vm8662, %v8639, %v8678
        %v8695 = vsel %vm8663, %v8642, %v8679
        %v8696 = vsel %vm8664, %v8644, %v8680
        %v8697 = vsel %vm8665, %v8647, %v8681
        %v8698 = vsel %vm8666, %v8649, %v8682
        %v8699 = vld [vmem:[%s8] sm:$0xff]
        %v8700 = vld [vmem:[%s8 + $0x8] sm:$0xff]
        %v8701 = vld [vmem:[%s8 + $0x10] sm:$0xff]
        %v8702 = vld [vmem:[%s8 + $0x18] sm:$0xff]
        %v8703 = vld [vmem:[%s8 + $0x20] sm:$0xff]
        %v8704 = vld [vmem:[%s8 + $0x28] sm:$0xff]
        %v8705 = vld [vmem:[%s8 + $0x30] sm:$0xff]
        %v8706 = vld [vmem:[%s8 + $0x38] sm:$0xff]
        %v8707 = vld [vmem:[%s8 + $0x40] sm:$0xff]
        %v8708 = vld [vmem:[%s8 + $0x48] sm:$0xff]
        %v8709 = vld [vmem:[%s8 + $0x50] sm:$0xff]
        %v8710 = vld [vmem:[%s8 + $0x58] sm:$0xff]
        %v8711 = vld [vmem:[%s8 + $0x60] sm:$0xff]
        %v8712 = vld [vmem:[%s8 + $0x68] sm:$0xff]
        %v8713 = vld [vmem:[%s8 + $0x70] sm:$0xff]
        %v8714 = vld [vmem:[%s8 + $0x78] sm:$0xff]
        %v8715 = vld [vmem:[%s8 + $0x80] sm:$0xff]
        %v8716 = vld [vmem:[%s8 + $0x88] sm:$0xff]
        %v8717 = vld [vmem:[%s8 + $0x90] sm:$0xff]
        %v8718 = vld [vmem:[%s8 + $0x98] sm:$0xff]
        %v8719 = vld [vmem:[%s8 + $0xa0] sm:$0xff]
        %v8720 = vld [vmem:[%s8 + $0xa8] sm:$0xff]
        %v8721 = vld [vmem:[%s8 + $0xb0] sm:$0xff]
        %v8722 = vld [vmem:[%s8 + $0xb8] sm:$0xff]
        %v8723 = vld [vmem:[%s8 + $0xc0] sm:$0xff]
        %v8724 = vld [vmem:[%s8 + $0xc8] sm:$0xff]
        %v8725 = vld [vmem:[%s8 + $0xd0] sm:$0xff]
        %v8726 = vld [vmem:[%s8 + $0xd8] sm:$0xff]
        %v8727 = vld [vmem:[%s8 + $0xe0] sm:$0xff]
        %v8728 = vld [vmem:[%s8 + $0xe8] sm:$0xff]
        %v8729 = vld [vmem:[%s8 + $0xf0] sm:$0xff]
        %v8730 = vld [vmem:[%s8 + $0xf8] sm:$0xff]
        %v8731 = vld [vmem:[%s8 + $0x100] sm:$0xff]
        %v8732 = vld [vmem:[%s8 + $0x108] sm:$0xff]
        %v8733 = vld [vmem:[%s8 + $0x110] sm:$0xff]
        %v8734 = vld [vmem:[%s8 + $0x118] sm:$0xff]
        %v8735 = vld [vmem:[%s8 + $0x120] sm:$0xff]
        %v8736 = vld [vmem:[%s8 + $0x128] sm:$0xff]
        %v8737 = vld [vmem:[%s8 + $0x130] sm:$0xff]
        %v8738 = vld [vmem:[%s8 + $0x138] sm:$0xff]
        %v8739 = vld [vmem:[%s8 + $0x140] sm:$0xff]
        %v8740 = vld [vmem:[%s8 + $0x148] sm:$0xff]
        %v8741 = vld [vmem:[%s8 + $0x150] sm:$0xff]
        %v8742 = vld [vmem:[%s8 + $0x158] sm:$0xff]
        %v8743 = vld [vmem:[%s8 + $0x160] sm:$0xff]
        %v8744 = vld [vmem:[%s8 + $0x168] sm:$0xff]
        %v8745 = vld [vmem:[%s8 + $0x170] sm:$0xff]
        %v8746 = vld [vmem:[%s8 + $0x178] sm:$0xff]
        %v8747 = vld [vmem:[%s8 + $0x180] sm:$0xff]
        %v8748 = vld [vmem:[%s8 + $0x188] sm:$0xff]
        %v8749 = vld [vmem:[%s8 + $0x190] sm:$0xff]
        %v8750 = vld [vmem:[%s8 + $0x198] sm:$0xff]
        %v8751 = vld [vmem:[%s8 + $0x1a0] sm:$0xff]
        %v8752 = vld [vmem:[%s8 + $0x1a8] sm:$0xff]
        %v8753 = vld [vmem:[%s8 + $0x1b0] sm:$0xff]
        %v8754 = vld [vmem:[%s8 + $0x1b8] sm:$0xff]
        %v8755 = vld [vmem:[%s8 + $0x1c0] sm:$0xff]
        %v8756 = vld [vmem:[%s8 + $0x1c8] sm:$0xff]
        %v8757 = vld [vmem:[%s8 + $0x1d0] sm:$0xff]
        %v8758 = vld [vmem:[%s8 + $0x1d8] sm:$0xff]
        %v8759 = vld [vmem:[%s8 + $0x1e0] sm:$0xff]
        %v8760 = vld [vmem:[%s8 + $0x1e8] sm:$0xff]
        %v8761 = vld [vmem:[%s8 + $0x1f0] sm:$0xff]
        %v8762 = vld [vmem:[%s8 + $0x1f8] sm:$0xff]
        %v8763 = vld [vmem:[%s8 + $0x200] sm:$0xff]
        %v8764 = vld [vmem:[%s8 + $0x208] sm:$0xff]
        %v8765 = vld [vmem:[%s8 + $0x210] sm:$0xff]
        %v8766 = vld [vmem:[%s8 + $0x218] sm:$0xff]
        %v8767 = vld [vmem:[%s8 + $0x220] sm:$0xff]
        %v8768 = vld [vmem:[%s8 + $0x228] sm:$0xff]
        %v8769 = vld [vmem:[%s8 + $0x230] sm:$0xff]
        %v8770 = vld [vmem:[%s8 + $0x238] sm:$0xff]
        %v8771 = vld [vmem:[%s8 + $0x240] sm:$0xff]
        %v8772 = vld [vmem:[%s8 + $0x248] sm:$0xff]
        %v8773 = vld [vmem:[%s8 + $0x250] sm:$0xff]
        %v8774 = vld [vmem:[%s8 + $0x258] sm:$0xff]
        %v8775 = vld [vmem:[%s8 + $0x260] sm:$0xff]
        %v8776 = vld [vmem:[%s8 + $0x268] sm:$0xff]
        %v8777 = vld [vmem:[%s8 + $0x270] sm:$0xff]
        %v8778 = vld [vmem:[%s8 + $0x278] sm:$0xff]
        %v8779 = vld [vmem:[%s8 + $0x280] sm:$0xff]
        %v8780 = vld [vmem:[%s8 + $0x288] sm:$0xff]
        %v8781 = vld [vmem:[%s8 + $0x290] sm:$0xff]
        %v8782 = vld [vmem:[%s8 + $0x298] sm:$0xff]
        %v8783 = vld [vmem:[%s8 + $0x2a0] sm:$0xff]
        %v8784 = vld [vmem:[%s8 + $0x2a8] sm:$0xff]
        %v8785 = vld [vmem:[%s8 + $0x2b0] sm:$0xff]
        %v8786 = vld [vmem:[%s8 + $0x2b8] sm:$0xff]
        %v8787 = vld [vmem:[%s8 + $0x2c0] sm:$0xff]
        %v8788 = vld [vmem:[%s8 + $0x2c8] sm:$0xff]
        %v8789 = vld [vmem:[%s8 + $0x2d0] sm:$0xff]
        %v8790 = vld [vmem:[%s8 + $0x2d8] sm:$0xff]
        %v8791 = vld [vmem:[%s8 + $0x2e0] sm:$0xff]
        %v8792 = vld [vmem:[%s8 + $0x2e8] sm:$0xff]
        %v8793 = vld [vmem:[%s8 + $0x2f0] sm:$0xff]
        %v8794 = vld [vmem:[%s8 + $0x2f8] sm:$0xff]
        %v8795 = vld [vmem:[%s8 + $0x300] sm:$0xff]
        %v8796 = vld [vmem:[%s8 + $0x308] sm:$0xff]
        %v8797 = vld [vmem:[%s8 + $0x310] sm:$0xff]
        %v8798 = vld [vmem:[%s8 + $0x318] sm:$0xff]
        %v8799 = vld [vmem:[%s8 + $0x320] sm:$0xff]
        %v8800 = vld [vmem:[%s8 + $0x328] sm:$0xff]
        %v8801 = vld [vmem:[%s8 + $0x330] sm:$0xff]
        %v8802 = vld [vmem:[%s8 + $0x338] sm:$0xff]
        %v8803 = vld [vmem:[%s8 + $0x340] sm:$0xff]
        %v8804 = vld [vmem:[%s8 + $0x348] sm:$0xff]
        %v8805 = vld [vmem:[%s8 + $0x350] sm:$0xff]
        %v8806 = vld [vmem:[%s8 + $0x358] sm:$0xff]
        %v8807 = vld [vmem:[%s8 + $0x360] sm:$0xff]
        %v8808 = vld [vmem:[%s8 + $0x368] sm:$0xff]
        %v8809 = vld [vmem:[%s8 + $0x370] sm:$0xff]
        %v8810 = vld [vmem:[%s8 + $0x378] sm:$0xff]
        %v8811 = vld [vmem:[%s8 + $0x380] sm:$0xff]
        %v8812 = vld [vmem:[%s8 + $0x388] sm:$0xff]
        %v8813 = vld [vmem:[%s8 + $0x390] sm:$0xff]
        %v8814 = vld [vmem:[%s8 + $0x398] sm:$0xff]
        %v8815 = vld [vmem:[%s8 + $0x3a0] sm:$0xff]
        %v8816 = vld [vmem:[%s8 + $0x3a8] sm:$0xff]
        %v8817 = vld [vmem:[%s8 + $0x3b0] sm:$0xff]
        %v8818 = vld [vmem:[%s8 + $0x3b8] sm:$0xff]
        %v8819 = vld [vmem:[%s8 + $0x3c0] sm:$0xff]
        %v8820 = vld [vmem:[%s8 + $0x3c8] sm:$0xff]
        %v8821 = vld [vmem:[%s8 + $0x3d0] sm:$0xff]
        %v8822 = vld [vmem:[%s8 + $0x3d8] sm:$0xff]
        %v8823 = vld [vmem:[%s8 + $0x3e0] sm:$0xff]
        %v8824 = vld [vmem:[%s8 + $0x3e8] sm:$0xff]
        %v8825 = vld [vmem:[%s8 + $0x3f0] sm:$0xff]
        %v8826 = vld [vmem:[%s8 + $0x3f8] sm:$0xff]
        %v8955 = vunpack.c.l.b16 %v8699
        %v8956 = vunpack.c.h.b16 %v8699
        %v8957 = vunpack.c.l.b16 %v8700
        %v8958 = vunpack.c.h.b16 %v8700
        %v8959 = vunpack.c.l.b16 %v8701
        %v8960 = vunpack.c.h.b16 %v8701
        %v8961 = vunpack.c.l.b16 %v8702
        %v8962 = vunpack.c.h.b16 %v8702
        %v8963 = vunpack.c.l.b16 %v8703
        %v8964 = vunpack.c.h.b16 %v8703
        %v8965 = vunpack.c.l.b16 %v8704
        %v8966 = vunpack.c.h.b16 %v8704
        %v8967 = vunpack.c.l.b16 %v8705
        %v8968 = vunpack.c.h.b16 %v8705
        %v8969 = vunpack.c.l.b16 %v8706
        %v8970 = vunpack.c.h.b16 %v8706
        %v8971 = vunpack.c.l.b16 %v8707
        %v8972 = vunpack.c.h.b16 %v8707
        %v8973 = vunpack.c.l.b16 %v8708
        %v8974 = vunpack.c.h.b16 %v8708
        %v8975 = vunpack.c.l.b16 %v8709
        %v8976 = vunpack.c.h.b16 %v8709
        %v8977 = vunpack.c.l.b16 %v8710
        %v8978 = vunpack.c.h.b16 %v8710
        %v8979 = vunpack.c.l.b16 %v8711
        %v8980 = vunpack.c.h.b16 %v8711
        %v8981 = vunpack.c.l.b16 %v8712
        %v8982 = vunpack.c.h.b16 %v8712
        %v8983 = vunpack.c.l.b16 %v8713
        %v8984 = vunpack.c.h.b16 %v8713
        %v8985 = vunpack.c.l.b16 %v8714
        %v8986 = vunpack.c.h.b16 %v8714
        %v8987 = vunpack.c.l.b16 %v8715
        %v8988 = vunpack.c.h.b16 %v8715
        %v8989 = vunpack.c.l.b16 %v8716
        %v8990 = vunpack.c.h.b16 %v8716
        %v8991 = vunpack.c.l.b16 %v8717
        %v8992 = vunpack.c.h.b16 %v8717
        %v8993 = vunpack.c.l.b16 %v8718
        %v8994 = vunpack.c.h.b16 %v8718
        %v8995 = vunpack.c.l.b16 %v8719
        %v8996 = vunpack.c.h.b16 %v8719
        %v8997 = vunpack.c.l.b16 %v8720
        %v8998 = vunpack.c.h.b16 %v8720
        %v8999 = vunpack.c.l.b16 %v8721
        %v9000 = vunpack.c.h.b16 %v8721
        %v9001 = vunpack.c.l.b16 %v8722
        %v9002 = vunpack.c.h.b16 %v8722
        %v9003 = vunpack.c.l.b16 %v8723
        %v9004 = vunpack.c.h.b16 %v8723
        %v9005 = vunpack.c.l.b16 %v8724
        %v9006 = vunpack.c.h.b16 %v8724
        %v9007 = vunpack.c.l.b16 %v8725
        %v9008 = vunpack.c.h.b16 %v8725
        %v9009 = vunpack.c.l.b16 %v8726
        %v9010 = vunpack.c.h.b16 %v8726
        %v9011 = vunpack.c.l.b16 %v8727
        %v9012 = vunpack.c.h.b16 %v8727
        %v9013 = vunpack.c.l.b16 %v8728
        %v9014 = vunpack.c.h.b16 %v8728
        %v9015 = vunpack.c.l.b16 %v8729
        %v9016 = vunpack.c.h.b16 %v8729
        %v9017 = vunpack.c.l.b16 %v8730
        %v9018 = vunpack.c.h.b16 %v8730
        %v9019 = vunpack.c.l.b16 %v8731
        %v9020 = vunpack.c.h.b16 %v8731
        %v9021 = vunpack.c.l.b16 %v8732
        %v9022 = vunpack.c.h.b16 %v8732
        %v9023 = vunpack.c.l.b16 %v8733
        %v9024 = vunpack.c.h.b16 %v8733
        %v9025 = vunpack.c.l.b16 %v8734
        %v9026 = vunpack.c.h.b16 %v8734
        %v9027 = vunpack.c.l.b16 %v8735
        %v9028 = vunpack.c.h.b16 %v8735
        %v9029 = vunpack.c.l.b16 %v8736
        %v9030 = vunpack.c.h.b16 %v8736
        %v9031 = vunpack.c.l.b16 %v8737
        %v9032 = vunpack.c.h.b16 %v8737
        %v9033 = vunpack.c.l.b16 %v8738
        %v9034 = vunpack.c.h.b16 %v8738
        %v9035 = vunpack.c.l.b16 %v8739
        %v9036 = vunpack.c.h.b16 %v8739
        %v9037 = vunpack.c.l.b16 %v8740
        %v9038 = vunpack.c.h.b16 %v8740
        %v9039 = vunpack.c.l.b16 %v8741
        %v9040 = vunpack.c.h.b16 %v8741
        %v9041 = vunpack.c.l.b16 %v8742
        %v9042 = vunpack.c.h.b16 %v8742
        %v9043 = vunpack.c.l.b16 %v8743
        %v9044 = vunpack.c.h.b16 %v8743
        %v9045 = vunpack.c.l.b16 %v8744
        %v9046 = vunpack.c.h.b16 %v8744
        %v9047 = vunpack.c.l.b16 %v8745
        %v9048 = vunpack.c.h.b16 %v8745
        %v9049 = vunpack.c.l.b16 %v8746
        %v9050 = vunpack.c.h.b16 %v8746
        %v9051 = vunpack.c.l.b16 %v8747
        %v9052 = vunpack.c.h.b16 %v8747
        %v9053 = vunpack.c.l.b16 %v8748
        %v9054 = vunpack.c.h.b16 %v8748
        %v9055 = vunpack.c.l.b16 %v8749
        %v9056 = vunpack.c.h.b16 %v8749
        %v9057 = vunpack.c.l.b16 %v8750
        %v9058 = vunpack.c.h.b16 %v8750
        %v9059 = vunpack.c.l.b16 %v8751
        %v9060 = vunpack.c.h.b16 %v8751
        %v9061 = vunpack.c.l.b16 %v8752
        %v9062 = vunpack.c.h.b16 %v8752
        %v9063 = vunpack.c.l.b16 %v8753
        %v9064 = vunpack.c.h.b16 %v8753
        %v9065 = vunpack.c.l.b16 %v8754
        %v9066 = vunpack.c.h.b16 %v8754
        %v9067 = vunpack.c.l.b16 %v8755
        %v9068 = vunpack.c.h.b16 %v8755
        %v9069 = vunpack.c.l.b16 %v8756
        %v9070 = vunpack.c.h.b16 %v8756
        %v9071 = vunpack.c.l.b16 %v8757
        %v9072 = vunpack.c.h.b16 %v8757
        %v9073 = vunpack.c.l.b16 %v8758
        %v9074 = vunpack.c.h.b16 %v8758
        %v9075 = vunpack.c.l.b16 %v8759
        %v9076 = vunpack.c.h.b16 %v8759
        %v9077 = vunpack.c.l.b16 %v8760
        %v9078 = vunpack.c.h.b16 %v8760
        %v9079 = vunpack.c.l.b16 %v8761
        %v9080 = vunpack.c.h.b16 %v8761
        %v9081 = vunpack.c.l.b16 %v8762
        %v9082 = vunpack.c.h.b16 %v8762
        %v9083 = vunpack.c.l.b16 %v8763
        %v9084 = vunpack.c.h.b16 %v8763
        %v9085 = vunpack.c.l.b16 %v8764
        %v9086 = vunpack.c.h.b16 %v8764
        %v9087 = vunpack.c.l.b16 %v8765
        %v9088 = vunpack.c.h.b16 %v8765
        %v9089 = vunpack.c.l.b16 %v8766
        %v9090 = vunpack.c.h.b16 %v8766
        %v9091 = vunpack.c.l.b16 %v8767
        %v9092 = vunpack.c.h.b16 %v8767
        %v9093 = vunpack.c.l.b16 %v8768
        %v9094 = vunpack.c.h.b16 %v8768
        %v9095 = vunpack.c.l.b16 %v8769
        %v9096 = vunpack.c.h.b16 %v8769
        %v9097 = vunpack.c.l.b16 %v8770
        %v9098 = vunpack.c.h.b16 %v8770
        %v9099 = vunpack.c.l.b16 %v8771
        %v9100 = vunpack.c.h.b16 %v8771
        %v9101 = vunpack.c.l.b16 %v8772
        %v9102 = vunpack.c.h.b16 %v8772
        %v9103 = vunpack.c.l.b16 %v8773
        %v9104 = vunpack.c.h.b16 %v8773
        %v9105 = vunpack.c.l.b16 %v8774
        %v9106 = vunpack.c.h.b16 %v8774
        %v9107 = vunpack.c.l.b16 %v8775
        %v9108 = vunpack.c.h.b16 %v8775
        %v9109 = vunpack.c.l.b16 %v8776
        %v9110 = vunpack.c.h.b16 %v8776
        %v9111 = vunpack.c.l.b16 %v8777
        %v9112 = vunpack.c.h.b16 %v8777
        %v9113 = vunpack.c.l.b16 %v8778
        %v9114 = vunpack.c.h.b16 %v8778
        %v9115 = vunpack.c.l.b16 %v8779
        %v9116 = vunpack.c.h.b16 %v8779
        %v9117 = vunpack.c.l.b16 %v8780
        %v9118 = vunpack.c.h.b16 %v8780
        %v9119 = vunpack.c.l.b16 %v8781
        %v9120 = vunpack.c.h.b16 %v8781
        %v9121 = vunpack.c.l.b16 %v8782
        %v9122 = vunpack.c.h.b16 %v8782
        %v9123 = vunpack.c.l.b16 %v8783
        %v9124 = vunpack.c.h.b16 %v8783
        %v9125 = vunpack.c.l.b16 %v8784
        %v9126 = vunpack.c.h.b16 %v8784
        %v9127 = vunpack.c.l.b16 %v8785
        %v9128 = vunpack.c.h.b16 %v8785
        %v9129 = vunpack.c.l.b16 %v8786
        %v9130 = vunpack.c.h.b16 %v8786
        %v9131 = vunpack.c.l.b16 %v8787
        %v9132 = vunpack.c.h.b16 %v8787
        %v9133 = vunpack.c.l.b16 %v8788
        %v9134 = vunpack.c.h.b16 %v8788
        %v9135 = vunpack.c.l.b16 %v8789
        %v9136 = vunpack.c.h.b16 %v8789
        %v9137 = vunpack.c.l.b16 %v8790
        %v9138 = vunpack.c.h.b16 %v8790
        %v9139 = vunpack.c.l.b16 %v8791
        %v9140 = vunpack.c.h.b16 %v8791
        %v9141 = vunpack.c.l.b16 %v8792
        %v9142 = vunpack.c.h.b16 %v8792
        %v9143 = vunpack.c.l.b16 %v8793
        %v9144 = vunpack.c.h.b16 %v8793
        %v9145 = vunpack.c.l.b16 %v8794
        %v9146 = vunpack.c.h.b16 %v8794
        %v9147 = vunpack.c.l.b16 %v8795
        %v9148 = vunpack.c.h.b16 %v8795
        %v9149 = vunpack.c.l.b16 %v8796
        %v9150 = vunpack.c.h.b16 %v8796
        %v9151 = vunpack.c.l.b16 %v8797
        %v9152 = vunpack.c.h.b16 %v8797
        %v9153 = vunpack.c.l.b16 %v8798
        %v9154 = vunpack.c.h.b16 %v8798
        %v9155 = vunpack.c.l.b16 %v8799
        %v9156 = vunpack.c.h.b16 %v8799
        %v9157 = vunpack.c.l.b16 %v8800
        %v9158 = vunpack.c.h.b16 %v8800
        %v9159 = vunpack.c.l.b16 %v8801
        %v9160 = vunpack.c.h.b16 %v8801
        %v9161 = vunpack.c.l.b16 %v8802
        %v9162 = vunpack.c.h.b16 %v8802
        %v9163 = vunpack.c.l.b16 %v8803
        %v9164 = vunpack.c.h.b16 %v8803
        %v9165 = vunpack.c.l.b16 %v8804
        %v9166 = vunpack.c.h.b16 %v8804
        %v9167 = vunpack.c.l.b16 %v8805
        %v9168 = vunpack.c.h.b16 %v8805
        %v9169 = vunpack.c.l.b16 %v8806
        %v9170 = vunpack.c.h.b16 %v8806
        %v9171 = vunpack.c.l.b16 %v8807
        %v9172 = vunpack.c.h.b16 %v8807
        %v9173 = vunpack.c.l.b16 %v8808
        %v9174 = vunpack.c.h.b16 %v8808
        %v9175 = vunpack.c.l.b16 %v8809
        %v9176 = vunpack.c.h.b16 %v8809
        %v9177 = vunpack.c.l.b16 %v8810
        %v9178 = vunpack.c.h.b16 %v8810
        %v9179 = vunpack.c.l.b16 %v8811
        %v9180 = vunpack.c.h.b16 %v8811
        %v9181 = vunpack.c.l.b16 %v8812
        %v9182 = vunpack.c.h.b16 %v8812
        %v9183 = vunpack.c.l.b16 %v8813
        %v9184 = vunpack.c.h.b16 %v8813
        %v9185 = vunpack.c.l.b16 %v8814
        %v9186 = vunpack.c.h.b16 %v8814
        %v9187 = vunpack.c.l.b16 %v8815
        %v9188 = vunpack.c.h.b16 %v8815
        %v9189 = vunpack.c.l.b16 %v8816
        %v9190 = vunpack.c.h.b16 %v8816
        %v9191 = vunpack.c.l.b16 %v8817
        %v9192 = vunpack.c.h.b16 %v8817
        %v9193 = vunpack.c.l.b16 %v8818
        %v9194 = vunpack.c.h.b16 %v8818
        %v9195 = vunpack.c.l.b16 %v8819
        %v9196 = vunpack.c.h.b16 %v8819
        %v9197 = vunpack.c.l.b16 %v8820
        %v9198 = vunpack.c.h.b16 %v8820
        %v9199 = vunpack.c.l.b16 %v8821
        %v9200 = vunpack.c.h.b16 %v8821
        %v9201 = vunpack.c.l.b16 %v8822
        %v9202 = vunpack.c.h.b16 %v8822
        %v9203 = vunpack.c.l.b16 %v8823
        %v9204 = vunpack.c.h.b16 %v8823
        %v9205 = vunpack.c.l.b16 %v8824
        %v9206 = vunpack.c.h.b16 %v8824
        %v9207 = vunpack.c.l.b16 %v8825
        %v9208 = vunpack.c.h.b16 %v8825
        %v9209 = vunpack.c.l.b16 %v8826
        %v9210 = vunpack.c.h.b16 %v8826
        %v9211 = vpack.c.b16 %v8971, %v8955
        %v9212 = vpack.c.b16 %v8972, %v8956
        %v9213 = vpack.c.b16 %v8973, %v8957
        %v9214 = vpack.c.b16 %v8974, %v8958
        %v9215 = vpack.c.b16 %v8975, %v8959
        %v9216 = vpack.c.b16 %v8976, %v8960
        %v9217 = vpack.c.b16 %v8977, %v8961
        %v9218 = vpack.c.b16 %v8978, %v8962
        %v9219 = vpack.c.b16 %v8979, %v8963
        %v9220 = vpack.c.b16 %v8980, %v8964
        %v9221 = vpack.c.b16 %v8981, %v8965
        %v9222 = vpack.c.b16 %v8982, %v8966
        %v9223 = vpack.c.b16 %v8983, %v8967
        %v9224 = vpack.c.b16 %v8984, %v8968
        %v9225 = vpack.c.b16 %v8985, %v8969
        %v9226 = vpack.c.b16 %v8986, %v8970
        %v9227 = vpack.c.b16 %v9003, %v8987
        %v9228 = vpack.c.b16 %v9004, %v8988
        %v9229 = vpack.c.b16 %v9005, %v8989
        %v9230 = vpack.c.b16 %v9006, %v8990
        %v9231 = vpack.c.b16 %v9007, %v8991
        %v9232 = vpack.c.b16 %v9008, %v8992
        %v9233 = vpack.c.b16 %v9009, %v8993
        %v9234 = vpack.c.b16 %v9010, %v8994
        %v9235 = vpack.c.b16 %v9011, %v8995
        %v9236 = vpack.c.b16 %v9012, %v8996
        %v9237 = vpack.c.b16 %v9013, %v8997
        %v9238 = vpack.c.b16 %v9014, %v8998
        %v9239 = vpack.c.b16 %v9015, %v8999
        %v9240 = vpack.c.b16 %v9016, %v9000
        %v9241 = vpack.c.b16 %v9017, %v9001
        %v9242 = vpack.c.b16 %v9018, %v9002
        %v9243 = vpack.c.b16 %v9035, %v9019
        %v9244 = vpack.c.b16 %v9036, %v9020
        %v9245 = vpack.c.b16 %v9037, %v9021
        %v9246 = vpack.c.b16 %v9038, %v9022
        %v9247 = vpack.c.b16 %v9039, %v9023
        %v9248 = vpack.c.b16 %v9040, %v9024
        %v9249 = vpack.c.b16 %v9041, %v9025
        %v9250 = vpack.c.b16 %v9042, %v9026
        %v9251 = vpack.c.b16 %v9043, %v9027
        %v9252 = vpack.c.b16 %v9044, %v9028
        %v9253 = vpack.c.b16 %v9045, %v9029
        %v9254 = vpack.c.b16 %v9046, %v9030
        %v9255 = vpack.c.b16 %v9047, %v9031
        %v9256 = vpack.c.b16 %v9048, %v9032
        %v9257 = vpack.c.b16 %v9049, %v9033
        %v9258 = vpack.c.b16 %v9050, %v9034
        %v9259 = vpack.c.b16 %v9067, %v9051
        %v9260 = vpack.c.b16 %v9068, %v9052
        %v9261 = vpack.c.b16 %v9069, %v9053
        %v9262 = vpack.c.b16 %v9070, %v9054
        %v9263 = vpack.c.b16 %v9071, %v9055
        %v9264 = vpack.c.b16 %v9072, %v9056
        %v9265 = vpack.c.b16 %v9073, %v9057
        %v9266 = vpack.c.b16 %v9074, %v9058
        %v9267 = vpack.c.b16 %v9075, %v9059
        %v9268 = vpack.c.b16 %v9076, %v9060
        %v9269 = vpack.c.b16 %v9077, %v9061
        %v9270 = vpack.c.b16 %v9078, %v9062
        %v9271 = vpack.c.b16 %v9079, %v9063
        %v9272 = vpack.c.b16 %v9080, %v9064
        %v9273 = vpack.c.b16 %v9081, %v9065
        %v9274 = vpack.c.b16 %v9082, %v9066
        %v9275 = vpack.c.b16 %v9099, %v9083
        %v9276 = vpack.c.b16 %v9100, %v9084
        %v9277 = vpack.c.b16 %v9101, %v9085
        %v9278 = vpack.c.b16 %v9102, %v9086
        %v9279 = vpack.c.b16 %v9103, %v9087
        %v9280 = vpack.c.b16 %v9104, %v9088
        %v9281 = vpack.c.b16 %v9105, %v9089
        %v9282 = vpack.c.b16 %v9106, %v9090
        %v9283 = vpack.c.b16 %v9107, %v9091
        %v9284 = vpack.c.b16 %v9108, %v9092
        %v9285 = vpack.c.b16 %v9109, %v9093
        %v9286 = vpack.c.b16 %v9110, %v9094
        %v9287 = vpack.c.b16 %v9111, %v9095
        %v9288 = vpack.c.b16 %v9112, %v9096
        %v9289 = vpack.c.b16 %v9113, %v9097
        %v9290 = vpack.c.b16 %v9114, %v9098
        %v9291 = vpack.c.b16 %v9131, %v9115
        %v9292 = vpack.c.b16 %v9132, %v9116
        %v9293 = vpack.c.b16 %v9133, %v9117
        %v9294 = vpack.c.b16 %v9134, %v9118
        %v9295 = vpack.c.b16 %v9135, %v9119
        %v9296 = vpack.c.b16 %v9136, %v9120
        %v9297 = vpack.c.b16 %v9137, %v9121
        %v9298 = vpack.c.b16 %v9138, %v9122
        %v9299 = vpack.c.b16 %v9139, %v9123
        %v9300 = vpack.c.b16 %v9140, %v9124
        %v9301 = vpack.c.b16 %v9141, %v9125
        %v9302 = vpack.c.b16 %v9142, %v9126
        %v9303 = vpack.c.b16 %v9143, %v9127
        %v9304 = vpack.c.b16 %v9144, %v9128
        %v9305 = vpack.c.b16 %v9145, %v9129
        %v9306 = vpack.c.b16 %v9146, %v9130
        %v9307 = vpack.c.b16 %v9163, %v9147
        %v9308 = vpack.c.b16 %v9164, %v9148
        %v9309 = vpack.c.b16 %v9165, %v9149
        %v9310 = vpack.c.b16 %v9166, %v9150
        %v9311 = vpack.c.b16 %v9167, %v9151
        %v9312 = vpack.c.b16 %v9168, %v9152
        %v9313 = vpack.c.b16 %v9169, %v9153
        %v9314 = vpack.c.b16 %v9170, %v9154
        %v9315 = vpack.c.b16 %v9171, %v9155
        %v9316 = vpack.c.b16 %v9172, %v9156
        %v9317 = vpack.c.b16 %v9173, %v9157
        %v9318 = vpack.c.b16 %v9174, %v9158
        %v9319 = vpack.c.b16 %v9175, %v9159
        %v9320 = vpack.c.b16 %v9176, %v9160
        %v9321 = vpack.c.b16 %v9177, %v9161
        %v9322 = vpack.c.b16 %v9178, %v9162
        %v9323 = vpack.c.b16 %v9195, %v9179
        %v9324 = vpack.c.b16 %v9196, %v9180
        %v9325 = vpack.c.b16 %v9197, %v9181
        %v9326 = vpack.c.b16 %v9198, %v9182
        %v9327 = vpack.c.b16 %v9199, %v9183
        %v9328 = vpack.c.b16 %v9200, %v9184
        %v9329 = vpack.c.b16 %v9201, %v9185
        %v9330 = vpack.c.b16 %v9202, %v9186
        %v9331 = vpack.c.b16 %v9203, %v9187
        %v9332 = vpack.c.b16 %v9204, %v9188
        %v9333 = vpack.c.b16 %v9205, %v9189
        %v9334 = vpack.c.b16 %v9206, %v9190
        %v9335 = vpack.c.b16 %v9207, %v9191
        %v9336 = vpack.c.b16 %v9208, %v9192
        %v9337 = vpack.c.b16 %v9209, %v9193
        %v9338 = vpack.c.b16 %v9210, %v9194
        %9467 = vmatpush.bf16.msra.mxu0 %v9323
        %9468 = vmatpush.bf16.msra.mxu0 %v9307
        %9469 = vmatpush.bf16.msra.mxu0 %v9291
        %9470 = vmatpush.bf16.msra.mxu0 %v9275
        %9471 = vmatpush.bf16.msra.mxu0 %v9259
        %9472 = vmatpush.bf16.msra.mxu0 %v9243
        %9473 = vmatpush.bf16.msra.mxu0 %v9227
        %9474 = vmatpush.bf16.msra.mxu0 %v9211
        %9475 = vmatmul.bf16.gmra.mxu0 %v8538
        %v9476 = vpop.f32.mrf.mxu0
        %v9477 = vadd.f32 0.0, %v9476
        %v9478 = vpop.f32.mrf.mxu0
        %v9479 = vadd.f32 0.0, %v9478
        %9480 = vmatmul.bf16.gmra.mxu0 %v8539
        %v9481 = vpop.f32.mrf.mxu0
        %v9482 = vadd.f32 0.0, %v9481
        %v9483 = vpop.f32.mrf.mxu0
        %v9484 = vadd.f32 0.0, %v9483
        %9485 = vmatmul.bf16.gmra.mxu0 %v8540
        %v9486 = vpop.f32.mrf.mxu0
        %v9487 = vadd.f32 0.0, %v9486
        %v9488 = vpop.f32.mrf.mxu0
        %v9489 = vadd.f32 0.0, %v9488
        %9490 = vmatmul.bf16.gmra.mxu0 %v8541
        %v9491 = vpop.f32.mrf.mxu0
        %v9492 = vadd.f32 0.0, %v9491
        %v9493 = vpop.f32.mrf.mxu0
        %v9494 = vadd.f32 0.0, %v9493
        %9495 = vmatmul.bf16.gmra.mxu0 %v8542
        %v9496 = vpop.f32.mrf.mxu0
        %v9497 = vadd.f32 0.0, %v9496
        %v9498 = vpop.f32.mrf.mxu0
        %v9499 = vadd.f32 0.0, %v9498
        %9500 = vmatmul.bf16.gmra.mxu0 %v8543
        %v9501 = vpop.f32.mrf.mxu0
        %v9502 = vadd.f32 0.0, %v9501
        %v9503 = vpop.f32.mrf.mxu0
        %v9504 = vadd.f32 0.0, %v9503
        %9505 = vmatmul.bf16.gmra.mxu0 %v8544
        %v9506 = vpop.f32.mrf.mxu0
        %v9507 = vadd.f32 0.0, %v9506
        %v9508 = vpop.f32.mrf.mxu0
        %v9509 = vadd.f32 0.0, %v9508
        %9510 = vmatmul.bf16.gmra.mxu0 %v8545
        %v9511 = vpop.f32.mrf.mxu0
        %v9512 = vadd.f32 0.0, %v9511
        %v9513 = vpop.f32.mrf.mxu0
        %v9514 = vadd.f32 0.0, %v9513
        %9515 = vdwg.mxu0
        %9516 = vmatpush.bf16.msra.mxu0 %v9324
        %9517 = vmatpush.bf16.msra.mxu0 %v9308
        %9518 = vmatpush.bf16.msra.mxu0 %v9292
        %9519 = vmatpush.bf16.msra.mxu0 %v9276
        %9520 = vmatpush.bf16.msra.mxu0 %v9260
        %9521 = vmatpush.bf16.msra.mxu0 %v9244
        %9522 = vmatpush.bf16.msra.mxu0 %v9228
        %9523 = vmatpush.bf16.msra.mxu0 %v9212
        %9524 = vmatmul.bf16.gmra.mxu0 %v8538
        %v9525 = vpop.f32.mrf.mxu0
        %v9526 = vadd.f32 0.0, %v9525
        %v9527 = vpop.f32.mrf.mxu0
        %v9528 = vadd.f32 0.0, %v9527
        %9529 = vmatmul.bf16.gmra.mxu0 %v8539
        %v9530 = vpop.f32.mrf.mxu0
        %v9531 = vadd.f32 0.0, %v9530
        %v9532 = vpop.f32.mrf.mxu0
        %v9533 = vadd.f32 0.0, %v9532
        %9534 = vmatmul.bf16.gmra.mxu0 %v8540
        %v9535 = vpop.f32.mrf.mxu0
        %v9536 = vadd.f32 0.0, %v9535
        %v9537 = vpop.f32.mrf.mxu0
        %v9538 = vadd.f32 0.0, %v9537
        %9539 = vmatmul.bf16.gmra.mxu0 %v8541
        %v9540 = vpop.f32.mrf.mxu0
        %v9541 = vadd.f32 0.0, %v9540
        %v9542 = vpop.f32.mrf.mxu0
        %v9543 = vadd.f32 0.0, %v9542
        %9544 = vmatmul.bf16.gmra.mxu0 %v8542
        %v9545 = vpop.f32.mrf.mxu0
        %v9546 = vadd.f32 0.0, %v9545
        %v9547 = vpop.f32.mrf.mxu0
        %v9548 = vadd.f32 0.0, %v9547
        %9549 = vmatmul.bf16.gmra.mxu0 %v8543
        %v9550 = vpop.f32.mrf.mxu0
        %v9551 = vadd.f32 0.0, %v9550
        %v9552 = vpop.f32.mrf.mxu0
        %v9553 = vadd.f32 0.0, %v9552
        %9554 = vmatmul.bf16.gmra.mxu0 %v8544
        %v9555 = vpop.f32.mrf.mxu0
        %v9556 = vadd.f32 0.0, %v9555
        %v9557 = vpop.f32.mrf.mxu0
        %v9558 = vadd.f32 0.0, %v9557
        %9559 = vmatmul.bf16.gmra.mxu0 %v8545
        %v9560 = vpop.f32.mrf.mxu0
        %v9561 = vadd.f32 0.0, %v9560
        %v9562 = vpop.f32.mrf.mxu0
        %v9563 = vadd.f32 0.0, %v9562
        %9564 = vdwg.mxu0
        %9565 = vmatpush.bf16.msra.mxu0 %v9325
        %9566 = vmatpush.bf16.msra.mxu0 %v9309
        %9567 = vmatpush.bf16.msra.mxu0 %v9293
        %9568 = vmatpush.bf16.msra.mxu0 %v9277
        %9569 = vmatpush.bf16.msra.mxu0 %v9261
        %9570 = vmatpush.bf16.msra.mxu0 %v9245
        %9571 = vmatpush.bf16.msra.mxu0 %v9229
        %9572 = vmatpush.bf16.msra.mxu0 %v9213
        %9573 = vmatmul.bf16.gmra.mxu0 %v8538
        %v9574 = vpop.f32.mrf.mxu0
        %v9575 = vadd.f32 0.0, %v9574
        %v9576 = vpop.f32.mrf.mxu0
        %v9577 = vadd.f32 0.0, %v9576
        %9578 = vmatmul.bf16.gmra.mxu0 %v8539
        %v9579 = vpop.f32.mrf.mxu0
        %v9580 = vadd.f32 0.0, %v9579
        %v9581 = vpop.f32.mrf.mxu0
        %v9582 = vadd.f32 0.0, %v9581
        %9583 = vmatmul.bf16.gmra.mxu0 %v8540
        %v9584 = vpop.f32.mrf.mxu0
        %v9585 = vadd.f32 0.0, %v9584
        %v9586 = vpop.f32.mrf.mxu0
        %v9587 = vadd.f32 0.0, %v9586
        %9588 = vmatmul.bf16.gmra.mxu0 %v8541
        %v9589 = vpop.f32.mrf.mxu0
        %v9590 = vadd.f32 0.0, %v9589
        %v9591 = vpop.f32.mrf.mxu0
        %v9592 = vadd.f32 0.0, %v9591
        %9593 = vmatmul.bf16.gmra.mxu0 %v8542
        %v9594 = vpop.f32.mrf.mxu0
        %v9595 = vadd.f32 0.0, %v9594
        %v9596 = vpop.f32.mrf.mxu0
        %v9597 = vadd.f32 0.0, %v9596
        %9598 = vmatmul.bf16.gmra.mxu0 %v8543
        %v9599 = vpop.f32.mrf.mxu0
        %v9600 = vadd.f32 0.0, %v9599
        %v9601 = vpop.f32.mrf.mxu0
        %v9602 = vadd.f32 0.0, %v9601
        %9603 = vmatmul.bf16.gmra.mxu0 %v8544
        %v9604 = vpop.f32.mrf.mxu0
        %v9605 = vadd.f32 0.0, %v9604
        %v9606 = vpop.f32.mrf.mxu0
        %v9607 = vadd.f32 0.0, %v9606
        %9608 = vmatmul.bf16.gmra.mxu0 %v8545
        %v9609 = vpop.f32.mrf.mxu0
        %v9610 = vadd.f32 0.0, %v9609
        %v9611 = vpop.f32.mrf.mxu0
        %v9612 = vadd.f32 0.0, %v9611
        %9613 = vdwg.mxu0
        %9614 = vmatpush.bf16.msra.mxu0 %v9326
        %9615 = vmatpush.bf16.msra.mxu0 %v9310
        %9616 = vmatpush.bf16.msra.mxu0 %v9294
        %9617 = vmatpush.bf16.msra.mxu0 %v9278
        %9618 = vmatpush.bf16.msra.mxu0 %v9262
        %9619 = vmatpush.bf16.msra.mxu0 %v9246
        %9620 = vmatpush.bf16.msra.mxu0 %v9230
        %9621 = vmatpush.bf16.msra.mxu0 %v9214
        %9622 = vmatmul.bf16.gmra.mxu0 %v8538
        %v9623 = vpop.f32.mrf.mxu0
        %v9624 = vadd.f32 0.0, %v9623
        %v9625 = vpop.f32.mrf.mxu0
        %v9626 = vadd.f32 0.0, %v9625
        %9627 = vmatmul.bf16.gmra.mxu0 %v8539
        %v9628 = vpop.f32.mrf.mxu0
        %v9629 = vadd.f32 0.0, %v9628
        %v9630 = vpop.f32.mrf.mxu0
        %v9631 = vadd.f32 0.0, %v9630
        %9632 = vmatmul.bf16.gmra.mxu0 %v8540
        %v9633 = vpop.f32.mrf.mxu0
        %v9634 = vadd.f32 0.0, %v9633
        %v9635 = vpop.f32.mrf.mxu0
        %v9636 = vadd.f32 0.0, %v9635
        %9637 = vmatmul.bf16.gmra.mxu0 %v8541
        %v9638 = vpop.f32.mrf.mxu0
        %v9639 = vadd.f32 0.0, %v9638
        %v9640 = vpop.f32.mrf.mxu0
        %v9641 = vadd.f32 0.0, %v9640
        %9642 = vmatmul.bf16.gmra.mxu0 %v8542
        %v9643 = vpop.f32.mrf.mxu0
        %v9644 = vadd.f32 0.0, %v9643
        %v9645 = vpop.f32.mrf.mxu0
        %v9646 = vadd.f32 0.0, %v9645
        %9647 = vmatmul.bf16.gmra.mxu0 %v8543
        %v9648 = vpop.f32.mrf.mxu0
        %v9649 = vadd.f32 0.0, %v9648
        %v9650 = vpop.f32.mrf.mxu0
        %v9651 = vadd.f32 0.0, %v9650
        %9652 = vmatmul.bf16.gmra.mxu0 %v8544
        %v9653 = vpop.f32.mrf.mxu0
        %v9654 = vadd.f32 0.0, %v9653
        %v9655 = vpop.f32.mrf.mxu0
        %v9656 = vadd.f32 0.0, %v9655
        %9657 = vmatmul.bf16.gmra.mxu0 %v8545
        %v9658 = vpop.f32.mrf.mxu0
        %v9659 = vadd.f32 0.0, %v9658
        %v9660 = vpop.f32.mrf.mxu0
        %v9661 = vadd.f32 0.0, %v9660
        %9662 = vdwg.mxu0
        %9663 = vmatpush.bf16.msra.mxu0 %v9327
        %9664 = vmatpush.bf16.msra.mxu0 %v9311
        %9665 = vmatpush.bf16.msra.mxu0 %v9295
        %9666 = vmatpush.bf16.msra.mxu0 %v9279
        %9667 = vmatpush.bf16.msra.mxu0 %v9263
        %9668 = vmatpush.bf16.msra.mxu0 %v9247
        %9669 = vmatpush.bf16.msra.mxu0 %v9231
        %9670 = vmatpush.bf16.msra.mxu0 %v9215
        %9671 = vmatmul.bf16.gmra.mxu0 %v8538
        %v9672 = vpop.f32.mrf.mxu0
        %v9673 = vadd.f32 0.0, %v9672
        %v9674 = vpop.f32.mrf.mxu0
        %v9675 = vadd.f32 0.0, %v9674
        %9676 = vmatmul.bf16.gmra.mxu0 %v8539
        %v9677 = vpop.f32.mrf.mxu0
        %v9678 = vadd.f32 0.0, %v9677
        %v9679 = vpop.f32.mrf.mxu0
        %v9680 = vadd.f32 0.0, %v9679
        %9681 = vmatmul.bf16.gmra.mxu0 %v8540
        %v9682 = vpop.f32.mrf.mxu0
        %v9683 = vadd.f32 0.0, %v9682
        %v9684 = vpop.f32.mrf.mxu0
        %v9685 = vadd.f32 0.0, %v9684
        %9686 = vmatmul.bf16.gmra.mxu0 %v8541
        %v9687 = vpop.f32.mrf.mxu0
        %v9688 = vadd.f32 0.0, %v9687
        %v9689 = vpop.f32.mrf.mxu0
        %v9690 = vadd.f32 0.0, %v9689
        %9691 = vmatmul.bf16.gmra.mxu0 %v8542
        %v9692 = vpop.f32.mrf.mxu0
        %v9693 = vadd.f32 0.0, %v9692
        %v9694 = vpop.f32.mrf.mxu0
        %v9695 = vadd.f32 0.0, %v9694
        %9696 = vmatmul.bf16.gmra.mxu0 %v8543
        %v9697 = vpop.f32.mrf.mxu0
        %v9698 = vadd.f32 0.0, %v9697
        %v9699 = vpop.f32.mrf.mxu0
        %v9700 = vadd.f32 0.0, %v9699
        %9701 = vmatmul.bf16.gmra.mxu0 %v8544
        %v9702 = vpop.f32.mrf.mxu0
        %v9703 = vadd.f32 0.0, %v9702
        %v9704 = vpop.f32.mrf.mxu0
        %v9705 = vadd.f32 0.0, %v9704
        %9706 = vmatmul.bf16.gmra.mxu0 %v8545
        %v9707 = vpop.f32.mrf.mxu0
        %v9708 = vadd.f32 0.0, %v9707
        %v9709 = vpop.f32.mrf.mxu0
        %v9710 = vadd.f32 0.0, %v9709
        %9711 = vdwg.mxu0
        %9712 = vmatpush.bf16.msra.mxu0 %v9328
        %9713 = vmatpush.bf16.msra.mxu0 %v9312
        %9714 = vmatpush.bf16.msra.mxu0 %v9296
        %9715 = vmatpush.bf16.msra.mxu0 %v9280
        %9716 = vmatpush.bf16.msra.mxu0 %v9264
        %9717 = vmatpush.bf16.msra.mxu0 %v9248
        %9718 = vmatpush.bf16.msra.mxu0 %v9232
        %9719 = vmatpush.bf16.msra.mxu0 %v9216
        %9720 = vmatmul.bf16.gmra.mxu0 %v8538
        %v9721 = vpop.f32.mrf.mxu0
        %v9722 = vadd.f32 0.0, %v9721
        %v9723 = vpop.f32.mrf.mxu0
        %v9724 = vadd.f32 0.0, %v9723
        %9725 = vmatmul.bf16.gmra.mxu0 %v8539
        %v9726 = vpop.f32.mrf.mxu0
        %v9727 = vadd.f32 0.0, %v9726
        %v9728 = vpop.f32.mrf.mxu0
        %v9729 = vadd.f32 0.0, %v9728
        %9730 = vmatmul.bf16.gmra.mxu0 %v8540
        %v9731 = vpop.f32.mrf.mxu0
        %v9732 = vadd.f32 0.0, %v9731
        %v9733 = vpop.f32.mrf.mxu0
        %v9734 = vadd.f32 0.0, %v9733
        %9735 = vmatmul.bf16.gmra.mxu0 %v8541
        %v9736 = vpop.f32.mrf.mxu0
        %v9737 = vadd.f32 0.0, %v9736
        %v9738 = vpop.f32.mrf.mxu0
        %v9739 = vadd.f32 0.0, %v9738
        %9740 = vmatmul.bf16.gmra.mxu0 %v8542
        %v9741 = vpop.f32.mrf.mxu0
        %v9742 = vadd.f32 0.0, %v9741
        %v9743 = vpop.f32.mrf.mxu0
        %v9744 = vadd.f32 0.0, %v9743
        %9745 = vmatmul.bf16.gmra.mxu0 %v8543
        %v9746 = vpop.f32.mrf.mxu0
        %v9747 = vadd.f32 0.0, %v9746
        %v9748 = vpop.f32.mrf.mxu0
        %v9749 = vadd.f32 0.0, %v9748
        %9750 = vmatmul.bf16.gmra.mxu0 %v8544
        %v9751 = vpop.f32.mrf.mxu0
        %v9752 = vadd.f32 0.0, %v9751
        %v9753 = vpop.f32.mrf.mxu0
        %v9754 = vadd.f32 0.0, %v9753
        %9755 = vmatmul.bf16.gmra.mxu0 %v8545
        %v9756 = vpop.f32.mrf.mxu0
        %v9757 = vadd.f32 0.0, %v9756
        %v9758 = vpop.f32.mrf.mxu0
        %v9759 = vadd.f32 0.0, %v9758
        %9760 = vdwg.mxu0
        %9761 = vmatpush.bf16.msra.mxu0 %v9329
        %9762 = vmatpush.bf16.msra.mxu0 %v9313
        %9763 = vmatpush.bf16.msra.mxu0 %v9297
        %9764 = vmatpush.bf16.msra.mxu0 %v9281
        %9765 = vmatpush.bf16.msra.mxu0 %v9265
        %9766 = vmatpush.bf16.msra.mxu0 %v9249
        %9767 = vmatpush.bf16.msra.mxu0 %v9233
        %9768 = vmatpush.bf16.msra.mxu0 %v9217
        %9769 = vmatmul.bf16.gmra.mxu0 %v8538
        %v9770 = vpop.f32.mrf.mxu0
        %v9771 = vadd.f32 0.0, %v9770
        %v9772 = vpop.f32.mrf.mxu0
        %v9773 = vadd.f32 0.0, %v9772
        %9774 = vmatmul.bf16.gmra.mxu0 %v8539
        %v9775 = vpop.f32.mrf.mxu0
        %v9776 = vadd.f32 0.0, %v9775
        %v9777 = vpop.f32.mrf.mxu0
        %v9778 = vadd.f32 0.0, %v9777
        %9779 = vmatmul.bf16.gmra.mxu0 %v8540
        %v9780 = vpop.f32.mrf.mxu0
        %v9781 = vadd.f32 0.0, %v9780
        %v9782 = vpop.f32.mrf.mxu0
        %v9783 = vadd.f32 0.0, %v9782
        %9784 = vmatmul.bf16.gmra.mxu0 %v8541
        %v9785 = vpop.f32.mrf.mxu0
        %v9786 = vadd.f32 0.0, %v9785
        %v9787 = vpop.f32.mrf.mxu0
        %v9788 = vadd.f32 0.0, %v9787
        %9789 = vmatmul.bf16.gmra.mxu0 %v8542
        %v9790 = vpop.f32.mrf.mxu0
        %v9791 = vadd.f32 0.0, %v9790
        %v9792 = vpop.f32.mrf.mxu0
        %v9793 = vadd.f32 0.0, %v9792
        %9794 = vmatmul.bf16.gmra.mxu0 %v8543
        %v9795 = vpop.f32.mrf.mxu0
        %v9796 = vadd.f32 0.0, %v9795
        %v9797 = vpop.f32.mrf.mxu0
        %v9798 = vadd.f32 0.0, %v9797
        %9799 = vmatmul.bf16.gmra.mxu0 %v8544
        %v9800 = vpop.f32.mrf.mxu0
        %v9801 = vadd.f32 0.0, %v9800
        %v9802 = vpop.f32.mrf.mxu0
        %v9803 = vadd.f32 0.0, %v9802
        %9804 = vmatmul.bf16.gmra.mxu0 %v8545
        %v9805 = vpop.f32.mrf.mxu0
        %v9806 = vadd.f32 0.0, %v9805
        %v9807 = vpop.f32.mrf.mxu0
        %v9808 = vadd.f32 0.0, %v9807
        %9809 = vdwg.mxu0
        %9810 = vmatpush.bf16.msra.mxu0 %v9330
        %9811 = vmatpush.bf16.msra.mxu0 %v9314
        %9812 = vmatpush.bf16.msra.mxu0 %v9298
        %9813 = vmatpush.bf16.msra.mxu0 %v9282
        %9814 = vmatpush.bf16.msra.mxu0 %v9266
        %9815 = vmatpush.bf16.msra.mxu0 %v9250
        %9816 = vmatpush.bf16.msra.mxu0 %v9234
        %9817 = vmatpush.bf16.msra.mxu0 %v9218
        %9818 = vmatmul.bf16.gmra.mxu0 %v8538
        %v9819 = vpop.f32.mrf.mxu0
        %v9820 = vadd.f32 0.0, %v9819
        %v9821 = vpop.f32.mrf.mxu0
        %v9822 = vadd.f32 0.0, %v9821
        %9823 = vmatmul.bf16.gmra.mxu0 %v8539
        %v9824 = vpop.f32.mrf.mxu0
        %v9825 = vadd.f32 0.0, %v9824
        %v9826 = vpop.f32.mrf.mxu0
        %v9827 = vadd.f32 0.0, %v9826
        %9828 = vmatmul.bf16.gmra.mxu0 %v8540
        %v9829 = vpop.f32.mrf.mxu0
        %v9830 = vadd.f32 0.0, %v9829
        %v9831 = vpop.f32.mrf.mxu0
        %v9832 = vadd.f32 0.0, %v9831
        %9833 = vmatmul.bf16.gmra.mxu0 %v8541
        %v9834 = vpop.f32.mrf.mxu0
        %v9835 = vadd.f32 0.0, %v9834
        %v9836 = vpop.f32.mrf.mxu0
        %v9837 = vadd.f32 0.0, %v9836
        %9838 = vmatmul.bf16.gmra.mxu0 %v8542
        %v9839 = vpop.f32.mrf.mxu0
        %v9840 = vadd.f32 0.0, %v9839
        %v9841 = vpop.f32.mrf.mxu0
        %v9842 = vadd.f32 0.0, %v9841
        %9843 = vmatmul.bf16.gmra.mxu0 %v8543
        %v9844 = vpop.f32.mrf.mxu0
        %v9845 = vadd.f32 0.0, %v9844
        %v9846 = vpop.f32.mrf.mxu0
        %v9847 = vadd.f32 0.0, %v9846
        %9848 = vmatmul.bf16.gmra.mxu0 %v8544
        %v9849 = vpop.f32.mrf.mxu0
        %v9850 = vadd.f32 0.0, %v9849
        %v9851 = vpop.f32.mrf.mxu0
        %v9852 = vadd.f32 0.0, %v9851
        %9853 = vmatmul.bf16.gmra.mxu0 %v8545
        %v9854 = vpop.f32.mrf.mxu0
        %v9855 = vadd.f32 0.0, %v9854
        %v9856 = vpop.f32.mrf.mxu0
        %v9857 = vadd.f32 0.0, %v9856
        %9858 = vdwg.mxu0
        %9859 = vmatpush.bf16.msra.mxu0 %v9331
        %9860 = vmatpush.bf16.msra.mxu0 %v9315
        %9861 = vmatpush.bf16.msra.mxu0 %v9299
        %9862 = vmatpush.bf16.msra.mxu0 %v9283
        %9863 = vmatpush.bf16.msra.mxu0 %v9267
        %9864 = vmatpush.bf16.msra.mxu0 %v9251
        %9865 = vmatpush.bf16.msra.mxu0 %v9235
        %9866 = vmatpush.bf16.msra.mxu0 %v9219
        %9867 = vmatmul.bf16.gmra.mxu0 %v8538
        %v9868 = vpop.f32.mrf.mxu0
        %v9869 = vadd.f32 0.0, %v9868
        %v9870 = vpop.f32.mrf.mxu0
        %v9871 = vadd.f32 0.0, %v9870
        %9872 = vmatmul.bf16.gmra.mxu0 %v8539
        %v9873 = vpop.f32.mrf.mxu0
        %v9874 = vadd.f32 0.0, %v9873
        %v9875 = vpop.f32.mrf.mxu0
        %v9876 = vadd.f32 0.0, %v9875
        %9877 = vmatmul.bf16.gmra.mxu0 %v8540
        %v9878 = vpop.f32.mrf.mxu0
        %v9879 = vadd.f32 0.0, %v9878
        %v9880 = vpop.f32.mrf.mxu0
        %v9881 = vadd.f32 0.0, %v9880
        %9882 = vmatmul.bf16.gmra.mxu0 %v8541
        %v9883 = vpop.f32.mrf.mxu0
        %v9884 = vadd.f32 0.0, %v9883
        %v9885 = vpop.f32.mrf.mxu0
        %v9886 = vadd.f32 0.0, %v9885
        %9887 = vmatmul.bf16.gmra.mxu0 %v8542
        %v9888 = vpop.f32.mrf.mxu0
        %v9889 = vadd.f32 0.0, %v9888
        %v9890 = vpop.f32.mrf.mxu0
        %v9891 = vadd.f32 0.0, %v9890
        %9892 = vmatmul.bf16.gmra.mxu0 %v8543
        %v9893 = vpop.f32.mrf.mxu0
        %v9894 = vadd.f32 0.0, %v9893
        %v9895 = vpop.f32.mrf.mxu0
        %v9896 = vadd.f32 0.0, %v9895
        %9897 = vmatmul.bf16.gmra.mxu0 %v8544
        %v9898 = vpop.f32.mrf.mxu0
        %v9899 = vadd.f32 0.0, %v9898
        %v9900 = vpop.f32.mrf.mxu0
        %v9901 = vadd.f32 0.0, %v9900
        %9902 = vmatmul.bf16.gmra.mxu0 %v8545
        %v9903 = vpop.f32.mrf.mxu0
        %v9904 = vadd.f32 0.0, %v9903
        %v9905 = vpop.f32.mrf.mxu0
        %v9906 = vadd.f32 0.0, %v9905
        %9907 = vdwg.mxu0
        %9908 = vmatpush.bf16.msra.mxu0 %v9332
        %9909 = vmatpush.bf16.msra.mxu0 %v9316
        %9910 = vmatpush.bf16.msra.mxu0 %v9300
        %9911 = vmatpush.bf16.msra.mxu0 %v9284
        %9912 = vmatpush.bf16.msra.mxu0 %v9268
        %9913 = vmatpush.bf16.msra.mxu0 %v9252
        %9914 = vmatpush.bf16.msra.mxu0 %v9236
        %9915 = vmatpush.bf16.msra.mxu0 %v9220
        %9916 = vmatmul.bf16.gmra.mxu0 %v8538
        %v9917 = vpop.f32.mrf.mxu0
        %v9918 = vadd.f32 0.0, %v9917
        %v9919 = vpop.f32.mrf.mxu0
        %v9920 = vadd.f32 0.0, %v9919
        %9921 = vmatmul.bf16.gmra.mxu0 %v8539
        %v9922 = vpop.f32.mrf.mxu0
        %v9923 = vadd.f32 0.0, %v9922
        %v9924 = vpop.f32.mrf.mxu0
        %v9925 = vadd.f32 0.0, %v9924
        %9926 = vmatmul.bf16.gmra.mxu0 %v8540
        %v9927 = vpop.f32.mrf.mxu0
        %v9928 = vadd.f32 0.0, %v9927
        %v9929 = vpop.f32.mrf.mxu0
        %v9930 = vadd.f32 0.0, %v9929
        %9931 = vmatmul.bf16.gmra.mxu0 %v8541
        %v9932 = vpop.f32.mrf.mxu0
        %v9933 = vadd.f32 0.0, %v9932
        %v9934 = vpop.f32.mrf.mxu0
        %v9935 = vadd.f32 0.0, %v9934
        %9936 = vmatmul.bf16.gmra.mxu0 %v8542
        %v9937 = vpop.f32.mrf.mxu0
        %v9938 = vadd.f32 0.0, %v9937
        %v9939 = vpop.f32.mrf.mxu0
        %v9940 = vadd.f32 0.0, %v9939
        %9941 = vmatmul.bf16.gmra.mxu0 %v8543
        %v9942 = vpop.f32.mrf.mxu0
        %v9943 = vadd.f32 0.0, %v9942
        %v9944 = vpop.f32.mrf.mxu0
        %v9945 = vadd.f32 0.0, %v9944
        %9946 = vmatmul.bf16.gmra.mxu0 %v8544
        %v9947 = vpop.f32.mrf.mxu0
        %v9948 = vadd.f32 0.0, %v9947
        %v9949 = vpop.f32.mrf.mxu0
        %v9950 = vadd.f32 0.0, %v9949
        %9951 = vmatmul.bf16.gmra.mxu0 %v8545
        %v9952 = vpop.f32.mrf.mxu0
        %v9953 = vadd.f32 0.0, %v9952
        %v9954 = vpop.f32.mrf.mxu0
        %v9955 = vadd.f32 0.0, %v9954
        %9956 = vdwg.mxu0
        %9957 = vmatpush.bf16.msra.mxu0 %v9333
        %9958 = vmatpush.bf16.msra.mxu0 %v9317
        %9959 = vmatpush.bf16.msra.mxu0 %v9301
        %9960 = vmatpush.bf16.msra.mxu0 %v9285
        %9961 = vmatpush.bf16.msra.mxu0 %v9269
        %9962 = vmatpush.bf16.msra.mxu0 %v9253
        %9963 = vmatpush.bf16.msra.mxu0 %v9237
        %9964 = vmatpush.bf16.msra.mxu0 %v9221
        %9965 = vmatmul.bf16.gmra.mxu0 %v8538
        %v9966 = vpop.f32.mrf.mxu0
        %v9967 = vadd.f32 0.0, %v9966
        %v9968 = vpop.f32.mrf.mxu0
        %v9969 = vadd.f32 0.0, %v9968
        %9970 = vmatmul.bf16.gmra.mxu0 %v8539
        %v9971 = vpop.f32.mrf.mxu0
        %v9972 = vadd.f32 0.0, %v9971
        %v9973 = vpop.f32.mrf.mxu0
        %v9974 = vadd.f32 0.0, %v9973
        %9975 = vmatmul.bf16.gmra.mxu0 %v8540
        %v9976 = vpop.f32.mrf.mxu0
        %v9977 = vadd.f32 0.0, %v9976
        %v9978 = vpop.f32.mrf.mxu0
        %v9979 = vadd.f32 0.0, %v9978
        %9980 = vmatmul.bf16.gmra.mxu0 %v8541
        %v9981 = vpop.f32.mrf.mxu0
        %v9982 = vadd.f32 0.0, %v9981
        %v9983 = vpop.f32.mrf.mxu0
        %v9984 = vadd.f32 0.0, %v9983
        %9985 = vmatmul.bf16.gmra.mxu0 %v8542
        %v9986 = vpop.f32.mrf.mxu0
        %v9987 = vadd.f32 0.0, %v9986
        %v9988 = vpop.f32.mrf.mxu0
        %v9989 = vadd.f32 0.0, %v9988
        %9990 = vmatmul.bf16.gmra.mxu0 %v8543
        %v9991 = vpop.f32.mrf.mxu0
        %v9992 = vadd.f32 0.0, %v9991
        %v9993 = vpop.f32.mrf.mxu0
        %v9994 = vadd.f32 0.0, %v9993
        %9995 = vmatmul.bf16.gmra.mxu0 %v8544
        %v9996 = vpop.f32.mrf.mxu0
        %v9997 = vadd.f32 0.0, %v9996
        %v9998 = vpop.f32.mrf.mxu0
        %v9999 = vadd.f32 0.0, %v9998
        %10000 = vmatmul.bf16.gmra.mxu0 %v8545
        %v10001 = vpop.f32.mrf.mxu0
        %v10002 = vadd.f32 0.0, %v10001
        %v10003 = vpop.f32.mrf.mxu0
        %v10004 = vadd.f32 0.0, %v10003
        %10005 = vdwg.mxu0
        %10006 = vmatpush.bf16.msra.mxu0 %v9334
        %10007 = vmatpush.bf16.msra.mxu0 %v9318
        %10008 = vmatpush.bf16.msra.mxu0 %v9302
        %10009 = vmatpush.bf16.msra.mxu0 %v9286
        %10010 = vmatpush.bf16.msra.mxu0 %v9270
        %10011 = vmatpush.bf16.msra.mxu0 %v9254
        %10012 = vmatpush.bf16.msra.mxu0 %v9238
        %10013 = vmatpush.bf16.msra.mxu0 %v9222
        %10014 = vmatmul.bf16.gmra.mxu0 %v8538
        %v10015 = vpop.f32.mrf.mxu0
        %v10016 = vadd.f32 0.0, %v10015
        %v10017 = vpop.f32.mrf.mxu0
        %v10018 = vadd.f32 0.0, %v10017
        %10019 = vmatmul.bf16.gmra.mxu0 %v8539
        %v10020 = vpop.f32.mrf.mxu0
        %v10021 = vadd.f32 0.0, %v10020
        %v10022 = vpop.f32.mrf.mxu0
        %v10023 = vadd.f32 0.0, %v10022
        %10024 = vmatmul.bf16.gmra.mxu0 %v8540
        %v10025 = vpop.f32.mrf.mxu0
        %v10026 = vadd.f32 0.0, %v10025
        %v10027 = vpop.f32.mrf.mxu0
        %v10028 = vadd.f32 0.0, %v10027
        %10029 = vmatmul.bf16.gmra.mxu0 %v8541
        %v10030 = vpop.f32.mrf.mxu0
        %v10031 = vadd.f32 0.0, %v10030
        %v10032 = vpop.f32.mrf.mxu0
        %v10033 = vadd.f32 0.0, %v10032
        %10034 = vmatmul.bf16.gmra.mxu0 %v8542
        %v10035 = vpop.f32.mrf.mxu0
        %v10036 = vadd.f32 0.0, %v10035
        %v10037 = vpop.f32.mrf.mxu0
        %v10038 = vadd.f32 0.0, %v10037
        %10039 = vmatmul.bf16.gmra.mxu0 %v8543
        %v10040 = vpop.f32.mrf.mxu0
        %v10041 = vadd.f32 0.0, %v10040
        %v10042 = vpop.f32.mrf.mxu0
        %v10043 = vadd.f32 0.0, %v10042
        %10044 = vmatmul.bf16.gmra.mxu0 %v8544
        %v10045 = vpop.f32.mrf.mxu0
        %v10046 = vadd.f32 0.0, %v10045
        %v10047 = vpop.f32.mrf.mxu0
        %v10048 = vadd.f32 0.0, %v10047
        %10049 = vmatmul.bf16.gmra.mxu0 %v8545
        %v10050 = vpop.f32.mrf.mxu0
        %v10051 = vadd.f32 0.0, %v10050
        %v10052 = vpop.f32.mrf.mxu0
        %v10053 = vadd.f32 0.0, %v10052
        %10054 = vdwg.mxu0
        %10055 = vmatpush.bf16.msra.mxu0 %v9335
        %10056 = vmatpush.bf16.msra.mxu0 %v9319
        %10057 = vmatpush.bf16.msra.mxu0 %v9303
        %10058 = vmatpush.bf16.msra.mxu0 %v9287
        %10059 = vmatpush.bf16.msra.mxu0 %v9271
        %10060 = vmatpush.bf16.msra.mxu0 %v9255
        %10061 = vmatpush.bf16.msra.mxu0 %v9239
        %10062 = vmatpush.bf16.msra.mxu0 %v9223
        %10063 = vmatmul.bf16.gmra.mxu0 %v8538
        %v10064 = vpop.f32.mrf.mxu0
        %v10065 = vadd.f32 0.0, %v10064
        %v10066 = vpop.f32.mrf.mxu0
        %v10067 = vadd.f32 0.0, %v10066
        %10068 = vmatmul.bf16.gmra.mxu0 %v8539
        %v10069 = vpop.f32.mrf.mxu0
        %v10070 = vadd.f32 0.0, %v10069
        %v10071 = vpop.f32.mrf.mxu0
        %v10072 = vadd.f32 0.0, %v10071
        %10073 = vmatmul.bf16.gmra.mxu0 %v8540
        %v10074 = vpop.f32.mrf.mxu0
        %v10075 = vadd.f32 0.0, %v10074
        %v10076 = vpop.f32.mrf.mxu0
        %v10077 = vadd.f32 0.0, %v10076
        %10078 = vmatmul.bf16.gmra.mxu0 %v8541
        %v10079 = vpop.f32.mrf.mxu0
        %v10080 = vadd.f32 0.0, %v10079
        %v10081 = vpop.f32.mrf.mxu0
        %v10082 = vadd.f32 0.0, %v10081
        %10083 = vmatmul.bf16.gmra.mxu0 %v8542
        %v10084 = vpop.f32.mrf.mxu0
        %v10085 = vadd.f32 0.0, %v10084
        %v10086 = vpop.f32.mrf.mxu0
        %v10087 = vadd.f32 0.0, %v10086
        %10088 = vmatmul.bf16.gmra.mxu0 %v8543
        %v10089 = vpop.f32.mrf.mxu0
        %v10090 = vadd.f32 0.0, %v10089
        %v10091 = vpop.f32.mrf.mxu0
        %v10092 = vadd.f32 0.0, %v10091
        %10093 = vmatmul.bf16.gmra.mxu0 %v8544
        %v10094 = vpop.f32.mrf.mxu0
        %v10095 = vadd.f32 0.0, %v10094
        %v10096 = vpop.f32.mrf.mxu0
        %v10097 = vadd.f32 0.0, %v10096
        %10098 = vmatmul.bf16.gmra.mxu0 %v8545
        %v10099 = vpop.f32.mrf.mxu0
        %v10100 = vadd.f32 0.0, %v10099
        %v10101 = vpop.f32.mrf.mxu0
        %v10102 = vadd.f32 0.0, %v10101
        %10103 = vdwg.mxu0
        %10104 = vmatpush.bf16.msra.mxu0 %v9336
        %10105 = vmatpush.bf16.msra.mxu0 %v9320
        %10106 = vmatpush.bf16.msra.mxu0 %v9304
        %10107 = vmatpush.bf16.msra.mxu0 %v9288
        %10108 = vmatpush.bf16.msra.mxu0 %v9272
        %10109 = vmatpush.bf16.msra.mxu0 %v9256
        %10110 = vmatpush.bf16.msra.mxu0 %v9240
        %10111 = vmatpush.bf16.msra.mxu0 %v9224
        %10112 = vmatmul.bf16.gmra.mxu0 %v8538
        %v10113 = vpop.f32.mrf.mxu0
        %v10114 = vadd.f32 0.0, %v10113
        %v10115 = vpop.f32.mrf.mxu0
        %v10116 = vadd.f32 0.0, %v10115
        %10117 = vmatmul.bf16.gmra.mxu0 %v8539
        %v10118 = vpop.f32.mrf.mxu0
        %v10119 = vadd.f32 0.0, %v10118
        %v10120 = vpop.f32.mrf.mxu0
        %v10121 = vadd.f32 0.0, %v10120
        %10122 = vmatmul.bf16.gmra.mxu0 %v8540
        %v10123 = vpop.f32.mrf.mxu0
        %v10124 = vadd.f32 0.0, %v10123
        %v10125 = vpop.f32.mrf.mxu0
        %v10126 = vadd.f32 0.0, %v10125
        %10127 = vmatmul.bf16.gmra.mxu0 %v8541
        %v10128 = vpop.f32.mrf.mxu0
        %v10129 = vadd.f32 0.0, %v10128
        %v10130 = vpop.f32.mrf.mxu0
        %v10131 = vadd.f32 0.0, %v10130
        %10132 = vmatmul.bf16.gmra.mxu0 %v8542
        %v10133 = vpop.f32.mrf.mxu0
        %v10134 = vadd.f32 0.0, %v10133
        %v10135 = vpop.f32.mrf.mxu0
        %v10136 = vadd.f32 0.0, %v10135
        %10137 = vmatmul.bf16.gmra.mxu0 %v8543
        %v10138 = vpop.f32.mrf.mxu0
        %v10139 = vadd.f32 0.0, %v10138
        %v10140 = vpop.f32.mrf.mxu0
        %v10141 = vadd.f32 0.0, %v10140
        %10142 = vmatmul.bf16.gmra.mxu0 %v8544
        %v10143 = vpop.f32.mrf.mxu0
        %v10144 = vadd.f32 0.0, %v10143
        %v10145 = vpop.f32.mrf.mxu0
        %v10146 = vadd.f32 0.0, %v10145
        %10147 = vmatmul.bf16.gmra.mxu0 %v8545
        %v10148 = vpop.f32.mrf.mxu0
        %v10149 = vadd.f32 0.0, %v10148
        %v10150 = vpop.f32.mrf.mxu0
        %v10151 = vadd.f32 0.0, %v10150
        %10152 = vdwg.mxu0
        %10153 = vmatpush.bf16.msra.mxu0 %v9337
        %10154 = vmatpush.bf16.msra.mxu0 %v9321
        %10155 = vmatpush.bf16.msra.mxu0 %v9305
        %10156 = vmatpush.bf16.msra.mxu0 %v9289
        %10157 = vmatpush.bf16.msra.mxu0 %v9273
        %10158 = vmatpush.bf16.msra.mxu0 %v9257
        %10159 = vmatpush.bf16.msra.mxu0 %v9241
        %10160 = vmatpush.bf16.msra.mxu0 %v9225
        %10161 = vmatmul.bf16.gmra.mxu0 %v8538
        %v10162 = vpop.f32.mrf.mxu0
        %v10163 = vadd.f32 0.0, %v10162
        %v10164 = vpop.f32.mrf.mxu0
        %v10165 = vadd.f32 0.0, %v10164
        %10166 = vmatmul.bf16.gmra.mxu0 %v8539
        %v10167 = vpop.f32.mrf.mxu0
        %v10168 = vadd.f32 0.0, %v10167
        %v10169 = vpop.f32.mrf.mxu0
        %v10170 = vadd.f32 0.0, %v10169
        %10171 = vmatmul.bf16.gmra.mxu0 %v8540
        %v10172 = vpop.f32.mrf.mxu0
        %v10173 = vadd.f32 0.0, %v10172
        %v10174 = vpop.f32.mrf.mxu0
        %v10175 = vadd.f32 0.0, %v10174
        %10176 = vmatmul.bf16.gmra.mxu0 %v8541
        %v10177 = vpop.f32.mrf.mxu0
        %v10178 = vadd.f32 0.0, %v10177
        %v10179 = vpop.f32.mrf.mxu0
        %v10180 = vadd.f32 0.0, %v10179
        %10181 = vmatmul.bf16.gmra.mxu0 %v8542
        %v10182 = vpop.f32.mrf.mxu0
        %v10183 = vadd.f32 0.0, %v10182
        %v10184 = vpop.f32.mrf.mxu0
        %v10185 = vadd.f32 0.0, %v10184
        %10186 = vmatmul.bf16.gmra.mxu0 %v8543
        %v10187 = vpop.f32.mrf.mxu0
        %v10188 = vadd.f32 0.0, %v10187
        %v10189 = vpop.f32.mrf.mxu0
        %v10190 = vadd.f32 0.0, %v10189
        %10191 = vmatmul.bf16.gmra.mxu0 %v8544
        %v10192 = vpop.f32.mrf.mxu0
        %v10193 = vadd.f32 0.0, %v10192
        %v10194 = vpop.f32.mrf.mxu0
        %v10195 = vadd.f32 0.0, %v10194
        %10196 = vmatmul.bf16.gmra.mxu0 %v8545
        %v10197 = vpop.f32.mrf.mxu0
        %v10198 = vadd.f32 0.0, %v10197
        %v10199 = vpop.f32.mrf.mxu0
        %v10200 = vadd.f32 0.0, %v10199
        %10201 = vdwg.mxu0
        %10202 = vmatpush.bf16.msra.mxu0 %v9338
        %10203 = vmatpush.bf16.msra.mxu0 %v9322
        %10204 = vmatpush.bf16.msra.mxu0 %v9306
        %10205 = vmatpush.bf16.msra.mxu0 %v9290
        %10206 = vmatpush.bf16.msra.mxu0 %v9274
        %10207 = vmatpush.bf16.msra.mxu0 %v9258
        %10208 = vmatpush.bf16.msra.mxu0 %v9242
        %10209 = vmatpush.bf16.msra.mxu0 %v9226
        %10210 = vmatmul.bf16.gmra.mxu0 %v8538
        %v10211 = vpop.f32.mrf.mxu0
        %v10212 = vadd.f32 0.0, %v10211
        %v10213 = vpop.f32.mrf.mxu0
        %v10214 = vadd.f32 0.0, %v10213
        %10215 = vmatmul.bf16.gmra.mxu0 %v8539
        %v10216 = vpop.f32.mrf.mxu0
        %v10217 = vadd.f32 0.0, %v10216
        %v10218 = vpop.f32.mrf.mxu0
        %v10219 = vadd.f32 0.0, %v10218
        %10220 = vmatmul.bf16.gmra.mxu0 %v8540
        %v10221 = vpop.f32.mrf.mxu0
        %v10222 = vadd.f32 0.0, %v10221
        %v10223 = vpop.f32.mrf.mxu0
        %v10224 = vadd.f32 0.0, %v10223
        %10225 = vmatmul.bf16.gmra.mxu0 %v8541
        %v10226 = vpop.f32.mrf.mxu0
        %v10227 = vadd.f32 0.0, %v10226
        %v10228 = vpop.f32.mrf.mxu0
        %v10229 = vadd.f32 0.0, %v10228
        %10230 = vmatmul.bf16.gmra.mxu0 %v8542
        %v10231 = vpop.f32.mrf.mxu0
        %v10232 = vadd.f32 0.0, %v10231
        %v10233 = vpop.f32.mrf.mxu0
        %v10234 = vadd.f32 0.0, %v10233
        %10235 = vmatmul.bf16.gmra.mxu0 %v8543
        %v10236 = vpop.f32.mrf.mxu0
        %v10237 = vadd.f32 0.0, %v10236
        %v10238 = vpop.f32.mrf.mxu0
        %v10239 = vadd.f32 0.0, %v10238
        %10240 = vmatmul.bf16.gmra.mxu0 %v8544
        %v10241 = vpop.f32.mrf.mxu0
        %v10242 = vadd.f32 0.0, %v10241
        %v10243 = vpop.f32.mrf.mxu0
        %v10244 = vadd.f32 0.0, %v10243
        %10245 = vmatmul.bf16.gmra.mxu0 %v8545
        %v10246 = vpop.f32.mrf.mxu0
        %v10247 = vadd.f32 0.0, %v10246
        %v10248 = vpop.f32.mrf.mxu0
        %v10249 = vadd.f32 0.0, %v10248
        %10250 = vdwg.mxu0
        %10252 = vset.pattern.permute.xlu0 0
        %10253 = vperm.xlu0 %10252, %v8683
        %v10254 = vpop.permute.xlu0 %10253
        %10257 = vset.pattern.permute.xlu0 0
        %10258 = vperm.xlu0 %10257, %v8684
        %v10259 = vpop.permute.xlu0 %10258
        %10262 = vset.pattern.permute.xlu0 0
        %10263 = vperm.xlu0 %10262, %v8685
        %v10264 = vpop.permute.xlu0 %10263
        %10267 = vset.pattern.permute.xlu0 0
        %10268 = vperm.xlu0 %10267, %v8686
        %v10269 = vpop.permute.xlu0 %10268
        %10272 = vset.pattern.permute.xlu0 0
        %10273 = vperm.xlu0 %10272, %v8687
        %v10274 = vpop.permute.xlu0 %10273
        %10277 = vset.pattern.permute.xlu0 0
        %10278 = vperm.xlu0 %10277, %v8688
        %v10279 = vpop.permute.xlu0 %10278
        %10282 = vset.pattern.permute.xlu0 0
        %10283 = vperm.xlu0 %10282, %v8689
        %v10284 = vpop.permute.xlu0 %10283
        %10287 = vset.pattern.permute.xlu0 0
        %10288 = vperm.xlu0 %10287, %v8690
        %v10289 = vpop.permute.xlu0 %10288
        %10292 = vset.pattern.permute.xlu0 0
        %10293 = vperm.xlu0 %10292, %v8691
        %v10294 = vpop.permute.xlu0 %10293
        %10297 = vset.pattern.permute.xlu0 0
        %10298 = vperm.xlu0 %10297, %v8692
        %v10299 = vpop.permute.xlu0 %10298
        %10302 = vset.pattern.permute.xlu0 0
        %10303 = vperm.xlu0 %10302, %v8693
        %v10304 = vpop.permute.xlu0 %10303
        %10307 = vset.pattern.permute.xlu0 0
        %10308 = vperm.xlu0 %10307, %v8694
        %v10309 = vpop.permute.xlu0 %10308
        %10312 = vset.pattern.permute.xlu0 0
        %10313 = vperm.xlu0 %10312, %v8695
        %v10314 = vpop.permute.xlu0 %10313
        %10317 = vset.pattern.permute.xlu0 0
        %10318 = vperm.xlu0 %10317, %v8696
        %v10319 = vpop.permute.xlu0 %10318
        %10322 = vset.pattern.permute.xlu0 0
        %10323 = vperm.xlu0 %10322, %v8697
        %v10324 = vpop.permute.xlu0 %10323
        %10327 = vset.pattern.permute.xlu0 0
        %10328 = vperm.xlu0 %10327, %v8698
        %v10329 = vpop.permute.xlu0 %10328
        %v10331 = vmul.f32 %v10254, %v9477
        %v10332 = vmul.f32 %v10259, %v9479
        %v10333 = vmul.f32 %v10264, %v9482
        %v10334 = vmul.f32 %v10269, %v9484
        %v10335 = vmul.f32 %v10274, %v9487
        %v10336 = vmul.f32 %v10279, %v9489
        %v10337 = vmul.f32 %v10284, %v9492
        %v10338 = vmul.f32 %v10289, %v9494
        %v10339 = vmul.f32 %v10294, %v9497
        %v10340 = vmul.f32 %v10299, %v9499
        %v10341 = vmul.f32 %v10304, %v9502
        %v10342 = vmul.f32 %v10309, %v9504
        %v10343 = vmul.f32 %v10314, %v9507
        %v10344 = vmul.f32 %v10319, %v9509
        %v10345 = vmul.f32 %v10324, %v9512
        %v10346 = vmul.f32 %v10329, %v9514
        %v10347 = vadd.f32 %v10331, 0.0
        %v10348 = vadd.f32 %v10332, 0.0
        %v10349 = vadd.f32 %v10333, 0.0
        %v10350 = vadd.f32 %v10334, 0.0
        %v10351 = vadd.f32 %v10335, 0.0
        %v10352 = vadd.f32 %v10336, 0.0
        %v10353 = vadd.f32 %v10337, 0.0
        %v10354 = vadd.f32 %v10338, 0.0
        %v10355 = vadd.f32 %v10339, 0.0
        %v10356 = vadd.f32 %v10340, 0.0
        %v10357 = vadd.f32 %v10341, 0.0
        %v10358 = vadd.f32 %v10342, 0.0
        %v10359 = vadd.f32 %v10343, 0.0
        %v10360 = vadd.f32 %v10344, 0.0
        %v10361 = vadd.f32 %v10345, 0.0
        %v10362 = vadd.f32 %v10346, 0.0
        %10363 = vset.pattern.permute.xlu0 1
        %10364 = vperm.xlu0 %10363, %v8683
        %v10365 = vpop.permute.xlu0 %10364
        %10367 = vset.pattern.permute.xlu0 1
        %10368 = vperm.xlu0 %10367, %v8684
        %v10369 = vpop.permute.xlu0 %10368
        %10371 = vset.pattern.permute.xlu0 1
        %10372 = vperm.xlu0 %10371, %v8685
        %v10373 = vpop.permute.xlu0 %10372
        %10375 = vset.pattern.permute.xlu0 1
        %10376 = vperm.xlu0 %10375, %v8686
        %v10377 = vpop.permute.xlu0 %10376
        %10379 = vset.pattern.permute.xlu0 1
        %10380 = vperm.xlu0 %10379, %v8687
        %v10381 = vpop.permute.xlu0 %10380
        %10383 = vset.pattern.permute.xlu0 1
        %10384 = vperm.xlu0 %10383, %v8688
        %v10385 = vpop.permute.xlu0 %10384
        %10387 = vset.pattern.permute.xlu0 1
        %10388 = vperm.xlu0 %10387, %v8689
        %v10389 = vpop.permute.xlu0 %10388
        %10391 = vset.pattern.permute.xlu0 1
        %10392 = vperm.xlu0 %10391, %v8690
        %v10393 = vpop.permute.xlu0 %10392
        %10395 = vset.pattern.permute.xlu0 1
        %10396 = vperm.xlu0 %10395, %v8691
        %v10397 = vpop.permute.xlu0 %10396
        %10399 = vset.pattern.permute.xlu0 1
        %10400 = vperm.xlu0 %10399, %v8692
        %v10401 = vpop.permute.xlu0 %10400
        %10403 = vset.pattern.permute.xlu0 1
        %10404 = vperm.xlu0 %10403, %v8693
        %v10405 = vpop.permute.xlu0 %10404
        %10407 = vset.pattern.permute.xlu0 1
        %10408 = vperm.xlu0 %10407, %v8694
        %v10409 = vpop.permute.xlu0 %10408
        %10411 = vset.pattern.permute.xlu0 1
        %10412 = vperm.xlu0 %10411, %v8695
        %v10413 = vpop.permute.xlu0 %10412
        %10415 = vset.pattern.permute.xlu0 1
        %10416 = vperm.xlu0 %10415, %v8696
        %v10417 = vpop.permute.xlu0 %10416
        %10419 = vset.pattern.permute.xlu0 1
        %10420 = vperm.xlu0 %10419, %v8697
        %v10421 = vpop.permute.xlu0 %10420
        %10423 = vset.pattern.permute.xlu0 1
        %10424 = vperm.xlu0 %10423, %v8698
        %v10425 = vpop.permute.xlu0 %10424
        %v10427 = vmul.f32 %v10365, %v9526
        %v10428 = vmul.f32 %v10369, %v9528
        %v10429 = vmul.f32 %v10373, %v9531
        %v10430 = vmul.f32 %v10377, %v9533
        %v10431 = vmul.f32 %v10381, %v9536
        %v10432 = vmul.f32 %v10385, %v9538
        %v10433 = vmul.f32 %v10389, %v9541
        %v10434 = vmul.f32 %v10393, %v9543
        %v10435 = vmul.f32 %v10397, %v9546
        %v10436 = vmul.f32 %v10401, %v9548
        %v10437 = vmul.f32 %v10405, %v9551
        %v10438 = vmul.f32 %v10409, %v9553
        %v10439 = vmul.f32 %v10413, %v9556
        %v10440 = vmul.f32 %v10417, %v9558
        %v10441 = vmul.f32 %v10421, %v9561
        %v10442 = vmul.f32 %v10425, %v9563
        %v10443 = vadd.f32 %v10347, %v10427
        %v10444 = vadd.f32 %v10348, %v10428
        %v10445 = vadd.f32 %v10349, %v10429
        %v10446 = vadd.f32 %v10350, %v10430
        %v10447 = vadd.f32 %v10351, %v10431
        %v10448 = vadd.f32 %v10352, %v10432
        %v10449 = vadd.f32 %v10353, %v10433
        %v10450 = vadd.f32 %v10354, %v10434
        %v10451 = vadd.f32 %v10355, %v10435
        %v10452 = vadd.f32 %v10356, %v10436
        %v10453 = vadd.f32 %v10357, %v10437
        %v10454 = vadd.f32 %v10358, %v10438
        %v10455 = vadd.f32 %v10359, %v10439
        %v10456 = vadd.f32 %v10360, %v10440
        %v10457 = vadd.f32 %v10361, %v10441
        %v10458 = vadd.f32 %v10362, %v10442
        %10459 = vset.pattern.permute.xlu0 2
        %10460 = vperm.xlu0 %10459, %v8683
        %v10461 = vpop.permute.xlu0 %10460
        %10463 = vset.pattern.permute.xlu0 2
        %10464 = vperm.xlu0 %10463, %v8684
        %v10465 = vpop.permute.xlu0 %10464
        %10467 = vset.pattern.permute.xlu0 2
        %10468 = vperm.xlu0 %10467, %v8685
        %v10469 = vpop.permute.xlu0 %10468
        %10471 = vset.pattern.permute.xlu0 2
        %10472 = vperm.xlu0 %10471, %v8686
        %v10473 = vpop.permute.xlu0 %10472
        %10475 = vset.pattern.permute.xlu0 2
        %10476 = vperm.xlu0 %10475, %v8687
        %v10477 = vpop.permute.xlu0 %10476
        %10479 = vset.pattern.permute.xlu0 2
        %10480 = vperm.xlu0 %10479, %v8688
        %v10481 = vpop.permute.xlu0 %10480
        %10483 = vset.pattern.permute.xlu0 2
        %10484 = vperm.xlu0 %10483, %v8689
        %v10485 = vpop.permute.xlu0 %10484
        %10487 = vset.pattern.permute.xlu0 2
        %10488 = vperm.xlu0 %10487, %v8690
        %v10489 = vpop.permute.xlu0 %10488
        %10491 = vset.pattern.permute.xlu0 2
        %10492 = vperm.xlu0 %10491, %v8691
        %v10493 = vpop.permute.xlu0 %10492
        %10495 = vset.pattern.permute.xlu0 2
        %10496 = vperm.xlu0 %10495, %v8692
        %v10497 = vpop.permute.xlu0 %10496
        %10499 = vset.pattern.permute.xlu0 2
        %10500 = vperm.xlu0 %10499, %v8693
        %v10501 = vpop.permute.xlu0 %10500
        %10503 = vset.pattern.permute.xlu0 2
        %10504 = vperm.xlu0 %10503, %v8694
        %v10505 = vpop.permute.xlu0 %10504
        %10507 = vset.pattern.permute.xlu0 2
        %10508 = vperm.xlu0 %10507, %v8695
        %v10509 = vpop.permute.xlu0 %10508
        %10511 = vset.pattern.permute.xlu0 2
        %10512 = vperm.xlu0 %10511, %v8696
        %v10513 = vpop.permute.xlu0 %10512
        %10515 = vset.pattern.permute.xlu0 2
        %10516 = vperm.xlu0 %10515, %v8697
        %v10517 = vpop.permute.xlu0 %10516
        %10519 = vset.pattern.permute.xlu0 2
        %10520 = vperm.xlu0 %10519, %v8698
        %v10521 = vpop.permute.xlu0 %10520
        %v10523 = vmul.f32 %v10461, %v9575
        %v10524 = vmul.f32 %v10465, %v9577
        %v10525 = vmul.f32 %v10469, %v9580
        %v10526 = vmul.f32 %v10473, %v9582
        %v10527 = vmul.f32 %v10477, %v9585
        %v10528 = vmul.f32 %v10481, %v9587
        %v10529 = vmul.f32 %v10485, %v9590
        %v10530 = vmul.f32 %v10489, %v9592
        %v10531 = vmul.f32 %v10493, %v9595
        %v10532 = vmul.f32 %v10497, %v9597
        %v10533 = vmul.f32 %v10501, %v9600
        %v10534 = vmul.f32 %v10505, %v9602
        %v10535 = vmul.f32 %v10509, %v9605
        %v10536 = vmul.f32 %v10513, %v9607
        %v10537 = vmul.f32 %v10517, %v9610
        %v10538 = vmul.f32 %v10521, %v9612
        %v10539 = vadd.f32 %v10443, %v10523
        %v10540 = vadd.f32 %v10444, %v10524
        %v10541 = vadd.f32 %v10445, %v10525
        %v10542 = vadd.f32 %v10446, %v10526
        %v10543 = vadd.f32 %v10447, %v10527
        %v10544 = vadd.f32 %v10448, %v10528
        %v10545 = vadd.f32 %v10449, %v10529
        %v10546 = vadd.f32 %v10450, %v10530
        %v10547 = vadd.f32 %v10451, %v10531
        %v10548 = vadd.f32 %v10452, %v10532
        %v10549 = vadd.f32 %v10453, %v10533
        %v10550 = vadd.f32 %v10454, %v10534
        %v10551 = vadd.f32 %v10455, %v10535
        %v10552 = vadd.f32 %v10456, %v10536
        %v10553 = vadd.f32 %v10457, %v10537
        %v10554 = vadd.f32 %v10458, %v10538
        %10555 = vset.pattern.permute.xlu0 3
        %10556 = vperm.xlu0 %10555, %v8683
        %v10557 = vpop.permute.xlu0 %10556
        %10559 = vset.pattern.permute.xlu0 3
        %10560 = vperm.xlu0 %10559, %v8684
        %v10561 = vpop.permute.xlu0 %10560
        %10563 = vset.pattern.permute.xlu0 3
        %10564 = vperm.xlu0 %10563, %v8685
        %v10565 = vpop.permute.xlu0 %10564
        %10567 = vset.pattern.permute.xlu0 3
        %10568 = vperm.xlu0 %10567, %v8686
        %v10569 = vpop.permute.xlu0 %10568
        %10571 = vset.pattern.permute.xlu0 3
        %10572 = vperm.xlu0 %10571, %v8687
        %v10573 = vpop.permute.xlu0 %10572
        %10575 = vset.pattern.permute.xlu0 3
        %10576 = vperm.xlu0 %10575, %v8688
        %v10577 = vpop.permute.xlu0 %10576
        %10579 = vset.pattern.permute.xlu0 3
        %10580 = vperm.xlu0 %10579, %v8689
        %v10581 = vpop.permute.xlu0 %10580
        %10583 = vset.pattern.permute.xlu0 3
        %10584 = vperm.xlu0 %10583, %v8690
        %v10585 = vpop.permute.xlu0 %10584
        %10587 = vset.pattern.permute.xlu0 3
        %10588 = vperm.xlu0 %10587, %v8691
        %v10589 = vpop.permute.xlu0 %10588
        %10591 = vset.pattern.permute.xlu0 3
        %10592 = vperm.xlu0 %10591, %v8692
        %v10593 = vpop.permute.xlu0 %10592
        %10595 = vset.pattern.permute.xlu0 3
        %10596 = vperm.xlu0 %10595, %v8693
        %v10597 = vpop.permute.xlu0 %10596
        %10599 = vset.pattern.permute.xlu0 3
        %10600 = vperm.xlu0 %10599, %v8694
        %v10601 = vpop.permute.xlu0 %10600
        %10603 = vset.pattern.permute.xlu0 3
        %10604 = vperm.xlu0 %10603, %v8695
        %v10605 = vpop.permute.xlu0 %10604
        %10607 = vset.pattern.permute.xlu0 3
        %10608 = vperm.xlu0 %10607, %v8696
        %v10609 = vpop.permute.xlu0 %10608
        %10611 = vset.pattern.permute.xlu0 3
        %10612 = vperm.xlu0 %10611, %v8697
        %v10613 = vpop.permute.xlu0 %10612
        %10615 = vset.pattern.permute.xlu0 3
        %10616 = vperm.xlu0 %10615, %v8698
        %v10617 = vpop.permute.xlu0 %10616
        %v10619 = vmul.f32 %v10557, %v9624
        %v10620 = vmul.f32 %v10561, %v9626
        %v10621 = vmul.f32 %v10565, %v9629
        %v10622 = vmul.f32 %v10569, %v9631
        %v10623 = vmul.f32 %v10573, %v9634
        %v10624 = vmul.f32 %v10577, %v9636
        %v10625 = vmul.f32 %v10581, %v9639
        %v10626 = vmul.f32 %v10585, %v9641
        %v10627 = vmul.f32 %v10589, %v9644
        %v10628 = vmul.f32 %v10593, %v9646
        %v10629 = vmul.f32 %v10597, %v9649
        %v10630 = vmul.f32 %v10601, %v9651
        %v10631 = vmul.f32 %v10605, %v9654
        %v10632 = vmul.f32 %v10609, %v9656
        %v10633 = vmul.f32 %v10613, %v9659
        %v10634 = vmul.f32 %v10617, %v9661
        %v10635 = vadd.f32 %v10539, %v10619
        %v10636 = vadd.f32 %v10540, %v10620
        %v10637 = vadd.f32 %v10541, %v10621
        %v10638 = vadd.f32 %v10542, %v10622
        %v10639 = vadd.f32 %v10543, %v10623
        %v10640 = vadd.f32 %v10544, %v10624
        %v10641 = vadd.f32 %v10545, %v10625
        %v10642 = vadd.f32 %v10546, %v10626
        %v10643 = vadd.f32 %v10547, %v10627
        %v10644 = vadd.f32 %v10548, %v10628
        %v10645 = vadd.f32 %v10549, %v10629
        %v10646 = vadd.f32 %v10550, %v10630
        %v10647 = vadd.f32 %v10551, %v10631
        %v10648 = vadd.f32 %v10552, %v10632
        %v10649 = vadd.f32 %v10553, %v10633
        %v10650 = vadd.f32 %v10554, %v10634
        %10651 = vset.pattern.permute.xlu0 4
        %10652 = vperm.xlu0 %10651, %v8683
        %v10653 = vpop.permute.xlu0 %10652
        %10655 = vset.pattern.permute.xlu0 4
        %10656 = vperm.xlu0 %10655, %v8684
        %v10657 = vpop.permute.xlu0 %10656
        %10659 = vset.pattern.permute.xlu0 4
        %10660 = vperm.xlu0 %10659, %v8685
        %v10661 = vpop.permute.xlu0 %10660
        %10663 = vset.pattern.permute.xlu0 4
        %10664 = vperm.xlu0 %10663, %v8686
        %v10665 = vpop.permute.xlu0 %10664
        %10667 = vset.pattern.permute.xlu0 4
        %10668 = vperm.xlu0 %10667, %v8687
        %v10669 = vpop.permute.xlu0 %10668
        %10671 = vset.pattern.permute.xlu0 4
        %10672 = vperm.xlu0 %10671, %v8688
        %v10673 = vpop.permute.xlu0 %10672
        %10675 = vset.pattern.permute.xlu0 4
        %10676 = vperm.xlu0 %10675, %v8689
        %v10677 = vpop.permute.xlu0 %10676
        %10679 = vset.pattern.permute.xlu0 4
        %10680 = vperm.xlu0 %10679, %v8690
        %v10681 = vpop.permute.xlu0 %10680
        %10683 = vset.pattern.permute.xlu0 4
        %10684 = vperm.xlu0 %10683, %v8691
        %v10685 = vpop.permute.xlu0 %10684
        %10687 = vset.pattern.permute.xlu0 4
        %10688 = vperm.xlu0 %10687, %v8692
        %v10689 = vpop.permute.xlu0 %10688
        %10691 = vset.pattern.permute.xlu0 4
        %10692 = vperm.xlu0 %10691, %v8693
        %v10693 = vpop.permute.xlu0 %10692
        %10695 = vset.pattern.permute.xlu0 4
        %10696 = vperm.xlu0 %10695, %v8694
        %v10697 = vpop.permute.xlu0 %10696
        %10699 = vset.pattern.permute.xlu0 4
        %10700 = vperm.xlu0 %10699, %v8695
        %v10701 = vpop.permute.xlu0 %10700
        %10703 = vset.pattern.permute.xlu0 4
        %10704 = vperm.xlu0 %10703, %v8696
        %v10705 = vpop.permute.xlu0 %10704
        %10707 = vset.pattern.permute.xlu0 4
        %10708 = vperm.xlu0 %10707, %v8697
        %v10709 = vpop.permute.xlu0 %10708
        %10711 = vset.pattern.permute.xlu0 4
        %10712 = vperm.xlu0 %10711, %v8698
        %v10713 = vpop.permute.xlu0 %10712
        %v10715 = vmul.f32 %v10653, %v9673
        %v10716 = vmul.f32 %v10657, %v9675
        %v10717 = vmul.f32 %v10661, %v9678
        %v10718 = vmul.f32 %v10665, %v9680
        %v10719 = vmul.f32 %v10669, %v9683
        %v10720 = vmul.f32 %v10673, %v9685
        %v10721 = vmul.f32 %v10677, %v9688
        %v10722 = vmul.f32 %v10681, %v9690
        %v10723 = vmul.f32 %v10685, %v9693
        %v10724 = vmul.f32 %v10689, %v9695
        %v10725 = vmul.f32 %v10693, %v9698
        %v10726 = vmul.f32 %v10697, %v9700
        %v10727 = vmul.f32 %v10701, %v9703
        %v10728 = vmul.f32 %v10705, %v9705
        %v10729 = vmul.f32 %v10709, %v9708
        %v10730 = vmul.f32 %v10713, %v9710
        %v10731 = vadd.f32 %v10635, %v10715
        %v10732 = vadd.f32 %v10636, %v10716
        %v10733 = vadd.f32 %v10637, %v10717
        %v10734 = vadd.f32 %v10638, %v10718
        %v10735 = vadd.f32 %v10639, %v10719
        %v10736 = vadd.f32 %v10640, %v10720
        %v10737 = vadd.f32 %v10641, %v10721
        %v10738 = vadd.f32 %v10642, %v10722
        %v10739 = vadd.f32 %v10643, %v10723
        %v10740 = vadd.f32 %v10644, %v10724
        %v10741 = vadd.f32 %v10645, %v10725
        %v10742 = vadd.f32 %v10646, %v10726
        %v10743 = vadd.f32 %v10647, %v10727
        %v10744 = vadd.f32 %v10648, %v10728
        %v10745 = vadd.f32 %v10649, %v10729
        %v10746 = vadd.f32 %v10650, %v10730
        %10747 = vset.pattern.permute.xlu0 5
        %10748 = vperm.xlu0 %10747, %v8683
        %v10749 = vpop.permute.xlu0 %10748
        %10751 = vset.pattern.permute.xlu0 5
        %10752 = vperm.xlu0 %10751, %v8684
        %v10753 = vpop.permute.xlu0 %10752
        %10755 = vset.pattern.permute.xlu0 5
        %10756 = vperm.xlu0 %10755, %v8685
        %v10757 = vpop.permute.xlu0 %10756
        %10759 = vset.pattern.permute.xlu0 5
        %10760 = vperm.xlu0 %10759, %v8686
        %v10761 = vpop.permute.xlu0 %10760
        %10763 = vset.pattern.permute.xlu0 5
        %10764 = vperm.xlu0 %10763, %v8687
        %v10765 = vpop.permute.xlu0 %10764
        %10767 = vset.pattern.permute.xlu0 5
        %10768 = vperm.xlu0 %10767, %v8688
        %v10769 = vpop.permute.xlu0 %10768
        %10771 = vset.pattern.permute.xlu0 5
        %10772 = vperm.xlu0 %10771, %v8689
        %v10773 = vpop.permute.xlu0 %10772
        %10775 = vset.pattern.permute.xlu0 5
        %10776 = vperm.xlu0 %10775, %v8690
        %v10777 = vpop.permute.xlu0 %10776
        %10779 = vset.pattern.permute.xlu0 5
        %10780 = vperm.xlu0 %10779, %v8691
        %v10781 = vpop.permute.xlu0 %10780
        %10783 = vset.pattern.permute.xlu0 5
        %10784 = vperm.xlu0 %10783, %v8692
        %v10785 = vpop.permute.xlu0 %10784
        %10787 = vset.pattern.permute.xlu0 5
        %10788 = vperm.xlu0 %10787, %v8693
        %v10789 = vpop.permute.xlu0 %10788
        %10791 = vset.pattern.permute.xlu0 5
        %10792 = vperm.xlu0 %10791, %v8694
        %v10793 = vpop.permute.xlu0 %10792
        %10795 = vset.pattern.permute.xlu0 5
        %10796 = vperm.xlu0 %10795, %v8695
        %v10797 = vpop.permute.xlu0 %10796
        %10799 = vset.pattern.permute.xlu0 5
        %10800 = vperm.xlu0 %10799, %v8696
        %v10801 = vpop.permute.xlu0 %10800
        %10803 = vset.pattern.permute.xlu0 5
        %10804 = vperm.xlu0 %10803, %v8697
        %v10805 = vpop.permute.xlu0 %10804
        %10807 = vset.pattern.permute.xlu0 5
        %10808 = vperm.xlu0 %10807, %v8698
        %v10809 = vpop.permute.xlu0 %10808
        %v10811 = vmul.f32 %v10749, %v9722
        %v10812 = vmul.f32 %v10753, %v9724
        %v10813 = vmul.f32 %v10757, %v9727
        %v10814 = vmul.f32 %v10761, %v9729
        %v10815 = vmul.f32 %v10765, %v9732
        %v10816 = vmul.f32 %v10769, %v9734
        %v10817 = vmul.f32 %v10773, %v9737
        %v10818 = vmul.f32 %v10777, %v9739
        %v10819 = vmul.f32 %v10781, %v9742
        %v10820 = vmul.f32 %v10785, %v9744
        %v10821 = vmul.f32 %v10789, %v9747
        %v10822 = vmul.f32 %v10793, %v9749
        %v10823 = vmul.f32 %v10797, %v9752
        %v10824 = vmul.f32 %v10801, %v9754
        %v10825 = vmul.f32 %v10805, %v9757
        %v10826 = vmul.f32 %v10809, %v9759
        %v10827 = vadd.f32 %v10731, %v10811
        %v10828 = vadd.f32 %v10732, %v10812
        %v10829 = vadd.f32 %v10733, %v10813
        %v10830 = vadd.f32 %v10734, %v10814
        %v10831 = vadd.f32 %v10735, %v10815
        %v10832 = vadd.f32 %v10736, %v10816
        %v10833 = vadd.f32 %v10737, %v10817
        %v10834 = vadd.f32 %v10738, %v10818
        %v10835 = vadd.f32 %v10739, %v10819
        %v10836 = vadd.f32 %v10740, %v10820
        %v10837 = vadd.f32 %v10741, %v10821
        %v10838 = vadd.f32 %v10742, %v10822
        %v10839 = vadd.f32 %v10743, %v10823
        %v10840 = vadd.f32 %v10744, %v10824
        %v10841 = vadd.f32 %v10745, %v10825
        %v10842 = vadd.f32 %v10746, %v10826
        %10843 = vset.pattern.permute.xlu0 6
        %10844 = vperm.xlu0 %10843, %v8683
        %v10845 = vpop.permute.xlu0 %10844
        %10847 = vset.pattern.permute.xlu0 6
        %10848 = vperm.xlu0 %10847, %v8684
        %v10849 = vpop.permute.xlu0 %10848
        %10851 = vset.pattern.permute.xlu0 6
        %10852 = vperm.xlu0 %10851, %v8685
        %v10853 = vpop.permute.xlu0 %10852
        %10855 = vset.pattern.permute.xlu0 6
        %10856 = vperm.xlu0 %10855, %v8686
        %v10857 = vpop.permute.xlu0 %10856
        %10859 = vset.pattern.permute.xlu0 6
        %10860 = vperm.xlu0 %10859, %v8687
        %v10861 = vpop.permute.xlu0 %10860
        %10863 = vset.pattern.permute.xlu0 6
        %10864 = vperm.xlu0 %10863, %v8688
        %v10865 = vpop.permute.xlu0 %10864
        %10867 = vset.pattern.permute.xlu0 6
        %10868 = vperm.xlu0 %10867, %v8689
        %v10869 = vpop.permute.xlu0 %10868
        %10871 = vset.pattern.permute.xlu0 6
        %10872 = vperm.xlu0 %10871, %v8690
        %v10873 = vpop.permute.xlu0 %10872
        %10875 = vset.pattern.permute.xlu0 6
        %10876 = vperm.xlu0 %10875, %v8691
        %v10877 = vpop.permute.xlu0 %10876
        %10879 = vset.pattern.permute.xlu0 6
        %10880 = vperm.xlu0 %10879, %v8692
        %v10881 = vpop.permute.xlu0 %10880
        %10883 = vset.pattern.permute.xlu0 6
        %10884 = vperm.xlu0 %10883, %v8693
        %v10885 = vpop.permute.xlu0 %10884
        %10887 = vset.pattern.permute.xlu0 6
        %10888 = vperm.xlu0 %10887, %v8694
        %v10889 = vpop.permute.xlu0 %10888
        %10891 = vset.pattern.permute.xlu0 6
        %10892 = vperm.xlu0 %10891, %v8695
        %v10893 = vpop.permute.xlu0 %10892
        %10895 = vset.pattern.permute.xlu0 6
        %10896 = vperm.xlu0 %10895, %v8696
        %v10897 = vpop.permute.xlu0 %10896
        %10899 = vset.pattern.permute.xlu0 6
        %10900 = vperm.xlu0 %10899, %v8697
        %v10901 = vpop.permute.xlu0 %10900
        %10903 = vset.pattern.permute.xlu0 6
        %10904 = vperm.xlu0 %10903, %v8698
        %v10905 = vpop.permute.xlu0 %10904
        %v10907 = vmul.f32 %v10845, %v9771
        %v10908 = vmul.f32 %v10849, %v9773
        %v10909 = vmul.f32 %v10853, %v9776
        %v10910 = vmul.f32 %v10857, %v9778
        %v10911 = vmul.f32 %v10861, %v9781
        %v10912 = vmul.f32 %v10865, %v9783
        %v10913 = vmul.f32 %v10869, %v9786
        %v10914 = vmul.f32 %v10873, %v9788
        %v10915 = vmul.f32 %v10877, %v9791
        %v10916 = vmul.f32 %v10881, %v9793
        %v10917 = vmul.f32 %v10885, %v9796
        %v10918 = vmul.f32 %v10889, %v9798
        %v10919 = vmul.f32 %v10893, %v9801
        %v10920 = vmul.f32 %v10897, %v9803
        %v10921 = vmul.f32 %v10901, %v9806
        %v10922 = vmul.f32 %v10905, %v9808
        %v10923 = vadd.f32 %v10827, %v10907
        %v10924 = vadd.f32 %v10828, %v10908
        %v10925 = vadd.f32 %v10829, %v10909
        %v10926 = vadd.f32 %v10830, %v10910
        %v10927 = vadd.f32 %v10831, %v10911
        %v10928 = vadd.f32 %v10832, %v10912
        %v10929 = vadd.f32 %v10833, %v10913
        %v10930 = vadd.f32 %v10834, %v10914
        %v10931 = vadd.f32 %v10835, %v10915
        %v10932 = vadd.f32 %v10836, %v10916
        %v10933 = vadd.f32 %v10837, %v10917
        %v10934 = vadd.f32 %v10838, %v10918
        %v10935 = vadd.f32 %v10839, %v10919
        %v10936 = vadd.f32 %v10840, %v10920
        %v10937 = vadd.f32 %v10841, %v10921
        %v10938 = vadd.f32 %v10842, %v10922
        %10939 = vset.pattern.permute.xlu0 7
        %10940 = vperm.xlu0 %10939, %v8683
        %v10941 = vpop.permute.xlu0 %10940
        %10943 = vset.pattern.permute.xlu0 7
        %10944 = vperm.xlu0 %10943, %v8684
        %v10945 = vpop.permute.xlu0 %10944
        %10947 = vset.pattern.permute.xlu0 7
        %10948 = vperm.xlu0 %10947, %v8685
        %v10949 = vpop.permute.xlu0 %10948
        %10951 = vset.pattern.permute.xlu0 7
        %10952 = vperm.xlu0 %10951, %v8686
        %v10953 = vpop.permute.xlu0 %10952
        %10955 = vset.pattern.permute.xlu0 7
        %10956 = vperm.xlu0 %10955, %v8687
        %v10957 = vpop.permute.xlu0 %10956
        %10959 = vset.pattern.permute.xlu0 7
        %10960 = vperm.xlu0 %10959, %v8688
        %v10961 = vpop.permute.xlu0 %10960
        %10963 = vset.pattern.permute.xlu0 7
        %10964 = vperm.xlu0 %10963, %v8689
        %v10965 = vpop.permute.xlu0 %10964
        %10967 = vset.pattern.permute.xlu0 7
        %10968 = vperm.xlu0 %10967, %v8690
        %v10969 = vpop.permute.xlu0 %10968
        %10971 = vset.pattern.permute.xlu0 7
        %10972 = vperm.xlu0 %10971, %v8691
        %v10973 = vpop.permute.xlu0 %10972
        %10975 = vset.pattern.permute.xlu0 7
        %10976 = vperm.xlu0 %10975, %v8692
        %v10977 = vpop.permute.xlu0 %10976
        %10979 = vset.pattern.permute.xlu0 7
        %10980 = vperm.xlu0 %10979, %v8693
        %v10981 = vpop.permute.xlu0 %10980
        %10983 = vset.pattern.permute.xlu0 7
        %10984 = vperm.xlu0 %10983, %v8694
        %v10985 = vpop.permute.xlu0 %10984
        %10987 = vset.pattern.permute.xlu0 7
        %10988 = vperm.xlu0 %10987, %v8695
        %v10989 = vpop.permute.xlu0 %10988
        %10991 = vset.pattern.permute.xlu0 7
        %10992 = vperm.xlu0 %10991, %v8696
        %v10993 = vpop.permute.xlu0 %10992
        %10995 = vset.pattern.permute.xlu0 7
        %10996 = vperm.xlu0 %10995, %v8697
        %v10997 = vpop.permute.xlu0 %10996
        %10999 = vset.pattern.permute.xlu0 7
        %11000 = vperm.xlu0 %10999, %v8698
        %v11001 = vpop.permute.xlu0 %11000
        %v11003 = vmul.f32 %v10941, %v9820
        %v11004 = vmul.f32 %v10945, %v9822
        %v11005 = vmul.f32 %v10949, %v9825
        %v11006 = vmul.f32 %v10953, %v9827
        %v11007 = vmul.f32 %v10957, %v9830
        %v11008 = vmul.f32 %v10961, %v9832
        %v11009 = vmul.f32 %v10965, %v9835
        %v11010 = vmul.f32 %v10969, %v9837
        %v11011 = vmul.f32 %v10973, %v9840
        %v11012 = vmul.f32 %v10977, %v9842
        %v11013 = vmul.f32 %v10981, %v9845
        %v11014 = vmul.f32 %v10985, %v9847
        %v11015 = vmul.f32 %v10989, %v9850
        %v11016 = vmul.f32 %v10993, %v9852
        %v11017 = vmul.f32 %v10997, %v9855
        %v11018 = vmul.f32 %v11001, %v9857
        %v11019 = vadd.f32 %v10923, %v11003
        %v11020 = vadd.f32 %v10924, %v11004
        %v11021 = vadd.f32 %v10925, %v11005
        %v11022 = vadd.f32 %v10926, %v11006
        %v11023 = vadd.f32 %v10927, %v11007
        %v11024 = vadd.f32 %v10928, %v11008
        %v11025 = vadd.f32 %v10929, %v11009
        %v11026 = vadd.f32 %v10930, %v11010
        %v11027 = vadd.f32 %v10931, %v11011
        %v11028 = vadd.f32 %v10932, %v11012
        %v11029 = vadd.f32 %v10933, %v11013
        %v11030 = vadd.f32 %v10934, %v11014
        %v11031 = vadd.f32 %v10935, %v11015
        %v11032 = vadd.f32 %v10936, %v11016
        %v11033 = vadd.f32 %v10937, %v11017
        %v11034 = vadd.f32 %v10938, %v11018
        %11035 = vset.pattern.permute.xlu0 8
        %11036 = vperm.xlu0 %11035, %v8683
        %v11037 = vpop.permute.xlu0 %11036
        %11039 = vset.pattern.permute.xlu0 8
        %11040 = vperm.xlu0 %11039, %v8684
        %v11041 = vpop.permute.xlu0 %11040
        %11043 = vset.pattern.permute.xlu0 8
        %11044 = vperm.xlu0 %11043, %v8685
        %v11045 = vpop.permute.xlu0 %11044
        %11047 = vset.pattern.permute.xlu0 8
        %11048 = vperm.xlu0 %11047, %v8686
        %v11049 = vpop.permute.xlu0 %11048
        %11051 = vset.pattern.permute.xlu0 8
        %11052 = vperm.xlu0 %11051, %v8687
        %v11053 = vpop.permute.xlu0 %11052
        %11055 = vset.pattern.permute.xlu0 8
        %11056 = vperm.xlu0 %11055, %v8688
        %v11057 = vpop.permute.xlu0 %11056
        %11059 = vset.pattern.permute.xlu0 8
        %11060 = vperm.xlu0 %11059, %v8689
        %v11061 = vpop.permute.xlu0 %11060
        %11063 = vset.pattern.permute.xlu0 8
        %11064 = vperm.xlu0 %11063, %v8690
        %v11065 = vpop.permute.xlu0 %11064
        %11067 = vset.pattern.permute.xlu0 8
        %11068 = vperm.xlu0 %11067, %v8691
        %v11069 = vpop.permute.xlu0 %11068
        %11071 = vset.pattern.permute.xlu0 8
        %11072 = vperm.xlu0 %11071, %v8692
        %v11073 = vpop.permute.xlu0 %11072
        %11075 = vset.pattern.permute.xlu0 8
        %11076 = vperm.xlu0 %11075, %v8693
        %v11077 = vpop.permute.xlu0 %11076
        %11079 = vset.pattern.permute.xlu0 8
        %11080 = vperm.xlu0 %11079, %v8694
        %v11081 = vpop.permute.xlu0 %11080
        %11083 = vset.pattern.permute.xlu0 8
        %11084 = vperm.xlu0 %11083, %v8695
        %v11085 = vpop.permute.xlu0 %11084
        %11087 = vset.pattern.permute.xlu0 8
        %11088 = vperm.xlu0 %11087, %v8696
        %v11089 = vpop.permute.xlu0 %11088
        %11091 = vset.pattern.permute.xlu0 8
        %11092 = vperm.xlu0 %11091, %v8697
        %v11093 = vpop.permute.xlu0 %11092
        %11095 = vset.pattern.permute.xlu0 8
        %11096 = vperm.xlu0 %11095, %v8698
        %v11097 = vpop.permute.xlu0 %11096
        %v11099 = vmul.f32 %v11037, %v9869
        %v11100 = vmul.f32 %v11041, %v9871
        %v11101 = vmul.f32 %v11045, %v9874
        %v11102 = vmul.f32 %v11049, %v9876
        %v11103 = vmul.f32 %v11053, %v9879
        %v11104 = vmul.f32 %v11057, %v9881
        %v11105 = vmul.f32 %v11061, %v9884
        %v11106 = vmul.f32 %v11065, %v9886
        %v11107 = vmul.f32 %v11069, %v9889
        %v11108 = vmul.f32 %v11073, %v9891
        %v11109 = vmul.f32 %v11077, %v9894
        %v11110 = vmul.f32 %v11081, %v9896
        %v11111 = vmul.f32 %v11085, %v9899
        %v11112 = vmul.f32 %v11089, %v9901
        %v11113 = vmul.f32 %v11093, %v9904
        %v11114 = vmul.f32 %v11097, %v9906
        %v11115 = vadd.f32 %v11019, %v11099
        %v11116 = vadd.f32 %v11020, %v11100
        %v11117 = vadd.f32 %v11021, %v11101
        %v11118 = vadd.f32 %v11022, %v11102
        %v11119 = vadd.f32 %v11023, %v11103
        %v11120 = vadd.f32 %v11024, %v11104
        %v11121 = vadd.f32 %v11025, %v11105
        %v11122 = vadd.f32 %v11026, %v11106
        %v11123 = vadd.f32 %v11027, %v11107
        %v11124 = vadd.f32 %v11028, %v11108
        %v11125 = vadd.f32 %v11029, %v11109
        %v11126 = vadd.f32 %v11030, %v11110
        %v11127 = vadd.f32 %v11031, %v11111
        %v11128 = vadd.f32 %v11032, %v11112
        %v11129 = vadd.f32 %v11033, %v11113
        %v11130 = vadd.f32 %v11034, %v11114
        %11131 = vset.pattern.permute.xlu0 9
        %11132 = vperm.xlu0 %11131, %v8683
        %v11133 = vpop.permute.xlu0 %11132
        %11135 = vset.pattern.permute.xlu0 9
        %11136 = vperm.xlu0 %11135, %v8684
        %v11137 = vpop.permute.xlu0 %11136
        %11139 = vset.pattern.permute.xlu0 9
        %11140 = vperm.xlu0 %11139, %v8685
        %v11141 = vpop.permute.xlu0 %11140
        %11143 = vset.pattern.permute.xlu0 9
        %11144 = vperm.xlu0 %11143, %v8686
        %v11145 = vpop.permute.xlu0 %11144
        %11147 = vset.pattern.permute.xlu0 9
        %11148 = vperm.xlu0 %11147, %v8687
        %v11149 = vpop.permute.xlu0 %11148
        %11151 = vset.pattern.permute.xlu0 9
        %11152 = vperm.xlu0 %11151, %v8688
        %v11153 = vpop.permute.xlu0 %11152
        %11155 = vset.pattern.permute.xlu0 9
        %11156 = vperm.xlu0 %11155, %v8689
        %v11157 = vpop.permute.xlu0 %11156
        %11159 = vset.pattern.permute.xlu0 9
        %11160 = vperm.xlu0 %11159, %v8690
        %v11161 = vpop.permute.xlu0 %11160
        %11163 = vset.pattern.permute.xlu0 9
        %11164 = vperm.xlu0 %11163, %v8691
        %v11165 = vpop.permute.xlu0 %11164
        %11167 = vset.pattern.permute.xlu0 9
        %11168 = vperm.xlu0 %11167, %v8692
        %v11169 = vpop.permute.xlu0 %11168
        %11171 = vset.pattern.permute.xlu0 9
        %11172 = vperm.xlu0 %11171, %v8693
        %v11173 = vpop.permute.xlu0 %11172
        %11175 = vset.pattern.permute.xlu0 9
        %11176 = vperm.xlu0 %11175, %v8694
        %v11177 = vpop.permute.xlu0 %11176
        %11179 = vset.pattern.permute.xlu0 9
        %11180 = vperm.xlu0 %11179, %v8695
        %v11181 = vpop.permute.xlu0 %11180
        %11183 = vset.pattern.permute.xlu0 9
        %11184 = vperm.xlu0 %11183, %v8696
        %v11185 = vpop.permute.xlu0 %11184
        %11187 = vset.pattern.permute.xlu0 9
        %11188 = vperm.xlu0 %11187, %v8697
        %v11189 = vpop.permute.xlu0 %11188
        %11191 = vset.pattern.permute.xlu0 9
        %11192 = vperm.xlu0 %11191, %v8698
        %v11193 = vpop.permute.xlu0 %11192
        %v11195 = vmul.f32 %v11133, %v9918
        %v11196 = vmul.f32 %v11137, %v9920
        %v11197 = vmul.f32 %v11141, %v9923
        %v11198 = vmul.f32 %v11145, %v9925
        %v11199 = vmul.f32 %v11149, %v9928
        %v11200 = vmul.f32 %v11153, %v9930
        %v11201 = vmul.f32 %v11157, %v9933
        %v11202 = vmul.f32 %v11161, %v9935
        %v11203 = vmul.f32 %v11165, %v9938
        %v11204 = vmul.f32 %v11169, %v9940
        %v11205 = vmul.f32 %v11173, %v9943
        %v11206 = vmul.f32 %v11177, %v9945
        %v11207 = vmul.f32 %v11181, %v9948
        %v11208 = vmul.f32 %v11185, %v9950
        %v11209 = vmul.f32 %v11189, %v9953
        %v11210 = vmul.f32 %v11193, %v9955
        %v11211 = vadd.f32 %v11115, %v11195
        %v11212 = vadd.f32 %v11116, %v11196
        %v11213 = vadd.f32 %v11117, %v11197
        %v11214 = vadd.f32 %v11118, %v11198
        %v11215 = vadd.f32 %v11119, %v11199
        %v11216 = vadd.f32 %v11120, %v11200
        %v11217 = vadd.f32 %v11121, %v11201
        %v11218 = vadd.f32 %v11122, %v11202
        %v11219 = vadd.f32 %v11123, %v11203
        %v11220 = vadd.f32 %v11124, %v11204
        %v11221 = vadd.f32 %v11125, %v11205
        %v11222 = vadd.f32 %v11126, %v11206
        %v11223 = vadd.f32 %v11127, %v11207
        %v11224 = vadd.f32 %v11128, %v11208
        %v11225 = vadd.f32 %v11129, %v11209
        %v11226 = vadd.f32 %v11130, %v11210
        %11227 = vset.pattern.permute.xlu0 10
        %11228 = vperm.xlu0 %11227, %v8683
        %v11229 = vpop.permute.xlu0 %11228
        %11231 = vset.pattern.permute.xlu0 10
        %11232 = vperm.xlu0 %11231, %v8684
        %v11233 = vpop.permute.xlu0 %11232
        %11235 = vset.pattern.permute.xlu0 10
        %11236 = vperm.xlu0 %11235, %v8685
        %v11237 = vpop.permute.xlu0 %11236
        %11239 = vset.pattern.permute.xlu0 10
        %11240 = vperm.xlu0 %11239, %v8686
        %v11241 = vpop.permute.xlu0 %11240
        %11243 = vset.pattern.permute.xlu0 10
        %11244 = vperm.xlu0 %11243, %v8687
        %v11245 = vpop.permute.xlu0 %11244
        %11247 = vset.pattern.permute.xlu0 10
        %11248 = vperm.xlu0 %11247, %v8688
        %v11249 = vpop.permute.xlu0 %11248
        %11251 = vset.pattern.permute.xlu0 10
        %11252 = vperm.xlu0 %11251, %v8689
        %v11253 = vpop.permute.xlu0 %11252
        %11255 = vset.pattern.permute.xlu0 10
        %11256 = vperm.xlu0 %11255, %v8690
        %v11257 = vpop.permute.xlu0 %11256
        %11259 = vset.pattern.permute.xlu0 10
        %11260 = vperm.xlu0 %11259, %v8691
        %v11261 = vpop.permute.xlu0 %11260
        %11263 = vset.pattern.permute.xlu0 10
        %11264 = vperm.xlu0 %11263, %v8692
        %v11265 = vpop.permute.xlu0 %11264
        %11267 = vset.pattern.permute.xlu0 10
        %11268 = vperm.xlu0 %11267, %v8693
        %v11269 = vpop.permute.xlu0 %11268
        %11271 = vset.pattern.permute.xlu0 10
        %11272 = vperm.xlu0 %11271, %v8694
        %v11273 = vpop.permute.xlu0 %11272
        %11275 = vset.pattern.permute.xlu0 10
        %11276 = vperm.xlu0 %11275, %v8695
        %v11277 = vpop.permute.xlu0 %11276
        %11279 = vset.pattern.permute.xlu0 10
        %11280 = vperm.xlu0 %11279, %v8696
        %v11281 = vpop.permute.xlu0 %11280
        %11283 = vset.pattern.permute.xlu0 10
        %11284 = vperm.xlu0 %11283, %v8697
        %v11285 = vpop.permute.xlu0 %11284
        %11287 = vset.pattern.permute.xlu0 10
        %11288 = vperm.xlu0 %11287, %v8698
        %v11289 = vpop.permute.xlu0 %11288
        %v11291 = vmul.f32 %v11229, %v9967
        %v11292 = vmul.f32 %v11233, %v9969
        %v11293 = vmul.f32 %v11237, %v9972
        %v11294 = vmul.f32 %v11241, %v9974
        %v11295 = vmul.f32 %v11245, %v9977
        %v11296 = vmul.f32 %v11249, %v9979
        %v11297 = vmul.f32 %v11253, %v9982
        %v11298 = vmul.f32 %v11257, %v9984
        %v11299 = vmul.f32 %v11261, %v9987
        %v11300 = vmul.f32 %v11265, %v9989
        %v11301 = vmul.f32 %v11269, %v9992
        %v11302 = vmul.f32 %v11273, %v9994
        %v11303 = vmul.f32 %v11277, %v9997
        %v11304 = vmul.f32 %v11281, %v9999
        %v11305 = vmul.f32 %v11285, %v10002
        %v11306 = vmul.f32 %v11289, %v10004
        %v11307 = vadd.f32 %v11211, %v11291
        %v11308 = vadd.f32 %v11212, %v11292
        %v11309 = vadd.f32 %v11213, %v11293
        %v11310 = vadd.f32 %v11214, %v11294
        %v11311 = vadd.f32 %v11215, %v11295
        %v11312 = vadd.f32 %v11216, %v11296
        %v11313 = vadd.f32 %v11217, %v11297
        %v11314 = vadd.f32 %v11218, %v11298
        %v11315 = vadd.f32 %v11219, %v11299
        %v11316 = vadd.f32 %v11220, %v11300
        %v11317 = vadd.f32 %v11221, %v11301
        %v11318 = vadd.f32 %v11222, %v11302
        %v11319 = vadd.f32 %v11223, %v11303
        %v11320 = vadd.f32 %v11224, %v11304
        %v11321 = vadd.f32 %v11225, %v11305
        %v11322 = vadd.f32 %v11226, %v11306
        %11323 = vset.pattern.permute.xlu0 11
        %11324 = vperm.xlu0 %11323, %v8683
        %v11325 = vpop.permute.xlu0 %11324
        %11327 = vset.pattern.permute.xlu0 11
        %11328 = vperm.xlu0 %11327, %v8684
        %v11329 = vpop.permute.xlu0 %11328
        %11331 = vset.pattern.permute.xlu0 11
        %11332 = vperm.xlu0 %11331, %v8685
        %v11333 = vpop.permute.xlu0 %11332
        %11335 = vset.pattern.permute.xlu0 11
        %11336 = vperm.xlu0 %11335, %v8686
        %v11337 = vpop.permute.xlu0 %11336
        %11339 = vset.pattern.permute.xlu0 11
        %11340 = vperm.xlu0 %11339, %v8687
        %v11341 = vpop.permute.xlu0 %11340
        %11343 = vset.pattern.permute.xlu0 11
        %11344 = vperm.xlu0 %11343, %v8688
        %v11345 = vpop.permute.xlu0 %11344
        %11347 = vset.pattern.permute.xlu0 11
        %11348 = vperm.xlu0 %11347, %v8689
        %v11349 = vpop.permute.xlu0 %11348
        %11351 = vset.pattern.permute.xlu0 11
        %11352 = vperm.xlu0 %11351, %v8690
        %v11353 = vpop.permute.xlu0 %11352
        %11355 = vset.pattern.permute.xlu0 11
        %11356 = vperm.xlu0 %11355, %v8691
        %v11357 = vpop.permute.xlu0 %11356
        %11359 = vset.pattern.permute.xlu0 11
        %11360 = vperm.xlu0 %11359, %v8692
        %v11361 = vpop.permute.xlu0 %11360
        %11363 = vset.pattern.permute.xlu0 11
        %11364 = vperm.xlu0 %11363, %v8693
        %v11365 = vpop.permute.xlu0 %11364
        %11367 = vset.pattern.permute.xlu0 11
        %11368 = vperm.xlu0 %11367, %v8694
        %v11369 = vpop.permute.xlu0 %11368
        %11371 = vset.pattern.permute.xlu0 11
        %11372 = vperm.xlu0 %11371, %v8695
        %v11373 = vpop.permute.xlu0 %11372
        %11375 = vset.pattern.permute.xlu0 11
        %11376 = vperm.xlu0 %11375, %v8696
        %v11377 = vpop.permute.xlu0 %11376
        %11379 = vset.pattern.permute.xlu0 11
        %11380 = vperm.xlu0 %11379, %v8697
        %v11381 = vpop.permute.xlu0 %11380
        %11383 = vset.pattern.permute.xlu0 11
        %11384 = vperm.xlu0 %11383, %v8698
        %v11385 = vpop.permute.xlu0 %11384
        %v11387 = vmul.f32 %v11325, %v10016
        %v11388 = vmul.f32 %v11329, %v10018
        %v11389 = vmul.f32 %v11333, %v10021
        %v11390 = vmul.f32 %v11337, %v10023
        %v11391 = vmul.f32 %v11341, %v10026
        %v11392 = vmul.f32 %v11345, %v10028
        %v11393 = vmul.f32 %v11349, %v10031
        %v11394 = vmul.f32 %v11353, %v10033
        %v11395 = vmul.f32 %v11357, %v10036
        %v11396 = vmul.f32 %v11361, %v10038
        %v11397 = vmul.f32 %v11365, %v10041
        %v11398 = vmul.f32 %v11369, %v10043
        %v11399 = vmul.f32 %v11373, %v10046
        %v11400 = vmul.f32 %v11377, %v10048
        %v11401 = vmul.f32 %v11381, %v10051
        %v11402 = vmul.f32 %v11385, %v10053
        %v11403 = vadd.f32 %v11307, %v11387
        %v11404 = vadd.f32 %v11308, %v11388
        %v11405 = vadd.f32 %v11309, %v11389
        %v11406 = vadd.f32 %v11310, %v11390
        %v11407 = vadd.f32 %v11311, %v11391
        %v11408 = vadd.f32 %v11312, %v11392
        %v11409 = vadd.f32 %v11313, %v11393
        %v11410 = vadd.f32 %v11314, %v11394
        %v11411 = vadd.f32 %v11315, %v11395
        %v11412 = vadd.f32 %v11316, %v11396
        %v11413 = vadd.f32 %v11317, %v11397
        %v11414 = vadd.f32 %v11318, %v11398
        %v11415 = vadd.f32 %v11319, %v11399
        %v11416 = vadd.f32 %v11320, %v11400
        %v11417 = vadd.f32 %v11321, %v11401
        %v11418 = vadd.f32 %v11322, %v11402
        %11419 = vset.pattern.permute.xlu0 12
        %11420 = vperm.xlu0 %11419, %v8683
        %v11421 = vpop.permute.xlu0 %11420
        %11423 = vset.pattern.permute.xlu0 12
        %11424 = vperm.xlu0 %11423, %v8684
        %v11425 = vpop.permute.xlu0 %11424
        %11427 = vset.pattern.permute.xlu0 12
        %11428 = vperm.xlu0 %11427, %v8685
        %v11429 = vpop.permute.xlu0 %11428
        %11431 = vset.pattern.permute.xlu0 12
        %11432 = vperm.xlu0 %11431, %v8686
        %v11433 = vpop.permute.xlu0 %11432
        %11435 = vset.pattern.permute.xlu0 12
        %11436 = vperm.xlu0 %11435, %v8687
        %v11437 = vpop.permute.xlu0 %11436
        %11439 = vset.pattern.permute.xlu0 12
        %11440 = vperm.xlu0 %11439, %v8688
        %v11441 = vpop.permute.xlu0 %11440
        %11443 = vset.pattern.permute.xlu0 12
        %11444 = vperm.xlu0 %11443, %v8689
        %v11445 = vpop.permute.xlu0 %11444
        %11447 = vset.pattern.permute.xlu0 12
        %11448 = vperm.xlu0 %11447, %v8690
        %v11449 = vpop.permute.xlu0 %11448
        %11451 = vset.pattern.permute.xlu0 12
        %11452 = vperm.xlu0 %11451, %v8691
        %v11453 = vpop.permute.xlu0 %11452
        %11455 = vset.pattern.permute.xlu0 12
        %11456 = vperm.xlu0 %11455, %v8692
        %v11457 = vpop.permute.xlu0 %11456
        %11459 = vset.pattern.permute.xlu0 12
        %11460 = vperm.xlu0 %11459, %v8693
        %v11461 = vpop.permute.xlu0 %11460
        %11463 = vset.pattern.permute.xlu0 12
        %11464 = vperm.xlu0 %11463, %v8694
        %v11465 = vpop.permute.xlu0 %11464
        %11467 = vset.pattern.permute.xlu0 12
        %11468 = vperm.xlu0 %11467, %v8695
        %v11469 = vpop.permute.xlu0 %11468
        %11471 = vset.pattern.permute.xlu0 12
        %11472 = vperm.xlu0 %11471, %v8696
        %v11473 = vpop.permute.xlu0 %11472
        %11475 = vset.pattern.permute.xlu0 12
        %11476 = vperm.xlu0 %11475, %v8697
        %v11477 = vpop.permute.xlu0 %11476
        %11479 = vset.pattern.permute.xlu0 12
        %11480 = vperm.xlu0 %11479, %v8698
        %v11481 = vpop.permute.xlu0 %11480
        %v11483 = vmul.f32 %v11421, %v10065
        %v11484 = vmul.f32 %v11425, %v10067
        %v11485 = vmul.f32 %v11429, %v10070
        %v11486 = vmul.f32 %v11433, %v10072
        %v11487 = vmul.f32 %v11437, %v10075
        %v11488 = vmul.f32 %v11441, %v10077
        %v11489 = vmul.f32 %v11445, %v10080
        %v11490 = vmul.f32 %v11449, %v10082
        %v11491 = vmul.f32 %v11453, %v10085
        %v11492 = vmul.f32 %v11457, %v10087
        %v11493 = vmul.f32 %v11461, %v10090
        %v11494 = vmul.f32 %v11465, %v10092
        %v11495 = vmul.f32 %v11469, %v10095
        %v11496 = vmul.f32 %v11473, %v10097
        %v11497 = vmul.f32 %v11477, %v10100
        %v11498 = vmul.f32 %v11481, %v10102
        %v11499 = vadd.f32 %v11403, %v11483
        %v11500 = vadd.f32 %v11404, %v11484
        %v11501 = vadd.f32 %v11405, %v11485
        %v11502 = vadd.f32 %v11406, %v11486
        %v11503 = vadd.f32 %v11407, %v11487
        %v11504 = vadd.f32 %v11408, %v11488
        %v11505 = vadd.f32 %v11409, %v11489
        %v11506 = vadd.f32 %v11410, %v11490
        %v11507 = vadd.f32 %v11411, %v11491
        %v11508 = vadd.f32 %v11412, %v11492
        %v11509 = vadd.f32 %v11413, %v11493
        %v11510 = vadd.f32 %v11414, %v11494
        %v11511 = vadd.f32 %v11415, %v11495
        %v11512 = vadd.f32 %v11416, %v11496
        %v11513 = vadd.f32 %v11417, %v11497
        %v11514 = vadd.f32 %v11418, %v11498
        %11515 = vset.pattern.permute.xlu0 13
        %11516 = vperm.xlu0 %11515, %v8683
        %v11517 = vpop.permute.xlu0 %11516
        %11519 = vset.pattern.permute.xlu0 13
        %11520 = vperm.xlu0 %11519, %v8684
        %v11521 = vpop.permute.xlu0 %11520
        %11523 = vset.pattern.permute.xlu0 13
        %11524 = vperm.xlu0 %11523, %v8685
        %v11525 = vpop.permute.xlu0 %11524
        %11527 = vset.pattern.permute.xlu0 13
        %11528 = vperm.xlu0 %11527, %v8686
        %v11529 = vpop.permute.xlu0 %11528
        %11531 = vset.pattern.permute.xlu0 13
        %11532 = vperm.xlu0 %11531, %v8687
        %v11533 = vpop.permute.xlu0 %11532
        %11535 = vset.pattern.permute.xlu0 13
        %11536 = vperm.xlu0 %11535, %v8688
        %v11537 = vpop.permute.xlu0 %11536
        %11539 = vset.pattern.permute.xlu0 13
        %11540 = vperm.xlu0 %11539, %v8689
        %v11541 = vpop.permute.xlu0 %11540
        %11543 = vset.pattern.permute.xlu0 13
        %11544 = vperm.xlu0 %11543, %v8690
        %v11545 = vpop.permute.xlu0 %11544
        %11547 = vset.pattern.permute.xlu0 13
        %11548 = vperm.xlu0 %11547, %v8691
        %v11549 = vpop.permute.xlu0 %11548
        %11551 = vset.pattern.permute.xlu0 13
        %11552 = vperm.xlu0 %11551, %v8692
        %v11553 = vpop.permute.xlu0 %11552
        %11555 = vset.pattern.permute.xlu0 13
        %11556 = vperm.xlu0 %11555, %v8693
        %v11557 = vpop.permute.xlu0 %11556
        %11559 = vset.pattern.permute.xlu0 13
        %11560 = vperm.xlu0 %11559, %v8694
        %v11561 = vpop.permute.xlu0 %11560
        %11563 = vset.pattern.permute.xlu0 13
        %11564 = vperm.xlu0 %11563, %v8695
        %v11565 = vpop.permute.xlu0 %11564
        %11567 = vset.pattern.permute.xlu0 13
        %11568 = vperm.xlu0 %11567, %v8696
        %v11569 = vpop.permute.xlu0 %11568
        %11571 = vset.pattern.permute.xlu0 13
        %11572 = vperm.xlu0 %11571, %v8697
        %v11573 = vpop.permute.xlu0 %11572
        %11575 = vset.pattern.permute.xlu0 13
        %11576 = vperm.xlu0 %11575, %v8698
        %v11577 = vpop.permute.xlu0 %11576
        %v11579 = vmul.f32 %v11517, %v10114
        %v11580 = vmul.f32 %v11521, %v10116
        %v11581 = vmul.f32 %v11525, %v10119
        %v11582 = vmul.f32 %v11529, %v10121
        %v11583 = vmul.f32 %v11533, %v10124
        %v11584 = vmul.f32 %v11537, %v10126
        %v11585 = vmul.f32 %v11541, %v10129
        %v11586 = vmul.f32 %v11545, %v10131
        %v11587 = vmul.f32 %v11549, %v10134
        %v11588 = vmul.f32 %v11553, %v10136
        %v11589 = vmul.f32 %v11557, %v10139
        %v11590 = vmul.f32 %v11561, %v10141
        %v11591 = vmul.f32 %v11565, %v10144
        %v11592 = vmul.f32 %v11569, %v10146
        %v11593 = vmul.f32 %v11573, %v10149
        %v11594 = vmul.f32 %v11577, %v10151
        %v11595 = vadd.f32 %v11499, %v11579
        %v11596 = vadd.f32 %v11500, %v11580
        %v11597 = vadd.f32 %v11501, %v11581
        %v11598 = vadd.f32 %v11502, %v11582
        %v11599 = vadd.f32 %v11503, %v11583
        %v11600 = vadd.f32 %v11504, %v11584
        %v11601 = vadd.f32 %v11505, %v11585
        %v11602 = vadd.f32 %v11506, %v11586
        %v11603 = vadd.f32 %v11507, %v11587
        %v11604 = vadd.f32 %v11508, %v11588
        %v11605 = vadd.f32 %v11509, %v11589
        %v11606 = vadd.f32 %v11510, %v11590
        %v11607 = vadd.f32 %v11511, %v11591
        %v11608 = vadd.f32 %v11512, %v11592
        %v11609 = vadd.f32 %v11513, %v11593
        %v11610 = vadd.f32 %v11514, %v11594
        %11611 = vset.pattern.permute.xlu0 14
        %11612 = vperm.xlu0 %11611, %v8683
        %v11613 = vpop.permute.xlu0 %11612
        %11615 = vset.pattern.permute.xlu0 14
        %11616 = vperm.xlu0 %11615, %v8684
        %v11617 = vpop.permute.xlu0 %11616
        %11619 = vset.pattern.permute.xlu0 14
        %11620 = vperm.xlu0 %11619, %v8685
        %v11621 = vpop.permute.xlu0 %11620
        %11623 = vset.pattern.permute.xlu0 14
        %11624 = vperm.xlu0 %11623, %v8686
        %v11625 = vpop.permute.xlu0 %11624
        %11627 = vset.pattern.permute.xlu0 14
        %11628 = vperm.xlu0 %11627, %v8687
        %v11629 = vpop.permute.xlu0 %11628
        %11631 = vset.pattern.permute.xlu0 14
        %11632 = vperm.xlu0 %11631, %v8688
        %v11633 = vpop.permute.xlu0 %11632
        %11635 = vset.pattern.permute.xlu0 14
        %11636 = vperm.xlu0 %11635, %v8689
        %v11637 = vpop.permute.xlu0 %11636
        %11639 = vset.pattern.permute.xlu0 14
        %11640 = vperm.xlu0 %11639, %v8690
        %v11641 = vpop.permute.xlu0 %11640
        %11643 = vset.pattern.permute.xlu0 14
        %11644 = vperm.xlu0 %11643, %v8691
        %v11645 = vpop.permute.xlu0 %11644
        %11647 = vset.pattern.permute.xlu0 14
        %11648 = vperm.xlu0 %11647, %v8692
        %v11649 = vpop.permute.xlu0 %11648
        %11651 = vset.pattern.permute.xlu0 14
        %11652 = vperm.xlu0 %11651, %v8693
        %v11653 = vpop.permute.xlu0 %11652
        %11655 = vset.pattern.permute.xlu0 14
        %11656 = vperm.xlu0 %11655, %v8694
        %v11657 = vpop.permute.xlu0 %11656
        %11659 = vset.pattern.permute.xlu0 14
        %11660 = vperm.xlu0 %11659, %v8695
        %v11661 = vpop.permute.xlu0 %11660
        %11663 = vset.pattern.permute.xlu0 14
        %11664 = vperm.xlu0 %11663, %v8696
        %v11665 = vpop.permute.xlu0 %11664
        %11667 = vset.pattern.permute.xlu0 14
        %11668 = vperm.xlu0 %11667, %v8697
        %v11669 = vpop.permute.xlu0 %11668
        %11671 = vset.pattern.permute.xlu0 14
        %11672 = vperm.xlu0 %11671, %v8698
        %v11673 = vpop.permute.xlu0 %11672
        %v11675 = vmul.f32 %v11613, %v10163
        %v11676 = vmul.f32 %v11617, %v10165
        %v11677 = vmul.f32 %v11621, %v10168
        %v11678 = vmul.f32 %v11625, %v10170
        %v11679 = vmul.f32 %v11629, %v10173
        %v11680 = vmul.f32 %v11633, %v10175
        %v11681 = vmul.f32 %v11637, %v10178
        %v11682 = vmul.f32 %v11641, %v10180
        %v11683 = vmul.f32 %v11645, %v10183
        %v11684 = vmul.f32 %v11649, %v10185
        %v11685 = vmul.f32 %v11653, %v10188
        %v11686 = vmul.f32 %v11657, %v10190
        %v11687 = vmul.f32 %v11661, %v10193
        %v11688 = vmul.f32 %v11665, %v10195
        %v11689 = vmul.f32 %v11669, %v10198
        %v11690 = vmul.f32 %v11673, %v10200
        %v11691 = vadd.f32 %v11595, %v11675
        %v11692 = vadd.f32 %v11596, %v11676
        %v11693 = vadd.f32 %v11597, %v11677
        %v11694 = vadd.f32 %v11598, %v11678
        %v11695 = vadd.f32 %v11599, %v11679
        %v11696 = vadd.f32 %v11600, %v11680
        %v11697 = vadd.f32 %v11601, %v11681
        %v11698 = vadd.f32 %v11602, %v11682
        %v11699 = vadd.f32 %v11603, %v11683
        %v11700 = vadd.f32 %v11604, %v11684
        %v11701 = vadd.f32 %v11605, %v11685
        %v11702 = vadd.f32 %v11606, %v11686
        %v11703 = vadd.f32 %v11607, %v11687
        %v11704 = vadd.f32 %v11608, %v11688
        %v11705 = vadd.f32 %v11609, %v11689
        %v11706 = vadd.f32 %v11610, %v11690
        %11707 = vset.pattern.permute.xlu0 15
        %11708 = vperm.xlu0 %11707, %v8683
        %v11709 = vpop.permute.xlu0 %11708
        %11711 = vset.pattern.permute.xlu0 15
        %11712 = vperm.xlu0 %11711, %v8684
        %v11713 = vpop.permute.xlu0 %11712
        %11715 = vset.pattern.permute.xlu0 15
        %11716 = vperm.xlu0 %11715, %v8685
        %v11717 = vpop.permute.xlu0 %11716
        %11719 = vset.pattern.permute.xlu0 15
        %11720 = vperm.xlu0 %11719, %v8686
        %v11721 = vpop.permute.xlu0 %11720
        %11723 = vset.pattern.permute.xlu0 15
        %11724 = vperm.xlu0 %11723, %v8687
        %v11725 = vpop.permute.xlu0 %11724
        %11727 = vset.pattern.permute.xlu0 15
        %11728 = vperm.xlu0 %11727, %v8688
        %v11729 = vpop.permute.xlu0 %11728
        %11731 = vset.pattern.permute.xlu0 15
        %11732 = vperm.xlu0 %11731, %v8689
        %v11733 = vpop.permute.xlu0 %11732
        %11735 = vset.pattern.permute.xlu0 15
        %11736 = vperm.xlu0 %11735, %v8690
        %v11737 = vpop.permute.xlu0 %11736
        %11739 = vset.pattern.permute.xlu0 15
        %11740 = vperm.xlu0 %11739, %v8691
        %v11741 = vpop.permute.xlu0 %11740
        %11743 = vset.pattern.permute.xlu0 15
        %11744 = vperm.xlu0 %11743, %v8692
        %v11745 = vpop.permute.xlu0 %11744
        %11747 = vset.pattern.permute.xlu0 15
        %11748 = vperm.xlu0 %11747, %v8693
        %v11749 = vpop.permute.xlu0 %11748
        %11751 = vset.pattern.permute.xlu0 15
        %11752 = vperm.xlu0 %11751, %v8694
        %v11753 = vpop.permute.xlu0 %11752
        %11755 = vset.pattern.permute.xlu0 15
        %11756 = vperm.xlu0 %11755, %v8695
        %v11757 = vpop.permute.xlu0 %11756
        %11759 = vset.pattern.permute.xlu0 15
        %11760 = vperm.xlu0 %11759, %v8696
        %v11761 = vpop.permute.xlu0 %11760
        %11763 = vset.pattern.permute.xlu0 15
        %11764 = vperm.xlu0 %11763, %v8697
        %v11765 = vpop.permute.xlu0 %11764
        %11767 = vset.pattern.permute.xlu0 15
        %11768 = vperm.xlu0 %11767, %v8698
        %v11769 = vpop.permute.xlu0 %11768
        %v11771 = vmul.f32 %v11709, %v10212
        %v11772 = vmul.f32 %v11713, %v10214
        %v11773 = vmul.f32 %v11717, %v10217
        %v11774 = vmul.f32 %v11721, %v10219
        %v11775 = vmul.f32 %v11725, %v10222
        %v11776 = vmul.f32 %v11729, %v10224
        %v11777 = vmul.f32 %v11733, %v10227
        %v11778 = vmul.f32 %v11737, %v10229
        %v11779 = vmul.f32 %v11741, %v10232
        %v11780 = vmul.f32 %v11745, %v10234
        %v11781 = vmul.f32 %v11749, %v10237
        %v11782 = vmul.f32 %v11753, %v10239
        %v11783 = vmul.f32 %v11757, %v10242
        %v11784 = vmul.f32 %v11761, %v10244
        %v11785 = vmul.f32 %v11765, %v10247
        %v11786 = vmul.f32 %v11769, %v10249
        %v11787 = vadd.f32 %v11691, %v11771
        %v11788 = vadd.f32 %v11692, %v11772
        %v11789 = vadd.f32 %v11693, %v11773
        %v11790 = vadd.f32 %v11694, %v11774
        %v11791 = vadd.f32 %v11695, %v11775
        %v11792 = vadd.f32 %v11696, %v11776
        %v11793 = vadd.f32 %v11697, %v11777
        %v11794 = vadd.f32 %v11698, %v11778
        %v11795 = vadd.f32 %v11699, %v11779
        %v11796 = vadd.f32 %v11700, %v11780
        %v11797 = vadd.f32 %v11701, %v11781
        %v11798 = vadd.f32 %v11702, %v11782
        %v11799 = vadd.f32 %v11703, %v11783
        %v11800 = vadd.f32 %v11704, %v11784
        %v11801 = vadd.f32 %v11705, %v11785
        %v11802 = vadd.f32 %v11706, %v11786
        %v11803 = vld [vmem:[%s9] sm:$0x1]
        %v11805 = vperm.slane %v11803, 0
        %v11807 = vadd.f32 %v8454, %v11805
        %v11808 = vadd.f32 %v8455, %v11805
        %v11809 = vadd.f32 %v8456, %v11805
        %v11810 = vadd.f32 %v8457, %v11805
        %v11811 = vadd.f32 %v8458, %v11805
        %v11812 = vadd.f32 %v8459, %v11805
        %v11813 = vadd.f32 %v8460, %v11805
        %v11814 = vadd.f32 %v8461, %v11805
        %v11815 = vadd.f32 %v8462, %v11805
        %v11816 = vadd.f32 %v8463, %v11805
        %v11817 = vadd.f32 %v8464, %v11805
        %v11818 = vadd.f32 %v8465, %v11805
        %v11819 = vadd.f32 %v8466, %v11805
        %v11820 = vadd.f32 %v8467, %v11805
        %v11821 = vadd.f32 %v8468, %v11805
        %v11822 = vadd.f32 %v8469, %v11805
        %v11823 = vadd.f32 %v11807, %v11787
        %v11824 = vadd.f32 %v11808, %v11788
        %v11825 = vadd.f32 %v11809, %v11789
        %v11826 = vadd.f32 %v11810, %v11790
        %v11827 = vadd.f32 %v11811, %v11791
        %v11828 = vadd.f32 %v11812, %v11792
        %v11829 = vadd.f32 %v11813, %v11793
        %v11830 = vadd.f32 %v11814, %v11794
        %v11831 = vadd.f32 %v11815, %v11795
        %v11832 = vadd.f32 %v11816, %v11796
        %v11833 = vadd.f32 %v11817, %v11797
        %v11834 = vadd.f32 %v11818, %v11798
        %v11835 = vadd.f32 %v11819, %v11799
        %v11836 = vadd.f32 %v11820, %v11800
        %v11837 = vadd.f32 %v11821, %v11801
        %v11838 = vadd.f32 %v11822, %v11802
        %11839 = vst [vmem:[%s10] sm:$0xff] %v11823
        %11840 = vst [vmem:[%s10 + $0x8] sm:$0xff] %v11824
        %11841 = vst [vmem:[%s10 + $0x10] sm:$0xff] %v11825
        %11842 = vst [vmem:[%s10 + $0x18] sm:$0xff] %v11826
        %11843 = vst [vmem:[%s10 + $0x20] sm:$0xff] %v11827
        %11844 = vst [vmem:[%s10 + $0x28] sm:$0xff] %v11828
        %11845 = vst [vmem:[%s10 + $0x30] sm:$0xff] %v11829
        %11846 = vst [vmem:[%s10 + $0x38] sm:$0xff] %v11830
        %11847 = vst [vmem:[%s10 + $0x40] sm:$0xff] %v11831
        %11848 = vst [vmem:[%s10 + $0x48] sm:$0xff] %v11832
        %11849 = vst [vmem:[%s10 + $0x50] sm:$0xff] %v11833
        %11850 = vst [vmem:[%s10 + $0x58] sm:$0xff] %v11834
        %11851 = vst [vmem:[%s10 + $0x60] sm:$0xff] %v11835
        %11852 = vst [vmem:[%s10 + $0x68] sm:$0xff] %v11836
        %11853 = vst [vmem:[%s10 + $0x70] sm:$0xff] %v11837
        %11854 = vst [vmem:[%s10 + $0x78] sm:$0xff] %v11838
      $region76: #{gnn_layer_forward.1} parent=59 // pred_fallthru
        _
      // Predicated region
      $region77: #{gnn_layer_forward.1} parent=59 // pred_check
        %p11855 = pneg %p281
      $region78: #{gnn_layer_forward.1} parent=59 // pred_check_branch
        %11857 = sbr.rel (%p11855) target = $region80
      $region79: #{gnn_layer_forward.1} parent=59 // pred_region
        _
      $region80: #{gnn_layer_forward.1} parent=59 // pred_fallthru
        _
      // Predicated region
      $region81: #{gnn_layer_forward.1} parent=59 // pred_check
        %p11858 = pneg %p281
      $region82: #{gnn_layer_forward.1} parent=59 // pred_check_branch
        %11860 = sbr.rel (%p11858) target = $region84
      $region83: #{gnn_layer_forward.1} parent=59 // pred_region
        _
      $region84: #{gnn_layer_forward.1} parent=59 // pred_fallthru
        _
    $region60: #{gnn_layer_forward.1} parent=5 // pred_fallthru
      _
    %p11861 = scmp.le.s32.totalorder 2, %s16
    // Predicated region
    $region85: #{gnn_layer_forward.1} parent=5 // pred_check
      %p11862 = pneg %p11861
    $region86: #{gnn_layer_forward.1} parent=5 // pred_check_branch
      %11864 = sbr.rel (%p11862) target = $region88
    $region87: #{gnn_layer_forward.1} parent=5 // pred_region
      %s11865 = ssub.s32 %s16, 2
    $region88: #{gnn_layer_forward.1} parent=5 // pred_fallthru
      _
  $region6: #{gnn_layer_forward.1} parent=0 // loop_footer
    %s20 = sadd.s32 1, %s16
  $region7: #{gnn_layer_forward.1} parent=0 // loop_footer_branch
    %15 = sbr.rel target = $region3
  $region8: #{gnn_layer_forward.1} parent=0 // loop_exit
    _

</llo_original>
